<compile_context>
chip_gen: v7x
topology: tpu7x:2x2x1
jax: 0.10.0
libtpu: 0.0.40
codegen_flags: <defaults>
</compile_context>

<pallas_src>
import jax
import jax.numpy as jnp
from jax import lax
from jax.experimental import pallas as pl
from jax.experimental.pallas import tpu as pltpu

LANE = 128                       # MXU / lane width
SUB = 16                         # bf16 sublane packing
VMEM_LIMIT = 32 * 1024 * 1024    # scoped VMEM budget (safe on v5e/v6e/v7x)


def _round_up(x, m):
    return ((x + m - 1) // m) * m


def _tile_rows(m, max_tile=1024, min_steps=2):
    """Row tile (multiple of 16, <= max_tile) + padded row count, aiming for
    >= min_steps grid steps so a v7x chip can use both TensorCores."""
    target = max(SUB, -(-m // min_steps))
    t = min(max_tile, _round_up(target, SUB))
    return t, _round_up(m, t)


def _tile_batch(b, max_tile=128):
    """Batch tile + padded batch.  Small batches run as one full block
    (padded to >= 8 rows for the MXU); batches that split cleanly into two
    16-aligned tiles are split for v7x's two TensorCores."""
    bp = max(_round_up(b, 8), 8)
    if bp <= max_tile:
        if bp >= 32 and bp % 32 == 0:
            return bp // 2, bp
        return bp, bp
    bp = _round_up(b, SUB)
    t = (max_tile // SUB) * SUB
    while t > SUB and bp % t:
        t -= SUB
    return t, bp


# ---------------------------------------------------------------------------
# JAX-side im2col: for each position of the 2x2/stride-2 pool window, the
# patch matrix of the valid 5x5 conv, columns ordered (i, j, c), K padded
# only to a multiple of 16 (not 128).
def _pool_quads(y, kh, kw, k_pad):
    B, H, W, C = y.shape
    OH, OW = H - kh + 1, W - kw + 1
    PH, PW = OH // 2, OW // 2
    k_raw = kh * kw * C
    quads = []
    for di in (0, 1):
        for dj in (0, 1):
            cols = [y[:, di + i: di + i + 2 * PH:2,
                      dj + j: dj + j + 2 * PW:2, :]
                    for i in range(kh) for j in range(kw)]
            q = jnp.concatenate(cols, axis=-1)               # (B, PH, PW, K)
            q = jnp.pad(q, ((0, 0), (0, 0), (0, 0), (0, k_pad - k_raw)))
            quads.append(q.reshape(B, PH * PW, k_pad))
    return quads, (PH, PW)


# ---------------------------------------------------------------------------
# Kernel 1: conv1 as fused matmul + streaming 2x2 pool-max + bias + ReLU.
def _conv_pool_kernel(a0, a1, a2, a3, w_ref, b_ref, o_ref):
    w = w_ref[...]                                            # (K, 128) bf16
    m = jnp.dot(a0[...], w, preferred_element_type=jnp.float32)
    m = jnp.maximum(m, jnp.dot(a1[...], w, preferred_element_type=jnp.float32))
    m = jnp.maximum(m, jnp.dot(a2[...], w, preferred_element_type=jnp.float32))
    m = jnp.maximum(m, jnp.dot(a3[...], w, preferred_element_type=jnp.float32))
    y = jnp.maximum(m + b_ref[...], 0.0)      # bias + ReLU once (monotone max)
    o_ref[...] = y[:, :o_ref.shape[-1]].astype(o_ref.dtype)   # real channels


def conv_relu_pool(x_nhwc, w_mat, b_mat, kh, kw, out_c, *, max_tile_m=1024):
    """Valid conv (stride 1) + bias + ReLU + 2x2/2 max pool.
    Returns (B, PH, PW, out_c) bf16 with only the real channels stored."""
    B = x_nhwc.shape[0]
    k_pad = w_mat.shape[0]
    quads, (PH, PW) = _pool_quads(x_nhwc, kh, kw, k_pad)
    M = B * PH * PW
    tm, Mp = _tile_rows(M, max_tile_m)

    def flat(q):
        q = q.reshape(M, k_pad)
        return jnp.pad(q, ((0, Mp - M), (0, 0))) if Mp > M else q

    quads = [flat(q) for q in quads]
    a_spec = pl.BlockSpec((tm, k_pad), lambda i: (i, 0))
    out = pl.pallas_call(
        _conv_pool_kernel,
        out_shape=jax.ShapeDtypeStruct((Mp, out_c), jnp.bfloat16),
        grid=(Mp // tm,),
        in_specs=[a_spec, a_spec, a_spec, a_spec,
                  pl.BlockSpec((k_pad, LANE), lambda i: (0, 0)),   # resident W
                  pl.BlockSpec((1, LANE), lambda i: (0, 0))],      # resident b
        out_specs=pl.BlockSpec((tm, out_c), lambda i: (i, 0)),
        compiler_params=pltpu.CompilerParams(
            dimension_semantics=("parallel",),
            vmem_limit_bytes=VMEM_LIMIT),
    )(*quads, w_mat, b_mat)
    return out[:M].reshape(B, PH, PW, out_c)


# ---------------------------------------------------------------------------
# Kernel 2: conv2 (matmul + pool-max + bias + ReLU) fused with fc1/fc2/fc3.
# The pooled conv2 activations feed fc1 position-by-position, so nothing
# between conv2's im2col input and the logits ever leaves VMEM.
def _conv2_fc_kernel(a0, a1, a2, a3, wc_ref, bc_ref, w1_ref, b1_ref,
                     w2_ref, b2_ref, w3_ref, b3_ref, o_ref):
    wc = wc_ref[...]                                  # (K2, 128) bf16
    bc = bc_ref[...]                                  # (1, 128) f32
    n_pos = a0.shape[0]                               # 25 pooled positions
    tb = o_ref.shape[0]
    h1 = jnp.zeros((tb, LANE), jnp.float32)
    for p in range(n_pos):                            # static unroll (25)
        m = jnp.dot(a0[p], wc, preferred_element_type=jnp.float32)
        m = jnp.maximum(m, jnp.dot(a1[p], wc, preferred_element_type=jnp.float32))
        m = jnp.maximum(m, jnp.dot(a2[p], wc, preferred_element_type=jnp.float32))
        m = jnp.maximum(m, jnp.dot(a3[p], wc, preferred_element_type=jnp.float32))
        pooled = jnp.maximum(m + bc, 0.0).astype(jnp.bfloat16)  # (tb, 128)
        # fc1 consumes this spatial position directly: h1 += pooled @ W1[p].
        # pooled cols 16..127 are exact zeros (zero weight cols, zero bias,
        # ReLU) and W1[p] rows 16..127 are zero -> padding is inert.
        h1 = h1 + jnp.dot(pooled, w1_ref[p], preferred_element_type=jnp.float32)
    h1 = jnp.maximum(h1 + b1_ref[...], 0.0).astype(jnp.bfloat16)
    h2 = jnp.dot(h1, w2_ref[...], preferred_element_type=jnp.float32)
    h2 = jnp.maximum(h2 + b2_ref[...], 0.0).astype(jnp.bfloat16)
    out = jnp.dot(h2, w3_ref[...], preferred_element_type=jnp.float32) + b3_ref[...]
    o_ref[...] = out.astype(o_ref.dtype)


def conv2_fc_stack(y1, wc, bc, kh, kw, w1, b1, w2, b2, w3, b3, n_cls,
                   *, max_tile_b=128):
    B = y1.shape[0]
    k_pad = wc.shape[0]
    quads, (PH, PW) = _pool_quads(y1, kh, kw, k_pad)   # each (B, 25, K2)
    P = PH * PW
    tb, Bp = _tile_batch(B, max_tile_b)

    def arrange(q):                                    # position-major layout
        q = jnp.transpose(q, (1, 0, 2))                # (25, B, K2)
        return jnp.pad(q, ((0, 0), (0, Bp - B), (0, 0))) if Bp > B else q

    quads = [arrange(q) for q in quads]
    a_spec = pl.BlockSpec((P, tb, k_pad), lambda i: (0, i, 0))

    def res(shape):                                    # resident (revisited)
        return pl.BlockSpec(shape, lambda i: tuple(0 for _ in shape))

    out = pl.pallas_call(
        _conv2_fc_kernel,
        out_shape=jax.ShapeDtypeStruct((Bp, LANE), jnp.float32),
        grid=(Bp // tb,),
        in_specs=[a_spec, a_spec, a_spec, a_spec,
                  res((k_pad, LANE)), res((1, LANE)),
                  res((P, LANE, LANE)), res((1, LANE)),
                  res((LANE, LANE)), res((1, LANE)),
                  res((LANE, LANE)), res((1, LANE))],
        out_specs=pl.BlockSpec((tb, LANE), lambda i: (i, 0)),
        compiler_params=pltpu.CompilerParams(
            dimension_semantics=("parallel",),
            vmem_limit_bytes=VMEM_LIMIT),
    )(*quads, wc, bc, w1, b1, w2, b2, w3, b3)
    return out[:B, :n_cls]


# ---------------------------------------------------------------------------
# Parameter prep: PyTorch layouts -> bf16, lane-padded matmul operands.
def _prep_conv(w, b):
    """Conv weight (OC, IC, kh, kw) -> bf16 (K_pad, 128), rows ordered
    (i, j, c) to match the im2col columns; bias -> f32 (1, 128)."""
    oc, ic, kh, kw = w.shape
    k_raw = kh * kw * ic
    k_pad = _round_up(k_raw, SUB)
    wm = jnp.transpose(w, (2, 3, 1, 0)).reshape(k_raw, oc)
    wm = jnp.pad(wm, ((0, k_pad - k_raw), (0, LANE - oc))).astype(jnp.bfloat16)
    bm = jnp.pad(b, (0, LANE - oc)).astype(jnp.float32).reshape(1, LANE)
    return wm, bm, kh, kw


def _prep_fc1(w, b, c_in, ph, pw):
    """fc1 (OC, c_in*ph*pw) with torch (c, h, w) feature order -> bf16
    (ph*pw, 128, 128): one (C_pad -> OC_pad) matrix per pooled position."""
    oc = w.shape[0]
    w3 = w.reshape(oc, c_in, ph * pw)                 # [o, c, p], p = h*pw + w
    w3 = jnp.transpose(w3, (2, 1, 0))                 # [p, c, o]
    w3 = jnp.pad(w3, ((0, 0), (0, LANE - c_in), (0, LANE - oc)))
    bm = jnp.pad(b, (0, LANE - oc)).astype(jnp.float32).reshape(1, LANE)
    return w3.astype(jnp.bfloat16), bm


def _prep_fc(w, b):
    """Dense (OC, IC) -> bf16 (128, 128) zero-padded, bias -> f32 (1, 128)."""
    oc, ic = w.shape
    wm = jnp.pad(w.T, ((0, LANE - ic), (0, LANE - oc))).astype(jnp.bfloat16)
    bm = jnp.pad(b, (0, LANE - oc)).astype(jnp.float32).reshape(1, LANE)
    return wm, bm


# ---------------------------------------------------------------------------
def tennet_forward(params, x):
    """TenNet forward.  x: (B, 1, 32, 32) NCHW f32 -> logits (B, 10) f32."""
    c1w, c1b, kh1, kw1 = _prep_conv(params["conv1_w"], params["conv1_b"])
    c2w, c2b, kh2, kw2 = _prep_conv(params["conv2_w"], params["conv2_b"])
    f1w, f1b = _prep_fc1(params["fc1_w"], params["fc1_b"],
                         c_in=params["conv2_w"].shape[0], ph=5, pw=5)
    f2w, f2b = _prep_fc(params["fc2_w"], params["fc2_b"])
    f3w, f3b = _prep_fc(params["fc3_w"], params["fc3_b"])

    x = jnp.transpose(x, (0, 2, 3, 1)).astype(jnp.bfloat16)      # NHWC bf16
    y1 = conv_relu_pool(x, c1w, c1b, kh1, kw1,
                        out_c=params["conv1_w"].shape[0])        # (B,14,14,6)
    logits = conv2_fc_stack(y1, c2w, c2b, kh2, kw2,
                            f1w, f1b, f2w, f2b, f3w, f3b,
                            n_cls=params["fc3_w"].shape[0])      # (B, 10)
    # F.dropout(p=0) is the identity, so nothing to do.
    return logits


# ---------------------------------------------------------------------------
def init_params(key):
    """Deterministic PyTorch-style U(-1/sqrt(fan_in), +1/sqrt(fan_in)) init."""
    def uniform(k, shape, fan_in):
        bound = 1.0 / jnp.sqrt(jnp.float32(fan_in))
        return jax.random.uniform(k, shape, jnp.float32, -bound, bound)

    ks = jax.random.split(key, 10)
    return {
        "conv1_w": uniform(ks[0], (6, 1, 5, 5), 1 * 5 * 5),
        "conv1_b": uniform(ks[1], (6,), 1 * 5 * 5),
        "conv2_w": uniform(ks[2], (16, 6, 5, 5), 6 * 5 * 5),
        "conv2_b": uniform(ks[3], (16,), 6 * 5 * 5),
        "fc1_w": uniform(ks[4], (120, 400), 400),
        "fc1_b": uniform(ks[5], (120,), 400),
        "fc2_w": uniform(ks[6], (84, 120), 120),
        "fc2_b": uniform(ks[7], (84,), 120),
        "fc3_w": uniform(ks[8], (10, 84), 84),
        "fc3_b": uniform(ks[9], (10,), 84),
    }


def tennet_reference(params, x):
    """Plain-JAX f32 reference (XLA conv / reduce_window) for a sanity check."""
    dn = ("NCHW", "OIHW", "NCHW")

    def conv_block(x, w, b):
        y = lax.conv_general_dilated(x, w, (1, 1), "VALID",
                                     dimension_numbers=dn)
        y = jnp.maximum(y + b[None, :, None, None], 0.0)
        return lax.reduce_window(y, -jnp.inf, lax.max,
                                 (1, 1, 2, 2), (1, 1, 2, 2), "VALID")

    y = conv_block(x, params["conv1_w"], params["conv1_b"])
    y = conv_block(y, params["conv2_w"], params["conv2_b"])
    y = y.reshape(y.shape[0], -1)
    y = jnp.maximum(y @ params["fc1_w"].T + params["fc1_b"], 0.0)
    y = jnp.maximum(y @ params["fc2_w"].T + params["fc2_b"], 0.0)
    return y @ params["fc3_w"].T + params["fc3_b"]


if __name__ == "__main__":
    key = jax.random.PRNGKey(0)
    pkey, xkey = jax.random.split(key)
    params = init_params(pkey)
    x = jax.random.normal(xkey, (2, 1, 32, 32), jnp.float32)

    out = jax.block_until_ready(jax.jit(tennet_forward)(params, x))
    assert out.shape == (2, 10) and out.dtype == jnp.float32

    ref = jax.block_until_ready(jax.jit(tennet_reference)(params, x))
    max_err = float(jnp.max(jnp.abs(out - ref)))
    # bf16 MXU operands with f32 accumulation: logits are O(0.1), error ~1e-3.
    assert max_err < 2e-2, f"mismatch vs reference: max abs err {max_err}"

    print("KERNEL_OK")
</pallas_src>

<mosaic_0001>
module attributes {stable_mosaic.version = 11 : i64} {
  func.func @_conv_pool_kernel(%arg0: i32, %arg1: memref<208x32xbf16, #tpu.memory_space<vmem>>, %arg2: memref<208x32xbf16, #tpu.memory_space<vmem>>, %arg3: memref<208x32xbf16, #tpu.memory_space<vmem>>, %arg4: memref<208x32xbf16, #tpu.memory_space<vmem>>, %arg5: memref<32x128xbf16, #tpu.memory_space<vmem>>, %arg6: memref<1x128xf32, #tpu.memory_space<vmem>>, %arg7: memref<208x6xbf16, #tpu.memory_space<vmem>>) attributes {dimension_semantics = [#tpu.dimension_semantics<parallel>], iteration_bounds = array<i64: 2>, scalar_prefetch = 0 : i64, scratch_operands = 0 : i64, tpu.core_type = #tpu.core_type<tc>, window_params = [{transform_indices = @transform_0, window_bounds = array<i64: 208, 32>}, {transform_indices = @transform_1, window_bounds = array<i64: 208, 32>}, {transform_indices = @transform_2, window_bounds = array<i64: 208, 32>}, {transform_indices = @transform_3, window_bounds = array<i64: 208, 32>}, {pipeline_mode = #tpu.pipeline_mode<synchronous>, transform_indices = @transform_4, window_bounds = array<i64: 32, 128>}, {pipeline_mode = #tpu.pipeline_mode<synchronous>, transform_indices = @transform_5, window_bounds = array<i64: 1, 128>}, {transform_indices = @transform_6, window_bounds = array<i64: 208, 6>}]} {
    %c0 = arith.constant 0 : index
    %c0_0 = arith.constant 0 : index
    %0 = vector.load %arg5[%c0, %c0_0] : memref<32x128xbf16, #tpu.memory_space<vmem>>, vector<32x128xbf16>
    %c0_1 = arith.constant 0 : index
    %c0_2 = arith.constant 0 : index
    %1 = vector.load %arg1[%c0_1, %c0_2] : memref<208x32xbf16, #tpu.memory_space<vmem>>, vector<208x32xbf16>
    %cst = arith.constant dense<0.000000e+00> : vector<208x128xf32>
    %2 = tpu.matmul %1, %0, %cst {dimension_numbers = #tpu.dot_dimension_numbers<[1], [0], [0], [1], [0, 0, 1, 1], [], []>} : vector<208x32xbf16>, vector<32x128xbf16>, vector<208x128xf32> -> vector<208x128xf32>
    %c0_3 = arith.constant 0 : index
    %c0_4 = arith.constant 0 : index
    %3 = vector.load %arg2[%c0_3, %c0_4] : memref<208x32xbf16, #tpu.memory_space<vmem>>, vector<208x32xbf16>
    %cst_5 = arith.constant dense<0.000000e+00> : vector<208x128xf32>
    %4 = tpu.matmul %3, %0, %cst_5 {dimension_numbers = #tpu.dot_dimension_numbers<[1], [0], [0], [1], [0, 0, 1, 1], [], []>} : vector<208x32xbf16>, vector<32x128xbf16>, vector<208x128xf32> -> vector<208x128xf32>
    %5 = arith.maximumf %2, %4 : vector<208x128xf32>
    %c0_6 = arith.constant 0 : index
    %c0_7 = arith.constant 0 : index
    %6 = vector.load %arg3[%c0_6, %c0_7] : memref<208x32xbf16, #tpu.memory_space<vmem>>, vector<208x32xbf16>
    %cst_8 = arith.constant dense<0.000000e+00> : vector<208x128xf32>
    %7 = tpu.matmul %6, %0, %cst_8 {dimension_numbers = #tpu.dot_dimension_numbers<[1], [0], [0], [1], [0, 0, 1, 1], [], []>} : vector<208x32xbf16>, vector<32x128xbf16>, vector<208x128xf32> -> vector<208x128xf32>
    %8 = arith.maximumf %5, %7 : vector<208x128xf32>
    %c0_9 = arith.constant 0 : index
    %c0_10 = arith.constant 0 : index
    %9 = vector.load %arg4[%c0_9, %c0_10] : memref<208x32xbf16, #tpu.memory_space<vmem>>, vector<208x32xbf16>
    %cst_11 = arith.constant dense<0.000000e+00> : vector<208x128xf32>
    %10 = tpu.matmul %9, %0, %cst_11 {dimension_numbers = #tpu.dot_dimension_numbers<[1], [0], [0], [1], [0, 0, 1, 1], [], []>} : vector<208x32xbf16>, vector<32x128xbf16>, vector<208x128xf32> -> vector<208x128xf32>
    %11 = arith.maximumf %8, %10 : vector<208x128xf32>
    %c0_12 = arith.constant 0 : index
    %c0_13 = arith.constant 0 : index
    %12 = vector.load %arg6[%c0_12, %c0_13] : memref<1x128xf32, #tpu.memory_space<vmem>>, vector<1x128xf32>
    %13 = vector.broadcast %12 : vector<1x128xf32> to vector<208x128xf32>
    %14 = arith.addf %11, %13 : vector<208x128xf32>
    %cst_14 = arith.constant 0.000000e+00 : f32
    %15 = vector.broadcast %cst_14 : f32 to vector<208x128xf32>
    %16 = arith.maximumf %14, %15 : vector<208x128xf32>
    %17 = vector.extract_strided_slice %16 {offsets = [0, 0], sizes = [208, 6], strides = [1, 1]} : vector<208x128xf32> to vector<208x6xf32>
    %18 = arith.truncf %17 : vector<208x6xf32> to vector<208x6xbf16>
    %c0_15 = arith.constant 0 : index
    %c0_16 = arith.constant 0 : index
    %19 = vector.load %arg7[%c0_15, %c0_16] : memref<208x6xbf16, #tpu.memory_space<vmem>>, vector<208x6xbf16>
    tpu.vector_store %arg7[%c0_15, %c0_16], %18 {strides = array<i32>} : memref<208x6xbf16, #tpu.memory_space<vmem>>, vector<208x6xbf16>,
    return
  }
  func.func @transform_0(%arg0: i32) -> (i32, i32) {
    %c0_i32 = arith.constant 0 : i32
    %c0_i32_0 = arith.constant 0 : i32
    return %arg0, %c0_i32 : i32, i32
  }
  func.func @transform_1(%arg0: i32) -> (i32, i32) {
    %c0_i32 = arith.constant 0 : i32
    %c0_i32_0 = arith.constant 0 : i32
    return %arg0, %c0_i32 : i32, i32
  }
  func.func @transform_2(%arg0: i32) -> (i32, i32) {
    %c0_i32 = arith.constant 0 : i32
    %c0_i32_0 = arith.constant 0 : i32
    return %arg0, %c0_i32 : i32, i32
  }
  func.func @transform_3(%arg0: i32) -> (i32, i32) {
    %c0_i32 = arith.constant 0 : i32
    %c0_i32_0 = arith.constant 0 : i32
    return %arg0, %c0_i32 : i32, i32
  }
  func.func @transform_4(%arg0: i32) -> (i32, i32) {
    %c0_i32 = arith.constant 0 : i32
    %c0_i32_0 = arith.constant 0 : i32
    %c0_i32_1 = arith.constant 0 : i32
    return %c0_i32, %c0_i32_0 : i32, i32
  }
  func.func @transform_5(%arg0: i32) -> (i32, i32) {
    %c0_i32 = arith.constant 0 : i32
    %c0_i32_0 = arith.constant 0 : i32
    %c0_i32_1 = arith.constant 0 : i32
    return %c0_i32, %c0_i32_0 : i32, i32
  }
  func.func @transform_6(%arg0: i32) -> (i32, i32) {
    %c0_i32 = arith.constant 0 : i32
    %c0_i32_0 = arith.constant 0 : i32
    return %arg0, %c0_i32 : i32, i32
  }
}

module attributes {stable_mosaic.version = 11 : i64} {
  func.func @_conv2_fc_kernel(%arg0: i32, %arg1: memref<25x8x160xbf16, #tpu.memory_space<vmem>>, %arg2: memref<25x8x160xbf16, #tpu.memory_space<vmem>>, %arg3: memref<25x8x160xbf16, #tpu.memory_space<vmem>>, %arg4: memref<25x8x160xbf16, #tpu.memory_space<vmem>>, %arg5: memref<160x128xbf16, #tpu.memory_space<vmem>>, %arg6: memref<1x128xf32, #tpu.memory_space<vmem>>, %arg7: memref<25x128x128xbf16, #tpu.memory_space<vmem>>, %arg8: memref<1x128xf32, #tpu.memory_space<vmem>>, %arg9: memref<128x128xbf16, #tpu.memory_space<vmem>>, %arg10: memref<1x128xf32, #tpu.memory_space<vmem>>, %arg11: memref<128x128xbf16, #tpu.memory_space<vmem>>, %arg12: memref<1x128xf32, #tpu.memory_space<vmem>>, %arg13: memref<8x128xf32, #tpu.memory_space<vmem>>) attributes {dimension_semantics = [#tpu.dimension_semantics<parallel>], iteration_bounds = array<i64: 1>, scalar_prefetch = 0 : i64, scratch_operands = 0 : i64, tpu.core_type = #tpu.core_type<tc>, window_params = [{transform_indices = @transform_0, window_bounds = array<i64: 25, 8, 160>}, {transform_indices = @transform_1, window_bounds = array<i64: 25, 8, 160>}, {transform_indices = @transform_2, window_bounds = array<i64: 25, 8, 160>}, {transform_indices = @transform_3, window_bounds = array<i64: 25, 8, 160>}, {pipeline_mode = #tpu.pipeline_mode<synchronous>, transform_indices = @transform_4, window_bounds = array<i64: 160, 128>}, {pipeline_mode = #tpu.pipeline_mode<synchronous>, transform_indices = @transform_5, window_bounds = array<i64: 1, 128>}, {pipeline_mode = #tpu.pipeline_mode<synchronous>, transform_indices = @transform_6, window_bounds = array<i64: 25, 128, 128>}, {pipeline_mode = #tpu.pipeline_mode<synchronous>, transform_indices = @transform_7, window_bounds = array<i64: 1, 128>}, {pipeline_mode = #tpu.pipeline_mode<synchronous>, transform_indices = @transform_8, window_bounds = array<i64: 128, 128>}, {pipeline_mode = #tpu.pipeline_mode<synchronous>, transform_indices = @transform_9, window_bounds = array<i64: 1, 128>}, {pipeline_mode = #tpu.pipeline_mode<synchronous>, transform_indices = @transform_10, window_bounds = array<i64: 128, 128>}, {pipeline_mode = #tpu.pipeline_mode<synchronous>, transform_indices = @transform_11, window_bounds = array<i64: 1, 128>}, {transform_indices = @transform_12, window_bounds = array<i64: 8, 128>}]} {
    %c0 = arith.constant 0 : index
    %c0_0 = arith.constant 0 : index
    %0 = vector.load %arg5[%c0, %c0_0] : memref<160x128xbf16, #tpu.memory_space<vmem>>, vector<160x128xbf16>
    %c0_1 = arith.constant 0 : index
    %c0_2 = arith.constant 0 : index
    %1 = vector.load %arg6[%c0_1, %c0_2] : memref<1x128xf32, #tpu.memory_space<vmem>>, vector<1x128xf32>
    %cst = arith.constant 0.000000e+00 : f32
    %2 = vector.broadcast %cst : f32 to vector<8x128xf32>
    %c0_3 = arith.constant 0 : index
    %c0_4 = arith.constant 0 : index
    %c0_5 = arith.constant 0 : index
    %3 = vector.load %arg1[%c0_3, %c0_4, %c0_5] : memref<25x8x160xbf16, #tpu.memory_space<vmem>>, vector<1x8x160xbf16>
    %4 = vector.shape_cast %3 : vector<1x8x160xbf16> to vector<8x160xbf16>
    %cst_6 = arith.constant dense<0.000000e+00> : vector<8x128xf32>
    %5 = tpu.matmul %4, %0, %cst_6 {dimension_numbers = #tpu.dot_dimension_numbers<[1], [0], [0], [1], [0, 0, 1, 1], [], []>} : vector<8x160xbf16>, vector<160x128xbf16>, vector<8x128xf32> -> vector<8x128xf32>
    %c0_7 = arith.constant 0 : index
    %c0_8 = arith.constant 0 : index
    %c0_9 = arith.constant 0 : index
    %6 = vector.load %arg2[%c0_7, %c0_8, %c0_9] : memref<25x8x160xbf16, #tpu.memory_space<vmem>>, vector<1x8x160xbf16>
    %7 = vector.shape_cast %6 : vector<1x8x160xbf16> to vector<8x160xbf16>
    %cst_10 = arith.constant dense<0.000000e+00> : vector<8x128xf32>
    %8 = tpu.matmul %7, %0, %cst_10 {dimension_numbers = #tpu.dot_dimension_numbers<[1], [0], [0], [1], [0, 0, 1, 1], [], []>} : vector<8x160xbf16>, vector<160x128xbf16>, vector<8x128xf32> -> vector<8x128xf32>
    %9 = arith.maximumf %5, %8 : vector<8x128xf32>
    %c0_11 = arith.constant 0 : index
    %c0_12 = arith.constant 0 : index
    %c0_13 = arith.constant 0 : index
    %10 = vector.load %arg3[%c0_11, %c0_12, %c0_13] : memref<25x8x160xbf16, #tpu.memory_space<vmem>>, vector<1x8x160xbf16>
    %11 = vector.shape_cast %10 : vector<1x8x160xbf16> to vector<8x160xbf16>
    %cst_14 = arith.constant dense<0.000000e+00> : vector<8x128xf32>
    %12 = tpu.matmul %11, %0, %cst_14 {dimension_numbers = #tpu.dot_dimension_numbers<[1], [0], [0], [1], [0, 0, 1, 1], [], []>} : vector<8x160xbf16>, vector<160x128xbf16>, vector<8x128xf32> -> vector<8x128xf32>
    %13 = arith.maximumf %9, %12 : vector<8x128xf32>
    %c0_15 = arith.constant 0 : index
    %c0_16 = arith.constant 0 : index
    %c0_17 = arith.constant 0 : index
    %14 = vector.load %arg4[%c0_15, %c0_16, %c0_17] : memref<25x8x160xbf16, #tpu.memory_space<vmem>>, vector<1x8x160xbf16>
    %15 = vector.shape_cast %14 : vector<1x8x160xbf16> to vector<8x160xbf16>
    %cst_18 = arith.constant dense<0.000000e+00> : vector<8x128xf32>
    %16 = tpu.matmul %15, %0, %cst_18 {dimension_numbers = #tpu.dot_dimension_numbers<[1], [0], [0], [1], [0, 0, 1, 1], [], []>} : vector<8x160xbf16>, vector<160x128xbf16>, vector<8x128xf32> -> vector<8x128xf32>
    %17 = arith.maximumf %13, %16 : vector<8x128xf32>
    %18 = vector.broadcast %1 : vector<1x128xf32> to vector<8x128xf32>
    %19 = arith.addf %17, %18 : vector<8x128xf32>
    %cst_19 = arith.constant 0.000000e+00 : f32
    %20 = vector.broadcast %cst_19 : f32 to vector<8x128xf32>
    %21 = arith.maximumf %19, %20 : vector<8x128xf32>
    %22 = arith.truncf %21 : vector<8x128xf32> to vector<8x128xbf16>
    %c0_20 = arith.constant 0 : index
    %c0_21 = arith.constant 0 : index
    %c0_22 = arith.constant 0 : index
    %23 = vector.load %arg7[%c0_20, %c0_21, %c0_22] : memref<25x128x128xbf16, #tpu.memory_space<vmem>>, vector<1x128x128xbf16>
    %24 = vector.shape_cast %23 : vector<1x128x128xbf16> to vector<128x128xbf16>
    %cst_23 = arith.constant dense<0.000000e+00> : vector<8x128xf32>
    %25 = tpu.matmul %22, %24, %cst_23 {dimension_numbers = #tpu.dot_dimension_numbers<[1], [0], [0], [1], [0, 0, 1, 1], [], []>} : vector<8x128xbf16>, vector<128x128xbf16>, vector<8x128xf32> -> vector<8x128xf32>
    %26 = arith.addf %2, %25 : vector<8x128xf32>
    %c1 = arith.constant 1 : index
    %c0_24 = arith.constant 0 : index
    %c0_25 = arith.constant 0 : index
    %27 = vector.load %arg1[%c1, %c0_24, %c0_25] : memref<25x8x160xbf16, #tpu.memory_space<vmem>>, vector<1x8x160xbf16>
    %28 = vector.shape_cast %27 : vector<1x8x160xbf16> to vector<8x160xbf16>
    %cst_26 = arith.constant dense<0.000000e+00> : vector<8x128xf32>
    %29 = tpu.matmul %28, %0, %cst_26 {dimension_numbers = #tpu.dot_dimension_numbers<[1], [0], [0], [1], [0, 0, 1, 1], [], []>} : vector<8x160xbf16>, vector<160x128xbf16>, vector<8x128xf32> -> vector<8x128xf32>
    %c1_27 = arith.constant 1 : index
    %c0_28 = arith.constant 0 : index
    %c0_29 = arith.constant 0 : index
    %30 = vector.load %arg2[%c1_27, %c0_28, %c0_29] : memref<25x8x160xbf16, #tpu.memory_space<vmem>>, vector<1x8x160xbf16>
    %31 = vector.shape_cast %30 : vector<1x8x160xbf16> to vector<8x160xbf16>
    %cst_30 = arith.constant dense<0.000000e+00> : vector<8x128xf32>
    %32 = tpu.matmul %31, %0, %cst_30 {dimension_numbers = #tpu.dot_dimension_numbers<[1], [0], [0], [1], [0, 0, 1, 1], [], []>} : vector<8x160xbf16>, vector<160x128xbf16>, vector<8x128xf32> -> vector<8x128xf32>
    %33 = arith.maximumf %29, %32 : vector<8x128xf32>
    %c1_31 = arith.constant 1 : index
    %c0_32 = arith.constant 0 : index
    %c0_33 = arith.constant 0 : index
    %34 = vector.load %arg3[%c1_31, %c0_32, %c0_33] : memref<25x8x160xbf16, #tpu.memory_space<vmem>>, vector<1x8x160xbf16>
    %35 = vector.shape_cast %34 : vector<1x8x160xbf16> to vector<8x160xbf16>
    %cst_34 = arith.constant dense<0.000000e+00> : vector<8x128xf32>
    %36 = tpu.matmul %35, %0, %cst_34 {dimension_numbers = #tpu.dot_dimension_numbers<[1], [0], [0], [1], [0, 0, 1, 1], [], []>} : vector<8x160xbf16>, vector<160x128xbf16>, vector<8x128xf32> -> vector<8x128xf32>
    %37 = arith.maximumf %33, %36 : vector<8x128xf32>
    %c1_35 = arith.constant 1 : index
    %c0_36 = arith.constant 0 : index
    %c0_37 = arith.constant 0 : index
    %38 = vector.load %arg4[%c1_35, %c0_36, %c0_37] : memref<25x8x160xbf16, #tpu.memory_space<vmem>>, vector<1x8x160xbf16>
    %39 = vector.shape_cast %38 : vector<1x8x160xbf16> to vector<8x160xbf16>
    %cst_38 = arith.constant dense<0.000000e+00> : vector<8x128xf32>
    %40 = tpu.matmul %39, %0, %cst_38 {dimension_numbers = #tpu.dot_dimension_numbers<[1], [0], [0], [1], [0, 0, 1, 1], [], []>} : vector<8x160xbf16>, vector<160x128xbf16>, vector<8x128xf32> -> vector<8x128xf32>
    %41 = arith.maximumf %37, %40 : vector<8x128xf32>
    %42 = vector.broadcast %1 : vector<1x128xf32> to vector<8x128xf32>
    %43 = arith.addf %41, %42 : vector<8x128xf32>
    %cst_39 = arith.constant 0.000000e+00 : f32
    %44 = vector.broadcast %cst_39 : f32 to vector<8x128xf32>
    %45 = arith.maximumf %43, %44 : vector<8x128xf32>
    %46 = arith.truncf %45 : vector<8x128xf32> to vector<8x128xbf16>
    %c1_40 = arith.constant 1 : index
    %c0_41 = arith.constant 0 : index
    %c0_42 = arith.constant 0 : index
    %47 = vector.load %arg7[%c1_40, %c0_41, %c0_42] : memref<25x128x128xbf16, #tpu.memory_space<vmem>>, vector<1x128x128xbf16>
    %48 = vector.shape_cast %47 : vector<1x128x128xbf16> to vector<128x128xbf16>
    %cst_43 = arith.constant dense<0.000000e+00> : vector<8x128xf32>
    %49 = tpu.matmul %46, %48, %cst_43 {dimension_numbers = #tpu.dot_dimension_numbers<[1], [0], [0], [1], [0, 0, 1, 1], [], []>} : vector<8x128xbf16>, vector<128x128xbf16>, vector<8x128xf32> -> vector<8x128xf32>
    %50 = arith.addf %26, %49 : vector<8x128xf32>
    %c2 = arith.constant 2 : index
    %c0_44 = arith.constant 0 : index
    %c0_45 = arith.constant 0 : index
    %51 = vector.load %arg1[%c2, %c0_44, %c0_45] : memref<25x8x160xbf16, #tpu.memory_space<vmem>>, vector<1x8x160xbf16>
    %52 = vector.shape_cast %51 : vector<1x8x160xbf16> to vector<8x160xbf16>
    %cst_46 = arith.constant dense<0.000000e+00> : vector<8x128xf32>
    %53 = tpu.matmul %52, %0, %cst_46 {dimension_numbers = #tpu.dot_dimension_numbers<[1], [0], [0], [1], [0, 0, 1, 1], [], []>} : vector<8x160xbf16>, vector<160x128xbf16>, vector<8x128xf32> -> vector<8x128xf32>
    %c2_47 = arith.constant 2 : index
    %c0_48 = arith.constant 0 : index
    %c0_49 = arith.constant 0 : index
    %54 = vector.load %arg2[%c2_47, %c0_48, %c0_49] : memref<25x8x160xbf16, #tpu.memory_space<vmem>>, vector<1x8x160xbf16>
    %55 = vector.shape_cast %54 : vector<1x8x160xbf16> to vector<8x160xbf16>
    %cst_50 = arith.constant dense<0.000000e+00> : vector<8x128xf32>
    %56 = tpu.matmul %55, %0, %cst_50 {dimension_numbers = #tpu.dot_dimension_numbers<[1], [0], [0], [1], [0, 0, 1, 1], [], []>} : vector<8x160xbf16>, vector<160x128xbf16>, vector<8x128xf32> -> vector<8x128xf32>
    %57 = arith.maximumf %53, %56 : vector<8x128xf32>
    %c2_51 = arith.constant 2 : index
    %c0_52 = arith.constant 0 : index
    %c0_53 = arith.constant 0 : index
    %58 = vector.load %arg3[%c2_51, %c0_52, %c0_53] : memref<25x8x160xbf16, #tpu.memory_space<vmem>>, vector<1x8x160xbf16>
    %59 = vector.shape_cast %58 : vector<1x8x160xbf16> to vector<8x160xbf16>
    %cst_54 = arith.constant dense<0.000000e+00> : vector<8x128xf32>
    %60 = tpu.matmul %59, %0, %cst_54 {dimension_numbers = #tpu.dot_dimension_numbers<[1], [0], [0], [1], [0, 0, 1, 1], [], []>} : vector<8x160xbf16>, vector<160x128xbf16>, vector<8x128xf32> -> vector<8x128xf32>
    %61 = arith.maximumf %57, %60 : vector<8x128xf32>
    %c2_55 = arith.constant 2 : index
    %c0_56 = arith.constant 0 : index
    %c0_57 = arith.constant 0 : index
    %62 = vector.load %arg4[%c2_55, %c0_56, %c0_57] : memref<25x8x160xbf16, #tpu.memory_space<vmem>>, vector<1x8x160xbf16>
    %63 = vector.shape_cast %62 : vector<1x8x160xbf16> to vector<8x160xbf16>
    %cst_58 = arith.constant dense<0.000000e+00> : vector<8x128xf32>
    %64 = tpu.matmul %63, %0, %cst_58 {dimension_numbers = #tpu.dot_dimension_numbers<[1], [0], [0], [1], [0, 0, 1, 1], [], []>} : vector<8x160xbf16>, vector<160x128xbf16>, vector<8x128xf32> -> vector<8x128xf32>
    %65 = arith.maximumf %61, %64 : vector<8x128xf32>
    %66 = vector.broadcast %1 : vector<1x128xf32> to vector<8x128xf32>
    %67 = arith.addf %65, %66 : vector<8x128xf32>
    %cst_59 = arith.constant 0.000000e+00 : f32
    %68 = vector.broadcast %cst_59 : f32 to vector<8x128xf32>
    %69 = arith.maximumf %67, %68 : vector<8x128xf32>
    %70 = arith.truncf %69 : vector<8x128xf32> to vector<8x128xbf16>
    %c2_60 = arith.constant 2 : index
    %c0_61 = arith.constant 0 : index
    %c0_62 = arith.constant 0 : index
    %71 = vector.load %arg7[%c2_60, %c0_61, %c0_62] : memref<25x128x128xbf16, #tpu.memory_space<vmem>>, vector<1x128x128xbf16>
    %72 = vector.shape_cast %71 : vector<1x128x128xbf16> to vector<128x128xbf16>
    %cst_63 = arith.constant dense<0.000000e+00> : vector<8x128xf32>
    %73 = tpu.matmul %70, %72, %cst_63 {dimension_numbers = #tpu.dot_dimension_numbers<[1], [0], [0], [1], [0, 0, 1, 1], [], []>} : vector<8x128xbf16>, vector<128x128xbf16>, vector<8x128xf32> -> vector<8x128xf32>
    %74 = arith.addf %50, %73 : vector<8x128xf32>
    %c3 = arith.constant 3 : index
    %c0_64 = arith.constant 0 : index
    %c0_65 = arith.constant 0 : index
    %75 = vector.load %arg1[%c3, %c0_64, %c0_65] : memref<25x8x160xbf16, #tpu.memory_space<vmem>>, vector<1x8x160xbf16>
    %76 = vector.shape_cast %75 : vector<1x8x160xbf16> to vector<8x160xbf16>
    %cst_66 = arith.constant dense<0.000000e+00> : vector<8x128xf32>
    %77 = tpu.matmul %76, %0, %cst_66 {dimension_numbers = #tpu.dot_dimension_numbers<[1], [0], [0], [1], [0, 0, 1, 1], [], []>} : vector<8x160xbf16>, vector<160x128xbf16>, vector<8x128xf32> -> vector<8x128xf32>
    %c3_67 = arith.constant 3 : index
    %c0_68 = arith.constant 0 : index
    %c0_69 = arith.constant 0 : index
    %78 = vector.load %arg2[%c3_67, %c0_68, %c0_69] : memref<25x8x160xbf16, #tpu.memory_space<vmem>>, vector<1x8x160xbf16>
    %79 = vector.shape_cast %78 : vector<1x8x160xbf16> to vector<8x160xbf16>
    %cst_70 = arith.constant dense<0.000000e+00> : vector<8x128xf32>
    %80 = tpu.matmul %79, %0, %cst_70 {dimension_numbers = #tpu.dot_dimension_numbers<[1], [0], [0], [1], [0, 0, 1, 1], [], []>} : vector<8x160xbf16>, vector<160x128xbf16>, vector<8x128xf32> -> vector<8x128xf32>
    %81 = arith.maximumf %77, %80 : vector<8x128xf32>
    %c3_71 = arith.constant 3 : index
    %c0_72 = arith.constant 0 : index
    %c0_73 = arith.constant 0 : index
    %82 = vector.load %arg3[%c3_71, %c0_72, %c0_73] : memref<25x8x160xbf16, #tpu.memory_space<vmem>>, vector<1x8x160xbf16>
    %83 = vector.shape_cast %82 : vector<1x8x160xbf16> to vector<8x160xbf16>
    %cst_74 = arith.constant dense<0.000000e+00> : vector<8x128xf32>
    %84 = tpu.matmul %83, %0, %cst_74 {dimension_numbers = #tpu.dot_dimension_numbers<[1], [0], [0], [1], [0, 0, 1, 1], [], []>} : vector<8x160xbf16>, vector<160x128xbf16>, vector<8x128xf32> -> vector<8x128xf32>
    %85 = arith.maximumf %81, %84 : vector<8x128xf32>
    %c3_75 = arith.constant 3 : index
    %c0_76 = arith.constant 0 : index
    %c0_77 = arith.constant 0 : index
    %86 = vector.load %arg4[%c3_75, %c0_76, %c0_77] : memref<25x8x160xbf16, #tpu.memory_space<vmem>>, vector<1x8x160xbf16>
    %87 = vector.shape_cast %86 : vector<1x8x160xbf16> to vector<8x160xbf16>
    %cst_78 = arith.constant dense<0.000000e+00> : vector<8x128xf32>
    %88 = tpu.matmul %87, %0, %cst_78 {dimension_numbers = #tpu.dot_dimension_numbers<[1], [0], [0], [1], [0, 0, 1, 1], [], []>} : vector<8x160xbf16>, vector<160x128xbf16>, vector<8x128xf32> -> vector<8x128xf32>
    %89 = arith.maximumf %85, %88 : vector<8x128xf32>
    %90 = vector.broadcast %1 : vector<1x128xf32> to vector<8x128xf32>
    %91 = arith.addf %89, %90 : vector<8x128xf32>
    %cst_79 = arith.constant 0.000000e+00 : f32
    %92 = vector.broadcast %cst_79 : f32 to vector<8x128xf32>
    %93 = arith.maximumf %91, %92 : vector<8x128xf32>
    %94 = arith.truncf %93 : vector<8x128xf32> to vector<8x128xbf16>
    %c3_80 = arith.constant 3 : index
    %c0_81 = arith.constant 0 : index
    %c0_82 = arith.constant 0 : index
    %95 = vector.load %arg7[%c3_80, %c0_81, %c0_82] : memref<25x128x128xbf16, #tpu.memory_space<vmem>>, vector<1x128x128xbf16>
    %96 = vector.shape_cast %95 : vector<1x128x128xbf16> to vector<128x128xbf16>
    %cst_83 = arith.constant dense<0.000000e+00> : vector<8x128xf32>
    %97 = tpu.matmul %94, %96, %cst_83 {dimension_numbers = #tpu.dot_dimension_numbers<[1], [0], [0], [1], [0, 0, 1, 1], [], []>} : vector<8x128xbf16>, vector<128x128xbf16>, vector<8x128xf32> -> vector<8x128xf32>
    %98 = arith.addf %74, %97 : vector<8x128xf32>
    %c4 = arith.constant 4 : index
    %c0_84 = arith.constant 0 : index
    %c0_85 = arith.constant 0 : index
    %99 = vector.load %arg1[%c4, %c0_84, %c0_85] : memref<25x8x160xbf16, #tpu.memory_space<vmem>>, vector<1x8x160xbf16>
    %100 = vector.shape_cast %99 : vector<1x8x160xbf16> to vector<8x160xbf16>
    %cst_86 = arith.constant dense<0.000000e+00> : vector<8x128xf32>
    %101 = tpu.matmul %100, %0, %cst_86 {dimension_numbers = #tpu.dot_dimension_numbers<[1], [0], [0], [1], [0, 0, 1, 1], [], []>} : vector<8x160xbf16>, vector<160x128xbf16>, vector<8x128xf32> -> vector<8x128xf32>
    %c4_87 = arith.constant 4 : index
    %c0_88 = arith.constant 0 : index
    %c0_89 = arith.constant 0 : index
    %102 = vector.load %arg2[%c4_87, %c0_88, %c0_89] : memref<25x8x160xbf16, #tpu.memory_space<vmem>>, vector<1x8x160xbf16>
    %103 = vector.shape_cast %102 : vector<1x8x160xbf16> to vector<8x160xbf16>
    %cst_90 = arith.constant dense<0.000000e+00> : vector<8x128xf32>
    %104 = tpu.matmul %103, %0, %cst_90 {dimension_numbers = #tpu.dot_dimension_numbers<[1], [0], [0], [1], [0, 0, 1, 1], [], []>} : vector<8x160xbf16>, vector<160x128xbf16>, vector<8x128xf32> -> vector<8x128xf32>
    %105 = arith.maximumf %101, %104 : vector<8x128xf32>
    %c4_91 = arith.constant 4 : index
    %c0_92 = arith.constant 0 : index
    %c0_93 = arith.constant 0 : index
    %106 = vector.load %arg3[%c4_91, %c0_92, %c0_93] : memref<25x8x160xbf16, #tpu.memory_space<vmem>>, vector<1x8x160xbf16>
    %107 = vector.shape_cast %106 : vector<1x8x160xbf16> to vector<8x160xbf16>
    %cst_94 = arith.constant dense<0.000000e+00> : vector<8x128xf32>
    %108 = tpu.matmul %107, %0, %cst_94 {dimension_numbers = #tpu.dot_dimension_numbers<[1], [0], [0], [1], [0, 0, 1, 1], [], []>} : vector<8x160xbf16>, vector<160x128xbf16>, vector<8x128xf32> -> vector<8x128xf32>
    %109 = arith.maximumf %105, %108 : vector<8x128xf32>
    %c4_95 = arith.constant 4 : index
    %c0_96 = arith.constant 0 : index
    %c0_97 = arith.constant 0 : index
    %110 = vector.load %arg4[%c4_95, %c0_96, %c0_97] : memref<25x8x160xbf16, #tpu.memory_space<vmem>>, vector<1x8x160xbf16>
    %111 = vector.shape_cast %110 : vector<1x8x160xbf16> to vector<8x160xbf16>
    %cst_98 = arith.constant dense<0.000000e+00> : vector<8x128xf32>
    %112 = tpu.matmul %111, %0, %cst_98 {dimension_numbers = #tpu.dot_dimension_numbers<[1], [0], [0], [1], [0, 0, 1, 1], [], []>} : vector<8x160xbf16>, vector<160x128xbf16>, vector<8x128xf32> -> vector<8x128xf32>
    %113 = arith.maximumf %109, %112 : vector<8x128xf32>
    %114 = vector.broadcast %1 : vector<1x128xf32> to vector<8x128xf32>
    %115 = arith.addf %113, %114 : vector<8x128xf32>
    %cst_99 = arith.constant 0.000000e+00 : f32
    %116 = vector.broadcast %cst_99 : f32 to vector<8x128xf32>
    %117 = arith.maximumf %115, %116 : vector<8x128xf32>
    %118 = arith.truncf %117 : vector<8x128xf32> to vector<8x128xbf16>
    %c4_100 = arith.constant 4 : index
    %c0_101 = arith.constant 0 : index
    %c0_102 = arith.constant 0 : index
    %119 = vector.load %arg7[%c4_100, %c0_101, %c0_102] : memref<25x128x128xbf16, #tpu.memory_space<vmem>>, vector<1x128x128xbf16>
    %120 = vector.shape_cast %119 : vector<1x128x128xbf16> to vector<128x128xbf16>
    %cst_103 = arith.constant dense<0.000000e+00> : vector<8x128xf32>
    %121 = tpu.matmul %118, %120, %cst_103 {dimension_numbers = #tpu.dot_dimension_numbers<[1], [0], [0], [1], [0, 0, 1, 1], [], []>} : vector<8x128xbf16>, vector<128x128xbf16>, vector<8x128xf32> -> vector<8x128xf32>
    %122 = arith.addf %98, %121 : vector<8x128xf32>
    %c5 = arith.constant 5 : index
    %c0_104 = arith.constant 0 : index
    %c0_105 = arith.constant 0 : index
    %123 = vector.load %arg1[%c5, %c0_104, %c0_105] : memref<25x8x160xbf16, #tpu.memory_space<vmem>>, vector<1x8x160xbf16>
    %124 = vector.shape_cast %123 : vector<1x8x160xbf16> to vector<8x160xbf16>
    %cst_106 = arith.constant dense<0.000000e+00> : vector<8x128xf32>
    %125 = tpu.matmul %124, %0, %cst_106 {dimension_numbers = #tpu.dot_dimension_numbers<[1], [0], [0], [1], [0, 0, 1, 1], [], []>} : vector<8x160xbf16>, vector<160x128xbf16>, vector<8x128xf32> -> vector<8x128xf32>
    %c5_107 = arith.constant 5 : index
    %c0_108 = arith.constant 0 : index
    %c0_109 = arith.constant 0 : index
    %126 = vector.load %arg2[%c5_107, %c0_108, %c0_109] : memref<25x8x160xbf16, #tpu.memory_space<vmem>>, vector<1x8x160xbf16>
    %127 = vector.shape_cast %126 : vector<1x8x160xbf16> to vector<8x160xbf16>
    %cst_110 = arith.constant dense<0.000000e+00> : vector<8x128xf32>
    %128 = tpu.matmul %127, %0, %cst_110 {dimension_numbers = #tpu.dot_dimension_numbers<[1], [0], [0], [1], [0, 0, 1, 1], [], []>} : vector<8x160xbf16>, vector<160x128xbf16>, vector<8x128xf32> -> vector<8x128xf32>
    %129 = arith.maximumf %125, %128 : vector<8x128xf32>
    %c5_111 = arith.constant 5 : index
    %c0_112 = arith.constant 0 : index
    %c0_113 = arith.constant 0 : index
    %130 = vector.load %arg3[%c5_111, %c0_112, %c0_113] : memref<25x8x160xbf16, #tpu.memory_space<vmem>>, vector<1x8x160xbf16>
    %131 = vector.shape_cast %130 : vector<1x8x160xbf16> to vector<8x160xbf16>
    %cst_114 = arith.constant dense<0.000000e+00> : vector<8x128xf32>
    %132 = tpu.matmul %131, %0, %cst_114 {dimension_numbers = #tpu.dot_dimension_numbers<[1], [0], [0], [1], [0, 0, 1, 1], [], []>} : vector<8x160xbf16>, vector<160x128xbf16>, vector<8x128xf32> -> vector<8x128xf32>
    %133 = arith.maximumf %129, %132 : vector<8x128xf32>
    %c5_115 = arith.constant 5 : index
    %c0_116 = arith.constant 0 : index
    %c0_117 = arith.constant 0 : index
    %134 = vector.load %arg4[%c5_115, %c0_116, %c0_117] : memref<25x8x160xbf16, #tpu.memory_space<vmem>>, vector<1x8x160xbf16>
    %135 = vector.shape_cast %134 : vector<1x8x160xbf16> to vector<8x160xbf16>
    %cst_118 = arith.constant dense<0.000000e+00> : vector<8x128xf32>
    %136 = tpu.matmul %135, %0, %cst_118 {dimension_numbers = #tpu.dot_dimension_numbers<[1], [0], [0], [1], [0, 0, 1, 1], [], []>} : vector<8x160xbf16>, vector<160x128xbf16>, vector<8x128xf32> -> vector<8x128xf32>
    %137 = arith.maximumf %133, %136 : vector<8x128xf32>
    %138 = vector.broadcast %1 : vector<1x128xf32> to vector<8x128xf32>
    %139 = arith.addf %137, %138 : vector<8x128xf32>
    %cst_119 = arith.constant 0.000000e+00 : f32
    %140 = vector.broadcast %cst_119 : f32 to vector<8x128xf32>
    %141 = arith.maximumf %139, %140 : vector<8x128xf32>
    %142 = arith.truncf %141 : vector<8x128xf32> to vector<8x128xbf16>
    %c5_120 = arith.constant 5 : index
    %c0_121 = arith.constant 0 : index
    %c0_122 = arith.constant 0 : index
    %143 = vector.load %arg7[%c5_120, %c0_121, %c0_122] : memref<25x128x128xbf16, #tpu.memory_space<vmem>>, vector<1x128x128xbf16>
    %144 = vector.shape_cast %143 : vector<1x128x128xbf16> to vector<128x128xbf16>
    %cst_123 = arith.constant dense<0.000000e+00> : vector<8x128xf32>
    %145 = tpu.matmul %142, %144, %cst_123 {dimension_numbers = #tpu.dot_dimension_numbers<[1], [0], [0], [1], [0, 0, 1, 1], [], []>} : vector<8x128xbf16>, vector<128x128xbf16>, vector<8x128xf32> -> vector<8x128xf32>
    %146 = arith.addf %122, %145 : vector<8x128xf32>
    %c6 = arith.constant 6 : index
    %c0_124 = arith.constant 0 : index
    %c0_125 = arith.constant 0 : index
    %147 = vector.load %arg1[%c6, %c0_124, %c0_125] : memref<25x8x160xbf16, #tpu.memory_space<vmem>>, vector<1x8x160xbf16>
    %148 = vector.shape_cast %147 : vector<1x8x160xbf16> to vector<8x160xbf16>
    %cst_126 = arith.constant dense<0.000000e+00> : vector<8x128xf32>
    %149 = tpu.matmul %148, %0, %cst_126 {dimension_numbers = #tpu.dot_dimension_numbers<[1], [0], [0], [1], [0, 0, 1, 1], [], []>} : vector<8x160xbf16>, vector<160x128xbf16>, vector<8x128xf32> -> vector<8x128xf32>
    %c6_127 = arith.constant 6 : index
    %c0_128 = arith.constant 0 : index
    %c0_129 = arith.constant 0 : index
    %150 = vector.load %arg2[%c6_127, %c0_128, %c0_129] : memref<25x8x160xbf16, #tpu.memory_space<vmem>>, vector<1x8x160xbf16>
    %151 = vector.shape_cast %150 : vector<1x8x160xbf16> to vector<8x160xbf16>
    %cst_130 = arith.constant dense<0.000000e+00> : vector<8x128xf32>
    %152 = tpu.matmul %151, %0, %cst_130 {dimension_numbers = #tpu.dot_dimension_numbers<[1], [0], [0], [1], [0, 0, 1, 1], [], []>} : vector<8x160xbf16>, vector<160x128xbf16>, vector<8x128xf32> -> vector<8x128xf32>
    %153 = arith.maximumf %149, %152 : vector<8x128xf32>
    %c6_131 = arith.constant 6 : index
    %c0_132 = arith.constant 0 : index
    %c0_133 = arith.constant 0 : index
    %154 = vector.load %arg3[%c6_131, %c0_132, %c0_133] : memref<25x8x160xbf16, #tpu.memory_space<vmem>>, vector<1x8x160xbf16>
    %155 = vector.shape_cast %154 : vector<1x8x160xbf16> to vector<8x160xbf16>
    %cst_134 = arith.constant dense<0.000000e+00> : vector<8x128xf32>
    %156 = tpu.matmul %155, %0, %cst_134 {dimension_numbers = #tpu.dot_dimension_numbers<[1], [0], [0], [1], [0, 0, 1, 1], [], []>} : vector<8x160xbf16>, vector<160x128xbf16>, vector<8x128xf32> -> vector<8x128xf32>
    %157 = arith.maximumf %153, %156 : vector<8x128xf32>
    %c6_135 = arith.constant 6 : index
    %c0_136 = arith.constant 0 : index
    %c0_137 = arith.constant 0 : index
    %158 = vector.load %arg4[%c6_135, %c0_136, %c0_137] : memref<25x8x160xbf16, #tpu.memory_space<vmem>>, vector<1x8x160xbf16>
    %159 = vector.shape_cast %158 : vector<1x8x160xbf16> to vector<8x160xbf16>
    %cst_138 = arith.constant dense<0.000000e+00> : vector<8x128xf32>
    %160 = tpu.matmul %159, %0, %cst_138 {dimension_numbers = #tpu.dot_dimension_numbers<[1], [0], [0], [1], [0, 0, 1, 1], [], []>} : vector<8x160xbf16>, vector<160x128xbf16>, vector<8x128xf32> -> vector<8x128xf32>
    %161 = arith.maximumf %157, %160 : vector<8x128xf32>
    %162 = vector.broadcast %1 : vector<1x128xf32> to vector<8x128xf32>
    %163 = arith.addf %161, %162 : vector<8x128xf32>
    %cst_139 = arith.constant 0.000000e+00 : f32
    %164 = vector.broadcast %cst_139 : f32 to vector<8x128xf32>
    %165 = arith.maximumf %163, %164 : vector<8x128xf32>
    %166 = arith.truncf %165 : vector<8x128xf32> to vector<8x128xbf16>
    %c6_140 = arith.constant 6 : index
    %c0_141 = arith.constant 0 : index
    %c0_142 = arith.constant 0 : index
    %167 = vector.load %arg7[%c6_140, %c0_141, %c0_142] : memref<25x128x128xbf16, #tpu.memory_space<vmem>>, vector<1x128x128xbf16>
    %168 = vector.shape_cast %167 : vector<1x128x128xbf16> to vector<128x128xbf16>
    %cst_143 = arith.constant dense<0.000000e+00> : vector<8x128xf32>
    %169 = tpu.matmul %166, %168, %cst_143 {dimension_numbers = #tpu.dot_dimension_numbers<[1], [0], [0], [1], [0, 0, 1, 1], [], []>} : vector<8x128xbf16>, vector<128x128xbf16>, vector<8x128xf32> -> vector<8x128xf32>
    %170 = arith.addf %146, %169 : vector<8x128xf32>
    %c7 = arith.constant 7 : index
    %c0_144 = arith.constant 0 : index
    %c0_145 = arith.constant 0 : index
    %171 = vector.load %arg1[%c7, %c0_144, %c0_145] : memref<25x8x160xbf16, #tpu.memory_space<vmem>>, vector<1x8x160xbf16>
    %172 = vector.shape_cast %171 : vector<1x8x160xbf16> to vector<8x160xbf16>
    %cst_146 = arith.constant dense<0.000000e+00> : vector<8x128xf32>
    %173 = tpu.matmul %172, %0, %cst_146 {dimension_numbers = #tpu.dot_dimension_numbers<[1], [0], [0], [1], [0, 0, 1, 1], [], []>} : vector<8x160xbf16>, vector<160x128xbf16>, vector<8x128xf32> -> vector<8x128xf32>
    %c7_147 = arith.constant 7 : index
    %c0_148 = arith.constant 0 : index
    %c0_149 = arith.constant 0 : index
    %174 = vector.load %arg2[%c7_147, %c0_148, %c0_149] : memref<25x8x160xbf16, #tpu.memory_space<vmem>>, vector<1x8x160xbf16>
    %175 = vector.shape_cast %174 : vector<1x8x160xbf16> to vector<8x160xbf16>
    %cst_150 = arith.constant dense<0.000000e+00> : vector<8x128xf32>
    %176 = tpu.matmul %175, %0, %cst_150 {dimension_numbers = #tpu.dot_dimension_numbers<[1], [0], [0], [1], [0, 0, 1, 1], [], []>} : vector<8x160xbf16>, vector<160x128xbf16>, vector<8x128xf32> -> vector<8x128xf32>
    %177 = arith.maximumf %173, %176 : vector<8x128xf32>
    %c7_151 = arith.constant 7 : index
    %c0_152 = arith.constant 0 : index
    %c0_153 = arith.constant 0 : index
    %178 = vector.load %arg3[%c7_151, %c0_152, %c0_153] : memref<25x8x160xbf16, #tpu.memory_space<vmem>>, vector<1x8x160xbf16>
    %179 = vector.shape_cast %178 : vector<1x8x160xbf16> to vector<8x160xbf16>
    %cst_154 = arith.constant dense<0.000000e+00> : vector<8x128xf32>
    %180 = tpu.matmul %179, %0, %cst_154 {dimension_numbers = #tpu.dot_dimension_numbers<[1], [0], [0], [1], [0, 0, 1, 1], [], []>} : vector<8x160xbf16>, vector<160x128xbf16>, vector<8x128xf32> -> vector<8x128xf32>
    %181 = arith.maximumf %177, %180 : vector<8x128xf32>
    %c7_155 = arith.constant 7 : index
    %c0_156 = arith.constant 0 : index
    %c0_157 = arith.constant 0 : index
    %182 = vector.load %arg4[%c7_155, %c0_156, %c0_157] : memref<25x8x160xbf16, #tpu.memory_space<vmem>>, vector<1x8x160xbf16>
    %183 = vector.shape_cast %182 : vector<1x8x160xbf16> to vector<8x160xbf16>
    %cst_158 = arith.constant dense<0.000000e+00> : vector<8x128xf32>
    %184 = tpu.matmul %183, %0, %cst_158 {dimension_numbers = #tpu.dot_dimension_numbers<[1], [0], [0], [1], [0, 0, 1, 1], [], []>} : vector<8x160xbf16>, vector<160x128xbf16>, vector<8x128xf32> -> vector<8x128xf32>
    %185 = arith.maximumf %181, %184 : vector<8x128xf32>
    %186 = vector.broadcast %1 : vector<1x128xf32> to vector<8x128xf32>
    %187 = arith.addf %185, %186 : vector<8x128xf32>
    %cst_159 = arith.constant 0.000000e+00 : f32
    %188 = vector.broadcast %cst_159 : f32 to vector<8x128xf32>
    %189 = arith.maximumf %187, %188 : vector<8x128xf32>
    %190 = arith.truncf %189 : vector<8x128xf32> to vector<8x128xbf16>
    %c7_160 = arith.constant 7 : index
    %c0_161 = arith.constant 0 : index
    %c0_162 = arith.constant 0 : index
    %191 = vector.load %arg7[%c7_160, %c0_161, %c0_162] : memref<25x128x128xbf16, #tpu.memory_space<vmem>>, vector<1x128x128xbf16>
    %192 = vector.shape_cast %191 : vector<1x128x128xbf16> to vector<128x128xbf16>
    %cst_163 = arith.constant dense<0.000000e+00> : vector<8x128xf32>
    %193 = tpu.matmul %190, %192, %cst_163 {dimension_numbers = #tpu.dot_dimension_numbers<[1], [0], [0], [1], [0, 0, 1, 1], [], []>} : vector<8x128xbf16>, vector<128x128xbf16>, vector<8x128xf32> -> vector<8x128xf32>
    %194 = arith.addf %170, %193 : vector<8x128xf32>
    %c8 = arith.constant 8 : index
    %c0_164 = arith.constant 0 : index
    %c0_165 = arith.constant 0 : index
    %195 = vector.load %arg1[%c8, %c0_164, %c0_165] : memref<25x8x160xbf16, #tpu.memory_space<vmem>>, vector<1x8x160xbf16>
    %196 = vector.shape_cast %195 : vector<1x8x160xbf16> to vector<8x160xbf16>
    %cst_166 = arith.constant dense<0.000000e+00> : vector<8x128xf32>
    %197 = tpu.matmul %196, %0, %cst_166 {dimension_numbers = #tpu.dot_dimension_numbers<[1], [0], [0], [1], [0, 0, 1, 1], [], []>} : vector<8x160xbf16>, vector<160x128xbf16>, vector<8x128xf32> -> vector<8x128xf32>
    %c8_167 = arith.constant 8 : index
    %c0_168 = arith.constant 0 : index
    %c0_169 = arith.constant 0 : index
    %198 = vector.load %arg2[%c8_167, %c0_168, %c0_169] : memref<25x8x160xbf16, #tpu.memory_space<vmem>>, vector<1x8x160xbf16>
    %199 = vector.shape_cast %198 : vector<1x8x160xbf16> to vector<8x160xbf16>
    %cst_170 = arith.constant dense<0.000000e+00> : vector<8x128xf32>
    %200 = tpu.matmul %199, %0, %cst_170 {dimension_numbers = #tpu.dot_dimension_numbers<[1], [0], [0], [1], [0, 0, 1, 1], [], []>} : vector<8x160xbf16>, vector<160x128xbf16>, vector<8x128xf32> -> vector<8x128xf32>
    %201 = arith.maximumf %197, %200 : vector<8x128xf32>
    %c8_171 = arith.constant 8 : index
    %c0_172 = arith.constant 0 : index
    %c0_173 = arith.constant 0 : index
    %202 = vector.load %arg3[%c8_171, %c0_172, %c0_173] : memref<25x8x160xbf16, #tpu.memory_space<vmem>>, vector<1x8x160xbf16>
    %203 = vector.shape_cast %202 : vector<1x8x160xbf16> to vector<8x160xbf16>
    %cst_174 = arith.constant dense<0.000000e+00> : vector<8x128xf32>
    %204 = tpu.matmul %203, %0, %cst_174 {dimension_numbers = #tpu.dot_dimension_numbers<[1], [0], [0], [1], [0, 0, 1, 1], [], []>} : vector<8x160xbf16>, vector<160x128xbf16>, vector<8x128xf32> -> vector<8x128xf32>
    %205 = arith.maximumf %201, %204 : vector<8x128xf32>
    %c8_175 = arith.constant 8 : index
    %c0_176 = arith.constant 0 : index
    %c0_177 = arith.constant 0 : index
    %206 = vector.load %arg4[%c8_175, %c0_176, %c0_177] : memref<25x8x160xbf16, #tpu.memory_space<vmem>>, vector<1x8x160xbf16>
    %207 = vector.shape_cast %206 : vector<1x8x160xbf16> to vector<8x160xbf16>
    %cst_178 = arith.constant dense<0.000000e+00> : vector<8x128xf32>
    %208 = tpu.matmul %207, %0, %cst_178 {dimension_numbers = #tpu.dot_dimension_numbers<[1], [0], [0], [1], [0, 0, 1, 1], [], []>} : vector<8x160xbf16>, vector<160x128xbf16>, vector<8x128xf32> -> vector<8x128xf32>
    %209 = arith.maximumf %205, %208 : vector<8x128xf32>
    %210 = vector.broadcast %1 : vector<1x128xf32> to vector<8x128xf32>
    %211 = arith.addf %209, %210 : vector<8x128xf32>
    %cst_179 = arith.constant 0.000000e+00 : f32
    %212 = vector.broadcast %cst_179 : f32 to vector<8x128xf32>
    %213 = arith.maximumf %211, %212 : vector<8x128xf32>
    %214 = arith.truncf %213 : vector<8x128xf32> to vector<8x128xbf16>
    %c8_180 = arith.constant 8 : index
    %c0_181 = arith.constant 0 : index
    %c0_182 = arith.constant 0 : index
    %215 = vector.load %arg7[%c8_180, %c0_181, %c0_182] : memref<25x128x128xbf16, #tpu.memory_space<vmem>>, vector<1x128x128xbf16>
    %216 = vector.shape_cast %215 : vector<1x128x128xbf16> to vector<128x128xbf16>
    %cst_183 = arith.constant dense<0.000000e+00> : vector<8x128xf32>
    %217 = tpu.matmul %214, %216, %cst_183 {dimension_numbers = #tpu.dot_dimension_numbers<[1], [0], [0], [1], [0, 0, 1, 1], [], []>} : vector<8x128xbf16>, vector<128x128xbf16>, vector<8x128xf32> -> vector<8x128xf32>
    %218 = arith.addf %194, %217 : vector<8x128xf32>
    %c9 = arith.constant 9 : index
    %c0_184 = arith.constant 0 : index
    %c0_185 = arith.constant 0 : index
    %219 = vector.load %arg1[%c9, %c0_184, %c0_185] : memref<25x8x160xbf16, #tpu.memory_space<vmem>>, vector<1x8x160xbf16>
    %220 = vector.shape_cast %219 : vector<1x8x160xbf16> to vector<8x160xbf16>
    %cst_186 = arith.constant dense<0.000000e+00> : vector<8x128xf32>
    %221 = tpu.matmul %220, %0, %cst_186 {dimension_numbers = #tpu.dot_dimension_numbers<[1], [0], [0], [1], [0, 0, 1, 1], [], []>} : vector<8x160xbf16>, vector<160x128xbf16>, vector<8x128xf32> -> vector<8x128xf32>
    %c9_187 = arith.constant 9 : index
    %c0_188 = arith.constant 0 : index
    %c0_189 = arith.constant 0 : index
    %222 = vector.load %arg2[%c9_187, %c0_188, %c0_189] : memref<25x8x160xbf16, #tpu.memory_space<vmem>>, vector<1x8x160xbf16>
    %223 = vector.shape_cast %222 : vector<1x8x160xbf16> to vector<8x160xbf16>
    %cst_190 = arith.constant dense<0.000000e+00> : vector<8x128xf32>
    %224 = tpu.matmul %223, %0, %cst_190 {dimension_numbers = #tpu.dot_dimension_numbers<[1], [0], [0], [1], [0, 0, 1, 1], [], []>} : vector<8x160xbf16>, vector<160x128xbf16>, vector<8x128xf32> -> vector<8x128xf32>
    %225 = arith.maximumf %221, %224 : vector<8x128xf32>
    %c9_191 = arith.constant 9 : index
    %c0_192 = arith.constant 0 : index
    %c0_193 = arith.constant 0 : index
    %226 = vector.load %arg3[%c9_191, %c0_192, %c0_193] : memref<25x8x160xbf16, #tpu.memory_space<vmem>>, vector<1x8x160xbf16>
    %227 = vector.shape_cast %226 : vector<1x8x160xbf16> to vector<8x160xbf16>
    %cst_194 = arith.constant dense<0.000000e+00> : vector<8x128xf32>
    %228 = tpu.matmul %227, %0, %cst_194 {dimension_numbers = #tpu.dot_dimension_numbers<[1], [0], [0], [1], [0, 0, 1, 1], [], []>} : vector<8x160xbf16>, vector<160x128xbf16>, vector<8x128xf32> -> vector<8x128xf32>
    %229 = arith.maximumf %225, %228 : vector<8x128xf32>
    %c9_195 = arith.constant 9 : index
    %c0_196 = arith.constant 0 : index
    %c0_197 = arith.constant 0 : index
    %230 = vector.load %arg4[%c9_195, %c0_196, %c0_197] : memref<25x8x160xbf16, #tpu.memory_space<vmem>>, vector<1x8x160xbf16>
    %231 = vector.shape_cast %230 : vector<1x8x160xbf16> to vector<8x160xbf16>
    %cst_198 = arith.constant dense<0.000000e+00> : vector<8x128xf32>
    %232 = tpu.matmul %231, %0, %cst_198 {dimension_numbers = #tpu.dot_dimension_numbers<[1], [0], [0], [1], [0, 0, 1, 1], [], []>} : vector<8x160xbf16>, vector<160x128xbf16>, vector<8x128xf32> -> vector<8x128xf32>
    %233 = arith.maximumf %229, %232 : vector<8x128xf32>
    %234 = vector.broadcast %1 : vector<1x128xf32> to vector<8x128xf32>
    %235 = arith.addf %233, %234 : vector<8x128xf32>
    %cst_199 = arith.constant 0.000000e+00 : f32
    %236 = vector.broadcast %cst_199 : f32 to vector<8x128xf32>
    %237 = arith.maximumf %235, %236 : vector<8x128xf32>
    %238 = arith.truncf %237 : vector<8x128xf32> to vector<8x128xbf16>
    %c9_200 = arith.constant 9 : index
    %c0_201 = arith.constant 0 : index
    %c0_202 = arith.constant 0 : index
    %239 = vector.load %arg7[%c9_200, %c0_201, %c0_202] : memref<25x128x128xbf16, #tpu.memory_space<vmem>>, vector<1x128x128xbf16>
    %240 = vector.shape_cast %239 : vector<1x128x128xbf16> to vector<128x128xbf16>
    %cst_203 = arith.constant dense<0.000000e+00> : vector<8x128xf32>
    %241 = tpu.matmul %238, %240, %cst_203 {dimension_numbers = #tpu.dot_dimension_numbers<[1], [0], [0], [1], [0, 0, 1, 1], [], []>} : vector<8x128xbf16>, vector<128x128xbf16>, vector<8x128xf32> -> vector<8x128xf32>
    %242 = arith.addf %218, %241 : vector<8x128xf32>
    %c10 = arith.constant 10 : index
    %c0_204 = arith.constant 0 : index
    %c0_205 = arith.constant 0 : index
    %243 = vector.load %arg1[%c10, %c0_204, %c0_205] : memref<25x8x160xbf16, #tpu.memory_space<vmem>>, vector<1x8x160xbf16>
    %244 = vector.shape_cast %243 : vector<1x8x160xbf16> to vector<8x160xbf16>
    %cst_206 = arith.constant dense<0.000000e+00> : vector<8x128xf32>
    %245 = tpu.matmul %244, %0, %cst_206 {dimension_numbers = #tpu.dot_dimension_numbers<[1], [0], [0], [1], [0, 0, 1, 1], [], []>} : vector<8x160xbf16>, vector<160x128xbf16>, vector<8x128xf32> -> vector<8x128xf32>
    %c10_207 = arith.constant 10 : index
    %c0_208 = arith.constant 0 : index
    %c0_209 = arith.constant 0 : index
    %246 = vector.load %arg2[%c10_207, %c0_208, %c0_209] : memref<25x8x160xbf16, #tpu.memory_space<vmem>>, vector<1x8x160xbf16>
    %247 = vector.shape_cast %246 : vector<1x8x160xbf16> to vector<8x160xbf16>
    %cst_210 = arith.constant dense<0.000000e+00> : vector<8x128xf32>
    %248 = tpu.matmul %247, %0, %cst_210 {dimension_numbers = #tpu.dot_dimension_numbers<[1], [0], [0], [1], [0, 0, 1, 1], [], []>} : vector<8x160xbf16>, vector<160x128xbf16>, vector<8x128xf32> -> vector<8x128xf32>
    %249 = arith.maximumf %245, %248 : vector<8x128xf32>
    %c10_211 = arith.constant 10 : index
    %c0_212 = arith.constant 0 : index
    %c0_213 = arith.constant 0 : index
    %250 = vector.load %arg3[%c10_211, %c0_212, %c0_213] : memref<25x8x160xbf16, #tpu.memory_space<vmem>>, vector<1x8x160xbf16>
    %251 = vector.shape_cast %250 : vector<1x8x160xbf16> to vector<8x160xbf16>
    %cst_214 = arith.constant dense<0.000000e+00> : vector<8x128xf32>
    %252 = tpu.matmul %251, %0, %cst_214 {dimension_numbers = #tpu.dot_dimension_numbers<[1], [0], [0], [1], [0, 0, 1, 1], [], []>} : vector<8x160xbf16>, vector<160x128xbf16>, vector<8x128xf32> -> vector<8x128xf32>
    %253 = arith.maximumf %249, %252 : vector<8x128xf32>
    %c10_215 = arith.constant 10 : index
    %c0_216 = arith.constant 0 : index
    %c0_217 = arith.constant 0 : index
    %254 = vector.load %arg4[%c10_215, %c0_216, %c0_217] : memref<25x8x160xbf16, #tpu.memory_space<vmem>>, vector<1x8x160xbf16>
    %255 = vector.shape_cast %254 : vector<1x8x160xbf16> to vector<8x160xbf16>
    %cst_218 = arith.constant dense<0.000000e+00> : vector<8x128xf32>
    %256 = tpu.matmul %255, %0, %cst_218 {dimension_numbers = #tpu.dot_dimension_numbers<[1], [0], [0], [1], [0, 0, 1, 1], [], []>} : vector<8x160xbf16>, vector<160x128xbf16>, vector<8x128xf32> -> vector<8x128xf32>
    %257 = arith.maximumf %253, %256 : vector<8x128xf32>
    %258 = vector.broadcast %1 : vector<1x128xf32> to vector<8x128xf32>
    %259 = arith.addf %257, %258 : vector<8x128xf32>
    %cst_219 = arith.constant 0.000000e+00 : f32
    %260 = vector.broadcast %cst_219 : f32 to vector<8x128xf32>
    %261 = arith.maximumf %259, %260 : vector<8x128xf32>
    %262 = arith.truncf %261 : vector<8x128xf32> to vector<8x128xbf16>
    %c10_220 = arith.constant 10 : index
    %c0_221 = arith.constant 0 : index
    %c0_222 = arith.constant 0 : index
    %263 = vector.load %arg7[%c10_220, %c0_221, %c0_222] : memref<25x128x128xbf16, #tpu.memory_space<vmem>>, vector<1x128x128xbf16>
    %264 = vector.shape_cast %263 : vector<1x128x128xbf16> to vector<128x128xbf16>
    %cst_223 = arith.constant dense<0.000000e+00> : vector<8x128xf32>
    %265 = tpu.matmul %262, %264, %cst_223 {dimension_numbers = #tpu.dot_dimension_numbers<[1], [0], [0], [1], [0, 0, 1, 1], [], []>} : vector<8x128xbf16>, vector<128x128xbf16>, vector<8x128xf32> -> vector<8x128xf32>
    %266 = arith.addf %242, %265 : vector<8x128xf32>
    %c11 = arith.constant 11 : index
    %c0_224 = arith.constant 0 : index
    %c0_225 = arith.constant 0 : index
    %267 = vector.load %arg1[%c11, %c0_224, %c0_225] : memref<25x8x160xbf16, #tpu.memory_space<vmem>>, vector<1x8x160xbf16>
    %268 = vector.shape_cast %267 : vector<1x8x160xbf16> to vector<8x160xbf16>
    %cst_226 = arith.constant dense<0.000000e+00> : vector<8x128xf32>
    %269 = tpu.matmul %268, %0, %cst_226 {dimension_numbers = #tpu.dot_dimension_numbers<[1], [0], [0], [1], [0, 0, 1, 1], [], []>} : vector<8x160xbf16>, vector<160x128xbf16>, vector<8x128xf32> -> vector<8x128xf32>
    %c11_227 = arith.constant 11 : index
    %c0_228 = arith.constant 0 : index
    %c0_229 = arith.constant 0 : index
    %270 = vector.load %arg2[%c11_227, %c0_228, %c0_229] : memref<25x8x160xbf16, #tpu.memory_space<vmem>>, vector<1x8x160xbf16>
    %271 = vector.shape_cast %270 : vector<1x8x160xbf16> to vector<8x160xbf16>
    %cst_230 = arith.constant dense<0.000000e+00> : vector<8x128xf32>
    %272 = tpu.matmul %271, %0, %cst_230 {dimension_numbers = #tpu.dot_dimension_numbers<[1], [0], [0], [1], [0, 0, 1, 1], [], []>} : vector<8x160xbf16>, vector<160x128xbf16>, vector<8x128xf32> -> vector<8x128xf32>
    %273 = arith.maximumf %269, %272 : vector<8x128xf32>
    %c11_231 = arith.constant 11 : index
    %c0_232 = arith.constant 0 : index
    %c0_233 = arith.constant 0 : index
    %274 = vector.load %arg3[%c11_231, %c0_232, %c0_233] : memref<25x8x160xbf16, #tpu.memory_space<vmem>>, vector<1x8x160xbf16>
    %275 = vector.shape_cast %274 : vector<1x8x160xbf16> to vector<8x160xbf16>
    %cst_234 = arith.constant dense<0.000000e+00> : vector<8x128xf32>
    %276 = tpu.matmul %275, %0, %cst_234 {dimension_numbers = #tpu.dot_dimension_numbers<[1], [0], [0], [1], [0, 0, 1, 1], [], []>} : vector<8x160xbf16>, vector<160x128xbf16>, vector<8x128xf32> -> vector<8x128xf32>
    %277 = arith.maximumf %273, %276 : vector<8x128xf32>
    %c11_235 = arith.constant 11 : index
    %c0_236 = arith.constant 0 : index
    %c0_237 = arith.constant 0 : index
    %278 = vector.load %arg4[%c11_235, %c0_236, %c0_237] : memref<25x8x160xbf16, #tpu.memory_space<vmem>>, vector<1x8x160xbf16>
    %279 = vector.shape_cast %278 : vector<1x8x160xbf16> to vector<8x160xbf16>
    %cst_238 = arith.constant dense<0.000000e+00> : vector<8x128xf32>
    %280 = tpu.matmul %279, %0, %cst_238 {dimension_numbers = #tpu.dot_dimension_numbers<[1], [0], [0], [1], [0, 0, 1, 1], [], []>} : vector<8x160xbf16>, vector<160x128xbf16>, vector<8x128xf32> -> vector<8x128xf32>
    %281 = arith.maximumf %277, %280 : vector<8x128xf32>
    %282 = vector.broadcast %1 : vector<1x128xf32> to vector<8x128xf32>
    %283 = arith.addf %281, %282 : vector<8x128xf32>
    %cst_239 = arith.constant 0.000000e+00 : f32
    %284 = vector.broadcast %cst_239 : f32 to vector<8x128xf32>
    %285 = arith.maximumf %283, %284 : vector<8x128xf32>
    %286 = arith.truncf %285 : vector<8x128xf32> to vector<8x128xbf16>
    %c11_240 = arith.constant 11 : index
    %c0_241 = arith.constant 0 : index
    %c0_242 = arith.constant 0 : index
    %287 = vector.load %arg7[%c11_240, %c0_241, %c0_242] : memref<25x128x128xbf16, #tpu.memory_space<vmem>>, vector<1x128x128xbf16>
    %288 = vector.shape_cast %287 : vector<1x128x128xbf16> to vector<128x128xbf16>
    %cst_243 = arith.constant dense<0.000000e+00> : vector<8x128xf32>
    %289 = tpu.matmul %286, %288, %cst_243 {dimension_numbers = #tpu.dot_dimension_numbers<[1], [0], [0], [1], [0, 0, 1, 1], [], []>} : vector<8x128xbf16>, vector<128x128xbf16>, vector<8x128xf32> -> vector<8x128xf32>
    %290 = arith.addf %266, %289 : vector<8x128xf32>
    %c12 = arith.constant 12 : index
    %c0_244 = arith.constant 0 : index
    %c0_245 = arith.constant 0 : index
    %291 = vector.load %arg1[%c12, %c0_244, %c0_245] : memref<25x8x160xbf16, #tpu.memory_space<vmem>>, vector<1x8x160xbf16>
    %292 = vector.shape_cast %291 : vector<1x8x160xbf16> to vector<8x160xbf16>
    %cst_246 = arith.constant dense<0.000000e+00> : vector<8x128xf32>
    %293 = tpu.matmul %292, %0, %cst_246 {dimension_numbers = #tpu.dot_dimension_numbers<[1], [0], [0], [1], [0, 0, 1, 1], [], []>} : vector<8x160xbf16>, vector<160x128xbf16>, vector<8x128xf32> -> vector<8x128xf32>
    %c12_247 = arith.constant 12 : index
    %c0_248 = arith.constant 0 : index
    %c0_249 = arith.constant 0 : index
    %294 = vector.load %arg2[%c12_247, %c0_248, %c0_249] : memref<25x8x160xbf16, #tpu.memory_space<vmem>>, vector<1x8x160xbf16>
    %295 = vector.shape_cast %294 : vector<1x8x160xbf16> to vector<8x160xbf16>
    %cst_250 = arith.constant dense<0.000000e+00> : vector<8x128xf32>
    %296 = tpu.matmul %295, %0, %cst_250 {dimension_numbers = #tpu.dot_dimension_numbers<[1], [0], [0], [1], [0, 0, 1, 1], [], []>} : vector<8x160xbf16>, vector<160x128xbf16>, vector<8x128xf32> -> vector<8x128xf32>
    %297 = arith.maximumf %293, %296 : vector<8x128xf32>
    %c12_251 = arith.constant 12 : index
    %c0_252 = arith.constant 0 : index
    %c0_253 = arith.constant 0 : index
    %298 = vector.load %arg3[%c12_251, %c0_252, %c0_253] : memref<25x8x160xbf16, #tpu.memory_space<vmem>>, vector<1x8x160xbf16>
    %299 = vector.shape_cast %298 : vector<1x8x160xbf16> to vector<8x160xbf16>
    %cst_254 = arith.constant dense<0.000000e+00> : vector<8x128xf32>
    %300 = tpu.matmul %299, %0, %cst_254 {dimension_numbers = #tpu.dot_dimension_numbers<[1], [0], [0], [1], [0, 0, 1, 1], [], []>} : vector<8x160xbf16>, vector<160x128xbf16>, vector<8x128xf32> -> vector<8x128xf32>
    %301 = arith.maximumf %297, %300 : vector<8x128xf32>
    %c12_255 = arith.constant 12 : index
    %c0_256 = arith.constant 0 : index
    %c0_257 = arith.constant 0 : index
    %302 = vector.load %arg4[%c12_255, %c0_256, %c0_257] : memref<25x8x160xbf16, #tpu.memory_space<vmem>>, vector<1x8x160xbf16>
    %303 = vector.shape_cast %302 : vector<1x8x160xbf16> to vector<8x160xbf16>
    %cst_258 = arith.constant dense<0.000000e+00> : vector<8x128xf32>
    %304 = tpu.matmul %303, %0, %cst_258 {dimension_numbers = #tpu.dot_dimension_numbers<[1], [0], [0], [1], [0, 0, 1, 1], [], []>} : vector<8x160xbf16>, vector<160x128xbf16>, vector<8x128xf32> -> vector<8x128xf32>
    %305 = arith.maximumf %301, %304 : vector<8x128xf32>
    %306 = vector.broadcast %1 : vector<1x128xf32> to vector<8x128xf32>
    %307 = arith.addf %305, %306 : vector<8x128xf32>
    %cst_259 = arith.constant 0.000000e+00 : f32
    %308 = vector.broadcast %cst_259 : f32 to vector<8x128xf32>
    %309 = arith.maximumf %307, %308 : vector<8x128xf32>
    %310 = arith.truncf %309 : vector<8x128xf32> to vector<8x128xbf16>
    %c12_260 = arith.constant 12 : index
    %c0_261 = arith.constant 0 : index
    %c0_262 = arith.constant 0 : index
    %311 = vector.load %arg7[%c12_260, %c0_261, %c0_262] : memref<25x128x128xbf16, #tpu.memory_space<vmem>>, vector<1x128x128xbf16>
    %312 = vector.shape_cast %311 : vector<1x128x128xbf16> to vector<128x128xbf16>
    %cst_263 = arith.constant dense<0.000000e+00> : vector<8x128xf32>
    %313 = tpu.matmul %310, %312, %cst_263 {dimension_numbers = #tpu.dot_dimension_numbers<[1], [0], [0], [1], [0, 0, 1, 1], [], []>} : vector<8x128xbf16>, vector<128x128xbf16>, vector<8x128xf32> -> vector<8x128xf32>
    %314 = arith.addf %290, %313 : vector<8x128xf32>
    %c13 = arith.constant 13 : index
    %c0_264 = arith.constant 0 : index
    %c0_265 = arith.constant 0 : index
    %315 = vector.load %arg1[%c13, %c0_264, %c0_265] : memref<25x8x160xbf16, #tpu.memory_space<vmem>>, vector<1x8x160xbf16>
    %316 = vector.shape_cast %315 : vector<1x8x160xbf16> to vector<8x160xbf16>
    %cst_266 = arith.constant dense<0.000000e+00> : vector<8x128xf32>
    %317 = tpu.matmul %316, %0, %cst_266 {dimension_numbers = #tpu.dot_dimension_numbers<[1], [0], [0], [1], [0, 0, 1, 1], [], []>} : vector<8x160xbf16>, vector<160x128xbf16>, vector<8x128xf32> -> vector<8x128xf32>
    %c13_267 = arith.constant 13 : index
    %c0_268 = arith.constant 0 : index
    %c0_269 = arith.constant 0 : index
    %318 = vector.load %arg2[%c13_267, %c0_268, %c0_269] : memref<25x8x160xbf16, #tpu.memory_space<vmem>>, vector<1x8x160xbf16>
    %319 = vector.shape_cast %318 : vector<1x8x160xbf16> to vector<8x160xbf16>
    %cst_270 = arith.constant dense<0.000000e+00> : vector<8x128xf32>
    %320 = tpu.matmul %319, %0, %cst_270 {dimension_numbers = #tpu.dot_dimension_numbers<[1], [0], [0], [1], [0, 0, 1, 1], [], []>} : vector<8x160xbf16>, vector<160x128xbf16>, vector<8x128xf32> -> vector<8x128xf32>
    %321 = arith.maximumf %317, %320 : vector<8x128xf32>
    %c13_271 = arith.constant 13 : index
    %c0_272 = arith.constant 0 : index
    %c0_273 = arith.constant 0 : index
    %322 = vector.load %arg3[%c13_271, %c0_272, %c0_273] : memref<25x8x160xbf16, #tpu.memory_space<vmem>>, vector<1x8x160xbf16>
    %323 = vector.shape_cast %322 : vector<1x8x160xbf16> to vector<8x160xbf16>
    %cst_274 = arith.constant dense<0.000000e+00> : vector<8x128xf32>
    %324 = tpu.matmul %323, %0, %cst_274 {dimension_numbers = #tpu.dot_dimension_numbers<[1], [0], [0], [1], [0, 0, 1, 1], [], []>} : vector<8x160xbf16>, vector<160x128xbf16>, vector<8x128xf32> -> vector<8x128xf32>
    %325 = arith.maximumf %321, %324 : vector<8x128xf32>
    %c13_275 = arith.constant 13 : index
    %c0_276 = arith.constant 0 : index
    %c0_277 = arith.constant 0 : index
    %326 = vector.load %arg4[%c13_275, %c0_276, %c0_277] : memref<25x8x160xbf16, #tpu.memory_space<vmem>>, vector<1x8x160xbf16>
    %327 = vector.shape_cast %326 : vector<1x8x160xbf16> to vector<8x160xbf16>
    %cst_278 = arith.constant dense<0.000000e+00> : vector<8x128xf32>
    %328 = tpu.matmul %327, %0, %cst_278 {dimension_numbers = #tpu.dot_dimension_numbers<[1], [0], [0], [1], [0, 0, 1, 1], [], []>} : vector<8x160xbf16>, vector<160x128xbf16>, vector<8x128xf32> -> vector<8x128xf32>
    %329 = arith.maximumf %325, %328 : vector<8x128xf32>
    %330 = vector.broadcast %1 : vector<1x128xf32> to vector<8x128xf32>
    %331 = arith.addf %329, %330 : vector<8x128xf32>
    %cst_279 = arith.constant 0.000000e+00 : f32
    %332 = vector.broadcast %cst_279 : f32 to vector<8x128xf32>
    %333 = arith.maximumf %331, %332 : vector<8x128xf32>
    %334 = arith.truncf %333 : vector<8x128xf32> to vector<8x128xbf16>
    %c13_280 = arith.constant 13 : index
    %c0_281 = arith.constant 0 : index
    %c0_282 = arith.constant 0 : index
    %335 = vector.load %arg7[%c13_280, %c0_281, %c0_282] : memref<25x128x128xbf16, #tpu.memory_space<vmem>>, vector<1x128x128xbf16>
    %336 = vector.shape_cast %335 : vector<1x128x128xbf16> to vector<128x128xbf16>
    %cst_283 = arith.constant dense<0.000000e+00> : vector<8x128xf32>
    %337 = tpu.matmul %334, %336, %cst_283 {dimension_numbers = #tpu.dot_dimension_numbers<[1], [0], [0], [1], [0, 0, 1, 1], [], []>} : vector<8x128xbf16>, vector<128x128xbf16>, vector<8x128xf32> -> vector<8x128xf32>
    %338 = arith.addf %314, %337 : vector<8x128xf32>
    %c14 = arith.constant 14 : index
    %c0_284 = arith.constant 0 : index
    %c0_285 = arith.constant 0 : index
    %339 = vector.load %arg1[%c14, %c0_284, %c0_285] : memref<25x8x160xbf16, #tpu.memory_space<vmem>>, vector<1x8x160xbf16>
    %340 = vector.shape_cast %339 : vector<1x8x160xbf16> to vector<8x160xbf16>
    %cst_286 = arith.constant dense<0.000000e+00> : vector<8x128xf32>
    %341 = tpu.matmul %340, %0, %cst_286 {dimension_numbers = #tpu.dot_dimension_numbers<[1], [0], [0], [1], [0, 0, 1, 1], [], []>} : vector<8x160xbf16>, vector<160x128xbf16>, vector<8x128xf32> -> vector<8x128xf32>
    %c14_287 = arith.constant 14 : index
    %c0_288 = arith.constant 0 : index
    %c0_289 = arith.constant 0 : index
    %342 = vector.load %arg2[%c14_287, %c0_288, %c0_289] : memref<25x8x160xbf16, #tpu.memory_space<vmem>>, vector<1x8x160xbf16>
    %343 = vector.shape_cast %342 : vector<1x8x160xbf16> to vector<8x160xbf16>
    %cst_290 = arith.constant dense<0.000000e+00> : vector<8x128xf32>
    %344 = tpu.matmul %343, %0, %cst_290 {dimension_numbers = #tpu.dot_dimension_numbers<[1], [0], [0], [1], [0, 0, 1, 1], [], []>} : vector<8x160xbf16>, vector<160x128xbf16>, vector<8x128xf32> -> vector<8x128xf32>
    %345 = arith.maximumf %341, %344 : vector<8x128xf32>
    %c14_291 = arith.constant 14 : index
    %c0_292 = arith.constant 0 : index
    %c0_293 = arith.constant 0 : index
    %346 = vector.load %arg3[%c14_291, %c0_292, %c0_293] : memref<25x8x160xbf16, #tpu.memory_space<vmem>>, vector<1x8x160xbf16>
    %347 = vector.shape_cast %346 : vector<1x8x160xbf16> to vector<8x160xbf16>
    %cst_294 = arith.constant dense<0.000000e+00> : vector<8x128xf32>
    %348 = tpu.matmul %347, %0, %cst_294 {dimension_numbers = #tpu.dot_dimension_numbers<[1], [0], [0], [1], [0, 0, 1, 1], [], []>} : vector<8x160xbf16>, vector<160x128xbf16>, vector<8x128xf32> -> vector<8x128xf32>
    %349 = arith.maximumf %345, %348 : vector<8x128xf32>
    %c14_295 = arith.constant 14 : index
    %c0_296 = arith.constant 0 : index
    %c0_297 = arith.constant 0 : index
    %350 = vector.load %arg4[%c14_295, %c0_296, %c0_297] : memref<25x8x160xbf16, #tpu.memory_space<vmem>>, vector<1x8x160xbf16>
    %351 = vector.shape_cast %350 : vector<1x8x160xbf16> to vector<8x160xbf16>
    %cst_298 = arith.constant dense<0.000000e+00> : vector<8x128xf32>
    %352 = tpu.matmul %351, %0, %cst_298 {dimension_numbers = #tpu.dot_dimension_numbers<[1], [0], [0], [1], [0, 0, 1, 1], [], []>} : vector<8x160xbf16>, vector<160x128xbf16>, vector<8x128xf32> -> vector<8x128xf32>
    %353 = arith.maximumf %349, %352 : vector<8x128xf32>
    %354 = vector.broadcast %1 : vector<1x128xf32> to vector<8x128xf32>
    %355 = arith.addf %353, %354 : vector<8x128xf32>
    %cst_299 = arith.constant 0.000000e+00 : f32
    %356 = vector.broadcast %cst_299 : f32 to vector<8x128xf32>
    %357 = arith.maximumf %355, %356 : vector<8x128xf32>
    %358 = arith.truncf %357 : vector<8x128xf32> to vector<8x128xbf16>
    %c14_300 = arith.constant 14 : index
    %c0_301 = arith.constant 0 : index
    %c0_302 = arith.constant 0 : index
    %359 = vector.load %arg7[%c14_300, %c0_301, %c0_302] : memref<25x128x128xbf16, #tpu.memory_space<vmem>>, vector<1x128x128xbf16>
    %360 = vector.shape_cast %359 : vector<1x128x128xbf16> to vector<128x128xbf16>
    %cst_303 = arith.constant dense<0.000000e+00> : vector<8x128xf32>
    %361 = tpu.matmul %358, %360, %cst_303 {dimension_numbers = #tpu.dot_dimension_numbers<[1], [0], [0], [1], [0, 0, 1, 1], [], []>} : vector<8x128xbf16>, vector<128x128xbf16>, vector<8x128xf32> -> vector<8x128xf32>
    %362 = arith.addf %338, %361 : vector<8x128xf32>
    %c15 = arith.constant 15 : index
    %c0_304 = arith.constant 0 : index
    %c0_305 = arith.constant 0 : index
    %363 = vector.load %arg1[%c15, %c0_304, %c0_305] : memref<25x8x160xbf16, #tpu.memory_space<vmem>>, vector<1x8x160xbf16>
    %364 = vector.shape_cast %363 : vector<1x8x160xbf16> to vector<8x160xbf16>
    %cst_306 = arith.constant dense<0.000000e+00> : vector<8x128xf32>
    %365 = tpu.matmul %364, %0, %cst_306 {dimension_numbers = #tpu.dot_dimension_numbers<[1], [0], [0], [1], [0, 0, 1, 1], [], []>} : vector<8x160xbf16>, vector<160x128xbf16>, vector<8x128xf32> -> vector<8x128xf32>
    %c15_307 = arith.constant 15 : index
    %c0_308 = arith.constant 0 : index
    %c0_309 = arith.constant 0 : index
    %366 = vector.load %arg2[%c15_307, %c0_308, %c0_309] : memref<25x8x160xbf16, #tpu.memory_space<vmem>>, vector<1x8x160xbf16>
    %367 = vector.shape_cast %366 : vector<1x8x160xbf16> to vector<8x160xbf16>
    %cst_310 = arith.constant dense<0.000000e+00> : vector<8x128xf32>
    %368 = tpu.matmul %367, %0, %cst_310 {dimension_numbers = #tpu.dot_dimension_numbers<[1], [0], [0], [1], [0, 0, 1, 1], [], []>} : vector<8x160xbf16>, vector<160x128xbf16>, vector<8x128xf32> -> vector<8x128xf32>
    %369 = arith.maximumf %365, %368 : vector<8x128xf32>
    %c15_311 = arith.constant 15 : index
    %c0_312 = arith.constant 0 : index
    %c0_313 = arith.constant 0 : index
    %370 = vector.load %arg3[%c15_311, %c0_312, %c0_313] : memref<25x8x160xbf16, #tpu.memory_space<vmem>>, vector<1x8x160xbf16>
    %371 = vector.shape_cast %370 : vector<1x8x160xbf16> to vector<8x160xbf16>
    %cst_314 = arith.constant dense<0.000000e+00> : vector<8x128xf32>
    %372 = tpu.matmul %371, %0, %cst_314 {dimension_numbers = #tpu.dot_dimension_numbers<[1], [0], [0], [1], [0, 0, 1, 1], [], []>} : vector<8x160xbf16>, vector<160x128xbf16>, vector<8x128xf32> -> vector<8x128xf32>
    %373 = arith.maximumf %369, %372 : vector<8x128xf32>
    %c15_315 = arith.constant 15 : index
    %c0_316 = arith.constant 0 : index
    %c0_317 = arith.constant 0 : index
    %374 = vector.load %arg4[%c15_315, %c0_316, %c0_317] : memref<25x8x160xbf16, #tpu.memory_space<vmem>>, vector<1x8x160xbf16>
    %375 = vector.shape_cast %374 : vector<1x8x160xbf16> to vector<8x160xbf16>
    %cst_318 = arith.constant dense<0.000000e+00> : vector<8x128xf32>
    %376 = tpu.matmul %375, %0, %cst_318 {dimension_numbers = #tpu.dot_dimension_numbers<[1], [0], [0], [1], [0, 0, 1, 1], [], []>} : vector<8x160xbf16>, vector<160x128xbf16>, vector<8x128xf32> -> vector<8x128xf32>
    %377 = arith.maximumf %373, %376 : vector<8x128xf32>
    %378 = vector.broadcast %1 : vector<1x128xf32> to vector<8x128xf32>
    %379 = arith.addf %377, %378 : vector<8x128xf32>
    %cst_319 = arith.constant 0.000000e+00 : f32
    %380 = vector.broadcast %cst_319 : f32 to vector<8x128xf32>
    %381 = arith.maximumf %379, %380 : vector<8x128xf32>
    %382 = arith.truncf %381 : vector<8x128xf32> to vector<8x128xbf16>
    %c15_320 = arith.constant 15 : index
    %c0_321 = arith.constant 0 : index
    %c0_322 = arith.constant 0 : index
    %383 = vector.load %arg7[%c15_320, %c0_321, %c0_322] : memref<25x128x128xbf16, #tpu.memory_space<vmem>>, vector<1x128x128xbf16>
    %384 = vector.shape_cast %383 : vector<1x128x128xbf16> to vector<128x128xbf16>
    %cst_323 = arith.constant dense<0.000000e+00> : vector<8x128xf32>
    %385 = tpu.matmul %382, %384, %cst_323 {dimension_numbers = #tpu.dot_dimension_numbers<[1], [0], [0], [1], [0, 0, 1, 1], [], []>} : vector<8x128xbf16>, vector<128x128xbf16>, vector<8x128xf32> -> vector<8x128xf32>
    %386 = arith.addf %362, %385 : vector<8x128xf32>
    %c16 = arith.constant 16 : index
    %c0_324 = arith.constant 0 : index
    %c0_325 = arith.constant 0 : index
    %387 = vector.load %arg1[%c16, %c0_324, %c0_325] : memref<25x8x160xbf16, #tpu.memory_space<vmem>>, vector<1x8x160xbf16>
    %388 = vector.shape_cast %387 : vector<1x8x160xbf16> to vector<8x160xbf16>
    %cst_326 = arith.constant dense<0.000000e+00> : vector<8x128xf32>
    %389 = tpu.matmul %388, %0, %cst_326 {dimension_numbers = #tpu.dot_dimension_numbers<[1], [0], [0], [1], [0, 0, 1, 1], [], []>} : vector<8x160xbf16>, vector<160x128xbf16>, vector<8x128xf32> -> vector<8x128xf32>
    %c16_327 = arith.constant 16 : index
    %c0_328 = arith.constant 0 : index
    %c0_329 = arith.constant 0 : index
    %390 = vector.load %arg2[%c16_327, %c0_328, %c0_329] : memref<25x8x160xbf16, #tpu.memory_space<vmem>>, vector<1x8x160xbf16>
    %391 = vector.shape_cast %390 : vector<1x8x160xbf16> to vector<8x160xbf16>
    %cst_330 = arith.constant dense<0.000000e+00> : vector<8x128xf32>
    %392 = tpu.matmul %391, %0, %cst_330 {dimension_numbers = #tpu.dot_dimension_numbers<[1], [0], [0], [1], [0, 0, 1, 1], [], []>} : vector<8x160xbf16>, vector<160x128xbf16>, vector<8x128xf32> -> vector<8x128xf32>
    %393 = arith.maximumf %389, %392 : vector<8x128xf32>
    %c16_331 = arith.constant 16 : index
    %c0_332 = arith.constant 0 : index
    %c0_333 = arith.constant 0 : index
    %394 = vector.load %arg3[%c16_331, %c0_332, %c0_333] : memref<25x8x160xbf16, #tpu.memory_space<vmem>>, vector<1x8x160xbf16>
    %395 = vector.shape_cast %394 : vector<1x8x160xbf16> to vector<8x160xbf16>
    %cst_334 = arith.constant dense<0.000000e+00> : vector<8x128xf32>
    %396 = tpu.matmul %395, %0, %cst_334 {dimension_numbers = #tpu.dot_dimension_numbers<[1], [0], [0], [1], [0, 0, 1, 1], [], []>} : vector<8x160xbf16>, vector<160x128xbf16>, vector<8x128xf32> -> vector<8x128xf32>
    %397 = arith.maximumf %393, %396 : vector<8x128xf32>
    %c16_335 = arith.constant 16 : index
    %c0_336 = arith.constant 0 : index
    %c0_337 = arith.constant 0 : index
    %398 = vector.load %arg4[%c16_335, %c0_336, %c0_337] : memref<25x8x160xbf16, #tpu.memory_space<vmem>>, vector<1x8x160xbf16>
    %399 = vector.shape_cast %398 : vector<1x8x160xbf16> to vector<8x160xbf16>
    %cst_338 = arith.constant dense<0.000000e+00> : vector<8x128xf32>
    %400 = tpu.matmul %399, %0, %cst_338 {dimension_numbers = #tpu.dot_dimension_numbers<[1], [0], [0], [1], [0, 0, 1, 1], [], []>} : vector<8x160xbf16>, vector<160x128xbf16>, vector<8x128xf32> -> vector<8x128xf32>
    %401 = arith.maximumf %397, %400 : vector<8x128xf32>
    %402 = vector.broadcast %1 : vector<1x128xf32> to vector<8x128xf32>
    %403 = arith.addf %401, %402 : vector<8x128xf32>
    %cst_339 = arith.constant 0.000000e+00 : f32
    %404 = vector.broadcast %cst_339 : f32 to vector<8x128xf32>
    %405 = arith.maximumf %403, %404 : vector<8x128xf32>
    %406 = arith.truncf %405 : vector<8x128xf32> to vector<8x128xbf16>
    %c16_340 = arith.constant 16 : index
    %c0_341 = arith.constant 0 : index
    %c0_342 = arith.constant 0 : index
    %407 = vector.load %arg7[%c16_340, %c0_341, %c0_342] : memref<25x128x128xbf16, #tpu.memory_space<vmem>>, vector<1x128x128xbf16>
    %408 = vector.shape_cast %407 : vector<1x128x128xbf16> to vector<128x128xbf16>
    %cst_343 = arith.constant dense<0.000000e+00> : vector<8x128xf32>
    %409 = tpu.matmul %406, %408, %cst_343 {dimension_numbers = #tpu.dot_dimension_numbers<[1], [0], [0], [1], [0, 0, 1, 1], [], []>} : vector<8x128xbf16>, vector<128x128xbf16>, vector<8x128xf32> -> vector<8x128xf32>
    %410 = arith.addf %386, %409 : vector<8x128xf32>
    %c17 = arith.constant 17 : index
    %c0_344 = arith.constant 0 : index
    %c0_345 = arith.constant 0 : index
    %411 = vector.load %arg1[%c17, %c0_344, %c0_345] : memref<25x8x160xbf16, #tpu.memory_space<vmem>>, vector<1x8x160xbf16>
    %412 = vector.shape_cast %411 : vector<1x8x160xbf16> to vector<8x160xbf16>
    %cst_346 = arith.constant dense<0.000000e+00> : vector<8x128xf32>
    %413 = tpu.matmul %412, %0, %cst_346 {dimension_numbers = #tpu.dot_dimension_numbers<[1], [0], [0], [1], [0, 0, 1, 1], [], []>} : vector<8x160xbf16>, vector<160x128xbf16>, vector<8x128xf32> -> vector<8x128xf32>
    %c17_347 = arith.constant 17 : index
    %c0_348 = arith.constant 0 : index
    %c0_349 = arith.constant 0 : index
    %414 = vector.load %arg2[%c17_347, %c0_348, %c0_349] : memref<25x8x160xbf16, #tpu.memory_space<vmem>>, vector<1x8x160xbf16>
    %415 = vector.shape_cast %414 : vector<1x8x160xbf16> to vector<8x160xbf16>
    %cst_350 = arith.constant dense<0.000000e+00> : vector<8x128xf32>
    %416 = tpu.matmul %415, %0, %cst_350 {dimension_numbers = #tpu.dot_dimension_numbers<[1], [0], [0], [1], [0, 0, 1, 1], [], []>} : vector<8x160xbf16>, vector<160x128xbf16>, vector<8x128xf32> -> vector<8x128xf32>
    %417 = arith.maximumf %413, %416 : vector<8x128xf32>
    %c17_351 = arith.constant 17 : index
    %c0_352 = arith.constant 0 : index
    %c0_353 = arith.constant 0 : index
    %418 = vector.load %arg3[%c17_351, %c0_352, %c0_353] : memref<25x8x160xbf16, #tpu.memory_space<vmem>>, vector<1x8x160xbf16>
    %419 = vector.shape_cast %418 : vector<1x8x160xbf16> to vector<8x160xbf16>
    %cst_354 = arith.constant dense<0.000000e+00> : vector<8x128xf32>
    %420 = tpu.matmul %419, %0, %cst_354 {dimension_numbers = #tpu.dot_dimension_numbers<[1], [0], [0], [1], [0, 0, 1, 1], [], []>} : vector<8x160xbf16>, vector<160x128xbf16>, vector<8x128xf32> -> vector<8x128xf32>
    %421 = arith.maximumf %417, %420 : vector<8x128xf32>
    %c17_355 = arith.constant 17 : index
    %c0_356 = arith.constant 0 : index
    %c0_357 = arith.constant 0 : index
    %422 = vector.load %arg4[%c17_355, %c0_356, %c0_357] : memref<25x8x160xbf16, #tpu.memory_space<vmem>>, vector<1x8x160xbf16>
    %423 = vector.shape_cast %422 : vector<1x8x160xbf16> to vector<8x160xbf16>
    %cst_358 = arith.constant dense<0.000000e+00> : vector<8x128xf32>
    %424 = tpu.matmul %423, %0, %cst_358 {dimension_numbers = #tpu.dot_dimension_numbers<[1], [0], [0], [1], [0, 0, 1, 1], [], []>} : vector<8x160xbf16>, vector<160x128xbf16>, vector<8x128xf32> -> vector<8x128xf32>
    %425 = arith.maximumf %421, %424 : vector<8x128xf32>
    %426 = vector.broadcast %1 : vector<1x128xf32> to vector<8x128xf32>
    %427 = arith.addf %425, %426 : vector<8x128xf32>
    %cst_359 = arith.constant 0.000000e+00 : f32
    %428 = vector.broadcast %cst_359 : f32 to vector<8x128xf32>
    %429 = arith.maximumf %427, %428 : vector<8x128xf32>
    %430 = arith.truncf %429 : vector<8x128xf32> to vector<8x128xbf16>
    %c17_360 = arith.constant 17 : index
    %c0_361 = arith.constant 0 : index
    %c0_362 = arith.constant 0 : index
    %431 = vector.load %arg7[%c17_360, %c0_361, %c0_362] : memref<25x128x128xbf16, #tpu.memory_space<vmem>>, vector<1x128x128xbf16>
    %432 = vector.shape_cast %431 : vector<1x128x128xbf16> to vector<128x128xbf16>
    %cst_363 = arith.constant dense<0.000000e+00> : vector<8x128xf32>
    %433 = tpu.matmul %430, %432, %cst_363 {dimension_numbers = #tpu.dot_dimension_numbers<[1], [0], [0], [1], [0, 0, 1, 1], [], []>} : vector<8x128xbf16>, vector<128x128xbf16>, vector<8x128xf32> -> vector<8x128xf32>
    %434 = arith.addf %410, %433 : vector<8x128xf32>
    %c18 = arith.constant 18 : index
    %c0_364 = arith.constant 0 : index
    %c0_365 = arith.constant 0 : index
    %435 = vector.load %arg1[%c18, %c0_364, %c0_365] : memref<25x8x160xbf16, #tpu.memory_space<vmem>>, vector<1x8x160xbf16>
    %436 = vector.shape_cast %435 : vector<1x8x160xbf16> to vector<8x160xbf16>
    %cst_366 = arith.constant dense<0.000000e+00> : vector<8x128xf32>
    %437 = tpu.matmul %436, %0, %cst_366 {dimension_numbers = #tpu.dot_dimension_numbers<[1], [0], [0], [1], [0, 0, 1, 1], [], []>} : vector<8x160xbf16>, vector<160x128xbf16>, vector<8x128xf32> -> vector<8x128xf32>
    %c18_367 = arith.constant 18 : index
    %c0_368 = arith.constant 0 : index
    %c0_369 = arith.constant 0 : index
    %438 = vector.load %arg2[%c18_367, %c0_368, %c0_369] : memref<25x8x160xbf16, #tpu.memory_space<vmem>>, vector<1x8x160xbf16>
    %439 = vector.shape_cast %438 : vector<1x8x160xbf16> to vector<8x160xbf16>
    %cst_370 = arith.constant dense<0.000000e+00> : vector<8x128xf32>
    %440 = tpu.matmul %439, %0, %cst_370 {dimension_numbers = #tpu.dot_dimension_numbers<[1], [0], [0], [1], [0, 0, 1, 1], [], []>} : vector<8x160xbf16>, vector<160x128xbf16>, vector<8x128xf32> -> vector<8x128xf32>
    %441 = arith.maximumf %437, %440 : vector<8x128xf32>
    %c18_371 = arith.constant 18 : index
    %c0_372 = arith.constant 0 : index
    %c0_373 = arith.constant 0 : index
    %442 = vector.load %arg3[%c18_371, %c0_372, %c0_373] : memref<25x8x160xbf16, #tpu.memory_space<vmem>>, vector<1x8x160xbf16>
    %443 = vector.shape_cast %442 : vector<1x8x160xbf16> to vector<8x160xbf16>
    %cst_374 = arith.constant dense<0.000000e+00> : vector<8x128xf32>
    %444 = tpu.matmul %443, %0, %cst_374 {dimension_numbers = #tpu.dot_dimension_numbers<[1], [0], [0], [1], [0, 0, 1, 1], [], []>} : vector<8x160xbf16>, vector<160x128xbf16>, vector<8x128xf32> -> vector<8x128xf32>
    %445 = arith.maximumf %441, %444 : vector<8x128xf32>
    %c18_375 = arith.constant 18 : index
    %c0_376 = arith.constant 0 : index
    %c0_377 = arith.constant 0 : index
    %446 = vector.load %arg4[%c18_375, %c0_376, %c0_377] : memref<25x8x160xbf16, #tpu.memory_space<vmem>>, vector<1x8x160xbf16>
    %447 = vector.shape_cast %446 : vector<1x8x160xbf16> to vector<8x160xbf16>
    %cst_378 = arith.constant dense<0.000000e+00> : vector<8x128xf32>
    %448 = tpu.matmul %447, %0, %cst_378 {dimension_numbers = #tpu.dot_dimension_numbers<[1], [0], [0], [1], [0, 0, 1, 1], [], []>} : vector<8x160xbf16>, vector<160x128xbf16>, vector<8x128xf32> -> vector<8x128xf32>
    %449 = arith.maximumf %445, %448 : vector<8x128xf32>
    %450 = vector.broadcast %1 : vector<1x128xf32> to vector<8x128xf32>
    %451 = arith.addf %449, %450 : vector<8x128xf32>
    %cst_379 = arith.constant 0.000000e+00 : f32
    %452 = vector.broadcast %cst_379 : f32 to vector<8x128xf32>
    %453 = arith.maximumf %451, %452 : vector<8x128xf32>
    %454 = arith.truncf %453 : vector<8x128xf32> to vector<8x128xbf16>
    %c18_380 = arith.constant 18 : index
    %c0_381 = arith.constant 0 : index
    %c0_382 = arith.constant 0 : index
    %455 = vector.load %arg7[%c18_380, %c0_381, %c0_382] : memref<25x128x128xbf16, #tpu.memory_space<vmem>>, vector<1x128x128xbf16>
    %456 = vector.shape_cast %455 : vector<1x128x128xbf16> to vector<128x128xbf16>
    %cst_383 = arith.constant dense<0.000000e+00> : vector<8x128xf32>
    %457 = tpu.matmul %454, %456, %cst_383 {dimension_numbers = #tpu.dot_dimension_numbers<[1], [0], [0], [1], [0, 0, 1, 1], [], []>} : vector<8x128xbf16>, vector<128x128xbf16>, vector<8x128xf32> -> vector<8x128xf32>
    %458 = arith.addf %434, %457 : vector<8x128xf32>
    %c19 = arith.constant 19 : index
    %c0_384 = arith.constant 0 : index
    %c0_385 = arith.constant 0 : index
    %459 = vector.load %arg1[%c19, %c0_384, %c0_385] : memref<25x8x160xbf16, #tpu.memory_space<vmem>>, vector<1x8x160xbf16>
    %460 = vector.shape_cast %459 : vector<1x8x160xbf16> to vector<8x160xbf16>
    %cst_386 = arith.constant dense<0.000000e+00> : vector<8x128xf32>
    %461 = tpu.matmul %460, %0, %cst_386 {dimension_numbers = #tpu.dot_dimension_numbers<[1], [0], [0], [1], [0, 0, 1, 1], [], []>} : vector<8x160xbf16>, vector<160x128xbf16>, vector<8x128xf32> -> vector<8x128xf32>
    %c19_387 = arith.constant 19 : index
    %c0_388 = arith.constant 0 : index
    %c0_389 = arith.constant 0 : index
    %462 = vector.load %arg2[%c19_387, %c0_388, %c0_389] : memref<25x8x160xbf16, #tpu.memory_space<vmem>>, vector<1x8x160xbf16>
    %463 = vector.shape_cast %462 : vector<1x8x160xbf16> to vector<8x160xbf16>
    %cst_390 = arith.constant dense<0.000000e+00> : vector<8x128xf32>
    %464 = tpu.matmul %463, %0, %cst_390 {dimension_numbers = #tpu.dot_dimension_numbers<[1], [0], [0], [1], [0, 0, 1, 1], [], []>} : vector<8x160xbf16>, vector<160x128xbf16>, vector<8x128xf32> -> vector<8x128xf32>
    %465 = arith.maximumf %461, %464 : vector<8x128xf32>
    %c19_391 = arith.constant 19 : index
    %c0_392 = arith.constant 0 : index
    %c0_393 = arith.constant 0 : index
    %466 = vector.load %arg3[%c19_391, %c0_392, %c0_393] : memref<25x8x160xbf16, #tpu.memory_space<vmem>>, vector<1x8x160xbf16>
    %467 = vector.shape_cast %466 : vector<1x8x160xbf16> to vector<8x160xbf16>
    %cst_394 = arith.constant dense<0.000000e+00> : vector<8x128xf32>
    %468 = tpu.matmul %467, %0, %cst_394 {dimension_numbers = #tpu.dot_dimension_numbers<[1], [0], [0], [1], [0, 0, 1, 1], [], []>} : vector<8x160xbf16>, vector<160x128xbf16>, vector<8x128xf32> -> vector<8x128xf32>
    %469 = arith.maximumf %465, %468 : vector<8x128xf32>
    %c19_395 = arith.constant 19 : index
    %c0_396 = arith.constant 0 : index
    %c0_397 = arith.constant 0 : index
    %470 = vector.load %arg4[%c19_395, %c0_396, %c0_397] : memref<25x8x160xbf16, #tpu.memory_space<vmem>>, vector<1x8x160xbf16>
    %471 = vector.shape_cast %470 : vector<1x8x160xbf16> to vector<8x160xbf16>
    %cst_398 = arith.constant dense<0.000000e+00> : vector<8x128xf32>
    %472 = tpu.matmul %471, %0, %cst_398 {dimension_numbers = #tpu.dot_dimension_numbers<[1], [0], [0], [1], [0, 0, 1, 1], [], []>} : vector<8x160xbf16>, vector<160x128xbf16>, vector<8x128xf32> -> vector<8x128xf32>
    %473 = arith.maximumf %469, %472 : vector<8x128xf32>
    %474 = vector.broadcast %1 : vector<1x128xf32> to vector<8x128xf32>
    %475 = arith.addf %473, %474 : vector<8x128xf32>
    %cst_399 = arith.constant 0.000000e+00 : f32
    %476 = vector.broadcast %cst_399 : f32 to vector<8x128xf32>
    %477 = arith.maximumf %475, %476 : vector<8x128xf32>
    %478 = arith.truncf %477 : vector<8x128xf32> to vector<8x128xbf16>
    %c19_400 = arith.constant 19 : index
    %c0_401 = arith.constant 0 : index
    %c0_402 = arith.constant 0 : index
    %479 = vector.load %arg7[%c19_400, %c0_401, %c0_402] : memref<25x128x128xbf16, #tpu.memory_space<vmem>>, vector<1x128x128xbf16>
    %480 = vector.shape_cast %479 : vector<1x128x128xbf16> to vector<128x128xbf16>
    %cst_403 = arith.constant dense<0.000000e+00> : vector<8x128xf32>
    %481 = tpu.matmul %478, %480, %cst_403 {dimension_numbers = #tpu.dot_dimension_numbers<[1], [0], [0], [1], [0, 0, 1, 1], [], []>} : vector<8x128xbf16>, vector<128x128xbf16>, vector<8x128xf32> -> vector<8x128xf32>
    %482 = arith.addf %458, %481 : vector<8x128xf32>
    %c20 = arith.constant 20 : index
    %c0_404 = arith.constant 0 : index
    %c0_405 = arith.constant 0 : index
    %483 = vector.load %arg1[%c20, %c0_404, %c0_405] : memref<25x8x160xbf16, #tpu.memory_space<vmem>>, vector<1x8x160xbf16>
    %484 = vector.shape_cast %483 : vector<1x8x160xbf16> to vector<8x160xbf16>
    %cst_406 = arith.constant dense<0.000000e+00> : vector<8x128xf32>
    %485 = tpu.matmul %484, %0, %cst_406 {dimension_numbers = #tpu.dot_dimension_numbers<[1], [0], [0], [1], [0, 0, 1, 1], [], []>} : vector<8x160xbf16>, vector<160x128xbf16>, vector<8x128xf32> -> vector<8x128xf32>
    %c20_407 = arith.constant 20 : index
    %c0_408 = arith.constant 0 : index
    %c0_409 = arith.constant 0 : index
    %486 = vector.load %arg2[%c20_407, %c0_408, %c0_409] : memref<25x8x160xbf16, #tpu.memory_space<vmem>>, vector<1x8x160xbf16>
    %487 = vector.shape_cast %486 : vector<1x8x160xbf16> to vector<8x160xbf16>
    %cst_410 = arith.constant dense<0.000000e+00> : vector<8x128xf32>
    %488 = tpu.matmul %487, %0, %cst_410 {dimension_numbers = #tpu.dot_dimension_numbers<[1], [0], [0], [1], [0, 0, 1, 1], [], []>} : vector<8x160xbf16>, vector<160x128xbf16>, vector<8x128xf32> -> vector<8x128xf32>
    %489 = arith.maximumf %485, %488 : vector<8x128xf32>
    %c20_411 = arith.constant 20 : index
    %c0_412 = arith.constant 0 : index
    %c0_413 = arith.constant 0 : index
    %490 = vector.load %arg3[%c20_411, %c0_412, %c0_413] : memref<25x8x160xbf16, #tpu.memory_space<vmem>>, vector<1x8x160xbf16>
    %491 = vector.shape_cast %490 : vector<1x8x160xbf16> to vector<8x160xbf16>
    %cst_414 = arith.constant dense<0.000000e+00> : vector<8x128xf32>
    %492 = tpu.matmul %491, %0, %cst_414 {dimension_numbers = #tpu.dot_dimension_numbers<[1], [0], [0], [1], [0, 0, 1, 1], [], []>} : vector<8x160xbf16>, vector<160x128xbf16>, vector<8x128xf32> -> vector<8x128xf32>
    %493 = arith.maximumf %489, %492 : vector<8x128xf32>
    %c20_415 = arith.constant 20 : index
    %c0_416 = arith.constant 0 : index
    %c0_417 = arith.constant 0 : index
    %494 = vector.load %arg4[%c20_415, %c0_416, %c0_417] : memref<25x8x160xbf16, #tpu.memory_space<vmem>>, vector<1x8x160xbf16>
    %495 = vector.shape_cast %494 : vector<1x8x160xbf16> to vector<8x160xbf16>
    %cst_418 = arith.constant dense<0.000000e+00> : vector<8x128xf32>
    %496 = tpu.matmul %495, %0, %cst_418 {dimension_numbers = #tpu.dot_dimension_numbers<[1], [0], [0], [1], [0, 0, 1, 1], [], []>} : vector<8x160xbf16>, vector<160x128xbf16>, vector<8x128xf32> -> vector<8x128xf32>
    %497 = arith.maximumf %493, %496 : vector<8x128xf32>
    %498 = vector.broadcast %1 : vector<1x128xf32> to vector<8x128xf32>
    %499 = arith.addf %497, %498 : vector<8x128xf32>
    %cst_419 = arith.constant 0.000000e+00 : f32
    %500 = vector.broadcast %cst_419 : f32 to vector<8x128xf32>
    %501 = arith.maximumf %499, %500 : vector<8x128xf32>
    %502 = arith.truncf %501 : vector<8x128xf32> to vector<8x128xbf16>
    %c20_420 = arith.constant 20 : index
    %c0_421 = arith.constant 0 : index
    %c0_422 = arith.constant 0 : index
    %503 = vector.load %arg7[%c20_420, %c0_421, %c0_422] : memref<25x128x128xbf16, #tpu.memory_space<vmem>>, vector<1x128x128xbf16>
    %504 = vector.shape_cast %503 : vector<1x128x128xbf16> to vector<128x128xbf16>
    %cst_423 = arith.constant dense<0.000000e+00> : vector<8x128xf32>
    %505 = tpu.matmul %502, %504, %cst_423 {dimension_numbers = #tpu.dot_dimension_numbers<[1], [0], [0], [1], [0, 0, 1, 1], [], []>} : vector<8x128xbf16>, vector<128x128xbf16>, vector<8x128xf32> -> vector<8x128xf32>
    %506 = arith.addf %482, %505 : vector<8x128xf32>
    %c21 = arith.constant 21 : index
    %c0_424 = arith.constant 0 : index
    %c0_425 = arith.constant 0 : index
    %507 = vector.load %arg1[%c21, %c0_424, %c0_425] : memref<25x8x160xbf16, #tpu.memory_space<vmem>>, vector<1x8x160xbf16>
    %508 = vector.shape_cast %507 : vector<1x8x160xbf16> to vector<8x160xbf16>
    %cst_426 = arith.constant dense<0.000000e+00> : vector<8x128xf32>
    %509 = tpu.matmul %508, %0, %cst_426 {dimension_numbers = #tpu.dot_dimension_numbers<[1], [0], [0], [1], [0, 0, 1, 1], [], []>} : vector<8x160xbf16>, vector<160x128xbf16>, vector<8x128xf32> -> vector<8x128xf32>
    %c21_427 = arith.constant 21 : index
    %c0_428 = arith.constant 0 : index
    %c0_429 = arith.constant 0 : index
    %510 = vector.load %arg2[%c21_427, %c0_428, %c0_429] : memref<25x8x160xbf16, #tpu.memory_space<vmem>>, vector<1x8x160xbf16>
    %511 = vector.shape_cast %510 : vector<1x8x160xbf16> to vector<8x160xbf16>
    %cst_430 = arith.constant dense<0.000000e+00> : vector<8x128xf32>
    %512 = tpu.matmul %511, %0, %cst_430 {dimension_numbers = #tpu.dot_dimension_numbers<[1], [0], [0], [1], [0, 0, 1, 1], [], []>} : vector<8x160xbf16>, vector<160x128xbf16>, vector<8x128xf32> -> vector<8x128xf32>
    %513 = arith.maximumf %509, %512 : vector<8x128xf32>
    %c21_431 = arith.constant 21 : index
    %c0_432 = arith.constant 0 : index
    %c0_433 = arith.constant 0 : index
    %514 = vector.load %arg3[%c21_431, %c0_432, %c0_433] : memref<25x8x160xbf16, #tpu.memory_space<vmem>>, vector<1x8x160xbf16>
    %515 = vector.shape_cast %514 : vector<1x8x160xbf16> to vector<8x160xbf16>
    %cst_434 = arith.constant dense<0.000000e+00> : vector<8x128xf32>
    %516 = tpu.matmul %515, %0, %cst_434 {dimension_numbers = #tpu.dot_dimension_numbers<[1], [0], [0], [1], [0, 0, 1, 1], [], []>} : vector<8x160xbf16>, vector<160x128xbf16>, vector<8x128xf32> -> vector<8x128xf32>
    %517 = arith.maximumf %513, %516 : vector<8x128xf32>
    %c21_435 = arith.constant 21 : index
    %c0_436 = arith.constant 0 : index
    %c0_437 = arith.constant 0 : index
    %518 = vector.load %arg4[%c21_435, %c0_436, %c0_437] : memref<25x8x160xbf16, #tpu.memory_space<vmem>>, vector<1x8x160xbf16>
    %519 = vector.shape_cast %518 : vector<1x8x160xbf16> to vector<8x160xbf16>
    %cst_438 = arith.constant dense<0.000000e+00> : vector<8x128xf32>
    %520 = tpu.matmul %519, %0, %cst_438 {dimension_numbers = #tpu.dot_dimension_numbers<[1], [0], [0], [1], [0, 0, 1, 1], [], []>} : vector<8x160xbf16>, vector<160x128xbf16>, vector<8x128xf32> -> vector<8x128xf32>
    %521 = arith.maximumf %517, %520 : vector<8x128xf32>
    %522 = vector.broadcast %1 : vector<1x128xf32> to vector<8x128xf32>
    %523 = arith.addf %521, %522 : vector<8x128xf32>
    %cst_439 = arith.constant 0.000000e+00 : f32
    %524 = vector.broadcast %cst_439 : f32 to vector<8x128xf32>
    %525 = arith.maximumf %523, %524 : vector<8x128xf32>
    %526 = arith.truncf %525 : vector<8x128xf32> to vector<8x128xbf16>
    %c21_440 = arith.constant 21 : index
    %c0_441 = arith.constant 0 : index
    %c0_442 = arith.constant 0 : index
    %527 = vector.load %arg7[%c21_440, %c0_441, %c0_442] : memref<25x128x128xbf16, #tpu.memory_space<vmem>>, vector<1x128x128xbf16>
    %528 = vector.shape_cast %527 : vector<1x128x128xbf16> to vector<128x128xbf16>
    %cst_443 = arith.constant dense<0.000000e+00> : vector<8x128xf32>
    %529 = tpu.matmul %526, %528, %cst_443 {dimension_numbers = #tpu.dot_dimension_numbers<[1], [0], [0], [1], [0, 0, 1, 1], [], []>} : vector<8x128xbf16>, vector<128x128xbf16>, vector<8x128xf32> -> vector<8x128xf32>
    %530 = arith.addf %506, %529 : vector<8x128xf32>
    %c22 = arith.constant 22 : index
    %c0_444 = arith.constant 0 : index
    %c0_445 = arith.constant 0 : index
    %531 = vector.load %arg1[%c22, %c0_444, %c0_445] : memref<25x8x160xbf16, #tpu.memory_space<vmem>>, vector<1x8x160xbf16>
    %532 = vector.shape_cast %531 : vector<1x8x160xbf16> to vector<8x160xbf16>
    %cst_446 = arith.constant dense<0.000000e+00> : vector<8x128xf32>
    %533 = tpu.matmul %532, %0, %cst_446 {dimension_numbers = #tpu.dot_dimension_numbers<[1], [0], [0], [1], [0, 0, 1, 1], [], []>} : vector<8x160xbf16>, vector<160x128xbf16>, vector<8x128xf32> -> vector<8x128xf32>
    %c22_447 = arith.constant 22 : index
    %c0_448 = arith.constant 0 : index
    %c0_449 = arith.constant 0 : index
    %534 = vector.load %arg2[%c22_447, %c0_448, %c0_449] : memref<25x8x160xbf16, #tpu.memory_space<vmem>>, vector<1x8x160xbf16>
    %535 = vector.shape_cast %534 : vector<1x8x160xbf16> to vector<8x160xbf16>
    %cst_450 = arith.constant dense<0.000000e+00> : vector<8x128xf32>
    %536 = tpu.matmul %535, %0, %cst_450 {dimension_numbers = #tpu.dot_dimension_numbers<[1], [0], [0], [1], [0, 0, 1, 1], [], []>} : vector<8x160xbf16>, vector<160x128xbf16>, vector<8x128xf32> -> vector<8x128xf32>
    %537 = arith.maximumf %533, %536 : vector<8x128xf32>
    %c22_451 = arith.constant 22 : index
    %c0_452 = arith.constant 0 : index
    %c0_453 = arith.constant 0 : index
    %538 = vector.load %arg3[%c22_451, %c0_452, %c0_453] : memref<25x8x160xbf16, #tpu.memory_space<vmem>>, vector<1x8x160xbf16>
    %539 = vector.shape_cast %538 : vector<1x8x160xbf16> to vector<8x160xbf16>
    %cst_454 = arith.constant dense<0.000000e+00> : vector<8x128xf32>
    %540 = tpu.matmul %539, %0, %cst_454 {dimension_numbers = #tpu.dot_dimension_numbers<[1], [0], [0], [1], [0, 0, 1, 1], [], []>} : vector<8x160xbf16>, vector<160x128xbf16>, vector<8x128xf32> -> vector<8x128xf32>
    %541 = arith.maximumf %537, %540 : vector<8x128xf32>
    %c22_455 = arith.constant 22 : index
    %c0_456 = arith.constant 0 : index
    %c0_457 = arith.constant 0 : index
    %542 = vector.load %arg4[%c22_455, %c0_456, %c0_457] : memref<25x8x160xbf16, #tpu.memory_space<vmem>>, vector<1x8x160xbf16>
    %543 = vector.shape_cast %542 : vector<1x8x160xbf16> to vector<8x160xbf16>
    %cst_458 = arith.constant dense<0.000000e+00> : vector<8x128xf32>
    %544 = tpu.matmul %543, %0, %cst_458 {dimension_numbers = #tpu.dot_dimension_numbers<[1], [0], [0], [1], [0, 0, 1, 1], [], []>} : vector<8x160xbf16>, vector<160x128xbf16>, vector<8x128xf32> -> vector<8x128xf32>
    %545 = arith.maximumf %541, %544 : vector<8x128xf32>
    %546 = vector.broadcast %1 : vector<1x128xf32> to vector<8x128xf32>
    %547 = arith.addf %545, %546 : vector<8x128xf32>
    %cst_459 = arith.constant 0.000000e+00 : f32
    %548 = vector.broadcast %cst_459 : f32 to vector<8x128xf32>
    %549 = arith.maximumf %547, %548 : vector<8x128xf32>
    %550 = arith.truncf %549 : vector<8x128xf32> to vector<8x128xbf16>
    %c22_460 = arith.constant 22 : index
    %c0_461 = arith.constant 0 : index
    %c0_462 = arith.constant 0 : index
    %551 = vector.load %arg7[%c22_460, %c0_461, %c0_462] : memref<25x128x128xbf16, #tpu.memory_space<vmem>>, vector<1x128x128xbf16>
    %552 = vector.shape_cast %551 : vector<1x128x128xbf16> to vector<128x128xbf16>
    %cst_463 = arith.constant dense<0.000000e+00> : vector<8x128xf32>
    %553 = tpu.matmul %550, %552, %cst_463 {dimension_numbers = #tpu.dot_dimension_numbers<[1], [0], [0], [1], [0, 0, 1, 1], [], []>} : vector<8x128xbf16>, vector<128x128xbf16>, vector<8x128xf32> -> vector<8x128xf32>
    %554 = arith.addf %530, %553 : vector<8x128xf32>
    %c23 = arith.constant 23 : index
    %c0_464 = arith.constant 0 : index
    %c0_465 = arith.constant 0 : index
    %555 = vector.load %arg1[%c23, %c0_464, %c0_465] : memref<25x8x160xbf16, #tpu.memory_space<vmem>>, vector<1x8x160xbf16>
    %556 = vector.shape_cast %555 : vector<1x8x160xbf16> to vector<8x160xbf16>
    %cst_466 = arith.constant dense<0.000000e+00> : vector<8x128xf32>
    %557 = tpu.matmul %556, %0, %cst_466 {dimension_numbers = #tpu.dot_dimension_numbers<[1], [0], [0], [1], [0, 0, 1, 1], [], []>} : vector<8x160xbf16>, vector<160x128xbf16>, vector<8x128xf32> -> vector<8x128xf32>
    %c23_467 = arith.constant 23 : index
    %c0_468 = arith.constant 0 : index
    %c0_469 = arith.constant 0 : index
    %558 = vector.load %arg2[%c23_467, %c0_468, %c0_469] : memref<25x8x160xbf16, #tpu.memory_space<vmem>>, vector<1x8x160xbf16>
    %559 = vector.shape_cast %558 : vector<1x8x160xbf16> to vector<8x160xbf16>
    %cst_470 = arith.constant dense<0.000000e+00> : vector<8x128xf32>
    %560 = tpu.matmul %559, %0, %cst_470 {dimension_numbers = #tpu.dot_dimension_numbers<[1], [0], [0], [1], [0, 0, 1, 1], [], []>} : vector<8x160xbf16>, vector<160x128xbf16>, vector<8x128xf32> -> vector<8x128xf32>
    %561 = arith.maximumf %557, %560 : vector<8x128xf32>
    %c23_471 = arith.constant 23 : index
    %c0_472 = arith.constant 0 : index
    %c0_473 = arith.constant 0 : index
    %562 = vector.load %arg3[%c23_471, %c0_472, %c0_473] : memref<25x8x160xbf16, #tpu.memory_space<vmem>>, vector<1x8x160xbf16>
    %563 = vector.shape_cast %562 : vector<1x8x160xbf16> to vector<8x160xbf16>
    %cst_474 = arith.constant dense<0.000000e+00> : vector<8x128xf32>
    %564 = tpu.matmul %563, %0, %cst_474 {dimension_numbers = #tpu.dot_dimension_numbers<[1], [0], [0], [1], [0, 0, 1, 1], [], []>} : vector<8x160xbf16>, vector<160x128xbf16>, vector<8x128xf32> -> vector<8x128xf32>
    %565 = arith.maximumf %561, %564 : vector<8x128xf32>
    %c23_475 = arith.constant 23 : index
    %c0_476 = arith.constant 0 : index
    %c0_477 = arith.constant 0 : index
    %566 = vector.load %arg4[%c23_475, %c0_476, %c0_477] : memref<25x8x160xbf16, #tpu.memory_space<vmem>>, vector<1x8x160xbf16>
    %567 = vector.shape_cast %566 : vector<1x8x160xbf16> to vector<8x160xbf16>
    %cst_478 = arith.constant dense<0.000000e+00> : vector<8x128xf32>
    %568 = tpu.matmul %567, %0, %cst_478 {dimension_numbers = #tpu.dot_dimension_numbers<[1], [0], [0], [1], [0, 0, 1, 1], [], []>} : vector<8x160xbf16>, vector<160x128xbf16>, vector<8x128xf32> -> vector<8x128xf32>
    %569 = arith.maximumf %565, %568 : vector<8x128xf32>
    %570 = vector.broadcast %1 : vector<1x128xf32> to vector<8x128xf32>
    %571 = arith.addf %569, %570 : vector<8x128xf32>
    %cst_479 = arith.constant 0.000000e+00 : f32
    %572 = vector.broadcast %cst_479 : f32 to vector<8x128xf32>
    %573 = arith.maximumf %571, %572 : vector<8x128xf32>
    %574 = arith.truncf %573 : vector<8x128xf32> to vector<8x128xbf16>
    %c23_480 = arith.constant 23 : index
    %c0_481 = arith.constant 0 : index
    %c0_482 = arith.constant 0 : index
    %575 = vector.load %arg7[%c23_480, %c0_481, %c0_482] : memref<25x128x128xbf16, #tpu.memory_space<vmem>>, vector<1x128x128xbf16>
    %576 = vector.shape_cast %575 : vector<1x128x128xbf16> to vector<128x128xbf16>
    %cst_483 = arith.constant dense<0.000000e+00> : vector<8x128xf32>
    %577 = tpu.matmul %574, %576, %cst_483 {dimension_numbers = #tpu.dot_dimension_numbers<[1], [0], [0], [1], [0, 0, 1, 1], [], []>} : vector<8x128xbf16>, vector<128x128xbf16>, vector<8x128xf32> -> vector<8x128xf32>
    %578 = arith.addf %554, %577 : vector<8x128xf32>
    %c24 = arith.constant 24 : index
    %c0_484 = arith.constant 0 : index
    %c0_485 = arith.constant 0 : index
    %579 = vector.load %arg1[%c24, %c0_484, %c0_485] : memref<25x8x160xbf16, #tpu.memory_space<vmem>>, vector<1x8x160xbf16>
    %580 = vector.shape_cast %579 : vector<1x8x160xbf16> to vector<8x160xbf16>
    %cst_486 = arith.constant dense<0.000000e+00> : vector<8x128xf32>
    %581 = tpu.matmul %580, %0, %cst_486 {dimension_numbers = #tpu.dot_dimension_numbers<[1], [0], [0], [1], [0, 0, 1, 1], [], []>} : vector<8x160xbf16>, vector<160x128xbf16>, vector<8x128xf32> -> vector<8x128xf32>
    %c24_487 = arith.constant 24 : index
    %c0_488 = arith.constant 0 : index
    %c0_489 = arith.constant 0 : index
    %582 = vector.load %arg2[%c24_487, %c0_488, %c0_489] : memref<25x8x160xbf16, #tpu.memory_space<vmem>>, vector<1x8x160xbf16>
    %583 = vector.shape_cast %582 : vector<1x8x160xbf16> to vector<8x160xbf16>
    %cst_490 = arith.constant dense<0.000000e+00> : vector<8x128xf32>
    %584 = tpu.matmul %583, %0, %cst_490 {dimension_numbers = #tpu.dot_dimension_numbers<[1], [0], [0], [1], [0, 0, 1, 1], [], []>} : vector<8x160xbf16>, vector<160x128xbf16>, vector<8x128xf32> -> vector<8x128xf32>
    %585 = arith.maximumf %581, %584 : vector<8x128xf32>
    %c24_491 = arith.constant 24 : index
    %c0_492 = arith.constant 0 : index
    %c0_493 = arith.constant 0 : index
    %586 = vector.load %arg3[%c24_491, %c0_492, %c0_493] : memref<25x8x160xbf16, #tpu.memory_space<vmem>>, vector<1x8x160xbf16>
    %587 = vector.shape_cast %586 : vector<1x8x160xbf16> to vector<8x160xbf16>
    %cst_494 = arith.constant dense<0.000000e+00> : vector<8x128xf32>
    %588 = tpu.matmul %587, %0, %cst_494 {dimension_numbers = #tpu.dot_dimension_numbers<[1], [0], [0], [1], [0, 0, 1, 1], [], []>} : vector<8x160xbf16>, vector<160x128xbf16>, vector<8x128xf32> -> vector<8x128xf32>
    %589 = arith.maximumf %585, %588 : vector<8x128xf32>
    %c24_495 = arith.constant 24 : index
    %c0_496 = arith.constant 0 : index
    %c0_497 = arith.constant 0 : index
    %590 = vector.load %arg4[%c24_495, %c0_496, %c0_497] : memref<25x8x160xbf16, #tpu.memory_space<vmem>>, vector<1x8x160xbf16>
    %591 = vector.shape_cast %590 : vector<1x8x160xbf16> to vector<8x160xbf16>
    %cst_498 = arith.constant dense<0.000000e+00> : vector<8x128xf32>
    %592 = tpu.matmul %591, %0, %cst_498 {dimension_numbers = #tpu.dot_dimension_numbers<[1], [0], [0], [1], [0, 0, 1, 1], [], []>} : vector<8x160xbf16>, vector<160x128xbf16>, vector<8x128xf32> -> vector<8x128xf32>
    %593 = arith.maximumf %589, %592 : vector<8x128xf32>
    %594 = vector.broadcast %1 : vector<1x128xf32> to vector<8x128xf32>
    %595 = arith.addf %593, %594 : vector<8x128xf32>
    %cst_499 = arith.constant 0.000000e+00 : f32
    %596 = vector.broadcast %cst_499 : f32 to vector<8x128xf32>
    %597 = arith.maximumf %595, %596 : vector<8x128xf32>
    %598 = arith.truncf %597 : vector<8x128xf32> to vector<8x128xbf16>
    %c24_500 = arith.constant 24 : index
    %c0_501 = arith.constant 0 : index
    %c0_502 = arith.constant 0 : index
    %599 = vector.load %arg7[%c24_500, %c0_501, %c0_502] : memref<25x128x128xbf16, #tpu.memory_space<vmem>>, vector<1x128x128xbf16>
    %600 = vector.shape_cast %599 : vector<1x128x128xbf16> to vector<128x128xbf16>
    %cst_503 = arith.constant dense<0.000000e+00> : vector<8x128xf32>
    %601 = tpu.matmul %598, %600, %cst_503 {dimension_numbers = #tpu.dot_dimension_numbers<[1], [0], [0], [1], [0, 0, 1, 1], [], []>} : vector<8x128xbf16>, vector<128x128xbf16>, vector<8x128xf32> -> vector<8x128xf32>
    %602 = arith.addf %578, %601 : vector<8x128xf32>
    %c0_504 = arith.constant 0 : index
    %c0_505 = arith.constant 0 : index
    %603 = vector.load %arg8[%c0_504, %c0_505] : memref<1x128xf32, #tpu.memory_space<vmem>>, vector<1x128xf32>
    %604 = vector.broadcast %603 : vector<1x128xf32> to vector<8x128xf32>
    %605 = arith.addf %602, %604 : vector<8x128xf32>
    %cst_506 = arith.constant 0.000000e+00 : f32
    %606 = vector.broadcast %cst_506 : f32 to vector<8x128xf32>
    %607 = arith.maximumf %605, %606 : vector<8x128xf32>
    %608 = arith.truncf %607 : vector<8x128xf32> to vector<8x128xbf16>
    %c0_507 = arith.constant 0 : index
    %c0_508 = arith.constant 0 : index
    %609 = vector.load %arg9[%c0_507, %c0_508] : memref<128x128xbf16, #tpu.memory_space<vmem>>, vector<128x128xbf16>
    %cst_509 = arith.constant dense<0.000000e+00> : vector<8x128xf32>
    %610 = tpu.matmul %608, %609, %cst_509 {dimension_numbers = #tpu.dot_dimension_numbers<[1], [0], [0], [1], [0, 0, 1, 1], [], []>} : vector<8x128xbf16>, vector<128x128xbf16>, vector<8x128xf32> -> vector<8x128xf32>
    %c0_510 = arith.constant 0 : index
    %c0_511 = arith.constant 0 : index
    %611 = vector.load %arg10[%c0_510, %c0_511] : memref<1x128xf32, #tpu.memory_space<vmem>>, vector<1x128xf32>
    %612 = vector.broadcast %611 : vector<1x128xf32> to vector<8x128xf32>
    %613 = arith.addf %610, %612 : vector<8x128xf32>
    %cst_512 = arith.constant 0.000000e+00 : f32
    %614 = vector.broadcast %cst_512 : f32 to vector<8x128xf32>
    %615 = arith.maximumf %613, %614 : vector<8x128xf32>
    %616 = arith.truncf %615 : vector<8x128xf32> to vector<8x128xbf16>
    %c0_513 = arith.constant 0 : index
    %c0_514 = arith.constant 0 : index
    %617 = vector.load %arg11[%c0_513, %c0_514] : memref<128x128xbf16, #tpu.memory_space<vmem>>, vector<128x128xbf16>
    %cst_515 = arith.constant dense<0.000000e+00> : vector<8x128xf32>
    %618 = tpu.matmul %616, %617, %cst_515 {dimension_numbers = #tpu.dot_dimension_numbers<[1], [0], [0], [1], [0, 0, 1, 1], [], []>} : vector<8x128xbf16>, vector<128x128xbf16>, vector<8x128xf32> -> vector<8x128xf32>
    %c0_516 = arith.constant 0 : index
    %c0_517 = arith.constant 0 : index
    %619 = vector.load %arg12[%c0_516, %c0_517] : memref<1x128xf32, #tpu.memory_space<vmem>>, vector<1x128xf32>
    %620 = vector.broadcast %619 : vector<1x128xf32> to vector<8x128xf32>
    %621 = arith.addf %618, %620 : vector<8x128xf32>
    %c0_518 = arith.constant 0 : index
    %c0_519 = arith.constant 0 : index
    %622 = vector.load %arg13[%c0_518, %c0_519] : memref<8x128xf32, #tpu.memory_space<vmem>>, vector<8x128xf32>
    tpu.vector_store %arg13[%c0_518, %c0_519], %621 {strides = array<i32>} : memref<8x128xf32, #tpu.memory_space<vmem>>, vector<8x128xf32>,
    return
  }
  func.func @transform_0(%arg0: i32) -> (i32, i32, i32) {
    %c0_i32 = arith.constant 0 : i32
    %c0_i32_0 = arith.constant 0 : i32
    %c0_i32_1 = arith.constant 0 : i32
    return %c0_i32, %arg0, %c0_i32_0 : i32, i32, i32
  }
  func.func @transform_1(%arg0: i32) -> (i32, i32, i32) {
    %c0_i32 = arith.constant 0 : i32
    %c0_i32_0 = arith.constant 0 : i32
    %c0_i32_1 = arith.constant 0 : i32
    return %c0_i32, %arg0, %c0_i32_0 : i32, i32, i32
  }
  func.func @transform_2(%arg0: i32) -> (i32, i32, i32) {
    %c0_i32 = arith.constant 0 : i32
    %c0_i32_0 = arith.constant 0 : i32
    %c0_i32_1 = arith.constant 0 : i32
    return %c0_i32, %arg0, %c0_i32_0 : i32, i32, i32
  }
  func.func @transform_3(%arg0: i32) -> (i32, i32, i32) {
    %c0_i32 = arith.constant 0 : i32
    %c0_i32_0 = arith.constant 0 : i32
    %c0_i32_1 = arith.constant 0 : i32
    return %c0_i32, %arg0, %c0_i32_0 : i32, i32, i32
  }
  func.func @transform_4(%arg0: i32) -> (i32, i32) {
    %c0_i32 = arith.constant 0 : i32
    %c0_i32_0 = arith.constant 0 : i32
    %c0_i32_1 = arith.constant 0 : i32
    return %c0_i32, %c0_i32_0 : i32, i32
  }
  func.func @transform_5(%arg0: i32) -> (i32, i32) {
    %c0_i32 = arith.constant 0 : i32
    %c0_i32_0 = arith.constant 0 : i32
    %c0_i32_1 = arith.constant 0 : i32
    return %c0_i32, %c0_i32_0 : i32, i32
  }
  func.func @transform_6(%arg0: i32) -> (i32, i32, i32) {
    %c0_i32 = arith.constant 0 : i32
    %c0_i32_0 = arith.constant 0 : i32
    %c0_i32_1 = arith.constant 0 : i32
    %c0_i32_2 = arith.constant 0 : i32
    return %c0_i32, %c0_i32_0, %c0_i32_1 : i32, i32, i32
  }
  func.func @transform_7(%arg0: i32) -> (i32, i32) {
    %c0_i32 = arith.constant 0 : i32
    %c0_i32_0 = arith.constant 0 : i32
    %c0_i32_1 = arith.constant 0 : i32
    return %c0_i32, %c0_i32_0 : i32, i32
  }
  func.func @transform_8(%arg0: i32) -> (i32, i32) {
    %c0_i32 = arith.constant 0 : i32
    %c0_i32_0 = arith.constant 0 : i32
    %c0_i32_1 = arith.constant 0 : i32
    return %c0_i32, %c0_i32_0 : i32, i32
  }
  func.func @transform_9(%arg0: i32) -> (i32, i32) {
    %c0_i32 = arith.constant 0 : i32
    %c0_i32_0 = arith.constant 0 : i32
    %c0_i32_1 = arith.constant 0 : i32
    return %c0_i32, %c0_i32_0 : i32, i32
  }
  func.func @transform_10(%arg0: i32) -> (i32, i32) {
    %c0_i32 = arith.constant 0 : i32
    %c0_i32_0 = arith.constant 0 : i32
    %c0_i32_1 = arith.constant 0 : i32
    return %c0_i32, %c0_i32_0 : i32, i32
  }
  func.func @transform_11(%arg0: i32) -> (i32, i32) {
    %c0_i32 = arith.constant 0 : i32
    %c0_i32_0 = arith.constant 0 : i32
    %c0_i32_1 = arith.constant 0 : i32
    return %c0_i32, %c0_i32_0 : i32, i32
  }
  func.func @transform_12(%arg0: i32) -> (i32, i32) {
    %c0_i32 = arith.constant 0 : i32
    %c0_i32_0 = arith.constant 0 : i32
    return %arg0, %c0_i32 : i32, i32
  }
}

</mosaic_0001>

<llo_original>
// kernel: tennet_forward.2
$region0: #{tennet_forward.2}
  #allocation0 [shape = 'u32[]', space=smem, size = 0x4, offset = 0x4, fixed_abs, tag = 'smem constant byte address 0x4 - core index']
  #allocation1 [shape = 'u32[144,128]{1,0:T(1,128)}', space=vmem, size = 0x12000, scoped, tag = 'internal scratch']
  %s0 = inlined_call_operand.vmem [shape: bf16[416,32], index: 0, kind: input, shape index: {}]
  %s1 = inlined_call_operand.vmem [shape: bf16[416,32], index: 1, kind: input, shape index: {}]
  %s2 = inlined_call_operand.vmem [shape: bf16[416,32], index: 2, kind: input, shape index: {}]
  %s3 = inlined_call_operand.vmem [shape: bf16[416,32], index: 3, kind: input, shape index: {}]
  %s4 = inlined_call_operand.vmem [shape: bf16[32,128], index: 4, kind: input, shape index: {}]
  %s5 = inlined_call_operand.vmem [shape: f32[1,128], index: 5, kind: input, shape index: {}]
  %s6 = inlined_call_operand.vmem [shape: bf16[416,6], index: 6, kind: output, shape index: {}]
  %s7 = sld [smem:[#allocation0]]
  $region57: #{tennet_forward.2} parent=0
    _
  %s9 = ssub.s32 1, %s7
  %s10 = scalar_select 0, %s9, %s7
  loop: start=0, step=1, limit=4
  $region2: #{tennet_forward.2} parent=0 // loop_pre_header
    _
  $region3: #{tennet_forward.2} parent=0 // loop_header
    %s12 = sphi 0, %s16
    %p13 = scmp.ge.s32.totalorder %s12, 4
    %s22 = sphi 0, %s24
    %s25 = sphi 0, %s22
    %s26 = sphi 0, %s25
    %s42 = sphi 0, %s26
    %s48 = sphi 0, %s50
    %s51 = sphi 0, %s48
    %s52 = sphi 0, %s51
    %s68 = sphi 0, %s52
    %s74 = sphi 0, %s76
    %s77 = sphi 0, %s74
    %s78 = sphi 0, %s77
    %s94 = sphi 0, %s78
    %s100 = sphi 0, %s102
    %s103 = sphi 0, %s100
    %s104 = sphi 0, %s103
    %s120 = sphi 0, %s104
    %s124 = sphi 0, %s124
    %s126 = sphi 0, %s124
    %s127 = sphi 0, %s126
    %s141 = sphi 0, %s127
    %s145 = sphi 0, %s145
    %s147 = sphi 0, %s145
    %s148 = sphi 0, %s147
    %s162 = sphi 0, %s148
    %s168 = sphi 0, %s170
    %s171 = sphi 0, %s168
    %s172 = sphi 0, %s171
    %s188 = sphi 0, %s172
  $region4: #{tennet_forward.2} parent=0 // loop_header_branch
    %15 = sbr.rel (%p13) target = $region8
  $region5: #{tennet_forward.2} parent=0 // loop_body
    %s17 = ssub.s32 %s12, 1
    %s18 = ssub.s32 %s12, 2
    %s19 = sadd.s32 %s12, 1
    %s20 = ssub.s32 %s12, %s19
    %p21 = scmp.eq.s32.totalorder %s20, 0
    %s23 = sadd.s32 %s22, 1
    %s24 = scalar_select %p21, %s22, %s23
    %p27 = pneg %p21
    %p28 = scmp.eq.s32.totalorder %s12, 1
    %p29 = por %p27, %p28
    %p30 = scmp.ne.s32.totalorder %s22, %s25
    %p31 = scmp.eq.s32.totalorder %s12, 0
    %p32 = por %p30, %p31
    %p33 = scmp.ne.s32.totalorder %s22, %s25
    %p34 = scmp.eq.s32.totalorder %s17, 1
    %p35 = por %p33, %p34
    %p36 = scmp.ne.s32.totalorder %s25, %s26
    %p37 = scmp.eq.s32.totalorder %s17, 0
    %p38 = por %p36, %p37
    %p39 = scmp.ne.s32.totalorder %s25, %s26
    %p40 = scmp.eq.s32.totalorder %s18, 1
    %p41 = por %p39, %p40
    %p43 = scmp.ne.s32.totalorder %s26, %s42
    %p44 = scmp.eq.s32.totalorder %s18, 0
    %p45 = por %p43, %p44
    %s46 = ssub.s32 %s12, %s19
    %p47 = scmp.eq.s32.totalorder %s46, 0
    %s49 = sadd.s32 %s48, 1
    %s50 = scalar_select %p47, %s48, %s49
    %p53 = pneg %p47
    %p54 = scmp.eq.s32.totalorder %s12, 1
    %p55 = por %p53, %p54
    %p56 = scmp.ne.s32.totalorder %s48, %s51
    %p57 = scmp.eq.s32.totalorder %s12, 0
    %p58 = por %p56, %p57
    %p59 = scmp.ne.s32.totalorder %s48, %s51
    %p60 = scmp.eq.s32.totalorder %s17, 1
    %p61 = por %p59, %p60
    %p62 = scmp.ne.s32.totalorder %s51, %s52
    %p63 = scmp.eq.s32.totalorder %s17, 0
    %p64 = por %p62, %p63
    %p65 = scmp.ne.s32.totalorder %s51, %s52
    %p66 = scmp.eq.s32.totalorder %s18, 1
    %p67 = por %p65, %p66
    %p69 = scmp.ne.s32.totalorder %s52, %s68
    %p70 = scmp.eq.s32.totalorder %s18, 0
    %p71 = por %p69, %p70
    %s72 = ssub.s32 %s12, %s19
    %p73 = scmp.eq.s32.totalorder %s72, 0
    %s75 = sadd.s32 %s74, 1
    %s76 = scalar_select %p73, %s74, %s75
    %p79 = pneg %p73
    %p80 = scmp.eq.s32.totalorder %s12, 1
    %p81 = por %p79, %p80
    %p82 = scmp.ne.s32.totalorder %s74, %s77
    %p83 = scmp.eq.s32.totalorder %s12, 0
    %p84 = por %p82, %p83
    %p85 = scmp.ne.s32.totalorder %s74, %s77
    %p86 = scmp.eq.s32.totalorder %s17, 1
    %p87 = por %p85, %p86
    %p88 = scmp.ne.s32.totalorder %s77, %s78
    %p89 = scmp.eq.s32.totalorder %s17, 0
    %p90 = por %p88, %p89
    %p91 = scmp.ne.s32.totalorder %s77, %s78
    %p92 = scmp.eq.s32.totalorder %s18, 1
    %p93 = por %p91, %p92
    %p95 = scmp.ne.s32.totalorder %s78, %s94
    %p96 = scmp.eq.s32.totalorder %s18, 0
    %p97 = por %p95, %p96
    %s98 = ssub.s32 %s12, %s19
    %p99 = scmp.eq.s32.totalorder %s98, 0
    %s101 = sadd.s32 %s100, 1
    %s102 = scalar_select %p99, %s100, %s101
    %p105 = pneg %p99
    %p106 = scmp.eq.s32.totalorder %s12, 1
    %p107 = por %p105, %p106
    %p108 = scmp.ne.s32.totalorder %s100, %s103
    %p109 = scmp.eq.s32.totalorder %s12, 0
    %p110 = por %p108, %p109
    %p111 = scmp.ne.s32.totalorder %s100, %s103
    %p112 = scmp.eq.s32.totalorder %s17, 1
    %p113 = por %p111, %p112
    %p114 = scmp.ne.s32.totalorder %s103, %s104
    %p115 = scmp.eq.s32.totalorder %s17, 0
    %p116 = por %p114, %p115
    %p117 = scmp.ne.s32.totalorder %s103, %s104
    %p118 = scmp.eq.s32.totalorder %s18, 1
    %p119 = por %p117, %p118
    %p121 = scmp.ne.s32.totalorder %s104, %s120
    %p122 = scmp.eq.s32.totalorder %s18, 0
    %p123 = por %p121, %p122
    %s125 = sadd.s32 %s124, 1
    %p128 = scmp.eq.s32.totalorder %s12, 1
    %p129 = scmp.ne.s32.totalorder %s124, %s126
    %p130 = scmp.eq.s32.totalorder %s12, 0
    %p131 = por %p129, %p130
    %p132 = scmp.ne.s32.totalorder %s124, %s126
    %p133 = scmp.eq.s32.totalorder %s17, 1
    %p134 = por %p132, %p133
    %p135 = scmp.ne.s32.totalorder %s126, %s127
    %p136 = scmp.eq.s32.totalorder %s17, 0
    %p137 = por %p135, %p136
    %p138 = scmp.ne.s32.totalorder %s126, %s127
    %p139 = scmp.eq.s32.totalorder %s18, 1
    %p140 = por %p138, %p139
    %p142 = scmp.ne.s32.totalorder %s127, %s141
    %p143 = scmp.eq.s32.totalorder %s18, 0
    %p144 = por %p142, %p143
    %s146 = sadd.s32 %s145, 1
    %p149 = scmp.eq.s32.totalorder %s12, 1
    %p150 = scmp.ne.s32.totalorder %s145, %s147
    %p151 = scmp.eq.s32.totalorder %s12, 0
    %p152 = por %p150, %p151
    %p153 = scmp.ne.s32.totalorder %s145, %s147
    %p154 = scmp.eq.s32.totalorder %s17, 1
    %p155 = por %p153, %p154
    %p156 = scmp.ne.s32.totalorder %s147, %s148
    %p157 = scmp.eq.s32.totalorder %s17, 0
    %p158 = por %p156, %p157
    %p159 = scmp.ne.s32.totalorder %s147, %s148
    %p160 = scmp.eq.s32.totalorder %s18, 1
    %p161 = por %p159, %p160
    %p163 = scmp.ne.s32.totalorder %s148, %s162
    %p164 = scmp.eq.s32.totalorder %s18, 0
    %p165 = por %p163, %p164
    %s166 = ssub.s32 %s12, %s19
    %p167 = scmp.eq.s32.totalorder %s166, 0
    %s169 = sadd.s32 %s168, 1
    %s170 = scalar_select %p167, %s168, %s169
    %p173 = pneg %p167
    %p174 = scmp.eq.s32.totalorder %s12, 1
    %p175 = por %p173, %p174
    %p176 = scmp.ne.s32.totalorder %s168, %s171
    %p177 = scmp.eq.s32.totalorder %s12, 0
    %p178 = por %p176, %p177
    %p179 = scmp.ne.s32.totalorder %s168, %s171
    %p180 = scmp.eq.s32.totalorder %s17, 1
    %p181 = por %p179, %p180
    %p182 = scmp.ne.s32.totalorder %s171, %s172
    %p183 = scmp.eq.s32.totalorder %s17, 0
    %p184 = por %p182, %p183
    %p185 = scmp.ne.s32.totalorder %s171, %s172
    %p186 = scmp.eq.s32.totalorder %s18, 1
    %p187 = por %p185, %p186
    %p189 = scmp.ne.s32.totalorder %s172, %s188
    %p190 = scmp.eq.s32.totalorder %s18, 0
    %p191 = por %p189, %p190
    %p192 = scmp.le.s32.totalorder 1, %s12
    %p193 = scmp.lt.s32.totalorder %s12, 3
    %p194 = pnand %p192, %p193
    %p195 = pneg %p194
    // Predicated region
    $region9: #{tennet_forward.2} parent=5 // pred_check
      _
    $region10: #{tennet_forward.2} parent=5 // pred_check_branch
      %197 = sbr.rel (%p194) target = $region12
    $region11: #{tennet_forward.2} parent=5 // pred_region
      %s198 = ssub.s32 %s12, 1
      // Predicated region
      $region13: #{tennet_forward.2} parent=11 // pred_check
        %p199 = pneg %p137
      $region14: #{tennet_forward.2} parent=11 // pred_check_branch
        %201 = sbr.rel (%p199) target = $region16
      $region15: #{tennet_forward.2} parent=11 // pred_region
        _
      $region16: #{tennet_forward.2} parent=11 // pred_fallthru
        _
      // Predicated region
      $region17: #{tennet_forward.2} parent=11 // pred_check
        %p202 = pneg %p158
      $region18: #{tennet_forward.2} parent=11 // pred_check_branch
        %204 = sbr.rel (%p202) target = $region20
      $region19: #{tennet_forward.2} parent=11 // pred_region
        _
      $region20: #{tennet_forward.2} parent=11 // pred_fallthru
        _
    $region12: #{tennet_forward.2} parent=5 // pred_fallthru
      _
    %p205 = scmp.lt.s32.totalorder %s12, 2
    // Predicated region
    $region21: #{tennet_forward.2} parent=5 // pred_check
      %p206 = pneg %p205
    $region22: #{tennet_forward.2} parent=5 // pred_check_branch
      %208 = sbr.rel (%p206) target = $region24
    $region23: #{tennet_forward.2} parent=5 // pred_region
      // Predicated region
      $region25: #{tennet_forward.2} parent=23 // pred_check
        %p209 = pneg %p32
      $region26: #{tennet_forward.2} parent=23 // pred_check_branch
        %211 = sbr.rel (%p209) target = $region28
      $region27: #{tennet_forward.2} parent=23 // pred_region
        %s212 = smul.u32 26, %s12
        %p213 = scmp.lt.s32.totalorder %s212, 51
        %s214 = scalar_select %p213, %s212, 51
        %s215 = smul.addr %s214, 4
        %s216 = scalar_lea.vmem %s0, %s215
        %s217 = smul.u32 26, %s12
      $region28: #{tennet_forward.2} parent=23 // pred_fallthru
        _
      // Predicated region
      $region29: #{tennet_forward.2} parent=23 // pred_check
        %p218 = pneg %p58
      $region30: #{tennet_forward.2} parent=23 // pred_check_branch
        %220 = sbr.rel (%p218) target = $region32
      $region31: #{tennet_forward.2} parent=23 // pred_region
        %s221 = smul.u32 26, %s12
        %p222 = scmp.lt.s32.totalorder %s221, 51
        %s223 = scalar_select %p222, %s221, 51
        %s224 = smul.addr %s223, 4
        %s225 = scalar_lea.vmem %s1, %s224
        %s226 = smul.u32 26, %s12
      $region32: #{tennet_forward.2} parent=23 // pred_fallthru
        _
      // Predicated region
      $region33: #{tennet_forward.2} parent=23 // pred_check
        %p227 = pneg %p84
      $region34: #{tennet_forward.2} parent=23 // pred_check_branch
        %229 = sbr.rel (%p227) target = $region36
      $region35: #{tennet_forward.2} parent=23 // pred_region
        %s230 = smul.u32 26, %s12
        %p231 = scmp.lt.s32.totalorder %s230, 51
        %s232 = scalar_select %p231, %s230, 51
        %s233 = smul.addr %s232, 4
        %s234 = scalar_lea.vmem %s2, %s233
        %s235 = smul.u32 26, %s12
      $region36: #{tennet_forward.2} parent=23 // pred_fallthru
        _
      // Predicated region
      $region37: #{tennet_forward.2} parent=23 // pred_check
        %p236 = pneg %p110
      $region38: #{tennet_forward.2} parent=23 // pred_check_branch
        %238 = sbr.rel (%p236) target = $region40
      $region39: #{tennet_forward.2} parent=23 // pred_region
        %s239 = smul.u32 26, %s12
        %p240 = scmp.lt.s32.totalorder %s239, 51
        %s241 = scalar_select %p240, %s239, 51
        %s242 = smul.addr %s241, 4
        %s243 = scalar_lea.vmem %s3, %s242
        %s244 = smul.u32 26, %s12
      $region40: #{tennet_forward.2} parent=23 // pred_fallthru
        _
    $region24: #{tennet_forward.2} parent=5 // pred_fallthru
      _
    %p245 = scmp.le.s32.totalorder 1, %s12
    %p246 = scmp.lt.s32.totalorder %s12, 3
    %p247 = pnand %p245, %p246
    %p248 = pneg %p247
    // Predicated region
    $region41: #{tennet_forward.2} parent=5 // pred_check
      _
    $region42: #{tennet_forward.2} parent=5 // pred_check_branch
      %250 = sbr.rel (%p247) target = $region44
    $region43: #{tennet_forward.2} parent=5 // pred_region
      %s251 = ssub.s32 %s12, 1
      %s252 = smul.u32 26, %s17
      %p253 = scmp.lt.s32.totalorder %s252, 51
      %s254 = scalar_select %p253, %s252, 51
      %s255 = smul.addr %s254, 4
      %s256 = scalar_lea.vmem %s0, %s255
      %p257 = pneg %p38
      %p258 = pneg %p35
      %s259 = smul.u32 26, %s17
      %p260 = scmp.lt.s32.totalorder %s259, 51
      %s261 = scalar_select %p260, %s259, 51
      %s262 = smul.addr %s261, 4
      %s263 = scalar_lea.vmem %s1, %s262
      %p264 = pneg %p64
      %p265 = pneg %p61
      %s266 = smul.u32 26, %s17
      %p267 = scmp.lt.s32.totalorder %s266, 51
      %s268 = scalar_select %p267, %s266, 51
      %s269 = smul.addr %s268, 4
      %s270 = scalar_lea.vmem %s2, %s269
      %p271 = pneg %p90
      %p272 = pneg %p87
      %s273 = smul.u32 26, %s17
      %p274 = scmp.lt.s32.totalorder %s273, 51
      %s275 = scalar_select %p274, %s273, 51
      %s276 = smul.addr %s275, 4
      %s277 = scalar_lea.vmem %s3, %s276
      %p278 = pneg %p116
      %p279 = pneg %p113
      %p280 = pneg %p137
      %p281 = pneg %p134
      %p282 = pneg %p158
      %p283 = pneg %p155
      %p284 = pneg %p184
      %p285 = pneg %p181
      %s286 = smul.u32 26, %s17
      %p287 = scmp.lt.s32.totalorder %s286, 51
      %s288 = scalar_select %p287, %s286, 51
      %s289 = smul.addr %s288, 4
      %s290 = scalar_lea.vmem %s6, %s289
      %s291 = smul.u32 26, %s17
      %p292 = scmp.lt.s32.totalorder %s291, 51
      %s293 = scalar_select %p292, %s291, 51
      %s294 = smul.addr %s293, 4
      %s295 = scalar_lea.vmem %s0, %s294
      %s296 = smul.u32 26, %s17
      %s297 = smul.u32 26, %s17
      %p298 = scmp.lt.s32.totalorder %s297, 51
      %s299 = scalar_select %p298, %s297, 51
      %s300 = smul.addr %s299, 4
      %s301 = scalar_lea.vmem %s1, %s300
      %s302 = smul.u32 26, %s17
      %s303 = smul.u32 26, %s17
      %p304 = scmp.lt.s32.totalorder %s303, 51
      %s305 = scalar_select %p304, %s303, 51
      %s306 = smul.addr %s305, 4
      %s307 = scalar_lea.vmem %s2, %s306
      %s308 = smul.u32 26, %s17
      %s309 = smul.u32 26, %s17
      %p310 = scmp.lt.s32.totalorder %s309, 51
      %s311 = scalar_select %p310, %s309, 51
      %s312 = smul.addr %s311, 4
      %s313 = scalar_lea.vmem %s3, %s312
      %s314 = smul.u32 26, %s17
      %s315 = smul.u32 26, %s17
      %p316 = scmp.lt.s32.totalorder %s315, 51
      %s317 = scalar_select %p316, %s315, 51
      %s318 = smul.addr %s317, 4
      %s319 = scalar_lea.vmem %s6, %s318
      %s320 = smul.u32 26, %s17
      %v322 = vld [vmem:[%s4] sm:$0xf]
      %v323 = vld [vmem:[%s4 + $0x4] sm:$0xf]
      %v324 = vld [vmem:[%s4 + $0x8] sm:$0xf]
      %v325 = vld [vmem:[%s4 + $0xc] sm:$0xf]
      %v326 = vld [vmem:[%s295] sm:$0xf]
      %v327 = vld [vmem:[%s295 + $0x4] sm:$0xf]
      %v328 = vld [vmem:[%s295 + $0x8] sm:$0xf]
      %v329 = vld [vmem:[%s295 + $0xc] sm:$0xf]
      %v330 = vld [vmem:[%s295 + $0x10] sm:$0xf]
      %v331 = vld [vmem:[%s295 + $0x14] sm:$0xf]
      %v332 = vld [vmem:[%s295 + $0x18] sm:$0xf]
      %v333 = vld [vmem:[%s295 + $0x1c] sm:$0xf]
      %v334 = vld [vmem:[%s295 + $0x20] sm:$0xf]
      %v335 = vld [vmem:[%s295 + $0x24] sm:$0xf]
      %v336 = vld [vmem:[%s295 + $0x28] sm:$0xf]
      %v337 = vld [vmem:[%s295 + $0x2c] sm:$0xf]
      %v338 = vld [vmem:[%s295 + $0x30] sm:$0xf]
      %v339 = vld [vmem:[%s295 + $0x34] sm:$0xf]
      %v340 = vld [vmem:[%s295 + $0x38] sm:$0xf]
      %v341 = vld [vmem:[%s295 + $0x3c] sm:$0xf]
      %v342 = vld [vmem:[%s295 + $0x40] sm:$0xf]
      %v343 = vld [vmem:[%s295 + $0x44] sm:$0xf]
      %v344 = vld [vmem:[%s295 + $0x48] sm:$0xf]
      %v345 = vld [vmem:[%s295 + $0x4c] sm:$0xf]
      %v346 = vld [vmem:[%s295 + $0x50] sm:$0xf]
      %v347 = vld [vmem:[%s295 + $0x54] sm:$0xf]
      %v348 = vld [vmem:[%s295 + $0x58] sm:$0xf]
      %v349 = vld [vmem:[%s295 + $0x5c] sm:$0xf]
      %v350 = vld [vmem:[%s295 + $0x60] sm:$0xf]
      %v351 = vld [vmem:[%s295 + $0x64] sm:$0xf]
      %v378 = vunpack.c.l.b16 %v326
      %v379 = vunpack.c.l.b16 %v327
      %v380 = vunpack.c.l.b16 %v328
      %v381 = vunpack.c.l.b16 %v329
      %v382 = vunpack.c.l.b16 %v330
      %v383 = vunpack.c.l.b16 %v331
      %v384 = vunpack.c.l.b16 %v332
      %v385 = vunpack.c.l.b16 %v333
      %v386 = vunpack.c.l.b16 %v334
      %v387 = vunpack.c.l.b16 %v335
      %v388 = vunpack.c.l.b16 %v336
      %v389 = vunpack.c.l.b16 %v337
      %v390 = vunpack.c.l.b16 %v338
      %v391 = vunpack.c.l.b16 %v339
      %v392 = vunpack.c.l.b16 %v340
      %v393 = vunpack.c.l.b16 %v341
      %v394 = vunpack.c.l.b16 %v342
      %v395 = vunpack.c.l.b16 %v343
      %v396 = vunpack.c.l.b16 %v344
      %v397 = vunpack.c.l.b16 %v345
      %v398 = vunpack.c.l.b16 %v346
      %v399 = vunpack.c.l.b16 %v347
      %v400 = vunpack.c.l.b16 %v348
      %v401 = vunpack.c.l.b16 %v349
      %v402 = vunpack.c.l.b16 %v350
      %v403 = vunpack.c.l.b16 %v351
      %v404 = vpack.c.b16 %v379, %v378
      %v405 = vpack.c.b16 %v381, %v380
      %v406 = vpack.c.b16 %v383, %v382
      %v407 = vpack.c.b16 %v385, %v384
      %v408 = vpack.c.b16 %v387, %v386
      %v409 = vpack.c.b16 %v389, %v388
      %v410 = vpack.c.b16 %v391, %v390
      %v411 = vpack.c.b16 %v393, %v392
      %v412 = vpack.c.b16 %v395, %v394
      %v413 = vpack.c.b16 %v397, %v396
      %v414 = vpack.c.b16 %v399, %v398
      %v415 = vpack.c.b16 %v401, %v400
      %v416 = vpack.c.b16 %v403, %v402
      %v421 = vunpack.c.l.b16 %v322
      %v422 = vunpack.c.l.b16 %v323
      %v423 = vunpack.c.l.b16 %v324
      %v424 = vunpack.c.l.b16 %v325
      %v425 = vpack.c.b16 %v422, %v421
      %v426 = vpack.c.b16 %v424, %v423
      %vm429 = vcmask 261120
      %v431 = vsel %vm429, %v404, 0
      %v434 = vsel %vm429, %v405, 0
      %v437 = vsel %vm429, %v406, 0
      %v440 = vsel %vm429, %v407, 0
      %v443 = vsel %vm429, %v408, 0
      %v446 = vsel %vm429, %v409, 0
      %v449 = vsel %vm429, %v410, 0
      %v452 = vsel %vm429, %v411, 0
      %v455 = vsel %vm429, %v412, 0
      %v458 = vsel %vm429, %v413, 0
      %v461 = vsel %vm429, %v414, 0
      %v464 = vsel %vm429, %v415, 0
      %v467 = vsel %vm429, %v416, 0
      %469 = vmatprep.subr.bf16.mxu0 0
      %470 = vmatpush1.bf16.msra.mxu0 %v425
      %471 = vmatprep.subr.bf16.mxu0 0
      %472 = vmatpush1.bf16.msra.mxu0 %v426
      %473 = vmatprep.subr.bf16.mxu0 0
      %474 = vmatpush1.bf16.msra.mxu0 0
      %475 = vmatprep.subr.bf16.mxu0 0
      %476 = vmatpush1.bf16.msra.mxu0 0
      %477 = vmatprep.subr.bf16.mxu0 0
      %478 = vmatpush1.bf16.msra.mxu0 0
      %479 = vmatprep.subr.bf16.mxu0 0
      %480 = vmatpush1.bf16.msra.mxu0 0
      %481 = vmatprep.subr.bf16.mxu0 0
      %482 = vmatpush1.bf16.msra.mxu0 0
      %483 = vmatprep.subr.bf16.mxu0 0
      %484 = vmatpush1.bf16.msra.mxu0 0
      %485 = vmatprep.subr.bf16.mxu0 0
      %486 = vmatpush1.bf16.msra.mxu0 0
      %487 = vmatprep.subr.bf16.mxu0 0
      %488 = vmatpush1.bf16.msra.mxu0 0
      %489 = vmatprep.subr.bf16.mxu0 0
      %490 = vmatpush1.bf16.msra.mxu0 0
      %491 = vmatprep.subr.bf16.mxu0 0
      %492 = vmatpush1.bf16.msra.mxu0 0
      %493 = vmatprep.subr.bf16.mxu0 0
      %494 = vmatpush1.bf16.msra.mxu0 0
      %495 = vmatprep.subr.bf16.mxu0 0
      %496 = vmatpush1.bf16.msra.mxu0 0
      %497 = vmatprep.subr.bf16.mxu0 0
      %498 = vmatpush1.bf16.msra.mxu0 0
      %499 = vmatprep.subr.bf16.mxu0 0
      %500 = vmatpush1.bf16.msra.mxu0 0
      %501 = vmatprep.mubr.bf16.mxu0 0
      %502 = vmatmul.mubr.bf16.gmra.mrb[0].mxu0 %v431
      %v503 = vpop.f32.mrb[0].mxu0
      %v504 = vadd.f32 0.0, %v503
      %v505 = vpop.f32.mrb[0].mxu0
      %v506 = vpop.f32.mrb[0].mxu0
      %v507 = vadd.f32 0.0, %v506
      %v508 = vpop.f32.mrb[0].mxu0
      %509 = vmatprep.mubr.bf16.mxu0 0
      %510 = vmatmul.mubr.bf16.gmra.mrb[0].mxu0 %v434
      %v511 = vpop.f32.mrb[0].mxu0
      %v512 = vadd.f32 0.0, %v511
      %v513 = vpop.f32.mrb[0].mxu0
      %v514 = vpop.f32.mrb[0].mxu0
      %v515 = vadd.f32 0.0, %v514
      %v516 = vpop.f32.mrb[0].mxu0
      %517 = vmatprep.mubr.bf16.mxu0 0
      %518 = vmatmul.mubr.bf16.gmra.mrb[0].mxu0 %v437
      %v519 = vpop.f32.mrb[0].mxu0
      %v520 = vadd.f32 0.0, %v519
      %v521 = vpop.f32.mrb[0].mxu0
      %v522 = vpop.f32.mrb[0].mxu0
      %v523 = vadd.f32 0.0, %v522
      %v524 = vpop.f32.mrb[0].mxu0
      %525 = vmatprep.mubr.bf16.mxu0 0
      %526 = vmatmul.mubr.bf16.gmra.mrb[0].mxu0 %v440
      %v527 = vpop.f32.mrb[0].mxu0
      %v528 = vadd.f32 0.0, %v527
      %v529 = vpop.f32.mrb[0].mxu0
      %v530 = vpop.f32.mrb[0].mxu0
      %v531 = vadd.f32 0.0, %v530
      %v532 = vpop.f32.mrb[0].mxu0
      %533 = vmatprep.mubr.bf16.mxu0 0
      %534 = vmatmul.mubr.bf16.gmra.mrb[0].mxu0 %v443
      %v535 = vpop.f32.mrb[0].mxu0
      %v536 = vadd.f32 0.0, %v535
      %v537 = vpop.f32.mrb[0].mxu0
      %v538 = vpop.f32.mrb[0].mxu0
      %v539 = vadd.f32 0.0, %v538
      %v540 = vpop.f32.mrb[0].mxu0
      %541 = vmatprep.mubr.bf16.mxu0 0
      %542 = vmatmul.mubr.bf16.gmra.mrb[0].mxu0 %v446
      %v543 = vpop.f32.mrb[0].mxu0
      %v544 = vadd.f32 0.0, %v543
      %v545 = vpop.f32.mrb[0].mxu0
      %v546 = vpop.f32.mrb[0].mxu0
      %v547 = vadd.f32 0.0, %v546
      %v548 = vpop.f32.mrb[0].mxu0
      %549 = vmatprep.mubr.bf16.mxu0 0
      %550 = vmatmul.mubr.bf16.gmra.mrb[0].mxu0 %v449
      %v551 = vpop.f32.mrb[0].mxu0
      %v552 = vadd.f32 0.0, %v551
      %v553 = vpop.f32.mrb[0].mxu0
      %v554 = vpop.f32.mrb[0].mxu0
      %v555 = vadd.f32 0.0, %v554
      %v556 = vpop.f32.mrb[0].mxu0
      %557 = vmatprep.mubr.bf16.mxu0 0
      %558 = vmatmul.mubr.bf16.gmra.mrb[0].mxu0 %v452
      %v559 = vpop.f32.mrb[0].mxu0
      %v560 = vadd.f32 0.0, %v559
      %v561 = vpop.f32.mrb[0].mxu0
      %v562 = vpop.f32.mrb[0].mxu0
      %v563 = vadd.f32 0.0, %v562
      %v564 = vpop.f32.mrb[0].mxu0
      %565 = vmatprep.mubr.bf16.mxu0 0
      %566 = vmatmul.mubr.bf16.gmra.mrb[0].mxu0 %v455
      %v567 = vpop.f32.mrb[0].mxu0
      %v568 = vadd.f32 0.0, %v567
      %v569 = vpop.f32.mrb[0].mxu0
      %v570 = vpop.f32.mrb[0].mxu0
      %v571 = vadd.f32 0.0, %v570
      %v572 = vpop.f32.mrb[0].mxu0
      %573 = vmatprep.mubr.bf16.mxu0 0
      %574 = vmatmul.mubr.bf16.gmra.mrb[0].mxu0 %v458
      %v575 = vpop.f32.mrb[0].mxu0
      %v576 = vadd.f32 0.0, %v575
      %v577 = vpop.f32.mrb[0].mxu0
      %v578 = vpop.f32.mrb[0].mxu0
      %v579 = vadd.f32 0.0, %v578
      %v580 = vpop.f32.mrb[0].mxu0
      %581 = vmatprep.mubr.bf16.mxu0 0
      %582 = vmatmul.mubr.bf16.gmra.mrb[0].mxu0 %v461
      %v583 = vpop.f32.mrb[0].mxu0
      %v584 = vadd.f32 0.0, %v583
      %v585 = vpop.f32.mrb[0].mxu0
      %v586 = vpop.f32.mrb[0].mxu0
      %v587 = vadd.f32 0.0, %v586
      %v588 = vpop.f32.mrb[0].mxu0
      %589 = vmatprep.mubr.bf16.mxu0 0
      %590 = vmatmul.mubr.bf16.gmra.mrb[0].mxu0 %v464
      %v591 = vpop.f32.mrb[0].mxu0
      %v592 = vadd.f32 0.0, %v591
      %v593 = vpop.f32.mrb[0].mxu0
      %v594 = vpop.f32.mrb[0].mxu0
      %v595 = vadd.f32 0.0, %v594
      %v596 = vpop.f32.mrb[0].mxu0
      %597 = vmatprep.mubr.bf16.mxu0 0
      %598 = vmatmul.mubr.bf16.gmra.mrb[0].mxu0 %v467
      %v599 = vpop.f32.mrb[0].mxu0
      %v600 = vadd.f32 0.0, %v599
      %v601 = vpop.f32.mrb[0].mxu0
      %v602 = vpop.f32.mrb[0].mxu0
      %v603 = vadd.f32 0.0, %v602
      %v604 = vpop.f32.mrb[0].mxu0
      %605 = vdwg.mxu0
      %v606 = vld [vmem:[%s301] sm:$0xf]
      %v607 = vld [vmem:[%s301 + $0x4] sm:$0xf]
      %v608 = vld [vmem:[%s301 + $0x8] sm:$0xf]
      %v609 = vld [vmem:[%s301 + $0xc] sm:$0xf]
      %v610 = vld [vmem:[%s301 + $0x10] sm:$0xf]
      %v611 = vld [vmem:[%s301 + $0x14] sm:$0xf]
      %v612 = vld [vmem:[%s301 + $0x18] sm:$0xf]
      %v613 = vld [vmem:[%s301 + $0x1c] sm:$0xf]
      %v614 = vld [vmem:[%s301 + $0x20] sm:$0xf]
      %v615 = vld [vmem:[%s301 + $0x24] sm:$0xf]
      %v616 = vld [vmem:[%s301 + $0x28] sm:$0xf]
      %v617 = vld [vmem:[%s301 + $0x2c] sm:$0xf]
      %v618 = vld [vmem:[%s301 + $0x30] sm:$0xf]
      %v619 = vld [vmem:[%s301 + $0x34] sm:$0xf]
      %v620 = vld [vmem:[%s301 + $0x38] sm:$0xf]
      %v621 = vld [vmem:[%s301 + $0x3c] sm:$0xf]
      %v622 = vld [vmem:[%s301 + $0x40] sm:$0xf]
      %v623 = vld [vmem:[%s301 + $0x44] sm:$0xf]
      %v624 = vld [vmem:[%s301 + $0x48] sm:$0xf]
      %v625 = vld [vmem:[%s301 + $0x4c] sm:$0xf]
      %v626 = vld [vmem:[%s301 + $0x50] sm:$0xf]
      %v627 = vld [vmem:[%s301 + $0x54] sm:$0xf]
      %v628 = vld [vmem:[%s301 + $0x58] sm:$0xf]
      %v629 = vld [vmem:[%s301 + $0x5c] sm:$0xf]
      %v630 = vld [vmem:[%s301 + $0x60] sm:$0xf]
      %v631 = vld [vmem:[%s301 + $0x64] sm:$0xf]
      %v658 = vunpack.c.l.b16 %v606
      %v659 = vunpack.c.l.b16 %v607
      %v660 = vunpack.c.l.b16 %v608
      %v661 = vunpack.c.l.b16 %v609
      %v662 = vunpack.c.l.b16 %v610
      %v663 = vunpack.c.l.b16 %v611
      %v664 = vunpack.c.l.b16 %v612
      %v665 = vunpack.c.l.b16 %v613
      %v666 = vunpack.c.l.b16 %v614
      %v667 = vunpack.c.l.b16 %v615
      %v668 = vunpack.c.l.b16 %v616
      %v669 = vunpack.c.l.b16 %v617
      %v670 = vunpack.c.l.b16 %v618
      %v671 = vunpack.c.l.b16 %v619
      %v672 = vunpack.c.l.b16 %v620
      %v673 = vunpack.c.l.b16 %v621
      %v674 = vunpack.c.l.b16 %v622
      %v675 = vunpack.c.l.b16 %v623
      %v676 = vunpack.c.l.b16 %v624
      %v677 = vunpack.c.l.b16 %v625
      %v678 = vunpack.c.l.b16 %v626
      %v679 = vunpack.c.l.b16 %v627
      %v680 = vunpack.c.l.b16 %v628
      %v681 = vunpack.c.l.b16 %v629
      %v682 = vunpack.c.l.b16 %v630
      %v683 = vunpack.c.l.b16 %v631
      %v684 = vpack.c.b16 %v659, %v658
      %v685 = vpack.c.b16 %v661, %v660
      %v686 = vpack.c.b16 %v663, %v662
      %v687 = vpack.c.b16 %v665, %v664
      %v688 = vpack.c.b16 %v667, %v666
      %v689 = vpack.c.b16 %v669, %v668
      %v690 = vpack.c.b16 %v671, %v670
      %v691 = vpack.c.b16 %v673, %v672
      %v692 = vpack.c.b16 %v675, %v674
      %v693 = vpack.c.b16 %v677, %v676
      %v694 = vpack.c.b16 %v679, %v678
      %v695 = vpack.c.b16 %v681, %v680
      %v696 = vpack.c.b16 %v683, %v682
      %v698 = vsel %vm429, %v684, 0
      %v701 = vsel %vm429, %v685, 0
      %v704 = vsel %vm429, %v686, 0
      %v707 = vsel %vm429, %v687, 0
      %v710 = vsel %vm429, %v688, 0
      %v713 = vsel %vm429, %v689, 0
      %v716 = vsel %vm429, %v690, 0
      %v719 = vsel %vm429, %v691, 0
      %v722 = vsel %vm429, %v692, 0
      %v725 = vsel %vm429, %v693, 0
      %v728 = vsel %vm429, %v694, 0
      %v731 = vsel %vm429, %v695, 0
      %v734 = vsel %vm429, %v696, 0
      %736 = vmatprep.subr.bf16.mxu0 0
      %737 = vmatpush1.bf16.msra.mxu0 %v425
      %738 = vmatprep.subr.bf16.mxu0 0
      %739 = vmatpush1.bf16.msra.mxu0 %v426
      %740 = vmatprep.subr.bf16.mxu0 0
      %741 = vmatpush1.bf16.msra.mxu0 0
      %742 = vmatprep.subr.bf16.mxu0 0
      %743 = vmatpush1.bf16.msra.mxu0 0
      %744 = vmatprep.subr.bf16.mxu0 0
      %745 = vmatpush1.bf16.msra.mxu0 0
      %746 = vmatprep.subr.bf16.mxu0 0
      %747 = vmatpush1.bf16.msra.mxu0 0
      %748 = vmatprep.subr.bf16.mxu0 0
      %749 = vmatpush1.bf16.msra.mxu0 0
      %750 = vmatprep.subr.bf16.mxu0 0
      %751 = vmatpush1.bf16.msra.mxu0 0
      %752 = vmatprep.subr.bf16.mxu0 0
      %753 = vmatpush1.bf16.msra.mxu0 0
      %754 = vmatprep.subr.bf16.mxu0 0
      %755 = vmatpush1.bf16.msra.mxu0 0
      %756 = vmatprep.subr.bf16.mxu0 0
      %757 = vmatpush1.bf16.msra.mxu0 0
      %758 = vmatprep.subr.bf16.mxu0 0
      %759 = vmatpush1.bf16.msra.mxu0 0
      %760 = vmatprep.subr.bf16.mxu0 0
      %761 = vmatpush1.bf16.msra.mxu0 0
      %762 = vmatprep.subr.bf16.mxu0 0
      %763 = vmatpush1.bf16.msra.mxu0 0
      %764 = vmatprep.subr.bf16.mxu0 0
      %765 = vmatpush1.bf16.msra.mxu0 0
      %766 = vmatprep.subr.bf16.mxu0 0
      %767 = vmatpush1.bf16.msra.mxu0 0
      %768 = vmatprep.mubr.bf16.mxu0 0
      %769 = vmatmul.mubr.bf16.gmra.mrb[0].mxu0 %v698
      %v770 = vpop.f32.mrb[0].mxu0
      %v771 = vadd.f32 0.0, %v770
      %v772 = vpop.f32.mrb[0].mxu0
      %v773 = vpop.f32.mrb[0].mxu0
      %v774 = vadd.f32 0.0, %v773
      %v775 = vpop.f32.mrb[0].mxu0
      %776 = vmatprep.mubr.bf16.mxu0 0
      %777 = vmatmul.mubr.bf16.gmra.mrb[0].mxu0 %v701
      %v778 = vpop.f32.mrb[0].mxu0
      %v779 = vadd.f32 0.0, %v778
      %v780 = vpop.f32.mrb[0].mxu0
      %v781 = vpop.f32.mrb[0].mxu0
      %v782 = vadd.f32 0.0, %v781
      %v783 = vpop.f32.mrb[0].mxu0
      %784 = vmatprep.mubr.bf16.mxu0 0
      %785 = vmatmul.mubr.bf16.gmra.mrb[0].mxu0 %v704
      %v786 = vpop.f32.mrb[0].mxu0
      %v787 = vadd.f32 0.0, %v786
      %v788 = vpop.f32.mrb[0].mxu0
      %v789 = vpop.f32.mrb[0].mxu0
      %v790 = vadd.f32 0.0, %v789
      %v791 = vpop.f32.mrb[0].mxu0
      %792 = vmatprep.mubr.bf16.mxu0 0
      %793 = vmatmul.mubr.bf16.gmra.mrb[0].mxu0 %v707
      %v794 = vpop.f32.mrb[0].mxu0
      %v795 = vadd.f32 0.0, %v794
      %v796 = vpop.f32.mrb[0].mxu0
      %v797 = vpop.f32.mrb[0].mxu0
      %v798 = vadd.f32 0.0, %v797
      %v799 = vpop.f32.mrb[0].mxu0
      %800 = vmatprep.mubr.bf16.mxu0 0
      %801 = vmatmul.mubr.bf16.gmra.mrb[0].mxu0 %v710
      %v802 = vpop.f32.mrb[0].mxu0
      %v803 = vadd.f32 0.0, %v802
      %v804 = vpop.f32.mrb[0].mxu0
      %v805 = vpop.f32.mrb[0].mxu0
      %v806 = vadd.f32 0.0, %v805
      %v807 = vpop.f32.mrb[0].mxu0
      %808 = vmatprep.mubr.bf16.mxu0 0
      %809 = vmatmul.mubr.bf16.gmra.mrb[0].mxu0 %v713
      %v810 = vpop.f32.mrb[0].mxu0
      %v811 = vadd.f32 0.0, %v810
      %v812 = vpop.f32.mrb[0].mxu0
      %v813 = vpop.f32.mrb[0].mxu0
      %v814 = vadd.f32 0.0, %v813
      %v815 = vpop.f32.mrb[0].mxu0
      %816 = vmatprep.mubr.bf16.mxu0 0
      %817 = vmatmul.mubr.bf16.gmra.mrb[0].mxu0 %v716
      %v818 = vpop.f32.mrb[0].mxu0
      %v819 = vadd.f32 0.0, %v818
      %v820 = vpop.f32.mrb[0].mxu0
      %v821 = vpop.f32.mrb[0].mxu0
      %v822 = vadd.f32 0.0, %v821
      %v823 = vpop.f32.mrb[0].mxu0
      %824 = vmatprep.mubr.bf16.mxu0 0
      %825 = vmatmul.mubr.bf16.gmra.mrb[0].mxu0 %v719
      %v826 = vpop.f32.mrb[0].mxu0
      %v827 = vadd.f32 0.0, %v826
      %v828 = vpop.f32.mrb[0].mxu0
      %v829 = vpop.f32.mrb[0].mxu0
      %v830 = vadd.f32 0.0, %v829
      %v831 = vpop.f32.mrb[0].mxu0
      %832 = vmatprep.mubr.bf16.mxu0 0
      %833 = vmatmul.mubr.bf16.gmra.mrb[0].mxu0 %v722
      %v834 = vpop.f32.mrb[0].mxu0
      %v835 = vadd.f32 0.0, %v834
      %v836 = vpop.f32.mrb[0].mxu0
      %v837 = vpop.f32.mrb[0].mxu0
      %v838 = vadd.f32 0.0, %v837
      %v839 = vpop.f32.mrb[0].mxu0
      %840 = vmatprep.mubr.bf16.mxu0 0
      %841 = vmatmul.mubr.bf16.gmra.mrb[0].mxu0 %v725
      %v842 = vpop.f32.mrb[0].mxu0
      %v843 = vadd.f32 0.0, %v842
      %v844 = vpop.f32.mrb[0].mxu0
      %v845 = vpop.f32.mrb[0].mxu0
      %v846 = vadd.f32 0.0, %v845
      %v847 = vpop.f32.mrb[0].mxu0
      %848 = vmatprep.mubr.bf16.mxu0 0
      %849 = vmatmul.mubr.bf16.gmra.mrb[0].mxu0 %v728
      %v850 = vpop.f32.mrb[0].mxu0
      %v851 = vadd.f32 0.0, %v850
      %v852 = vpop.f32.mrb[0].mxu0
      %v853 = vpop.f32.mrb[0].mxu0
      %v854 = vadd.f32 0.0, %v853
      %v855 = vpop.f32.mrb[0].mxu0
      %856 = vmatprep.mubr.bf16.mxu0 0
      %857 = vmatmul.mubr.bf16.gmra.mrb[0].mxu0 %v731
      %v858 = vpop.f32.mrb[0].mxu0
      %v859 = vadd.f32 0.0, %v858
      %v860 = vpop.f32.mrb[0].mxu0
      %v861 = vpop.f32.mrb[0].mxu0
      %v862 = vadd.f32 0.0, %v861
      %v863 = vpop.f32.mrb[0].mxu0
      %864 = vmatprep.mubr.bf16.mxu0 0
      %865 = vmatmul.mubr.bf16.gmra.mrb[0].mxu0 %v734
      %v866 = vpop.f32.mrb[0].mxu0
      %v867 = vadd.f32 0.0, %v866
      %v868 = vpop.f32.mrb[0].mxu0
      %v869 = vpop.f32.mrb[0].mxu0
      %v870 = vadd.f32 0.0, %v869
      %v871 = vpop.f32.mrb[0].mxu0
      %872 = vdwg.mxu0
      %v873 = vmax.f32 %v504, %v771
      %v874 = vmax.f32 %v507, %v774
      %v875 = vmax.f32 %v512, %v779
      %v876 = vmax.f32 %v515, %v782
      %v877 = vmax.f32 %v520, %v787
      %v878 = vmax.f32 %v523, %v790
      %v879 = vmax.f32 %v528, %v795
      %v880 = vmax.f32 %v531, %v798
      %v881 = vmax.f32 %v536, %v803
      %v882 = vmax.f32 %v539, %v806
      %v883 = vmax.f32 %v544, %v811
      %v884 = vmax.f32 %v547, %v814
      %v885 = vmax.f32 %v552, %v819
      %v886 = vmax.f32 %v555, %v822
      %v887 = vmax.f32 %v560, %v827
      %v888 = vmax.f32 %v563, %v830
      %v889 = vmax.f32 %v568, %v835
      %v890 = vmax.f32 %v571, %v838
      %v891 = vmax.f32 %v576, %v843
      %v892 = vmax.f32 %v579, %v846
      %v893 = vmax.f32 %v584, %v851
      %v894 = vmax.f32 %v587, %v854
      %v895 = vmax.f32 %v592, %v859
      %v896 = vmax.f32 %v595, %v862
      %v897 = vmax.f32 %v600, %v867
      %v898 = vmax.f32 %v603, %v870
      %v899 = vld [vmem:[%s307] sm:$0xf]
      %v900 = vld [vmem:[%s307 + $0x4] sm:$0xf]
      %v901 = vld [vmem:[%s307 + $0x8] sm:$0xf]
      %v902 = vld [vmem:[%s307 + $0xc] sm:$0xf]
      %v903 = vld [vmem:[%s307 + $0x10] sm:$0xf]
      %v904 = vld [vmem:[%s307 + $0x14] sm:$0xf]
      %v905 = vld [vmem:[%s307 + $0x18] sm:$0xf]
      %v906 = vld [vmem:[%s307 + $0x1c] sm:$0xf]
      %v907 = vld [vmem:[%s307 + $0x20] sm:$0xf]
      %v908 = vld [vmem:[%s307 + $0x24] sm:$0xf]
      %v909 = vld [vmem:[%s307 + $0x28] sm:$0xf]
      %v910 = vld [vmem:[%s307 + $0x2c] sm:$0xf]
      %v911 = vld [vmem:[%s307 + $0x30] sm:$0xf]
      %v912 = vld [vmem:[%s307 + $0x34] sm:$0xf]
      %v913 = vld [vmem:[%s307 + $0x38] sm:$0xf]
      %v914 = vld [vmem:[%s307 + $0x3c] sm:$0xf]
      %v915 = vld [vmem:[%s307 + $0x40] sm:$0xf]
      %v916 = vld [vmem:[%s307 + $0x44] sm:$0xf]
      %v917 = vld [vmem:[%s307 + $0x48] sm:$0xf]
      %v918 = vld [vmem:[%s307 + $0x4c] sm:$0xf]
      %v919 = vld [vmem:[%s307 + $0x50] sm:$0xf]
      %v920 = vld [vmem:[%s307 + $0x54] sm:$0xf]
      %v921 = vld [vmem:[%s307 + $0x58] sm:$0xf]
      %v922 = vld [vmem:[%s307 + $0x5c] sm:$0xf]
      %v923 = vld [vmem:[%s307 + $0x60] sm:$0xf]
      %v924 = vld [vmem:[%s307 + $0x64] sm:$0xf]
      %v951 = vunpack.c.l.b16 %v899
      %v952 = vunpack.c.l.b16 %v900
      %v953 = vunpack.c.l.b16 %v901
      %v954 = vunpack.c.l.b16 %v902
      %v955 = vunpack.c.l.b16 %v903
      %v956 = vunpack.c.l.b16 %v904
      %v957 = vunpack.c.l.b16 %v905
      %v958 = vunpack.c.l.b16 %v906
      %v959 = vunpack.c.l.b16 %v907
      %v960 = vunpack.c.l.b16 %v908
      %v961 = vunpack.c.l.b16 %v909
      %v962 = vunpack.c.l.b16 %v910
      %v963 = vunpack.c.l.b16 %v911
      %v964 = vunpack.c.l.b16 %v912
      %v965 = vunpack.c.l.b16 %v913
      %v966 = vunpack.c.l.b16 %v914
      %v967 = vunpack.c.l.b16 %v915
      %v968 = vunpack.c.l.b16 %v916
      %v969 = vunpack.c.l.b16 %v917
      %v970 = vunpack.c.l.b16 %v918
      %v971 = vunpack.c.l.b16 %v919
      %v972 = vunpack.c.l.b16 %v920
      %v973 = vunpack.c.l.b16 %v921
      %v974 = vunpack.c.l.b16 %v922
      %v975 = vunpack.c.l.b16 %v923
      %v976 = vunpack.c.l.b16 %v924
      %v977 = vpack.c.b16 %v952, %v951
      %v978 = vpack.c.b16 %v954, %v953
      %v979 = vpack.c.b16 %v956, %v955
      %v980 = vpack.c.b16 %v958, %v957
      %v981 = vpack.c.b16 %v960, %v959
      %v982 = vpack.c.b16 %v962, %v961
      %v983 = vpack.c.b16 %v964, %v963
      %v984 = vpack.c.b16 %v966, %v965
      %v985 = vpack.c.b16 %v968, %v967
      %v986 = vpack.c.b16 %v970, %v969
      %v987 = vpack.c.b16 %v972, %v971
      %v988 = vpack.c.b16 %v974, %v973
      %v989 = vpack.c.b16 %v976, %v975
      %v991 = vsel %vm429, %v977, 0
      %v994 = vsel %vm429, %v978, 0
      %v997 = vsel %vm429, %v979, 0
      %v1000 = vsel %vm429, %v980, 0
      %v1003 = vsel %vm429, %v981, 0
      %v1006 = vsel %vm429, %v982, 0
      %v1009 = vsel %vm429, %v983, 0
      %v1012 = vsel %vm429, %v984, 0
      %v1015 = vsel %vm429, %v985, 0
      %v1018 = vsel %vm429, %v986, 0
      %v1021 = vsel %vm429, %v987, 0
      %v1024 = vsel %vm429, %v988, 0
      %v1027 = vsel %vm429, %v989, 0
      %1029 = vmatprep.subr.bf16.mxu0 0
      %1030 = vmatpush1.bf16.msra.mxu0 %v425
      %1031 = vmatprep.subr.bf16.mxu0 0
      %1032 = vmatpush1.bf16.msra.mxu0 %v426
      %1033 = vmatprep.subr.bf16.mxu0 0
      %1034 = vmatpush1.bf16.msra.mxu0 0
      %1035 = vmatprep.subr.bf16.mxu0 0
      %1036 = vmatpush1.bf16.msra.mxu0 0
      %1037 = vmatprep.subr.bf16.mxu0 0
      %1038 = vmatpush1.bf16.msra.mxu0 0
      %1039 = vmatprep.subr.bf16.mxu0 0
      %1040 = vmatpush1.bf16.msra.mxu0 0
      %1041 = vmatprep.subr.bf16.mxu0 0
      %1042 = vmatpush1.bf16.msra.mxu0 0
      %1043 = vmatprep.subr.bf16.mxu0 0
      %1044 = vmatpush1.bf16.msra.mxu0 0
      %1045 = vmatprep.subr.bf16.mxu0 0
      %1046 = vmatpush1.bf16.msra.mxu0 0
      %1047 = vmatprep.subr.bf16.mxu0 0
      %1048 = vmatpush1.bf16.msra.mxu0 0
      %1049 = vmatprep.subr.bf16.mxu0 0
      %1050 = vmatpush1.bf16.msra.mxu0 0
      %1051 = vmatprep.subr.bf16.mxu0 0
      %1052 = vmatpush1.bf16.msra.mxu0 0
      %1053 = vmatprep.subr.bf16.mxu0 0
      %1054 = vmatpush1.bf16.msra.mxu0 0
      %1055 = vmatprep.subr.bf16.mxu0 0
      %1056 = vmatpush1.bf16.msra.mxu0 0
      %1057 = vmatprep.subr.bf16.mxu0 0
      %1058 = vmatpush1.bf16.msra.mxu0 0
      %1059 = vmatprep.subr.bf16.mxu0 0
      %1060 = vmatpush1.bf16.msra.mxu0 0
      %1061 = vmatprep.mubr.bf16.mxu0 0
      %1062 = vmatmul.mubr.bf16.gmra.mrb[0].mxu0 %v991
      %v1063 = vpop.f32.mrb[0].mxu0
      %v1064 = vadd.f32 0.0, %v1063
      %v1065 = vpop.f32.mrb[0].mxu0
      %v1066 = vpop.f32.mrb[0].mxu0
      %v1067 = vadd.f32 0.0, %v1066
      %v1068 = vpop.f32.mrb[0].mxu0
      %1069 = vmatprep.mubr.bf16.mxu0 0
      %1070 = vmatmul.mubr.bf16.gmra.mrb[0].mxu0 %v994
      %v1071 = vpop.f32.mrb[0].mxu0
      %v1072 = vadd.f32 0.0, %v1071
      %v1073 = vpop.f32.mrb[0].mxu0
      %v1074 = vpop.f32.mrb[0].mxu0
      %v1075 = vadd.f32 0.0, %v1074
      %v1076 = vpop.f32.mrb[0].mxu0
      %1077 = vmatprep.mubr.bf16.mxu0 0
      %1078 = vmatmul.mubr.bf16.gmra.mrb[0].mxu0 %v997
      %v1079 = vpop.f32.mrb[0].mxu0
      %v1080 = vadd.f32 0.0, %v1079
      %v1081 = vpop.f32.mrb[0].mxu0
      %v1082 = vpop.f32.mrb[0].mxu0
      %v1083 = vadd.f32 0.0, %v1082
      %v1084 = vpop.f32.mrb[0].mxu0
      %1085 = vmatprep.mubr.bf16.mxu0 0
      %1086 = vmatmul.mubr.bf16.gmra.mrb[0].mxu0 %v1000
      %v1087 = vpop.f32.mrb[0].mxu0
      %v1088 = vadd.f32 0.0, %v1087
      %v1089 = vpop.f32.mrb[0].mxu0
      %v1090 = vpop.f32.mrb[0].mxu0
      %v1091 = vadd.f32 0.0, %v1090
      %v1092 = vpop.f32.mrb[0].mxu0
      %1093 = vmatprep.mubr.bf16.mxu0 0
      %1094 = vmatmul.mubr.bf16.gmra.mrb[0].mxu0 %v1003
      %v1095 = vpop.f32.mrb[0].mxu0
      %v1096 = vadd.f32 0.0, %v1095
      %v1097 = vpop.f32.mrb[0].mxu0
      %v1098 = vpop.f32.mrb[0].mxu0
      %v1099 = vadd.f32 0.0, %v1098
      %v1100 = vpop.f32.mrb[0].mxu0
      %1101 = vmatprep.mubr.bf16.mxu0 0
      %1102 = vmatmul.mubr.bf16.gmra.mrb[0].mxu0 %v1006
      %v1103 = vpop.f32.mrb[0].mxu0
      %v1104 = vadd.f32 0.0, %v1103
      %v1105 = vpop.f32.mrb[0].mxu0
      %v1106 = vpop.f32.mrb[0].mxu0
      %v1107 = vadd.f32 0.0, %v1106
      %v1108 = vpop.f32.mrb[0].mxu0
      %1109 = vmatprep.mubr.bf16.mxu0 0
      %1110 = vmatmul.mubr.bf16.gmra.mrb[0].mxu0 %v1009
      %v1111 = vpop.f32.mrb[0].mxu0
      %v1112 = vadd.f32 0.0, %v1111
      %v1113 = vpop.f32.mrb[0].mxu0
      %v1114 = vpop.f32.mrb[0].mxu0
      %v1115 = vadd.f32 0.0, %v1114
      %v1116 = vpop.f32.mrb[0].mxu0
      %1117 = vmatprep.mubr.bf16.mxu0 0
      %1118 = vmatmul.mubr.bf16.gmra.mrb[0].mxu0 %v1012
      %v1119 = vpop.f32.mrb[0].mxu0
      %v1120 = vadd.f32 0.0, %v1119
      %v1121 = vpop.f32.mrb[0].mxu0
      %v1122 = vpop.f32.mrb[0].mxu0
      %v1123 = vadd.f32 0.0, %v1122
      %v1124 = vpop.f32.mrb[0].mxu0
      %1125 = vmatprep.mubr.bf16.mxu0 0
      %1126 = vmatmul.mubr.bf16.gmra.mrb[0].mxu0 %v1015
      %v1127 = vpop.f32.mrb[0].mxu0
      %v1128 = vadd.f32 0.0, %v1127
      %v1129 = vpop.f32.mrb[0].mxu0
      %v1130 = vpop.f32.mrb[0].mxu0
      %v1131 = vadd.f32 0.0, %v1130
      %v1132 = vpop.f32.mrb[0].mxu0
      %1133 = vmatprep.mubr.bf16.mxu0 0
      %1134 = vmatmul.mubr.bf16.gmra.mrb[0].mxu0 %v1018
      %v1135 = vpop.f32.mrb[0].mxu0
      %v1136 = vadd.f32 0.0, %v1135
      %v1137 = vpop.f32.mrb[0].mxu0
      %v1138 = vpop.f32.mrb[0].mxu0
      %v1139 = vadd.f32 0.0, %v1138
      %v1140 = vpop.f32.mrb[0].mxu0
      %1141 = vmatprep.mubr.bf16.mxu0 0
      %1142 = vmatmul.mubr.bf16.gmra.mrb[0].mxu0 %v1021
      %v1143 = vpop.f32.mrb[0].mxu0
      %v1144 = vadd.f32 0.0, %v1143
      %v1145 = vpop.f32.mrb[0].mxu0
      %v1146 = vpop.f32.mrb[0].mxu0
      %v1147 = vadd.f32 0.0, %v1146
      %v1148 = vpop.f32.mrb[0].mxu0
      %1149 = vmatprep.mubr.bf16.mxu0 0
      %1150 = vmatmul.mubr.bf16.gmra.mrb[0].mxu0 %v1024
      %v1151 = vpop.f32.mrb[0].mxu0
      %v1152 = vadd.f32 0.0, %v1151
      %v1153 = vpop.f32.mrb[0].mxu0
      %v1154 = vpop.f32.mrb[0].mxu0
      %v1155 = vadd.f32 0.0, %v1154
      %v1156 = vpop.f32.mrb[0].mxu0
      %1157 = vmatprep.mubr.bf16.mxu0 0
      %1158 = vmatmul.mubr.bf16.gmra.mrb[0].mxu0 %v1027
      %v1159 = vpop.f32.mrb[0].mxu0
      %v1160 = vadd.f32 0.0, %v1159
      %v1161 = vpop.f32.mrb[0].mxu0
      %v1162 = vpop.f32.mrb[0].mxu0
      %v1163 = vadd.f32 0.0, %v1162
      %v1164 = vpop.f32.mrb[0].mxu0
      %1165 = vdwg.mxu0
      %v1166 = vmax.f32 %v873, %v1064
      %v1167 = vmax.f32 %v874, %v1067
      %v1168 = vmax.f32 %v875, %v1072
      %v1169 = vmax.f32 %v876, %v1075
      %v1170 = vmax.f32 %v877, %v1080
      %v1171 = vmax.f32 %v878, %v1083
      %v1172 = vmax.f32 %v879, %v1088
      %v1173 = vmax.f32 %v880, %v1091
      %v1174 = vmax.f32 %v881, %v1096
      %v1175 = vmax.f32 %v882, %v1099
      %v1176 = vmax.f32 %v883, %v1104
      %v1177 = vmax.f32 %v884, %v1107
      %v1178 = vmax.f32 %v885, %v1112
      %v1179 = vmax.f32 %v886, %v1115
      %v1180 = vmax.f32 %v887, %v1120
      %v1181 = vmax.f32 %v888, %v1123
      %v1182 = vmax.f32 %v889, %v1128
      %v1183 = vmax.f32 %v890, %v1131
      %v1184 = vmax.f32 %v891, %v1136
      %v1185 = vmax.f32 %v892, %v1139
      %v1186 = vmax.f32 %v893, %v1144
      %v1187 = vmax.f32 %v894, %v1147
      %v1188 = vmax.f32 %v895, %v1152
      %v1189 = vmax.f32 %v896, %v1155
      %v1190 = vmax.f32 %v897, %v1160
      %v1191 = vmax.f32 %v898, %v1163
      %v1192 = vld [vmem:[%s313] sm:$0xf]
      %v1193 = vld [vmem:[%s313 + $0x4] sm:$0xf]
      %v1194 = vld [vmem:[%s313 + $0x8] sm:$0xf]
      %v1195 = vld [vmem:[%s313 + $0xc] sm:$0xf]
      %v1196 = vld [vmem:[%s313 + $0x10] sm:$0xf]
      %v1197 = vld [vmem:[%s313 + $0x14] sm:$0xf]
      %v1198 = vld [vmem:[%s313 + $0x18] sm:$0xf]
      %v1199 = vld [vmem:[%s313 + $0x1c] sm:$0xf]
      %v1200 = vld [vmem:[%s313 + $0x20] sm:$0xf]
      %v1201 = vld [vmem:[%s313 + $0x24] sm:$0xf]
      %v1202 = vld [vmem:[%s313 + $0x28] sm:$0xf]
      %v1203 = vld [vmem:[%s313 + $0x2c] sm:$0xf]
      %v1204 = vld [vmem:[%s313 + $0x30] sm:$0xf]
      %v1205 = vld [vmem:[%s313 + $0x34] sm:$0xf]
      %v1206 = vld [vmem:[%s313 + $0x38] sm:$0xf]
      %v1207 = vld [vmem:[%s313 + $0x3c] sm:$0xf]
      %v1208 = vld [vmem:[%s313 + $0x40] sm:$0xf]
      %v1209 = vld [vmem:[%s313 + $0x44] sm:$0xf]
      %v1210 = vld [vmem:[%s313 + $0x48] sm:$0xf]
      %v1211 = vld [vmem:[%s313 + $0x4c] sm:$0xf]
      %v1212 = vld [vmem:[%s313 + $0x50] sm:$0xf]
      %v1213 = vld [vmem:[%s313 + $0x54] sm:$0xf]
      %v1214 = vld [vmem:[%s313 + $0x58] sm:$0xf]
      %v1215 = vld [vmem:[%s313 + $0x5c] sm:$0xf]
      %v1216 = vld [vmem:[%s313 + $0x60] sm:$0xf]
      %v1217 = vld [vmem:[%s313 + $0x64] sm:$0xf]
      %v1244 = vunpack.c.l.b16 %v1192
      %v1245 = vunpack.c.l.b16 %v1193
      %v1246 = vunpack.c.l.b16 %v1194
      %v1247 = vunpack.c.l.b16 %v1195
      %v1248 = vunpack.c.l.b16 %v1196
      %v1249 = vunpack.c.l.b16 %v1197
      %v1250 = vunpack.c.l.b16 %v1198
      %v1251 = vunpack.c.l.b16 %v1199
      %v1252 = vunpack.c.l.b16 %v1200
      %v1253 = vunpack.c.l.b16 %v1201
      %v1254 = vunpack.c.l.b16 %v1202
      %v1255 = vunpack.c.l.b16 %v1203
      %v1256 = vunpack.c.l.b16 %v1204
      %v1257 = vunpack.c.l.b16 %v1205
      %v1258 = vunpack.c.l.b16 %v1206
      %v1259 = vunpack.c.l.b16 %v1207
      %v1260 = vunpack.c.l.b16 %v1208
      %v1261 = vunpack.c.l.b16 %v1209
      %v1262 = vunpack.c.l.b16 %v1210
      %v1263 = vunpack.c.l.b16 %v1211
      %v1264 = vunpack.c.l.b16 %v1212
      %v1265 = vunpack.c.l.b16 %v1213
      %v1266 = vunpack.c.l.b16 %v1214
      %v1267 = vunpack.c.l.b16 %v1215
      %v1268 = vunpack.c.l.b16 %v1216
      %v1269 = vunpack.c.l.b16 %v1217
      %v1270 = vpack.c.b16 %v1245, %v1244
      %v1271 = vpack.c.b16 %v1247, %v1246
      %v1272 = vpack.c.b16 %v1249, %v1248
      %v1273 = vpack.c.b16 %v1251, %v1250
      %v1274 = vpack.c.b16 %v1253, %v1252
      %v1275 = vpack.c.b16 %v1255, %v1254
      %v1276 = vpack.c.b16 %v1257, %v1256
      %v1277 = vpack.c.b16 %v1259, %v1258
      %v1278 = vpack.c.b16 %v1261, %v1260
      %v1279 = vpack.c.b16 %v1263, %v1262
      %v1280 = vpack.c.b16 %v1265, %v1264
      %v1281 = vpack.c.b16 %v1267, %v1266
      %v1282 = vpack.c.b16 %v1269, %v1268
      %v1284 = vsel %vm429, %v1270, 0
      %v1287 = vsel %vm429, %v1271, 0
      %v1290 = vsel %vm429, %v1272, 0
      %v1293 = vsel %vm429, %v1273, 0
      %v1296 = vsel %vm429, %v1274, 0
      %v1299 = vsel %vm429, %v1275, 0
      %v1302 = vsel %vm429, %v1276, 0
      %v1305 = vsel %vm429, %v1277, 0
      %v1308 = vsel %vm429, %v1278, 0
      %v1311 = vsel %vm429, %v1279, 0
      %v1314 = vsel %vm429, %v1280, 0
      %v1317 = vsel %vm429, %v1281, 0
      %v1320 = vsel %vm429, %v1282, 0
      %1322 = vmatprep.subr.bf16.mxu0 0
      %1323 = vmatpush1.bf16.msra.mxu0 %v425
      %1324 = vmatprep.subr.bf16.mxu0 0
      %1325 = vmatpush1.bf16.msra.mxu0 %v426
      %1326 = vmatprep.subr.bf16.mxu0 0
      %1327 = vmatpush1.bf16.msra.mxu0 0
      %1328 = vmatprep.subr.bf16.mxu0 0
      %1329 = vmatpush1.bf16.msra.mxu0 0
      %1330 = vmatprep.subr.bf16.mxu0 0
      %1331 = vmatpush1.bf16.msra.mxu0 0
      %1332 = vmatprep.subr.bf16.mxu0 0
      %1333 = vmatpush1.bf16.msra.mxu0 0
      %1334 = vmatprep.subr.bf16.mxu0 0
      %1335 = vmatpush1.bf16.msra.mxu0 0
      %1336 = vmatprep.subr.bf16.mxu0 0
      %1337 = vmatpush1.bf16.msra.mxu0 0
      %1338 = vmatprep.subr.bf16.mxu0 0
      %1339 = vmatpush1.bf16.msra.mxu0 0
      %1340 = vmatprep.subr.bf16.mxu0 0
      %1341 = vmatpush1.bf16.msra.mxu0 0
      %1342 = vmatprep.subr.bf16.mxu0 0
      %1343 = vmatpush1.bf16.msra.mxu0 0
      %1344 = vmatprep.subr.bf16.mxu0 0
      %1345 = vmatpush1.bf16.msra.mxu0 0
      %1346 = vmatprep.subr.bf16.mxu0 0
      %1347 = vmatpush1.bf16.msra.mxu0 0
      %1348 = vmatprep.subr.bf16.mxu0 0
      %1349 = vmatpush1.bf16.msra.mxu0 0
      %1350 = vmatprep.subr.bf16.mxu0 0
      %1351 = vmatpush1.bf16.msra.mxu0 0
      %1352 = vmatprep.subr.bf16.mxu0 0
      %1353 = vmatpush1.bf16.msra.mxu0 0
      %1354 = vmatprep.mubr.bf16.mxu0 0
      %1355 = vmatmul.mubr.bf16.gmra.mrb[0].mxu0 %v1284
      %v1356 = vpop.f32.mrb[0].mxu0
      %v1357 = vadd.f32 0.0, %v1356
      %v1358 = vpop.f32.mrb[0].mxu0
      %v1359 = vpop.f32.mrb[0].mxu0
      %v1360 = vadd.f32 0.0, %v1359
      %v1361 = vpop.f32.mrb[0].mxu0
      %1362 = vmatprep.mubr.bf16.mxu0 0
      %1363 = vmatmul.mubr.bf16.gmra.mrb[0].mxu0 %v1287
      %v1364 = vpop.f32.mrb[0].mxu0
      %v1365 = vadd.f32 0.0, %v1364
      %v1366 = vpop.f32.mrb[0].mxu0
      %v1367 = vpop.f32.mrb[0].mxu0
      %v1368 = vadd.f32 0.0, %v1367
      %v1369 = vpop.f32.mrb[0].mxu0
      %1370 = vmatprep.mubr.bf16.mxu0 0
      %1371 = vmatmul.mubr.bf16.gmra.mrb[0].mxu0 %v1290
      %v1372 = vpop.f32.mrb[0].mxu0
      %v1373 = vadd.f32 0.0, %v1372
      %v1374 = vpop.f32.mrb[0].mxu0
      %v1375 = vpop.f32.mrb[0].mxu0
      %v1376 = vadd.f32 0.0, %v1375
      %v1377 = vpop.f32.mrb[0].mxu0
      %1378 = vmatprep.mubr.bf16.mxu0 0
      %1379 = vmatmul.mubr.bf16.gmra.mrb[0].mxu0 %v1293
      %v1380 = vpop.f32.mrb[0].mxu0
      %v1381 = vadd.f32 0.0, %v1380
      %v1382 = vpop.f32.mrb[0].mxu0
      %v1383 = vpop.f32.mrb[0].mxu0
      %v1384 = vadd.f32 0.0, %v1383
      %v1385 = vpop.f32.mrb[0].mxu0
      %1386 = vmatprep.mubr.bf16.mxu0 0
      %1387 = vmatmul.mubr.bf16.gmra.mrb[0].mxu0 %v1296
      %v1388 = vpop.f32.mrb[0].mxu0
      %v1389 = vadd.f32 0.0, %v1388
      %v1390 = vpop.f32.mrb[0].mxu0
      %v1391 = vpop.f32.mrb[0].mxu0
      %v1392 = vadd.f32 0.0, %v1391
      %v1393 = vpop.f32.mrb[0].mxu0
      %1394 = vmatprep.mubr.bf16.mxu0 0
      %1395 = vmatmul.mubr.bf16.gmra.mrb[0].mxu0 %v1299
      %v1396 = vpop.f32.mrb[0].mxu0
      %v1397 = vadd.f32 0.0, %v1396
      %v1398 = vpop.f32.mrb[0].mxu0
      %v1399 = vpop.f32.mrb[0].mxu0
      %v1400 = vadd.f32 0.0, %v1399
      %v1401 = vpop.f32.mrb[0].mxu0
      %1402 = vmatprep.mubr.bf16.mxu0 0
      %1403 = vmatmul.mubr.bf16.gmra.mrb[0].mxu0 %v1302
      %v1404 = vpop.f32.mrb[0].mxu0
      %v1405 = vadd.f32 0.0, %v1404
      %v1406 = vpop.f32.mrb[0].mxu0
      %v1407 = vpop.f32.mrb[0].mxu0
      %v1408 = vadd.f32 0.0, %v1407
      %v1409 = vpop.f32.mrb[0].mxu0
      %1410 = vmatprep.mubr.bf16.mxu0 0
      %1411 = vmatmul.mubr.bf16.gmra.mrb[0].mxu0 %v1305
      %v1412 = vpop.f32.mrb[0].mxu0
      %v1413 = vadd.f32 0.0, %v1412
      %v1414 = vpop.f32.mrb[0].mxu0
      %v1415 = vpop.f32.mrb[0].mxu0
      %v1416 = vadd.f32 0.0, %v1415
      %v1417 = vpop.f32.mrb[0].mxu0
      %1418 = vmatprep.mubr.bf16.mxu0 0
      %1419 = vmatmul.mubr.bf16.gmra.mrb[0].mxu0 %v1308
      %v1420 = vpop.f32.mrb[0].mxu0
      %v1421 = vadd.f32 0.0, %v1420
      %v1422 = vpop.f32.mrb[0].mxu0
      %v1423 = vpop.f32.mrb[0].mxu0
      %v1424 = vadd.f32 0.0, %v1423
      %v1425 = vpop.f32.mrb[0].mxu0
      %1426 = vmatprep.mubr.bf16.mxu0 0
      %1427 = vmatmul.mubr.bf16.gmra.mrb[0].mxu0 %v1311
      %v1428 = vpop.f32.mrb[0].mxu0
      %v1429 = vadd.f32 0.0, %v1428
      %v1430 = vpop.f32.mrb[0].mxu0
      %v1431 = vpop.f32.mrb[0].mxu0
      %v1432 = vadd.f32 0.0, %v1431
      %v1433 = vpop.f32.mrb[0].mxu0
      %1434 = vmatprep.mubr.bf16.mxu0 0
      %1435 = vmatmul.mubr.bf16.gmra.mrb[0].mxu0 %v1314
      %v1436 = vpop.f32.mrb[0].mxu0
      %v1437 = vadd.f32 0.0, %v1436
      %v1438 = vpop.f32.mrb[0].mxu0
      %v1439 = vpop.f32.mrb[0].mxu0
      %v1440 = vadd.f32 0.0, %v1439
      %v1441 = vpop.f32.mrb[0].mxu0
      %1442 = vmatprep.mubr.bf16.mxu0 0
      %1443 = vmatmul.mubr.bf16.gmra.mrb[0].mxu0 %v1317
      %v1444 = vpop.f32.mrb[0].mxu0
      %v1445 = vadd.f32 0.0, %v1444
      %v1446 = vpop.f32.mrb[0].mxu0
      %v1447 = vpop.f32.mrb[0].mxu0
      %v1448 = vadd.f32 0.0, %v1447
      %v1449 = vpop.f32.mrb[0].mxu0
      %1450 = vmatprep.mubr.bf16.mxu0 0
      %1451 = vmatmul.mubr.bf16.gmra.mrb[0].mxu0 %v1320
      %v1452 = vpop.f32.mrb[0].mxu0
      %v1453 = vadd.f32 0.0, %v1452
      %v1454 = vpop.f32.mrb[0].mxu0
      %v1455 = vpop.f32.mrb[0].mxu0
      %v1456 = vadd.f32 0.0, %v1455
      %v1457 = vpop.f32.mrb[0].mxu0
      %1458 = vdwg.mxu0
      %v1459 = vmax.f32 %v1166, %v1357
      %v1460 = vmax.f32 %v1167, %v1360
      %v1461 = vmax.f32 %v1168, %v1365
      %v1462 = vmax.f32 %v1169, %v1368
      %v1463 = vmax.f32 %v1170, %v1373
      %v1464 = vmax.f32 %v1171, %v1376
      %v1465 = vmax.f32 %v1172, %v1381
      %v1466 = vmax.f32 %v1173, %v1384
      %v1467 = vmax.f32 %v1174, %v1389
      %v1468 = vmax.f32 %v1175, %v1392
      %v1469 = vmax.f32 %v1176, %v1397
      %v1470 = vmax.f32 %v1177, %v1400
      %v1471 = vmax.f32 %v1178, %v1405
      %v1472 = vmax.f32 %v1179, %v1408
      %v1473 = vmax.f32 %v1180, %v1413
      %v1474 = vmax.f32 %v1181, %v1416
      %v1475 = vmax.f32 %v1182, %v1421
      %v1476 = vmax.f32 %v1183, %v1424
      %v1477 = vmax.f32 %v1184, %v1429
      %v1478 = vmax.f32 %v1185, %v1432
      %v1479 = vmax.f32 %v1186, %v1437
      %v1480 = vmax.f32 %v1187, %v1440
      %v1481 = vmax.f32 %v1188, %v1445
      %v1482 = vmax.f32 %v1189, %v1448
      %v1483 = vmax.f32 %v1190, %v1453
      %v1484 = vmax.f32 %v1191, %v1456
      %v1485 = vld [vmem:[%s5] sm:$0x1]
      %v1487 = vlaneseq
      %v1488 = vshrl.u32 %v1487, 7
      %v1489 = vsub.s32 0, %v1488
      %v1490 = vrot.slane %v1485, %v1489
      %v1492 = vadd.f32 %v1459, %v1490
      %v1493 = vadd.f32 %v1460, %v1490
      %v1494 = vadd.f32 %v1461, %v1490
      %v1495 = vadd.f32 %v1462, %v1490
      %v1496 = vadd.f32 %v1463, %v1490
      %v1497 = vadd.f32 %v1464, %v1490
      %v1498 = vadd.f32 %v1465, %v1490
      %v1499 = vadd.f32 %v1466, %v1490
      %v1500 = vadd.f32 %v1467, %v1490
      %v1501 = vadd.f32 %v1468, %v1490
      %v1502 = vadd.f32 %v1469, %v1490
      %v1503 = vadd.f32 %v1470, %v1490
      %v1504 = vadd.f32 %v1471, %v1490
      %v1505 = vadd.f32 %v1472, %v1490
      %v1506 = vadd.f32 %v1473, %v1490
      %v1507 = vadd.f32 %v1474, %v1490
      %v1508 = vadd.f32 %v1475, %v1490
      %v1509 = vadd.f32 %v1476, %v1490
      %v1510 = vadd.f32 %v1477, %v1490
      %v1511 = vadd.f32 %v1478, %v1490
      %v1512 = vadd.f32 %v1479, %v1490
      %v1513 = vadd.f32 %v1480, %v1490
      %v1514 = vadd.f32 %v1481, %v1490
      %v1515 = vadd.f32 %v1482, %v1490
      %v1516 = vadd.f32 %v1483, %v1490
      %v1517 = vadd.f32 %v1484, %v1490
      %v1518 = vmax.f32 %v1492, 0.0
      %v1519 = vmax.f32 %v1493, 0.0
      %v1520 = vmax.f32 %v1494, 0.0
      %v1521 = vmax.f32 %v1495, 0.0
      %v1522 = vmax.f32 %v1496, 0.0
      %v1523 = vmax.f32 %v1497, 0.0
      %v1524 = vmax.f32 %v1498, 0.0
      %v1525 = vmax.f32 %v1499, 0.0
      %v1526 = vmax.f32 %v1500, 0.0
      %v1527 = vmax.f32 %v1501, 0.0
      %v1528 = vmax.f32 %v1502, 0.0
      %v1529 = vmax.f32 %v1503, 0.0
      %v1530 = vmax.f32 %v1504, 0.0
      %v1531 = vmax.f32 %v1505, 0.0
      %v1532 = vmax.f32 %v1506, 0.0
      %v1533 = vmax.f32 %v1507, 0.0
      %v1534 = vmax.f32 %v1508, 0.0
      %v1535 = vmax.f32 %v1509, 0.0
      %v1536 = vmax.f32 %v1510, 0.0
      %v1537 = vmax.f32 %v1511, 0.0
      %v1538 = vmax.f32 %v1512, 0.0
      %v1539 = vmax.f32 %v1513, 0.0
      %v1540 = vmax.f32 %v1514, 0.0
      %v1541 = vmax.f32 %v1515, 0.0
      %v1542 = vmax.f32 %v1516, 0.0
      %v1543 = vmax.f32 %v1517, 0.0
      %v1544 = vpack.c.bf16 %v1519, %v1518
      %v1545 = vpack.c.bf16 %v1521, %v1520
      %v1546 = vpack.c.bf16 %v1523, %v1522
      %v1547 = vpack.c.bf16 %v1525, %v1524
      %v1548 = vpack.c.bf16 %v1527, %v1526
      %v1549 = vpack.c.bf16 %v1529, %v1528
      %v1550 = vpack.c.bf16 %v1531, %v1530
      %v1551 = vpack.c.bf16 %v1533, %v1532
      %v1552 = vpack.c.bf16 %v1535, %v1534
      %v1553 = vpack.c.bf16 %v1537, %v1536
      %v1554 = vpack.c.bf16 %v1539, %v1538
      %v1555 = vpack.c.bf16 %v1541, %v1540
      %v1556 = vpack.c.bf16 %v1543, %v1542
      %v1570 = vunpack.c.l.b16 %v1544
      %v1571 = vunpack.c.h.b16 %v1544
      %v1572 = vunpack.c.l.b16 %v1545
      %v1573 = vunpack.c.h.b16 %v1545
      %v1574 = vunpack.c.l.b16 %v1546
      %v1575 = vunpack.c.h.b16 %v1546
      %v1576 = vunpack.c.l.b16 %v1547
      %v1577 = vunpack.c.h.b16 %v1547
      %v1578 = vunpack.c.l.b16 %v1548
      %v1579 = vunpack.c.h.b16 %v1548
      %v1580 = vunpack.c.l.b16 %v1549
      %v1581 = vunpack.c.h.b16 %v1549
      %v1582 = vunpack.c.l.b16 %v1550
      %v1583 = vunpack.c.h.b16 %v1550
      %v1584 = vunpack.c.l.b16 %v1551
      %v1585 = vunpack.c.h.b16 %v1551
      %v1586 = vunpack.c.l.b16 %v1552
      %v1587 = vunpack.c.h.b16 %v1552
      %v1588 = vunpack.c.l.b16 %v1553
      %v1589 = vunpack.c.h.b16 %v1553
      %v1590 = vunpack.c.l.b16 %v1554
      %v1591 = vunpack.c.h.b16 %v1554
      %v1592 = vunpack.c.l.b16 %v1555
      %v1593 = vunpack.c.h.b16 %v1555
      %v1594 = vunpack.c.l.b16 %v1556
      %v1595 = vunpack.c.h.b16 %v1556
      %v1596 = vpack.c.b16 %v1570, %v1570
      %v1597 = vpack.c.b16 %v1571, %v1571
      %v1598 = vpack.c.b16 %v1572, %v1572
      %v1599 = vpack.c.b16 %v1573, %v1573
      %v1600 = vpack.c.b16 %v1574, %v1574
      %v1601 = vpack.c.b16 %v1575, %v1575
      %v1602 = vpack.c.b16 %v1576, %v1576
      %v1603 = vpack.c.b16 %v1577, %v1577
      %v1604 = vpack.c.b16 %v1578, %v1578
      %v1605 = vpack.c.b16 %v1579, %v1579
      %v1606 = vpack.c.b16 %v1580, %v1580
      %v1607 = vpack.c.b16 %v1581, %v1581
      %v1608 = vpack.c.b16 %v1582, %v1582
      %v1609 = vpack.c.b16 %v1583, %v1583
      %v1610 = vpack.c.b16 %v1584, %v1584
      %v1611 = vpack.c.b16 %v1585, %v1585
      %v1612 = vpack.c.b16 %v1586, %v1586
      %v1613 = vpack.c.b16 %v1587, %v1587
      %v1614 = vpack.c.b16 %v1588, %v1588
      %v1615 = vpack.c.b16 %v1589, %v1589
      %v1616 = vpack.c.b16 %v1590, %v1590
      %v1617 = vpack.c.b16 %v1591, %v1591
      %v1618 = vpack.c.b16 %v1592, %v1592
      %v1619 = vpack.c.b16 %v1593, %v1593
      %v1620 = vpack.c.b16 %v1594, %v1594
      %v1621 = vpack.c.b16 %v1595, %v1595
      %vm1648 = vcmask 44032
      %1649 = vst.msk [vmem:[%s319] sm:$0xf] %vm1648, %v1596
      %1650 = vst.msk [vmem:[%s319 + $0x4] sm:$0xf] %vm1648, %v1597
      %1651 = vst.msk [vmem:[%s319 + $0x8] sm:$0xf] %vm1648, %v1598
      %1652 = vst.msk [vmem:[%s319 + $0xc] sm:$0xf] %vm1648, %v1599
      %1653 = vst.msk [vmem:[%s319 + $0x10] sm:$0xf] %vm1648, %v1600
      %1654 = vst.msk [vmem:[%s319 + $0x14] sm:$0xf] %vm1648, %v1601
      %1655 = vst.msk [vmem:[%s319 + $0x18] sm:$0xf] %vm1648, %v1602
      %1656 = vst.msk [vmem:[%s319 + $0x1c] sm:$0xf] %vm1648, %v1603
      %1657 = vst.msk [vmem:[%s319 + $0x20] sm:$0xf] %vm1648, %v1604
      %1658 = vst.msk [vmem:[%s319 + $0x24] sm:$0xf] %vm1648, %v1605
      %1659 = vst.msk [vmem:[%s319 + $0x28] sm:$0xf] %vm1648, %v1606
      %1660 = vst.msk [vmem:[%s319 + $0x2c] sm:$0xf] %vm1648, %v1607
      %1661 = vst.msk [vmem:[%s319 + $0x30] sm:$0xf] %vm1648, %v1608
      %1662 = vst.msk [vmem:[%s319 + $0x34] sm:$0xf] %vm1648, %v1609
      %1663 = vst.msk [vmem:[%s319 + $0x38] sm:$0xf] %vm1648, %v1610
      %1664 = vst.msk [vmem:[%s319 + $0x3c] sm:$0xf] %vm1648, %v1611
      %1665 = vst.msk [vmem:[%s319 + $0x40] sm:$0xf] %vm1648, %v1612
      %1666 = vst.msk [vmem:[%s319 + $0x44] sm:$0xf] %vm1648, %v1613
      %1667 = vst.msk [vmem:[%s319 + $0x48] sm:$0xf] %vm1648, %v1614
      %1668 = vst.msk [vmem:[%s319 + $0x4c] sm:$0xf] %vm1648, %v1615
      %1669 = vst.msk [vmem:[%s319 + $0x50] sm:$0xf] %vm1648, %v1616
      %1670 = vst.msk [vmem:[%s319 + $0x54] sm:$0xf] %vm1648, %v1617
      %1671 = vst.msk [vmem:[%s319 + $0x58] sm:$0xf] %vm1648, %v1618
      %1672 = vst.msk [vmem:[%s319 + $0x5c] sm:$0xf] %vm1648, %v1619
      %1673 = vst.msk [vmem:[%s319 + $0x60] sm:$0xf] %vm1648, %v1620
      %1674 = vst.msk [vmem:[%s319 + $0x64] sm:$0xf] %vm1648, %v1621
      %s1675 = smul.u32 26, %s17
      %p1676 = scmp.lt.s32.totalorder %s1675, 51
      %s1677 = scalar_select %p1676, %s1675, 51
      %s1678 = smul.addr %s1677, 4
      %s1679 = scalar_lea.vmem %s6, %s1678
      // Predicated region
      $region45: #{tennet_forward.2} parent=43 // pred_check
        %p1680 = pneg %p181
      $region46: #{tennet_forward.2} parent=43 // pred_check_branch
        %1682 = sbr.rel (%p1680) target = $region48
      $region47: #{tennet_forward.2} parent=43 // pred_region
        %s1683 = smul.u32 26, %s17
      $region48: #{tennet_forward.2} parent=43 // pred_fallthru
        _
    $region44: #{tennet_forward.2} parent=5 // pred_fallthru
      _
    %p1684 = scmp.le.s32.totalorder 2, %s12
    // Predicated region
    $region49: #{tennet_forward.2} parent=5 // pred_check
      %p1685 = pneg %p1684
    $region50: #{tennet_forward.2} parent=5 // pred_check_branch
      %1687 = sbr.rel (%p1685) target = $region52
    $region51: #{tennet_forward.2} parent=5 // pred_region
      %s1688 = ssub.s32 %s12, 2
      // Predicated region
      $region53: #{tennet_forward.2} parent=51 // pred_check
        %p1689 = pneg %p187
      $region54: #{tennet_forward.2} parent=51 // pred_check_branch
        %1691 = sbr.rel (%p1689) target = $region56
      $region55: #{tennet_forward.2} parent=51 // pred_region
        %s1692 = smul.u32 26, %s18
        %p1693 = scmp.lt.s32.totalorder %s1692, 51
        %s1694 = scalar_select %p1693, %s1692, 51
        %s1695 = smul.addr %s1694, 4
        %s1696 = scalar_lea.vmem %s6, %s1695
      $region56: #{tennet_forward.2} parent=51 // pred_fallthru
        _
    $region52: #{tennet_forward.2} parent=5 // pred_fallthru
      _
  $region6: #{tennet_forward.2} parent=0 // loop_footer
    %s16 = sadd.s32 1, %s12
  $region7: #{tennet_forward.2} parent=0 // loop_footer_branch
    %11 = sbr.rel target = $region3
  $region8: #{tennet_forward.2} parent=0 // loop_exit
    _

// kernel: tennet_forward.3
$region0: #{tennet_forward.3}
  #allocation0 [shape = 'u32[]', space=smem, size = 0x4, offset = 0x4, fixed_abs, tag = 'smem constant byte address 0x4 - core index']
  #allocation1 [shape = 'u32[144,128]{1,0:T(1,128)}', space=vmem, size = 0x12000, scoped, tag = 'internal scratch']
  %s0 = inlined_call_operand.vmem [shape: bf16[25,8,160], index: 0, kind: input, shape index: {}]
  %s1 = inlined_call_operand.vmem [shape: bf16[25,8,160], index: 1, kind: input, shape index: {}]
  %s2 = inlined_call_operand.vmem [shape: bf16[25,8,160], index: 2, kind: input, shape index: {}]
  %s3 = inlined_call_operand.vmem [shape: bf16[25,8,160], index: 3, kind: input, shape index: {}]
  %s4 = inlined_call_operand.vmem [shape: bf16[160,128], index: 4, kind: input, shape index: {}]
  %s5 = inlined_call_operand.vmem [shape: f32[1,128], index: 5, kind: input, shape index: {}]
  %s6 = inlined_call_operand.vmem [shape: bf16[25,128,128], index: 6, kind: input, shape index: {}]
  %s7 = inlined_call_operand.vmem [shape: f32[1,128], index: 7, kind: input, shape index: {}]
  %s8 = inlined_call_operand.vmem [shape: bf16[128,128], index: 8, kind: input, shape index: {}]
  %s9 = inlined_call_operand.vmem [shape: f32[1,128], index: 9, kind: input, shape index: {}]
  %s10 = inlined_call_operand.vmem [shape: bf16[128,128], index: 10, kind: input, shape index: {}]
  %s11 = inlined_call_operand.vmem [shape: f32[1,128], index: 11, kind: input, shape index: {}]
  %s12 = inlined_call_operand.vmem [shape: f32[8,128], index: 12, kind: output, shape index: {}]
  %s13 = sld [smem:[#allocation0]]
  $region58: #{tennet_forward.3} parent=0
    _
  %s15 = ssub.s32 1, %s13
  %s16 = scalar_select 0, %s15, %s13
  // Predicated region
  $region2: #{tennet_forward.3} parent=0 // pred_check
    _
  $region3: #{tennet_forward.3} parent=0 // pred_check_branch
    %18 = sbr.rel (0) target = $region5
  $region4: #{tennet_forward.3} parent=0 // pred_region
    _
  $region5: #{tennet_forward.3} parent=0 // pred_fallthru
    _
  // Predicated region
  $region6: #{tennet_forward.3} parent=0 // pred_check
    _
  $region7: #{tennet_forward.3} parent=0 // pred_check_branch
    %20 = sbr.rel (0) target = $region9
  $region8: #{tennet_forward.3} parent=0 // pred_region
    _
  $region9: #{tennet_forward.3} parent=0 // pred_fallthru
    _
  // Predicated region
  $region10: #{tennet_forward.3} parent=0 // pred_check
    _
  $region11: #{tennet_forward.3} parent=0 // pred_check_branch
    %22 = sbr.rel (0) target = $region13
  $region12: #{tennet_forward.3} parent=0 // pred_region
    _
  $region13: #{tennet_forward.3} parent=0 // pred_fallthru
    _
  // Predicated region
  $region14: #{tennet_forward.3} parent=0 // pred_check
    _
  $region15: #{tennet_forward.3} parent=0 // pred_check_branch
    %24 = sbr.rel (0) target = $region17
  $region16: #{tennet_forward.3} parent=0 // pred_region
    _
  $region17: #{tennet_forward.3} parent=0 // pred_fallthru
    _
  // Predicated region
  $region18: #{tennet_forward.3} parent=0 // pred_check
    _
  $region19: #{tennet_forward.3} parent=0 // pred_check_branch
    %26 = sbr.rel (0) target = $region21
  $region20: #{tennet_forward.3} parent=0 // pred_region
    _
  $region21: #{tennet_forward.3} parent=0 // pred_fallthru
    _
  // Predicated region
  $region22: #{tennet_forward.3} parent=0 // pred_check
    _
  $region23: #{tennet_forward.3} parent=0 // pred_check_branch
    %28 = sbr.rel (0) target = $region25
  $region24: #{tennet_forward.3} parent=0 // pred_region
    _
  $region25: #{tennet_forward.3} parent=0 // pred_fallthru
    _
  // Predicated region
  $region26: #{tennet_forward.3} parent=0 // pred_check
    _
  $region27: #{tennet_forward.3} parent=0 // pred_check_branch
    %30 = sbr.rel (0) target = $region29
  $region28: #{tennet_forward.3} parent=0 // pred_region
    _
  $region29: #{tennet_forward.3} parent=0 // pred_fallthru
    _
  // Predicated region
  $region30: #{tennet_forward.3} parent=0 // pred_check
    _
  $region31: #{tennet_forward.3} parent=0 // pred_check_branch
    %32 = sbr.rel (0) target = $region33
  $region32: #{tennet_forward.3} parent=0 // pred_region
    _
  $region33: #{tennet_forward.3} parent=0 // pred_fallthru
    _
  // Predicated region
  $region34: #{tennet_forward.3} parent=0 // pred_check
    _
  $region35: #{tennet_forward.3} parent=0 // pred_check_branch
    %34 = sbr.rel (0) target = $region37
  $region36: #{tennet_forward.3} parent=0 // pred_region
    _
  $region37: #{tennet_forward.3} parent=0 // pred_fallthru
    _
  // Predicated region
  $region38: #{tennet_forward.3} parent=0 // pred_check
    _
  $region39: #{tennet_forward.3} parent=0 // pred_check_branch
    %36 = sbr.rel (0) target = $region41
  $region40: #{tennet_forward.3} parent=0 // pred_region
    _
  $region41: #{tennet_forward.3} parent=0 // pred_fallthru
    _
  // Predicated region
  $region42: #{tennet_forward.3} parent=0 // pred_check
    _
  $region43: #{tennet_forward.3} parent=0 // pred_check_branch
    %38 = sbr.rel (0) target = $region45
  $region44: #{tennet_forward.3} parent=0 // pred_region
    _
  $region45: #{tennet_forward.3} parent=0 // pred_fallthru
    _
  // Predicated region
  $region46: #{tennet_forward.3} parent=0 // pred_check
    _
  $region47: #{tennet_forward.3} parent=0 // pred_check_branch
    %40 = sbr.rel (0) target = $region49
  $region48: #{tennet_forward.3} parent=0 // pred_region
    _
  $region49: #{tennet_forward.3} parent=0 // pred_fallthru
    _
  %v42 = vld [vmem:[%s4] sm:$0xf]
  %v43 = vld [vmem:[%s4 + $0x4] sm:$0xf]
  %v44 = vld [vmem:[%s4 + $0x8] sm:$0xf]
  %v45 = vld [vmem:[%s4 + $0xc] sm:$0xf]
  %v46 = vld [vmem:[%s4 + $0x10] sm:$0xf]
  %v47 = vld [vmem:[%s4 + $0x14] sm:$0xf]
  %v48 = vld [vmem:[%s4 + $0x18] sm:$0xf]
  %v49 = vld [vmem:[%s4 + $0x1c] sm:$0xf]
  %v50 = vld [vmem:[%s4 + $0x20] sm:$0xf]
  %v51 = vld [vmem:[%s4 + $0x24] sm:$0xf]
  %v52 = vld [vmem:[%s4 + $0x28] sm:$0xf]
  %v53 = vld [vmem:[%s4 + $0x2c] sm:$0xf]
  %v54 = vld [vmem:[%s4 + $0x30] sm:$0xf]
  %v55 = vld [vmem:[%s4 + $0x34] sm:$0xf]
  %v56 = vld [vmem:[%s4 + $0x38] sm:$0xf]
  %v57 = vld [vmem:[%s4 + $0x3c] sm:$0xf]
  %v58 = vld [vmem:[%s4 + $0x40] sm:$0xf]
  %v59 = vld [vmem:[%s4 + $0x44] sm:$0xf]
  %v60 = vld [vmem:[%s4 + $0x48] sm:$0xf]
  %v61 = vld [vmem:[%s4 + $0x4c] sm:$0xf]
  %v62 = vld [vmem:[%s5] sm:$0x1]
  %v63 = vld [vmem:[%s0] sm:$0xff]
  %v65 = vunpack.c.l.b16 %v63
  %v66 = vunpack.c.h.b16 %v63
  %v67 = vpack.c.b16 %v65, %v65
  %v68 = vpack.c.b16 %v66, %v66
  %v90 = vunpack.c.l.b16 %v42
  %v91 = vunpack.c.l.b16 %v43
  %v92 = vunpack.c.l.b16 %v44
  %v93 = vunpack.c.l.b16 %v45
  %v94 = vunpack.c.l.b16 %v46
  %v95 = vunpack.c.l.b16 %v47
  %v96 = vunpack.c.l.b16 %v48
  %v97 = vunpack.c.l.b16 %v49
  %v98 = vunpack.c.l.b16 %v50
  %v99 = vunpack.c.l.b16 %v51
  %v100 = vunpack.c.l.b16 %v52
  %v101 = vunpack.c.l.b16 %v53
  %v102 = vunpack.c.l.b16 %v54
  %v103 = vunpack.c.l.b16 %v55
  %v104 = vunpack.c.l.b16 %v56
  %v105 = vunpack.c.l.b16 %v57
  %v106 = vunpack.c.l.b16 %v58
  %v107 = vunpack.c.l.b16 %v59
  %v108 = vunpack.c.l.b16 %v60
  %v109 = vunpack.c.l.b16 %v61
  %v110 = vpack.c.b16 %v91, %v90
  %v111 = vpack.c.b16 %v93, %v92
  %v112 = vpack.c.b16 %v95, %v94
  %v113 = vpack.c.b16 %v97, %v96
  %v114 = vpack.c.b16 %v99, %v98
  %v115 = vpack.c.b16 %v101, %v100
  %v116 = vpack.c.b16 %v103, %v102
  %v117 = vpack.c.b16 %v105, %v104
  %v118 = vpack.c.b16 %v107, %v106
  %v119 = vpack.c.b16 %v109, %v108
  %vm130 = vcmask 261120
  %v132 = vsel %vm130, %v68, 0
  %134 = vmatprep.subr.bf16.mxu0 0
  %135 = vmatpush1.bf16.msra.mxu0 %v110
  %136 = vmatprep.subr.bf16.mxu0 0
  %137 = vmatpush1.bf16.msra.mxu0 %v111
  %138 = vmatprep.subr.bf16.mxu0 0
  %139 = vmatpush1.bf16.msra.mxu0 %v112
  %140 = vmatprep.subr.bf16.mxu0 0
  %141 = vmatpush1.bf16.msra.mxu0 %v113
  %142 = vmatprep.subr.bf16.mxu0 0
  %143 = vmatpush1.bf16.msra.mxu0 %v114
  %144 = vmatprep.subr.bf16.mxu0 0
  %145 = vmatpush1.bf16.msra.mxu0 %v115
  %146 = vmatprep.subr.bf16.mxu0 0
  %147 = vmatpush1.bf16.msra.mxu0 %v116
  %148 = vmatprep.subr.bf16.mxu0 0
  %149 = vmatpush1.bf16.msra.mxu0 %v117
  %150 = vmatprep.subr.bf16.mxu0 0
  %151 = vmatpush1.bf16.msra.mxu0 %v118
  %152 = vmatprep.subr.bf16.mxu0 0
  %153 = vmatpush1.bf16.msra.mxu0 %v119
  %154 = vmatprep.subr.bf16.mxu0 0
  %155 = vmatpush1.bf16.msra.mxu0 0
  %156 = vmatprep.subr.bf16.mxu0 0
  %157 = vmatpush1.bf16.msra.mxu0 0
  %158 = vmatprep.subr.bf16.mxu0 0
  %159 = vmatpush1.bf16.msra.mxu0 0
  %160 = vmatprep.subr.bf16.mxu0 0
  %161 = vmatpush1.bf16.msra.mxu0 0
  %162 = vmatprep.subr.bf16.mxu0 0
  %163 = vmatpush1.bf16.msra.mxu0 0
  %164 = vmatprep.subr.bf16.mxu0 0
  %165 = vmatpush1.bf16.msra.mxu0 0
  %166 = vmatprep.mubr.bf16.mxu0 %v132
  %167 = vmatmul.mubr.bf16.gmra.mrb[0].mxu0 %v67
  %v168 = vpop.f32.mrb[0].mxu0
  %v169 = vadd.f32 0.0, %v168
  %v170 = vpop.f32.mrb[0].mxu0
  %v171 = vpop.f32.mrb[0].mxu0
  %v172 = vpop.f32.mrb[0].mxu0
  %173 = vdwg.mxu0
  %v174 = vld [vmem:[%s1] sm:$0xff]
  %v176 = vunpack.c.l.b16 %v174
  %v177 = vunpack.c.h.b16 %v174
  %v178 = vpack.c.b16 %v176, %v176
  %v179 = vpack.c.b16 %v177, %v177
  %v182 = vsel %vm130, %v179, 0
  %184 = vmatprep.subr.bf16.mxu0 0
  %185 = vmatpush1.bf16.msra.mxu0 %v110
  %186 = vmatprep.subr.bf16.mxu0 0
  %187 = vmatpush1.bf16.msra.mxu0 %v111
  %188 = vmatprep.subr.bf16.mxu0 0
  %189 = vmatpush1.bf16.msra.mxu0 %v112
  %190 = vmatprep.subr.bf16.mxu0 0
  %191 = vmatpush1.bf16.msra.mxu0 %v113
  %192 = vmatprep.subr.bf16.mxu0 0
  %193 = vmatpush1.bf16.msra.mxu0 %v114
  %194 = vmatprep.subr.bf16.mxu0 0
  %195 = vmatpush1.bf16.msra.mxu0 %v115
  %196 = vmatprep.subr.bf16.mxu0 0
  %197 = vmatpush1.bf16.msra.mxu0 %v116
  %198 = vmatprep.subr.bf16.mxu0 0
  %199 = vmatpush1.bf16.msra.mxu0 %v117
  %200 = vmatprep.subr.bf16.mxu0 0
  %201 = vmatpush1.bf16.msra.mxu0 %v118
  %202 = vmatprep.subr.bf16.mxu0 0
  %203 = vmatpush1.bf16.msra.mxu0 %v119
  %204 = vmatprep.subr.bf16.mxu0 0
  %205 = vmatpush1.bf16.msra.mxu0 0
  %206 = vmatprep.subr.bf16.mxu0 0
  %207 = vmatpush1.bf16.msra.mxu0 0
  %208 = vmatprep.subr.bf16.mxu0 0
  %209 = vmatpush1.bf16.msra.mxu0 0
  %210 = vmatprep.subr.bf16.mxu0 0
  %211 = vmatpush1.bf16.msra.mxu0 0
  %212 = vmatprep.subr.bf16.mxu0 0
  %213 = vmatpush1.bf16.msra.mxu0 0
  %214 = vmatprep.subr.bf16.mxu0 0
  %215 = vmatpush1.bf16.msra.mxu0 0
  %216 = vmatprep.mubr.bf16.mxu0 %v182
  %217 = vmatmul.mubr.bf16.gmra.mrb[0].mxu0 %v178
  %v218 = vpop.f32.mrb[0].mxu0
  %v219 = vadd.f32 0.0, %v218
  %v220 = vpop.f32.mrb[0].mxu0
  %v221 = vpop.f32.mrb[0].mxu0
  %v222 = vpop.f32.mrb[0].mxu0
  %223 = vdwg.mxu0
  %v224 = vmax.f32 %v169, %v219
  %v225 = vld [vmem:[%s2] sm:$0xff]
  %v227 = vunpack.c.l.b16 %v225
  %v228 = vunpack.c.h.b16 %v225
  %v229 = vpack.c.b16 %v227, %v227
  %v230 = vpack.c.b16 %v228, %v228
  %v233 = vsel %vm130, %v230, 0
  %235 = vmatprep.subr.bf16.mxu0 0
  %236 = vmatpush1.bf16.msra.mxu0 %v110
  %237 = vmatprep.subr.bf16.mxu0 0
  %238 = vmatpush1.bf16.msra.mxu0 %v111
  %239 = vmatprep.subr.bf16.mxu0 0
  %240 = vmatpush1.bf16.msra.mxu0 %v112
  %241 = vmatprep.subr.bf16.mxu0 0
  %242 = vmatpush1.bf16.msra.mxu0 %v113
  %243 = vmatprep.subr.bf16.mxu0 0
  %244 = vmatpush1.bf16.msra.mxu0 %v114
  %245 = vmatprep.subr.bf16.mxu0 0
  %246 = vmatpush1.bf16.msra.mxu0 %v115
  %247 = vmatprep.subr.bf16.mxu0 0
  %248 = vmatpush1.bf16.msra.mxu0 %v116
  %249 = vmatprep.subr.bf16.mxu0 0
  %250 = vmatpush1.bf16.msra.mxu0 %v117
  %251 = vmatprep.subr.bf16.mxu0 0
  %252 = vmatpush1.bf16.msra.mxu0 %v118
  %253 = vmatprep.subr.bf16.mxu0 0
  %254 = vmatpush1.bf16.msra.mxu0 %v119
  %255 = vmatprep.subr.bf16.mxu0 0
  %256 = vmatpush1.bf16.msra.mxu0 0
  %257 = vmatprep.subr.bf16.mxu0 0
  %258 = vmatpush1.bf16.msra.mxu0 0
  %259 = vmatprep.subr.bf16.mxu0 0
  %260 = vmatpush1.bf16.msra.mxu0 0
  %261 = vmatprep.subr.bf16.mxu0 0
  %262 = vmatpush1.bf16.msra.mxu0 0
  %263 = vmatprep.subr.bf16.mxu0 0
  %264 = vmatpush1.bf16.msra.mxu0 0
  %265 = vmatprep.subr.bf16.mxu0 0
  %266 = vmatpush1.bf16.msra.mxu0 0
  %267 = vmatprep.mubr.bf16.mxu0 %v233
  %268 = vmatmul.mubr.bf16.gmra.mrb[0].mxu0 %v229
  %v269 = vpop.f32.mrb[0].mxu0
  %v270 = vadd.f32 0.0, %v269
  %v271 = vpop.f32.mrb[0].mxu0
  %v272 = vpop.f32.mrb[0].mxu0
  %v273 = vpop.f32.mrb[0].mxu0
  %274 = vdwg.mxu0
  %v275 = vmax.f32 %v224, %v270
  %v276 = vld [vmem:[%s3] sm:$0xff]
  %v278 = vunpack.c.l.b16 %v276
  %v279 = vunpack.c.h.b16 %v276
  %v280 = vpack.c.b16 %v278, %v278
  %v281 = vpack.c.b16 %v279, %v279
  %v284 = vsel %vm130, %v281, 0
  %286 = vmatprep.subr.bf16.mxu0 0
  %287 = vmatpush1.bf16.msra.mxu0 %v110
  %288 = vmatprep.subr.bf16.mxu0 0
  %289 = vmatpush1.bf16.msra.mxu0 %v111
  %290 = vmatprep.subr.bf16.mxu0 0
  %291 = vmatpush1.bf16.msra.mxu0 %v112
  %292 = vmatprep.subr.bf16.mxu0 0
  %293 = vmatpush1.bf16.msra.mxu0 %v113
  %294 = vmatprep.subr.bf16.mxu0 0
  %295 = vmatpush1.bf16.msra.mxu0 %v114
  %296 = vmatprep.subr.bf16.mxu0 0
  %297 = vmatpush1.bf16.msra.mxu0 %v115
  %298 = vmatprep.subr.bf16.mxu0 0
  %299 = vmatpush1.bf16.msra.mxu0 %v116
  %300 = vmatprep.subr.bf16.mxu0 0
  %301 = vmatpush1.bf16.msra.mxu0 %v117
  %302 = vmatprep.subr.bf16.mxu0 0
  %303 = vmatpush1.bf16.msra.mxu0 %v118
  %304 = vmatprep.subr.bf16.mxu0 0
  %305 = vmatpush1.bf16.msra.mxu0 %v119
  %306 = vmatprep.subr.bf16.mxu0 0
  %307 = vmatpush1.bf16.msra.mxu0 0
  %308 = vmatprep.subr.bf16.mxu0 0
  %309 = vmatpush1.bf16.msra.mxu0 0
  %310 = vmatprep.subr.bf16.mxu0 0
  %311 = vmatpush1.bf16.msra.mxu0 0
  %312 = vmatprep.subr.bf16.mxu0 0
  %313 = vmatpush1.bf16.msra.mxu0 0
  %314 = vmatprep.subr.bf16.mxu0 0
  %315 = vmatpush1.bf16.msra.mxu0 0
  %316 = vmatprep.subr.bf16.mxu0 0
  %317 = vmatpush1.bf16.msra.mxu0 0
  %318 = vmatprep.mubr.bf16.mxu0 %v284
  %319 = vmatmul.mubr.bf16.gmra.mrb[0].mxu0 %v280
  %v320 = vpop.f32.mrb[0].mxu0
  %v321 = vadd.f32 0.0, %v320
  %v322 = vpop.f32.mrb[0].mxu0
  %v323 = vpop.f32.mrb[0].mxu0
  %v324 = vpop.f32.mrb[0].mxu0
  %325 = vdwg.mxu0
  %v326 = vmax.f32 %v275, %v321
  %v328 = vlaneseq
  %v329 = vshrl.u32 %v328, 7
  %v330 = vsub.s32 0, %v329
  %v331 = vrot.slane %v62, %v330
  %v333 = vadd.f32 %v326, %v331
  %v334 = vmax.f32 %v333, 0.0
  %v335 = vpack.c.bf16 %v334, %v334
  %v336 = vld [vmem:[%s6] sm:$0xf]
  %v337 = vld [vmem:[%s6 + $0x4] sm:$0xf]
  %v338 = vld [vmem:[%s6 + $0x8] sm:$0xf]
  %v339 = vld [vmem:[%s6 + $0xc] sm:$0xf]
  %v340 = vld [vmem:[%s6 + $0x10] sm:$0xf]
  %v341 = vld [vmem:[%s6 + $0x14] sm:$0xf]
  %v342 = vld [vmem:[%s6 + $0x18] sm:$0xf]
  %v343 = vld [vmem:[%s6 + $0x1c] sm:$0xf]
  %v344 = vld [vmem:[%s6 + $0x20] sm:$0xf]
  %v345 = vld [vmem:[%s6 + $0x24] sm:$0xf]
  %v346 = vld [vmem:[%s6 + $0x28] sm:$0xf]
  %v347 = vld [vmem:[%s6 + $0x2c] sm:$0xf]
  %v348 = vld [vmem:[%s6 + $0x30] sm:$0xf]
  %v349 = vld [vmem:[%s6 + $0x34] sm:$0xf]
  %v350 = vld [vmem:[%s6 + $0x38] sm:$0xf]
  %v351 = vld [vmem:[%s6 + $0x3c] sm:$0xf]
  %s352 = scalar_lea.vmem %s0, 8
  %v353 = vld [vmem:[%s352] sm:$0xff]
  %v355 = vunpack.c.l.b16 %v353
  %v356 = vunpack.c.h.b16 %v353
  %v357 = vpack.c.b16 %v355, %v355
  %v358 = vpack.c.b16 %v356, %v356
  %v361 = vsel %vm130, %v358, 0
  %363 = vmatprep.subr.bf16.mxu0 0
  %364 = vmatpush1.bf16.msra.mxu0 %v110
  %365 = vmatprep.subr.bf16.mxu0 0
  %366 = vmatpush1.bf16.msra.mxu0 %v111
  %367 = vmatprep.subr.bf16.mxu0 0
  %368 = vmatpush1.bf16.msra.mxu0 %v112
  %369 = vmatprep.subr.bf16.mxu0 0
  %370 = vmatpush1.bf16.msra.mxu0 %v113
  %371 = vmatprep.subr.bf16.mxu0 0
  %372 = vmatpush1.bf16.msra.mxu0 %v114
  %373 = vmatprep.subr.bf16.mxu0 0
  %374 = vmatpush1.bf16.msra.mxu0 %v115
  %375 = vmatprep.subr.bf16.mxu0 0
  %376 = vmatpush1.bf16.msra.mxu0 %v116
  %377 = vmatprep.subr.bf16.mxu0 0
  %378 = vmatpush1.bf16.msra.mxu0 %v117
  %379 = vmatprep.subr.bf16.mxu0 0
  %380 = vmatpush1.bf16.msra.mxu0 %v118
  %381 = vmatprep.subr.bf16.mxu0 0
  %382 = vmatpush1.bf16.msra.mxu0 %v119
  %383 = vmatprep.subr.bf16.mxu0 0
  %384 = vmatpush1.bf16.msra.mxu0 0
  %385 = vmatprep.subr.bf16.mxu0 0
  %386 = vmatpush1.bf16.msra.mxu0 0
  %387 = vmatprep.subr.bf16.mxu0 0
  %388 = vmatpush1.bf16.msra.mxu0 0
  %389 = vmatprep.subr.bf16.mxu0 0
  %390 = vmatpush1.bf16.msra.mxu0 0
  %391 = vmatprep.subr.bf16.mxu0 0
  %392 = vmatpush1.bf16.msra.mxu0 0
  %393 = vmatprep.subr.bf16.mxu0 0
  %394 = vmatpush1.bf16.msra.mxu0 0
  %395 = vmatprep.mubr.bf16.mxu0 %v361
  %396 = vmatmul.mubr.bf16.gmra.mrb[0].mxu0 %v357
  %v397 = vpop.f32.mrb[0].mxu0
  %v398 = vadd.f32 0.0, %v397
  %v399 = vpop.f32.mrb[0].mxu0
  %v400 = vpop.f32.mrb[0].mxu0
  %v401 = vpop.f32.mrb[0].mxu0
  %402 = vdwg.mxu0
  %s403 = scalar_lea.vmem %s1, 8
  %v404 = vld [vmem:[%s403] sm:$0xff]
  %v406 = vunpack.c.l.b16 %v404
  %v407 = vunpack.c.h.b16 %v404
  %v408 = vpack.c.b16 %v406, %v406
  %v409 = vpack.c.b16 %v407, %v407
  %v412 = vsel %vm130, %v409, 0
  %414 = vmatprep.subr.bf16.mxu0 0
  %415 = vmatpush1.bf16.msra.mxu0 %v110
  %416 = vmatprep.subr.bf16.mxu0 0
  %417 = vmatpush1.bf16.msra.mxu0 %v111
  %418 = vmatprep.subr.bf16.mxu0 0
  %419 = vmatpush1.bf16.msra.mxu0 %v112
  %420 = vmatprep.subr.bf16.mxu0 0
  %421 = vmatpush1.bf16.msra.mxu0 %v113
  %422 = vmatprep.subr.bf16.mxu0 0
  %423 = vmatpush1.bf16.msra.mxu0 %v114
  %424 = vmatprep.subr.bf16.mxu0 0
  %425 = vmatpush1.bf16.msra.mxu0 %v115
  %426 = vmatprep.subr.bf16.mxu0 0
  %427 = vmatpush1.bf16.msra.mxu0 %v116
  %428 = vmatprep.subr.bf16.mxu0 0
  %429 = vmatpush1.bf16.msra.mxu0 %v117
  %430 = vmatprep.subr.bf16.mxu0 0
  %431 = vmatpush1.bf16.msra.mxu0 %v118
  %432 = vmatprep.subr.bf16.mxu0 0
  %433 = vmatpush1.bf16.msra.mxu0 %v119
  %434 = vmatprep.subr.bf16.mxu0 0
  %435 = vmatpush1.bf16.msra.mxu0 0
  %436 = vmatprep.subr.bf16.mxu0 0
  %437 = vmatpush1.bf16.msra.mxu0 0
  %438 = vmatprep.subr.bf16.mxu0 0
  %439 = vmatpush1.bf16.msra.mxu0 0
  %440 = vmatprep.subr.bf16.mxu0 0
  %441 = vmatpush1.bf16.msra.mxu0 0
  %442 = vmatprep.subr.bf16.mxu0 0
  %443 = vmatpush1.bf16.msra.mxu0 0
  %444 = vmatprep.subr.bf16.mxu0 0
  %445 = vmatpush1.bf16.msra.mxu0 0
  %446 = vmatprep.mubr.bf16.mxu0 %v412
  %447 = vmatmul.mubr.bf16.gmra.mrb[0].mxu0 %v408
  %v448 = vpop.f32.mrb[0].mxu0
  %v449 = vadd.f32 0.0, %v448
  %v450 = vpop.f32.mrb[0].mxu0
  %v451 = vpop.f32.mrb[0].mxu0
  %v452 = vpop.f32.mrb[0].mxu0
  %453 = vdwg.mxu0
  %v454 = vmax.f32 %v398, %v449
  %s455 = scalar_lea.vmem %s2, 8
  %v456 = vld [vmem:[%s455] sm:$0xff]
  %v458 = vunpack.c.l.b16 %v456
  %v459 = vunpack.c.h.b16 %v456
  %v460 = vpack.c.b16 %v458, %v458
  %v461 = vpack.c.b16 %v459, %v459
  %v464 = vsel %vm130, %v461, 0
  %466 = vmatprep.subr.bf16.mxu0 0
  %467 = vmatpush1.bf16.msra.mxu0 %v110
  %468 = vmatprep.subr.bf16.mxu0 0
  %469 = vmatpush1.bf16.msra.mxu0 %v111
  %470 = vmatprep.subr.bf16.mxu0 0
  %471 = vmatpush1.bf16.msra.mxu0 %v112
  %472 = vmatprep.subr.bf16.mxu0 0
  %473 = vmatpush1.bf16.msra.mxu0 %v113
  %474 = vmatprep.subr.bf16.mxu0 0
  %475 = vmatpush1.bf16.msra.mxu0 %v114
  %476 = vmatprep.subr.bf16.mxu0 0
  %477 = vmatpush1.bf16.msra.mxu0 %v115
  %478 = vmatprep.subr.bf16.mxu0 0
  %479 = vmatpush1.bf16.msra.mxu0 %v116
  %480 = vmatprep.subr.bf16.mxu0 0
  %481 = vmatpush1.bf16.msra.mxu0 %v117
  %482 = vmatprep.subr.bf16.mxu0 0
  %483 = vmatpush1.bf16.msra.mxu0 %v118
  %484 = vmatprep.subr.bf16.mxu0 0
  %485 = vmatpush1.bf16.msra.mxu0 %v119
  %486 = vmatprep.subr.bf16.mxu0 0
  %487 = vmatpush1.bf16.msra.mxu0 0
  %488 = vmatprep.subr.bf16.mxu0 0
  %489 = vmatpush1.bf16.msra.mxu0 0
  %490 = vmatprep.subr.bf16.mxu0 0
  %491 = vmatpush1.bf16.msra.mxu0 0
  %492 = vmatprep.subr.bf16.mxu0 0
  %493 = vmatpush1.bf16.msra.mxu0 0
  %494 = vmatprep.subr.bf16.mxu0 0
  %495 = vmatpush1.bf16.msra.mxu0 0
  %496 = vmatprep.subr.bf16.mxu0 0
  %497 = vmatpush1.bf16.msra.mxu0 0
  %498 = vmatprep.mubr.bf16.mxu0 %v464
  %499 = vmatmul.mubr.bf16.gmra.mrb[0].mxu0 %v460
  %v500 = vpop.f32.mrb[0].mxu0
  %v501 = vadd.f32 0.0, %v500
  %v502 = vpop.f32.mrb[0].mxu0
  %v503 = vpop.f32.mrb[0].mxu0
  %v504 = vpop.f32.mrb[0].mxu0
  %505 = vdwg.mxu0
  %v506 = vmax.f32 %v454, %v501
  %s507 = scalar_lea.vmem %s3, 8
  %v508 = vld [vmem:[%s507] sm:$0xff]
  %v510 = vunpack.c.l.b16 %v508
  %v511 = vunpack.c.h.b16 %v508
  %v512 = vpack.c.b16 %v510, %v510
  %v513 = vpack.c.b16 %v511, %v511
  %v516 = vsel %vm130, %v513, 0
  %518 = vmatprep.subr.bf16.mxu0 0
  %519 = vmatpush1.bf16.msra.mxu0 %v110
  %520 = vmatprep.subr.bf16.mxu0 0
  %521 = vmatpush1.bf16.msra.mxu0 %v111
  %522 = vmatprep.subr.bf16.mxu0 0
  %523 = vmatpush1.bf16.msra.mxu0 %v112
  %524 = vmatprep.subr.bf16.mxu0 0
  %525 = vmatpush1.bf16.msra.mxu0 %v113
  %526 = vmatprep.subr.bf16.mxu0 0
  %527 = vmatpush1.bf16.msra.mxu0 %v114
  %528 = vmatprep.subr.bf16.mxu0 0
  %529 = vmatpush1.bf16.msra.mxu0 %v115
  %530 = vmatprep.subr.bf16.mxu0 0
  %531 = vmatpush1.bf16.msra.mxu0 %v116
  %532 = vmatprep.subr.bf16.mxu0 0
  %533 = vmatpush1.bf16.msra.mxu0 %v117
  %534 = vmatprep.subr.bf16.mxu0 0
  %535 = vmatpush1.bf16.msra.mxu0 %v118
  %536 = vmatprep.subr.bf16.mxu0 0
  %537 = vmatpush1.bf16.msra.mxu0 %v119
  %538 = vmatprep.subr.bf16.mxu0 0
  %539 = vmatpush1.bf16.msra.mxu0 0
  %540 = vmatprep.subr.bf16.mxu0 0
  %541 = vmatpush1.bf16.msra.mxu0 0
  %542 = vmatprep.subr.bf16.mxu0 0
  %543 = vmatpush1.bf16.msra.mxu0 0
  %544 = vmatprep.subr.bf16.mxu0 0
  %545 = vmatpush1.bf16.msra.mxu0 0
  %546 = vmatprep.subr.bf16.mxu0 0
  %547 = vmatpush1.bf16.msra.mxu0 0
  %548 = vmatprep.subr.bf16.mxu0 0
  %549 = vmatpush1.bf16.msra.mxu0 0
  %550 = vmatprep.mubr.bf16.mxu0 %v516
  %551 = vmatmul.mubr.bf16.gmra.mrb[0].mxu0 %v512
  %v552 = vpop.f32.mrb[0].mxu0
  %v553 = vadd.f32 0.0, %v552
  %v554 = vpop.f32.mrb[0].mxu0
  %v555 = vpop.f32.mrb[0].mxu0
  %v556 = vpop.f32.mrb[0].mxu0
  %557 = vdwg.mxu0
  %v558 = vmax.f32 %v506, %v553
  %v559 = vadd.f32 %v558, %v331
  %v560 = vmax.f32 %v559, 0.0
  %v561 = vpack.c.bf16 %v560, %v560
  %s562 = scalar_lea.vmem %s6, 64
  %v563 = vld [vmem:[%s562] sm:$0xf]
  %v564 = vld [vmem:[%s562 + $0x4] sm:$0xf]
  %v565 = vld [vmem:[%s562 + $0x8] sm:$0xf]
  %v566 = vld [vmem:[%s562 + $0xc] sm:$0xf]
  %v567 = vld [vmem:[%s562 + $0x10] sm:$0xf]
  %v568 = vld [vmem:[%s562 + $0x14] sm:$0xf]
  %v569 = vld [vmem:[%s562 + $0x18] sm:$0xf]
  %v570 = vld [vmem:[%s562 + $0x1c] sm:$0xf]
  %v571 = vld [vmem:[%s562 + $0x20] sm:$0xf]
  %v572 = vld [vmem:[%s562 + $0x24] sm:$0xf]
  %v573 = vld [vmem:[%s562 + $0x28] sm:$0xf]
  %v574 = vld [vmem:[%s562 + $0x2c] sm:$0xf]
  %v575 = vld [vmem:[%s562 + $0x30] sm:$0xf]
  %v576 = vld [vmem:[%s562 + $0x34] sm:$0xf]
  %v577 = vld [vmem:[%s562 + $0x38] sm:$0xf]
  %v578 = vld [vmem:[%s562 + $0x3c] sm:$0xf]
  %v595 = vunpack.c.l.b16 %v563
  %v596 = vunpack.c.l.b16 %v564
  %v597 = vunpack.c.l.b16 %v565
  %v598 = vunpack.c.l.b16 %v566
  %v599 = vunpack.c.l.b16 %v567
  %v600 = vunpack.c.l.b16 %v568
  %v601 = vunpack.c.l.b16 %v569
  %v602 = vunpack.c.l.b16 %v570
  %v603 = vunpack.c.l.b16 %v571
  %v604 = vunpack.c.l.b16 %v572
  %v605 = vunpack.c.l.b16 %v573
  %v606 = vunpack.c.l.b16 %v574
  %v607 = vunpack.c.l.b16 %v575
  %v608 = vunpack.c.l.b16 %v576
  %v609 = vunpack.c.l.b16 %v577
  %v610 = vunpack.c.l.b16 %v578
  %v611 = vpack.c.b16 %v596, %v595
  %v612 = vpack.c.b16 %v598, %v597
  %v613 = vpack.c.b16 %v600, %v599
  %v614 = vpack.c.b16 %v602, %v601
  %v615 = vpack.c.b16 %v604, %v603
  %v616 = vpack.c.b16 %v606, %v605
  %v617 = vpack.c.b16 %v608, %v607
  %v618 = vpack.c.b16 %v610, %v609
  %627 = vmatprep.subr.bf16.mxu0 0
  %628 = vmatpush1.bf16.msra.mxu0 %v611
  %629 = vmatprep.subr.bf16.mxu0 0
  %630 = vmatpush1.bf16.msra.mxu0 %v612
  %631 = vmatprep.subr.bf16.mxu0 0
  %632 = vmatpush1.bf16.msra.mxu0 %v613
  %633 = vmatprep.subr.bf16.mxu0 0
  %634 = vmatpush1.bf16.msra.mxu0 %v614
  %635 = vmatprep.subr.bf16.mxu0 0
  %636 = vmatpush1.bf16.msra.mxu0 %v615
  %637 = vmatprep.subr.bf16.mxu0 0
  %638 = vmatpush1.bf16.msra.mxu0 %v616
  %639 = vmatprep.subr.bf16.mxu0 0
  %640 = vmatpush1.bf16.msra.mxu0 %v617
  %641 = vmatprep.subr.bf16.mxu0 0
  %642 = vmatpush1.bf16.msra.mxu0 %v618
  %643 = vmatprep.subr.bf16.mxu0 0
  %644 = vmatpush1.bf16.msra.mxu0 0
  %645 = vmatprep.subr.bf16.mxu0 0
  %646 = vmatpush1.bf16.msra.mxu0 0
  %647 = vmatprep.subr.bf16.mxu0 0
  %648 = vmatpush1.bf16.msra.mxu0 0
  %649 = vmatprep.subr.bf16.mxu0 0
  %650 = vmatpush1.bf16.msra.mxu0 0
  %651 = vmatprep.subr.bf16.mxu0 0
  %652 = vmatpush1.bf16.msra.mxu0 0
  %653 = vmatprep.subr.bf16.mxu0 0
  %654 = vmatpush1.bf16.msra.mxu0 0
  %655 = vmatprep.subr.bf16.mxu0 0
  %656 = vmatpush1.bf16.msra.mxu0 0
  %657 = vmatprep.subr.bf16.mxu0 0
  %658 = vmatpush1.bf16.msra.mxu0 0
  %659 = vmatprep.mubr.bf16.mxu0 0
  %660 = vmatmul.mubr.bf16.gmra.mrb[0].mxu0 %v561
  %v661 = vpop.f32.mrb[0].mxu0
  %v662 = vadd.f32 0.0, %v661
  %v663 = vpop.f32.mrb[0].mxu0
  %v664 = vpop.f32.mrb[0].mxu0
  %v665 = vpop.f32.mrb[0].mxu0
  %666 = vdwg.mxu0
  %v683 = vunpack.c.l.b16 %v336
  %v684 = vunpack.c.l.b16 %v337
  %v685 = vunpack.c.l.b16 %v338
  %v686 = vunpack.c.l.b16 %v339
  %v687 = vunpack.c.l.b16 %v340
  %v688 = vunpack.c.l.b16 %v341
  %v689 = vunpack.c.l.b16 %v342
  %v690 = vunpack.c.l.b16 %v343
  %v691 = vunpack.c.l.b16 %v344
  %v692 = vunpack.c.l.b16 %v345
  %v693 = vunpack.c.l.b16 %v346
  %v694 = vunpack.c.l.b16 %v347
  %v695 = vunpack.c.l.b16 %v348
  %v696 = vunpack.c.l.b16 %v349
  %v697 = vunpack.c.l.b16 %v350
  %v698 = vunpack.c.l.b16 %v351
  %v699 = vpack.c.b16 %v684, %v683
  %v700 = vpack.c.b16 %v686, %v685
  %v701 = vpack.c.b16 %v688, %v687
  %v702 = vpack.c.b16 %v690, %v689
  %v703 = vpack.c.b16 %v692, %v691
  %v704 = vpack.c.b16 %v694, %v693
  %v705 = vpack.c.b16 %v696, %v695
  %v706 = vpack.c.b16 %v698, %v697
  %715 = vmatprep.subr.bf16.mxu0 0
  %716 = vmatpush1.bf16.msra.mxu0 %v699
  %717 = vmatprep.subr.bf16.mxu0 0
  %718 = vmatpush1.bf16.msra.mxu0 %v700
  %719 = vmatprep.subr.bf16.mxu0 0
  %720 = vmatpush1.bf16.msra.mxu0 %v701
  %721 = vmatprep.subr.bf16.mxu0 0
  %722 = vmatpush1.bf16.msra.mxu0 %v702
  %723 = vmatprep.subr.bf16.mxu0 0
  %724 = vmatpush1.bf16.msra.mxu0 %v703
  %725 = vmatprep.subr.bf16.mxu0 0
  %726 = vmatpush1.bf16.msra.mxu0 %v704
  %727 = vmatprep.subr.bf16.mxu0 0
  %728 = vmatpush1.bf16.msra.mxu0 %v705
  %729 = vmatprep.subr.bf16.mxu0 0
  %730 = vmatpush1.bf16.msra.mxu0 %v706
  %731 = vmatprep.subr.bf16.mxu0 0
  %732 = vmatpush1.bf16.msra.mxu0 0
  %733 = vmatprep.subr.bf16.mxu0 0
  %734 = vmatpush1.bf16.msra.mxu0 0
  %735 = vmatprep.subr.bf16.mxu0 0
  %736 = vmatpush1.bf16.msra.mxu0 0
  %737 = vmatprep.subr.bf16.mxu0 0
  %738 = vmatpush1.bf16.msra.mxu0 0
  %739 = vmatprep.subr.bf16.mxu0 0
  %740 = vmatpush1.bf16.msra.mxu0 0
  %741 = vmatprep.subr.bf16.mxu0 0
  %742 = vmatpush1.bf16.msra.mxu0 0
  %743 = vmatprep.subr.bf16.mxu0 0
  %744 = vmatpush1.bf16.msra.mxu0 0
  %745 = vmatprep.subr.bf16.mxu0 0
  %746 = vmatpush1.bf16.msra.mxu0 0
  %747 = vmatprep.mubr.bf16.mxu0 0
  %748 = vmatmul.mubr.bf16.gmra.mrb[0].mxu0 %v335
  %v749 = vpop.f32.mrb[0].mxu0
  %v750 = vadd.f32 %v662, %v749
  %v751 = vpop.f32.mrb[0].mxu0
  %v752 = vpop.f32.mrb[0].mxu0
  %v753 = vpop.f32.mrb[0].mxu0
  %754 = vdwg.mxu0
  %s755 = scalar_lea.vmem %s0, 16
  %v756 = vld [vmem:[%s755] sm:$0xff]
  %v758 = vunpack.c.l.b16 %v756
  %v759 = vunpack.c.h.b16 %v756
  %v760 = vpack.c.b16 %v758, %v758
  %v761 = vpack.c.b16 %v759, %v759
  %v764 = vsel %vm130, %v761, 0
  %766 = vmatprep.subr.bf16.mxu0 0
  %767 = vmatpush1.bf16.msra.mxu0 %v110
  %768 = vmatprep.subr.bf16.mxu0 0
  %769 = vmatpush1.bf16.msra.mxu0 %v111
  %770 = vmatprep.subr.bf16.mxu0 0
  %771 = vmatpush1.bf16.msra.mxu0 %v112
  %772 = vmatprep.subr.bf16.mxu0 0
  %773 = vmatpush1.bf16.msra.mxu0 %v113
  %774 = vmatprep.subr.bf16.mxu0 0
  %775 = vmatpush1.bf16.msra.mxu0 %v114
  %776 = vmatprep.subr.bf16.mxu0 0
  %777 = vmatpush1.bf16.msra.mxu0 %v115
  %778 = vmatprep.subr.bf16.mxu0 0
  %779 = vmatpush1.bf16.msra.mxu0 %v116
  %780 = vmatprep.subr.bf16.mxu0 0
  %781 = vmatpush1.bf16.msra.mxu0 %v117
  %782 = vmatprep.subr.bf16.mxu0 0
  %783 = vmatpush1.bf16.msra.mxu0 %v118
  %784 = vmatprep.subr.bf16.mxu0 0
  %785 = vmatpush1.bf16.msra.mxu0 %v119
  %786 = vmatprep.subr.bf16.mxu0 0
  %787 = vmatpush1.bf16.msra.mxu0 0
  %788 = vmatprep.subr.bf16.mxu0 0
  %789 = vmatpush1.bf16.msra.mxu0 0
  %790 = vmatprep.subr.bf16.mxu0 0
  %791 = vmatpush1.bf16.msra.mxu0 0
  %792 = vmatprep.subr.bf16.mxu0 0
  %793 = vmatpush1.bf16.msra.mxu0 0
  %794 = vmatprep.subr.bf16.mxu0 0
  %795 = vmatpush1.bf16.msra.mxu0 0
  %796 = vmatprep.subr.bf16.mxu0 0
  %797 = vmatpush1.bf16.msra.mxu0 0
  %798 = vmatprep.mubr.bf16.mxu0 %v764
  %799 = vmatmul.mubr.bf16.gmra.mrb[0].mxu0 %v760
  %v800 = vpop.f32.mrb[0].mxu0
  %v801 = vadd.f32 0.0, %v800
  %v802 = vpop.f32.mrb[0].mxu0
  %v803 = vpop.f32.mrb[0].mxu0
  %v804 = vpop.f32.mrb[0].mxu0
  %805 = vdwg.mxu0
  %s806 = scalar_lea.vmem %s1, 16
  %v807 = vld [vmem:[%s806] sm:$0xff]
  %v809 = vunpack.c.l.b16 %v807
  %v810 = vunpack.c.h.b16 %v807
  %v811 = vpack.c.b16 %v809, %v809
  %v812 = vpack.c.b16 %v810, %v810
  %v815 = vsel %vm130, %v812, 0
  %817 = vmatprep.subr.bf16.mxu0 0
  %818 = vmatpush1.bf16.msra.mxu0 %v110
  %819 = vmatprep.subr.bf16.mxu0 0
  %820 = vmatpush1.bf16.msra.mxu0 %v111
  %821 = vmatprep.subr.bf16.mxu0 0
  %822 = vmatpush1.bf16.msra.mxu0 %v112
  %823 = vmatprep.subr.bf16.mxu0 0
  %824 = vmatpush1.bf16.msra.mxu0 %v113
  %825 = vmatprep.subr.bf16.mxu0 0
  %826 = vmatpush1.bf16.msra.mxu0 %v114
  %827 = vmatprep.subr.bf16.mxu0 0
  %828 = vmatpush1.bf16.msra.mxu0 %v115
  %829 = vmatprep.subr.bf16.mxu0 0
  %830 = vmatpush1.bf16.msra.mxu0 %v116
  %831 = vmatprep.subr.bf16.mxu0 0
  %832 = vmatpush1.bf16.msra.mxu0 %v117
  %833 = vmatprep.subr.bf16.mxu0 0
  %834 = vmatpush1.bf16.msra.mxu0 %v118
  %835 = vmatprep.subr.bf16.mxu0 0
  %836 = vmatpush1.bf16.msra.mxu0 %v119
  %837 = vmatprep.subr.bf16.mxu0 0
  %838 = vmatpush1.bf16.msra.mxu0 0
  %839 = vmatprep.subr.bf16.mxu0 0
  %840 = vmatpush1.bf16.msra.mxu0 0
  %841 = vmatprep.subr.bf16.mxu0 0
  %842 = vmatpush1.bf16.msra.mxu0 0
  %843 = vmatprep.subr.bf16.mxu0 0
  %844 = vmatpush1.bf16.msra.mxu0 0
  %845 = vmatprep.subr.bf16.mxu0 0
  %846 = vmatpush1.bf16.msra.mxu0 0
  %847 = vmatprep.subr.bf16.mxu0 0
  %848 = vmatpush1.bf16.msra.mxu0 0
  %849 = vmatprep.mubr.bf16.mxu0 %v815
  %850 = vmatmul.mubr.bf16.gmra.mrb[0].mxu0 %v811
  %v851 = vpop.f32.mrb[0].mxu0
  %v852 = vadd.f32 0.0, %v851
  %v853 = vpop.f32.mrb[0].mxu0
  %v854 = vpop.f32.mrb[0].mxu0
  %v855 = vpop.f32.mrb[0].mxu0
  %856 = vdwg.mxu0
  %v857 = vmax.f32 %v801, %v852
  %s858 = scalar_lea.vmem %s2, 16
  %v859 = vld [vmem:[%s858] sm:$0xff]
  %v861 = vunpack.c.l.b16 %v859
  %v862 = vunpack.c.h.b16 %v859
  %v863 = vpack.c.b16 %v861, %v861
  %v864 = vpack.c.b16 %v862, %v862
  %v867 = vsel %vm130, %v864, 0
  %869 = vmatprep.subr.bf16.mxu0 0
  %870 = vmatpush1.bf16.msra.mxu0 %v110
  %871 = vmatprep.subr.bf16.mxu0 0
  %872 = vmatpush1.bf16.msra.mxu0 %v111
  %873 = vmatprep.subr.bf16.mxu0 0
  %874 = vmatpush1.bf16.msra.mxu0 %v112
  %875 = vmatprep.subr.bf16.mxu0 0
  %876 = vmatpush1.bf16.msra.mxu0 %v113
  %877 = vmatprep.subr.bf16.mxu0 0
  %878 = vmatpush1.bf16.msra.mxu0 %v114
  %879 = vmatprep.subr.bf16.mxu0 0
  %880 = vmatpush1.bf16.msra.mxu0 %v115
  %881 = vmatprep.subr.bf16.mxu0 0
  %882 = vmatpush1.bf16.msra.mxu0 %v116
  %883 = vmatprep.subr.bf16.mxu0 0
  %884 = vmatpush1.bf16.msra.mxu0 %v117
  %885 = vmatprep.subr.bf16.mxu0 0
  %886 = vmatpush1.bf16.msra.mxu0 %v118
  %887 = vmatprep.subr.bf16.mxu0 0
  %888 = vmatpush1.bf16.msra.mxu0 %v119
  %889 = vmatprep.subr.bf16.mxu0 0
  %890 = vmatpush1.bf16.msra.mxu0 0
  %891 = vmatprep.subr.bf16.mxu0 0
  %892 = vmatpush1.bf16.msra.mxu0 0
  %893 = vmatprep.subr.bf16.mxu0 0
  %894 = vmatpush1.bf16.msra.mxu0 0
  %895 = vmatprep.subr.bf16.mxu0 0
  %896 = vmatpush1.bf16.msra.mxu0 0
  %897 = vmatprep.subr.bf16.mxu0 0
  %898 = vmatpush1.bf16.msra.mxu0 0
  %899 = vmatprep.subr.bf16.mxu0 0
  %900 = vmatpush1.bf16.msra.mxu0 0
  %901 = vmatprep.mubr.bf16.mxu0 %v867
  %902 = vmatmul.mubr.bf16.gmra.mrb[0].mxu0 %v863
  %v903 = vpop.f32.mrb[0].mxu0
  %v904 = vadd.f32 0.0, %v903
  %v905 = vpop.f32.mrb[0].mxu0
  %v906 = vpop.f32.mrb[0].mxu0
  %v907 = vpop.f32.mrb[0].mxu0
  %908 = vdwg.mxu0
  %v909 = vmax.f32 %v857, %v904
  %s910 = scalar_lea.vmem %s3, 16
  %v911 = vld [vmem:[%s910] sm:$0xff]
  %v913 = vunpack.c.l.b16 %v911
  %v914 = vunpack.c.h.b16 %v911
  %v915 = vpack.c.b16 %v913, %v913
  %v916 = vpack.c.b16 %v914, %v914
  %v919 = vsel %vm130, %v916, 0
  %921 = vmatprep.subr.bf16.mxu0 0
  %922 = vmatpush1.bf16.msra.mxu0 %v110
  %923 = vmatprep.subr.bf16.mxu0 0
  %924 = vmatpush1.bf16.msra.mxu0 %v111
  %925 = vmatprep.subr.bf16.mxu0 0
  %926 = vmatpush1.bf16.msra.mxu0 %v112
  %927 = vmatprep.subr.bf16.mxu0 0
  %928 = vmatpush1.bf16.msra.mxu0 %v113
  %929 = vmatprep.subr.bf16.mxu0 0
  %930 = vmatpush1.bf16.msra.mxu0 %v114
  %931 = vmatprep.subr.bf16.mxu0 0
  %932 = vmatpush1.bf16.msra.mxu0 %v115
  %933 = vmatprep.subr.bf16.mxu0 0
  %934 = vmatpush1.bf16.msra.mxu0 %v116
  %935 = vmatprep.subr.bf16.mxu0 0
  %936 = vmatpush1.bf16.msra.mxu0 %v117
  %937 = vmatprep.subr.bf16.mxu0 0
  %938 = vmatpush1.bf16.msra.mxu0 %v118
  %939 = vmatprep.subr.bf16.mxu0 0
  %940 = vmatpush1.bf16.msra.mxu0 %v119
  %941 = vmatprep.subr.bf16.mxu0 0
  %942 = vmatpush1.bf16.msra.mxu0 0
  %943 = vmatprep.subr.bf16.mxu0 0
  %944 = vmatpush1.bf16.msra.mxu0 0
  %945 = vmatprep.subr.bf16.mxu0 0
  %946 = vmatpush1.bf16.msra.mxu0 0
  %947 = vmatprep.subr.bf16.mxu0 0
  %948 = vmatpush1.bf16.msra.mxu0 0
  %949 = vmatprep.subr.bf16.mxu0 0
  %950 = vmatpush1.bf16.msra.mxu0 0
  %951 = vmatprep.subr.bf16.mxu0 0
  %952 = vmatpush1.bf16.msra.mxu0 0
  %953 = vmatprep.mubr.bf16.mxu0 %v919
  %954 = vmatmul.mubr.bf16.gmra.mrb[0].mxu0 %v915
  %v955 = vpop.f32.mrb[0].mxu0
  %v956 = vadd.f32 0.0, %v955
  %v957 = vpop.f32.mrb[0].mxu0
  %v958 = vpop.f32.mrb[0].mxu0
  %v959 = vpop.f32.mrb[0].mxu0
  %960 = vdwg.mxu0
  %v961 = vmax.f32 %v909, %v956
  %v962 = vadd.f32 %v961, %v331
  %v963 = vmax.f32 %v962, 0.0
  %v964 = vpack.c.bf16 %v963, %v963
  %s965 = scalar_lea.vmem %s6, 128
  %v966 = vld [vmem:[%s965] sm:$0xf]
  %v967 = vld [vmem:[%s965 + $0x4] sm:$0xf]
  %v968 = vld [vmem:[%s965 + $0x8] sm:$0xf]
  %v969 = vld [vmem:[%s965 + $0xc] sm:$0xf]
  %v970 = vld [vmem:[%s965 + $0x10] sm:$0xf]
  %v971 = vld [vmem:[%s965 + $0x14] sm:$0xf]
  %v972 = vld [vmem:[%s965 + $0x18] sm:$0xf]
  %v973 = vld [vmem:[%s965 + $0x1c] sm:$0xf]
  %v974 = vld [vmem:[%s965 + $0x20] sm:$0xf]
  %v975 = vld [vmem:[%s965 + $0x24] sm:$0xf]
  %v976 = vld [vmem:[%s965 + $0x28] sm:$0xf]
  %v977 = vld [vmem:[%s965 + $0x2c] sm:$0xf]
  %v978 = vld [vmem:[%s965 + $0x30] sm:$0xf]
  %v979 = vld [vmem:[%s965 + $0x34] sm:$0xf]
  %v980 = vld [vmem:[%s965 + $0x38] sm:$0xf]
  %v981 = vld [vmem:[%s965 + $0x3c] sm:$0xf]
  %v998 = vunpack.c.l.b16 %v966
  %v999 = vunpack.c.l.b16 %v967
  %v1000 = vunpack.c.l.b16 %v968
  %v1001 = vunpack.c.l.b16 %v969
  %v1002 = vunpack.c.l.b16 %v970
  %v1003 = vunpack.c.l.b16 %v971
  %v1004 = vunpack.c.l.b16 %v972
  %v1005 = vunpack.c.l.b16 %v973
  %v1006 = vunpack.c.l.b16 %v974
  %v1007 = vunpack.c.l.b16 %v975
  %v1008 = vunpack.c.l.b16 %v976
  %v1009 = vunpack.c.l.b16 %v977
  %v1010 = vunpack.c.l.b16 %v978
  %v1011 = vunpack.c.l.b16 %v979
  %v1012 = vunpack.c.l.b16 %v980
  %v1013 = vunpack.c.l.b16 %v981
  %v1014 = vpack.c.b16 %v999, %v998
  %v1015 = vpack.c.b16 %v1001, %v1000
  %v1016 = vpack.c.b16 %v1003, %v1002
  %v1017 = vpack.c.b16 %v1005, %v1004
  %v1018 = vpack.c.b16 %v1007, %v1006
  %v1019 = vpack.c.b16 %v1009, %v1008
  %v1020 = vpack.c.b16 %v1011, %v1010
  %v1021 = vpack.c.b16 %v1013, %v1012
  %1030 = vmatprep.subr.bf16.mxu0 0
  %1031 = vmatpush1.bf16.msra.mxu0 %v1014
  %1032 = vmatprep.subr.bf16.mxu0 0
  %1033 = vmatpush1.bf16.msra.mxu0 %v1015
  %1034 = vmatprep.subr.bf16.mxu0 0
  %1035 = vmatpush1.bf16.msra.mxu0 %v1016
  %1036 = vmatprep.subr.bf16.mxu0 0
  %1037 = vmatpush1.bf16.msra.mxu0 %v1017
  %1038 = vmatprep.subr.bf16.mxu0 0
  %1039 = vmatpush1.bf16.msra.mxu0 %v1018
  %1040 = vmatprep.subr.bf16.mxu0 0
  %1041 = vmatpush1.bf16.msra.mxu0 %v1019
  %1042 = vmatprep.subr.bf16.mxu0 0
  %1043 = vmatpush1.bf16.msra.mxu0 %v1020
  %1044 = vmatprep.subr.bf16.mxu0 0
  %1045 = vmatpush1.bf16.msra.mxu0 %v1021
  %1046 = vmatprep.subr.bf16.mxu0 0
  %1047 = vmatpush1.bf16.msra.mxu0 0
  %1048 = vmatprep.subr.bf16.mxu0 0
  %1049 = vmatpush1.bf16.msra.mxu0 0
  %1050 = vmatprep.subr.bf16.mxu0 0
  %1051 = vmatpush1.bf16.msra.mxu0 0
  %1052 = vmatprep.subr.bf16.mxu0 0
  %1053 = vmatpush1.bf16.msra.mxu0 0
  %1054 = vmatprep.subr.bf16.mxu0 0
  %1055 = vmatpush1.bf16.msra.mxu0 0
  %1056 = vmatprep.subr.bf16.mxu0 0
  %1057 = vmatpush1.bf16.msra.mxu0 0
  %1058 = vmatprep.subr.bf16.mxu0 0
  %1059 = vmatpush1.bf16.msra.mxu0 0
  %1060 = vmatprep.subr.bf16.mxu0 0
  %1061 = vmatpush1.bf16.msra.mxu0 0
  %1062 = vmatprep.mubr.bf16.mxu0 0
  %1063 = vmatmul.mubr.bf16.gmra.mrb[0].mxu0 %v964
  %v1064 = vpop.f32.mrb[0].mxu0
  %v1065 = vadd.f32 0.0, %v1064
  %v1066 = vpop.f32.mrb[0].mxu0
  %v1067 = vpop.f32.mrb[0].mxu0
  %v1068 = vpop.f32.mrb[0].mxu0
  %1069 = vdwg.mxu0
  %v1070 = vadd.f32 %v750, %v1065
  %s1071 = scalar_lea.vmem %s0, 24
  %v1072 = vld [vmem:[%s1071] sm:$0xff]
  %v1074 = vunpack.c.l.b16 %v1072
  %v1075 = vunpack.c.h.b16 %v1072
  %v1076 = vpack.c.b16 %v1074, %v1074
  %v1077 = vpack.c.b16 %v1075, %v1075
  %v1080 = vsel %vm130, %v1077, 0
  %1082 = vmatprep.subr.bf16.mxu0 0
  %1083 = vmatpush1.bf16.msra.mxu0 %v110
  %1084 = vmatprep.subr.bf16.mxu0 0
  %1085 = vmatpush1.bf16.msra.mxu0 %v111
  %1086 = vmatprep.subr.bf16.mxu0 0
  %1087 = vmatpush1.bf16.msra.mxu0 %v112
  %1088 = vmatprep.subr.bf16.mxu0 0
  %1089 = vmatpush1.bf16.msra.mxu0 %v113
  %1090 = vmatprep.subr.bf16.mxu0 0
  %1091 = vmatpush1.bf16.msra.mxu0 %v114
  %1092 = vmatprep.subr.bf16.mxu0 0
  %1093 = vmatpush1.bf16.msra.mxu0 %v115
  %1094 = vmatprep.subr.bf16.mxu0 0
  %1095 = vmatpush1.bf16.msra.mxu0 %v116
  %1096 = vmatprep.subr.bf16.mxu0 0
  %1097 = vmatpush1.bf16.msra.mxu0 %v117
  %1098 = vmatprep.subr.bf16.mxu0 0
  %1099 = vmatpush1.bf16.msra.mxu0 %v118
  %1100 = vmatprep.subr.bf16.mxu0 0
  %1101 = vmatpush1.bf16.msra.mxu0 %v119
  %1102 = vmatprep.subr.bf16.mxu0 0
  %1103 = vmatpush1.bf16.msra.mxu0 0
  %1104 = vmatprep.subr.bf16.mxu0 0
  %1105 = vmatpush1.bf16.msra.mxu0 0
  %1106 = vmatprep.subr.bf16.mxu0 0
  %1107 = vmatpush1.bf16.msra.mxu0 0
  %1108 = vmatprep.subr.bf16.mxu0 0
  %1109 = vmatpush1.bf16.msra.mxu0 0
  %1110 = vmatprep.subr.bf16.mxu0 0
  %1111 = vmatpush1.bf16.msra.mxu0 0
  %1112 = vmatprep.subr.bf16.mxu0 0
  %1113 = vmatpush1.bf16.msra.mxu0 0
  %1114 = vmatprep.mubr.bf16.mxu0 %v1080
  %1115 = vmatmul.mubr.bf16.gmra.mrb[0].mxu0 %v1076
  %v1116 = vpop.f32.mrb[0].mxu0
  %v1117 = vadd.f32 0.0, %v1116
  %v1118 = vpop.f32.mrb[0].mxu0
  %v1119 = vpop.f32.mrb[0].mxu0
  %v1120 = vpop.f32.mrb[0].mxu0
  %1121 = vdwg.mxu0
  %s1122 = scalar_lea.vmem %s1, 24
  %v1123 = vld [vmem:[%s1122] sm:$0xff]
  %v1125 = vunpack.c.l.b16 %v1123
  %v1126 = vunpack.c.h.b16 %v1123
  %v1127 = vpack.c.b16 %v1125, %v1125
  %v1128 = vpack.c.b16 %v1126, %v1126
  %v1131 = vsel %vm130, %v1128, 0
  %1133 = vmatprep.subr.bf16.mxu0 0
  %1134 = vmatpush1.bf16.msra.mxu0 %v110
  %1135 = vmatprep.subr.bf16.mxu0 0
  %1136 = vmatpush1.bf16.msra.mxu0 %v111
  %1137 = vmatprep.subr.bf16.mxu0 0
  %1138 = vmatpush1.bf16.msra.mxu0 %v112
  %1139 = vmatprep.subr.bf16.mxu0 0
  %1140 = vmatpush1.bf16.msra.mxu0 %v113
  %1141 = vmatprep.subr.bf16.mxu0 0
  %1142 = vmatpush1.bf16.msra.mxu0 %v114
  %1143 = vmatprep.subr.bf16.mxu0 0
  %1144 = vmatpush1.bf16.msra.mxu0 %v115
  %1145 = vmatprep.subr.bf16.mxu0 0
  %1146 = vmatpush1.bf16.msra.mxu0 %v116
  %1147 = vmatprep.subr.bf16.mxu0 0
  %1148 = vmatpush1.bf16.msra.mxu0 %v117
  %1149 = vmatprep.subr.bf16.mxu0 0
  %1150 = vmatpush1.bf16.msra.mxu0 %v118
  %1151 = vmatprep.subr.bf16.mxu0 0
  %1152 = vmatpush1.bf16.msra.mxu0 %v119
  %1153 = vmatprep.subr.bf16.mxu0 0
  %1154 = vmatpush1.bf16.msra.mxu0 0
  %1155 = vmatprep.subr.bf16.mxu0 0
  %1156 = vmatpush1.bf16.msra.mxu0 0
  %1157 = vmatprep.subr.bf16.mxu0 0
  %1158 = vmatpush1.bf16.msra.mxu0 0
  %1159 = vmatprep.subr.bf16.mxu0 0
  %1160 = vmatpush1.bf16.msra.mxu0 0
  %1161 = vmatprep.subr.bf16.mxu0 0
  %1162 = vmatpush1.bf16.msra.mxu0 0
  %1163 = vmatprep.subr.bf16.mxu0 0
  %1164 = vmatpush1.bf16.msra.mxu0 0
  %1165 = vmatprep.mubr.bf16.mxu0 %v1131
  %1166 = vmatmul.mubr.bf16.gmra.mrb[0].mxu0 %v1127
  %v1167 = vpop.f32.mrb[0].mxu0
  %v1168 = vadd.f32 0.0, %v1167
  %v1169 = vpop.f32.mrb[0].mxu0
  %v1170 = vpop.f32.mrb[0].mxu0
  %v1171 = vpop.f32.mrb[0].mxu0
  %1172 = vdwg.mxu0
  %v1173 = vmax.f32 %v1117, %v1168
  %s1174 = scalar_lea.vmem %s2, 24
  %v1175 = vld [vmem:[%s1174] sm:$0xff]
  %v1177 = vunpack.c.l.b16 %v1175
  %v1178 = vunpack.c.h.b16 %v1175
  %v1179 = vpack.c.b16 %v1177, %v1177
  %v1180 = vpack.c.b16 %v1178, %v1178
  %v1183 = vsel %vm130, %v1180, 0
  %1185 = vmatprep.subr.bf16.mxu0 0
  %1186 = vmatpush1.bf16.msra.mxu0 %v110
  %1187 = vmatprep.subr.bf16.mxu0 0
  %1188 = vmatpush1.bf16.msra.mxu0 %v111
  %1189 = vmatprep.subr.bf16.mxu0 0
  %1190 = vmatpush1.bf16.msra.mxu0 %v112
  %1191 = vmatprep.subr.bf16.mxu0 0
  %1192 = vmatpush1.bf16.msra.mxu0 %v113
  %1193 = vmatprep.subr.bf16.mxu0 0
  %1194 = vmatpush1.bf16.msra.mxu0 %v114
  %1195 = vmatprep.subr.bf16.mxu0 0
  %1196 = vmatpush1.bf16.msra.mxu0 %v115
  %1197 = vmatprep.subr.bf16.mxu0 0
  %1198 = vmatpush1.bf16.msra.mxu0 %v116
  %1199 = vmatprep.subr.bf16.mxu0 0
  %1200 = vmatpush1.bf16.msra.mxu0 %v117
  %1201 = vmatprep.subr.bf16.mxu0 0
  %1202 = vmatpush1.bf16.msra.mxu0 %v118
  %1203 = vmatprep.subr.bf16.mxu0 0
  %1204 = vmatpush1.bf16.msra.mxu0 %v119
  %1205 = vmatprep.subr.bf16.mxu0 0
  %1206 = vmatpush1.bf16.msra.mxu0 0
  %1207 = vmatprep.subr.bf16.mxu0 0
  %1208 = vmatpush1.bf16.msra.mxu0 0
  %1209 = vmatprep.subr.bf16.mxu0 0
  %1210 = vmatpush1.bf16.msra.mxu0 0
  %1211 = vmatprep.subr.bf16.mxu0 0
  %1212 = vmatpush1.bf16.msra.mxu0 0
  %1213 = vmatprep.subr.bf16.mxu0 0
  %1214 = vmatpush1.bf16.msra.mxu0 0
  %1215 = vmatprep.subr.bf16.mxu0 0
  %1216 = vmatpush1.bf16.msra.mxu0 0
  %1217 = vmatprep.mubr.bf16.mxu0 %v1183
  %1218 = vmatmul.mubr.bf16.gmra.mrb[0].mxu0 %v1179
  %v1219 = vpop.f32.mrb[0].mxu0
  %v1220 = vadd.f32 0.0, %v1219
  %v1221 = vpop.f32.mrb[0].mxu0
  %v1222 = vpop.f32.mrb[0].mxu0
  %v1223 = vpop.f32.mrb[0].mxu0
  %1224 = vdwg.mxu0
  %v1225 = vmax.f32 %v1173, %v1220
  %s1226 = scalar_lea.vmem %s3, 24
  %v1227 = vld [vmem:[%s1226] sm:$0xff]
  %v1229 = vunpack.c.l.b16 %v1227
  %v1230 = vunpack.c.h.b16 %v1227
  %v1231 = vpack.c.b16 %v1229, %v1229
  %v1232 = vpack.c.b16 %v1230, %v1230
  %v1235 = vsel %vm130, %v1232, 0
  %1237 = vmatprep.subr.bf16.mxu0 0
  %1238 = vmatpush1.bf16.msra.mxu0 %v110
  %1239 = vmatprep.subr.bf16.mxu0 0
  %1240 = vmatpush1.bf16.msra.mxu0 %v111
  %1241 = vmatprep.subr.bf16.mxu0 0
  %1242 = vmatpush1.bf16.msra.mxu0 %v112
  %1243 = vmatprep.subr.bf16.mxu0 0
  %1244 = vmatpush1.bf16.msra.mxu0 %v113
  %1245 = vmatprep.subr.bf16.mxu0 0
  %1246 = vmatpush1.bf16.msra.mxu0 %v114
  %1247 = vmatprep.subr.bf16.mxu0 0
  %1248 = vmatpush1.bf16.msra.mxu0 %v115
  %1249 = vmatprep.subr.bf16.mxu0 0
  %1250 = vmatpush1.bf16.msra.mxu0 %v116
  %1251 = vmatprep.subr.bf16.mxu0 0
  %1252 = vmatpush1.bf16.msra.mxu0 %v117
  %1253 = vmatprep.subr.bf16.mxu0 0
  %1254 = vmatpush1.bf16.msra.mxu0 %v118
  %1255 = vmatprep.subr.bf16.mxu0 0
  %1256 = vmatpush1.bf16.msra.mxu0 %v119
  %1257 = vmatprep.subr.bf16.mxu0 0
  %1258 = vmatpush1.bf16.msra.mxu0 0
  %1259 = vmatprep.subr.bf16.mxu0 0
  %1260 = vmatpush1.bf16.msra.mxu0 0
  %1261 = vmatprep.subr.bf16.mxu0 0
  %1262 = vmatpush1.bf16.msra.mxu0 0
  %1263 = vmatprep.subr.bf16.mxu0 0
  %1264 = vmatpush1.bf16.msra.mxu0 0
  %1265 = vmatprep.subr.bf16.mxu0 0
  %1266 = vmatpush1.bf16.msra.mxu0 0
  %1267 = vmatprep.subr.bf16.mxu0 0
  %1268 = vmatpush1.bf16.msra.mxu0 0
  %1269 = vmatprep.mubr.bf16.mxu0 %v1235
  %1270 = vmatmul.mubr.bf16.gmra.mrb[0].mxu0 %v1231
  %v1271 = vpop.f32.mrb[0].mxu0
  %v1272 = vadd.f32 0.0, %v1271
  %v1273 = vpop.f32.mrb[0].mxu0
  %v1274 = vpop.f32.mrb[0].mxu0
  %v1275 = vpop.f32.mrb[0].mxu0
  %1276 = vdwg.mxu0
  %v1277 = vmax.f32 %v1225, %v1272
  %v1278 = vadd.f32 %v1277, %v331
  %v1279 = vmax.f32 %v1278, 0.0
  %v1280 = vpack.c.bf16 %v1279, %v1279
  %s1281 = scalar_lea.vmem %s6, 192
  %v1282 = vld [vmem:[%s1281] sm:$0xf]
  %v1283 = vld [vmem:[%s1281 + $0x4] sm:$0xf]
  %v1284 = vld [vmem:[%s1281 + $0x8] sm:$0xf]
  %v1285 = vld [vmem:[%s1281 + $0xc] sm:$0xf]
  %v1286 = vld [vmem:[%s1281 + $0x10] sm:$0xf]
  %v1287 = vld [vmem:[%s1281 + $0x14] sm:$0xf]
  %v1288 = vld [vmem:[%s1281 + $0x18] sm:$0xf]
  %v1289 = vld [vmem:[%s1281 + $0x1c] sm:$0xf]
  %v1290 = vld [vmem:[%s1281 + $0x20] sm:$0xf]
  %v1291 = vld [vmem:[%s1281 + $0x24] sm:$0xf]
  %v1292 = vld [vmem:[%s1281 + $0x28] sm:$0xf]
  %v1293 = vld [vmem:[%s1281 + $0x2c] sm:$0xf]
  %v1294 = vld [vmem:[%s1281 + $0x30] sm:$0xf]
  %v1295 = vld [vmem:[%s1281 + $0x34] sm:$0xf]
  %v1296 = vld [vmem:[%s1281 + $0x38] sm:$0xf]
  %v1297 = vld [vmem:[%s1281 + $0x3c] sm:$0xf]
  %v1314 = vunpack.c.l.b16 %v1282
  %v1315 = vunpack.c.l.b16 %v1283
  %v1316 = vunpack.c.l.b16 %v1284
  %v1317 = vunpack.c.l.b16 %v1285
  %v1318 = vunpack.c.l.b16 %v1286
  %v1319 = vunpack.c.l.b16 %v1287
  %v1320 = vunpack.c.l.b16 %v1288
  %v1321 = vunpack.c.l.b16 %v1289
  %v1322 = vunpack.c.l.b16 %v1290
  %v1323 = vunpack.c.l.b16 %v1291
  %v1324 = vunpack.c.l.b16 %v1292
  %v1325 = vunpack.c.l.b16 %v1293
  %v1326 = vunpack.c.l.b16 %v1294
  %v1327 = vunpack.c.l.b16 %v1295
  %v1328 = vunpack.c.l.b16 %v1296
  %v1329 = vunpack.c.l.b16 %v1297
  %v1330 = vpack.c.b16 %v1315, %v1314
  %v1331 = vpack.c.b16 %v1317, %v1316
  %v1332 = vpack.c.b16 %v1319, %v1318
  %v1333 = vpack.c.b16 %v1321, %v1320
  %v1334 = vpack.c.b16 %v1323, %v1322
  %v1335 = vpack.c.b16 %v1325, %v1324
  %v1336 = vpack.c.b16 %v1327, %v1326
  %v1337 = vpack.c.b16 %v1329, %v1328
  %1346 = vmatprep.subr.bf16.mxu0 0
  %1347 = vmatpush1.bf16.msra.mxu0 %v1330
  %1348 = vmatprep.subr.bf16.mxu0 0
  %1349 = vmatpush1.bf16.msra.mxu0 %v1331
  %1350 = vmatprep.subr.bf16.mxu0 0
  %1351 = vmatpush1.bf16.msra.mxu0 %v1332
  %1352 = vmatprep.subr.bf16.mxu0 0
  %1353 = vmatpush1.bf16.msra.mxu0 %v1333
  %1354 = vmatprep.subr.bf16.mxu0 0
  %1355 = vmatpush1.bf16.msra.mxu0 %v1334
  %1356 = vmatprep.subr.bf16.mxu0 0
  %1357 = vmatpush1.bf16.msra.mxu0 %v1335
  %1358 = vmatprep.subr.bf16.mxu0 0
  %1359 = vmatpush1.bf16.msra.mxu0 %v1336
  %1360 = vmatprep.subr.bf16.mxu0 0
  %1361 = vmatpush1.bf16.msra.mxu0 %v1337
  %1362 = vmatprep.subr.bf16.mxu0 0
  %1363 = vmatpush1.bf16.msra.mxu0 0
  %1364 = vmatprep.subr.bf16.mxu0 0
  %1365 = vmatpush1.bf16.msra.mxu0 0
  %1366 = vmatprep.subr.bf16.mxu0 0
  %1367 = vmatpush1.bf16.msra.mxu0 0
  %1368 = vmatprep.subr.bf16.mxu0 0
  %1369 = vmatpush1.bf16.msra.mxu0 0
  %1370 = vmatprep.subr.bf16.mxu0 0
  %1371 = vmatpush1.bf16.msra.mxu0 0
  %1372 = vmatprep.subr.bf16.mxu0 0
  %1373 = vmatpush1.bf16.msra.mxu0 0
  %1374 = vmatprep.subr.bf16.mxu0 0
  %1375 = vmatpush1.bf16.msra.mxu0 0
  %1376 = vmatprep.subr.bf16.mxu0 0
  %1377 = vmatpush1.bf16.msra.mxu0 0
  %1378 = vmatprep.mubr.bf16.mxu0 0
  %1379 = vmatmul.mubr.bf16.gmra.mrb[0].mxu0 %v1280
  %v1380 = vpop.f32.mrb[0].mxu0
  %v1381 = vadd.f32 0.0, %v1380
  %v1382 = vpop.f32.mrb[0].mxu0
  %v1383 = vpop.f32.mrb[0].mxu0
  %v1384 = vpop.f32.mrb[0].mxu0
  %1385 = vdwg.mxu0
  %v1386 = vadd.f32 %v1070, %v1381
  %s1387 = scalar_lea.vmem %s0, 32
  %v1388 = vld [vmem:[%s1387] sm:$0xff]
  %v1390 = vunpack.c.l.b16 %v1388
  %v1391 = vunpack.c.h.b16 %v1388
  %v1392 = vpack.c.b16 %v1390, %v1390
  %v1393 = vpack.c.b16 %v1391, %v1391
  %v1396 = vsel %vm130, %v1393, 0
  %1398 = vmatprep.subr.bf16.mxu0 0
  %1399 = vmatpush1.bf16.msra.mxu0 %v110
  %1400 = vmatprep.subr.bf16.mxu0 0
  %1401 = vmatpush1.bf16.msra.mxu0 %v111
  %1402 = vmatprep.subr.bf16.mxu0 0
  %1403 = vmatpush1.bf16.msra.mxu0 %v112
  %1404 = vmatprep.subr.bf16.mxu0 0
  %1405 = vmatpush1.bf16.msra.mxu0 %v113
  %1406 = vmatprep.subr.bf16.mxu0 0
  %1407 = vmatpush1.bf16.msra.mxu0 %v114
  %1408 = vmatprep.subr.bf16.mxu0 0
  %1409 = vmatpush1.bf16.msra.mxu0 %v115
  %1410 = vmatprep.subr.bf16.mxu0 0
  %1411 = vmatpush1.bf16.msra.mxu0 %v116
  %1412 = vmatprep.subr.bf16.mxu0 0
  %1413 = vmatpush1.bf16.msra.mxu0 %v117
  %1414 = vmatprep.subr.bf16.mxu0 0
  %1415 = vmatpush1.bf16.msra.mxu0 %v118
  %1416 = vmatprep.subr.bf16.mxu0 0
  %1417 = vmatpush1.bf16.msra.mxu0 %v119
  %1418 = vmatprep.subr.bf16.mxu0 0
  %1419 = vmatpush1.bf16.msra.mxu0 0
  %1420 = vmatprep.subr.bf16.mxu0 0
  %1421 = vmatpush1.bf16.msra.mxu0 0
  %1422 = vmatprep.subr.bf16.mxu0 0
  %1423 = vmatpush1.bf16.msra.mxu0 0
  %1424 = vmatprep.subr.bf16.mxu0 0
  %1425 = vmatpush1.bf16.msra.mxu0 0
  %1426 = vmatprep.subr.bf16.mxu0 0
  %1427 = vmatpush1.bf16.msra.mxu0 0
  %1428 = vmatprep.subr.bf16.mxu0 0
  %1429 = vmatpush1.bf16.msra.mxu0 0
  %1430 = vmatprep.mubr.bf16.mxu0 %v1396
  %1431 = vmatmul.mubr.bf16.gmra.mrb[0].mxu0 %v1392
  %v1432 = vpop.f32.mrb[0].mxu0
  %v1433 = vadd.f32 0.0, %v1432
  %v1434 = vpop.f32.mrb[0].mxu0
  %v1435 = vpop.f32.mrb[0].mxu0
  %v1436 = vpop.f32.mrb[0].mxu0
  %1437 = vdwg.mxu0
  %s1438 = scalar_lea.vmem %s1, 32
  %v1439 = vld [vmem:[%s1438] sm:$0xff]
  %v1441 = vunpack.c.l.b16 %v1439
  %v1442 = vunpack.c.h.b16 %v1439
  %v1443 = vpack.c.b16 %v1441, %v1441
  %v1444 = vpack.c.b16 %v1442, %v1442
  %v1447 = vsel %vm130, %v1444, 0
  %1449 = vmatprep.subr.bf16.mxu0 0
  %1450 = vmatpush1.bf16.msra.mxu0 %v110
  %1451 = vmatprep.subr.bf16.mxu0 0
  %1452 = vmatpush1.bf16.msra.mxu0 %v111
  %1453 = vmatprep.subr.bf16.mxu0 0
  %1454 = vmatpush1.bf16.msra.mxu0 %v112
  %1455 = vmatprep.subr.bf16.mxu0 0
  %1456 = vmatpush1.bf16.msra.mxu0 %v113
  %1457 = vmatprep.subr.bf16.mxu0 0
  %1458 = vmatpush1.bf16.msra.mxu0 %v114
  %1459 = vmatprep.subr.bf16.mxu0 0
  %1460 = vmatpush1.bf16.msra.mxu0 %v115
  %1461 = vmatprep.subr.bf16.mxu0 0
  %1462 = vmatpush1.bf16.msra.mxu0 %v116
  %1463 = vmatprep.subr.bf16.mxu0 0
  %1464 = vmatpush1.bf16.msra.mxu0 %v117
  %1465 = vmatprep.subr.bf16.mxu0 0
  %1466 = vmatpush1.bf16.msra.mxu0 %v118
  %1467 = vmatprep.subr.bf16.mxu0 0
  %1468 = vmatpush1.bf16.msra.mxu0 %v119
  %1469 = vmatprep.subr.bf16.mxu0 0
  %1470 = vmatpush1.bf16.msra.mxu0 0
  %1471 = vmatprep.subr.bf16.mxu0 0
  %1472 = vmatpush1.bf16.msra.mxu0 0
  %1473 = vmatprep.subr.bf16.mxu0 0
  %1474 = vmatpush1.bf16.msra.mxu0 0
  %1475 = vmatprep.subr.bf16.mxu0 0
  %1476 = vmatpush1.bf16.msra.mxu0 0
  %1477 = vmatprep.subr.bf16.mxu0 0
  %1478 = vmatpush1.bf16.msra.mxu0 0
  %1479 = vmatprep.subr.bf16.mxu0 0
  %1480 = vmatpush1.bf16.msra.mxu0 0
  %1481 = vmatprep.mubr.bf16.mxu0 %v1447
  %1482 = vmatmul.mubr.bf16.gmra.mrb[0].mxu0 %v1443
  %v1483 = vpop.f32.mrb[0].mxu0
  %v1484 = vadd.f32 0.0, %v1483
  %v1485 = vpop.f32.mrb[0].mxu0
  %v1486 = vpop.f32.mrb[0].mxu0
  %v1487 = vpop.f32.mrb[0].mxu0
  %1488 = vdwg.mxu0
  %v1489 = vmax.f32 %v1433, %v1484
  %s1490 = scalar_lea.vmem %s2, 32
  %v1491 = vld [vmem:[%s1490] sm:$0xff]
  %v1493 = vunpack.c.l.b16 %v1491
  %v1494 = vunpack.c.h.b16 %v1491
  %v1495 = vpack.c.b16 %v1493, %v1493
  %v1496 = vpack.c.b16 %v1494, %v1494
  %v1499 = vsel %vm130, %v1496, 0
  %1501 = vmatprep.subr.bf16.mxu0 0
  %1502 = vmatpush1.bf16.msra.mxu0 %v110
  %1503 = vmatprep.subr.bf16.mxu0 0
  %1504 = vmatpush1.bf16.msra.mxu0 %v111
  %1505 = vmatprep.subr.bf16.mxu0 0
  %1506 = vmatpush1.bf16.msra.mxu0 %v112
  %1507 = vmatprep.subr.bf16.mxu0 0
  %1508 = vmatpush1.bf16.msra.mxu0 %v113
  %1509 = vmatprep.subr.bf16.mxu0 0
  %1510 = vmatpush1.bf16.msra.mxu0 %v114
  %1511 = vmatprep.subr.bf16.mxu0 0
  %1512 = vmatpush1.bf16.msra.mxu0 %v115
  %1513 = vmatprep.subr.bf16.mxu0 0
  %1514 = vmatpush1.bf16.msra.mxu0 %v116
  %1515 = vmatprep.subr.bf16.mxu0 0
  %1516 = vmatpush1.bf16.msra.mxu0 %v117
  %1517 = vmatprep.subr.bf16.mxu0 0
  %1518 = vmatpush1.bf16.msra.mxu0 %v118
  %1519 = vmatprep.subr.bf16.mxu0 0
  %1520 = vmatpush1.bf16.msra.mxu0 %v119
  %1521 = vmatprep.subr.bf16.mxu0 0
  %1522 = vmatpush1.bf16.msra.mxu0 0
  %1523 = vmatprep.subr.bf16.mxu0 0
  %1524 = vmatpush1.bf16.msra.mxu0 0
  %1525 = vmatprep.subr.bf16.mxu0 0
  %1526 = vmatpush1.bf16.msra.mxu0 0
  %1527 = vmatprep.subr.bf16.mxu0 0
  %1528 = vmatpush1.bf16.msra.mxu0 0
  %1529 = vmatprep.subr.bf16.mxu0 0
  %1530 = vmatpush1.bf16.msra.mxu0 0
  %1531 = vmatprep.subr.bf16.mxu0 0
  %1532 = vmatpush1.bf16.msra.mxu0 0
  %1533 = vmatprep.mubr.bf16.mxu0 %v1499
  %1534 = vmatmul.mubr.bf16.gmra.mrb[0].mxu0 %v1495
  %v1535 = vpop.f32.mrb[0].mxu0
  %v1536 = vadd.f32 0.0, %v1535
  %v1537 = vpop.f32.mrb[0].mxu0
  %v1538 = vpop.f32.mrb[0].mxu0
  %v1539 = vpop.f32.mrb[0].mxu0
  %1540 = vdwg.mxu0
  %v1541 = vmax.f32 %v1489, %v1536
  %s1542 = scalar_lea.vmem %s3, 32
  %v1543 = vld [vmem:[%s1542] sm:$0xff]
  %v1545 = vunpack.c.l.b16 %v1543
  %v1546 = vunpack.c.h.b16 %v1543
  %v1547 = vpack.c.b16 %v1545, %v1545
  %v1548 = vpack.c.b16 %v1546, %v1546
  %v1551 = vsel %vm130, %v1548, 0
  %1553 = vmatprep.subr.bf16.mxu0 0
  %1554 = vmatpush1.bf16.msra.mxu0 %v110
  %1555 = vmatprep.subr.bf16.mxu0 0
  %1556 = vmatpush1.bf16.msra.mxu0 %v111
  %1557 = vmatprep.subr.bf16.mxu0 0
  %1558 = vmatpush1.bf16.msra.mxu0 %v112
  %1559 = vmatprep.subr.bf16.mxu0 0
  %1560 = vmatpush1.bf16.msra.mxu0 %v113
  %1561 = vmatprep.subr.bf16.mxu0 0
  %1562 = vmatpush1.bf16.msra.mxu0 %v114
  %1563 = vmatprep.subr.bf16.mxu0 0
  %1564 = vmatpush1.bf16.msra.mxu0 %v115
  %1565 = vmatprep.subr.bf16.mxu0 0
  %1566 = vmatpush1.bf16.msra.mxu0 %v116
  %1567 = vmatprep.subr.bf16.mxu0 0
  %1568 = vmatpush1.bf16.msra.mxu0 %v117
  %1569 = vmatprep.subr.bf16.mxu0 0
  %1570 = vmatpush1.bf16.msra.mxu0 %v118
  %1571 = vmatprep.subr.bf16.mxu0 0
  %1572 = vmatpush1.bf16.msra.mxu0 %v119
  %1573 = vmatprep.subr.bf16.mxu0 0
  %1574 = vmatpush1.bf16.msra.mxu0 0
  %1575 = vmatprep.subr.bf16.mxu0 0
  %1576 = vmatpush1.bf16.msra.mxu0 0
  %1577 = vmatprep.subr.bf16.mxu0 0
  %1578 = vmatpush1.bf16.msra.mxu0 0
  %1579 = vmatprep.subr.bf16.mxu0 0
  %1580 = vmatpush1.bf16.msra.mxu0 0
  %1581 = vmatprep.subr.bf16.mxu0 0
  %1582 = vmatpush1.bf16.msra.mxu0 0
  %1583 = vmatprep.subr.bf16.mxu0 0
  %1584 = vmatpush1.bf16.msra.mxu0 0
  %1585 = vmatprep.mubr.bf16.mxu0 %v1551
  %1586 = vmatmul.mubr.bf16.gmra.mrb[0].mxu0 %v1547
  %v1587 = vpop.f32.mrb[0].mxu0
  %v1588 = vadd.f32 0.0, %v1587
  %v1589 = vpop.f32.mrb[0].mxu0
  %v1590 = vpop.f32.mrb[0].mxu0
  %v1591 = vpop.f32.mrb[0].mxu0
  %1592 = vdwg.mxu0
  %v1593 = vmax.f32 %v1541, %v1588
  %v1594 = vadd.f32 %v1593, %v331
  %v1595 = vmax.f32 %v1594, 0.0
  %v1596 = vpack.c.bf16 %v1595, %v1595
  %s1597 = scalar_lea.vmem %s6, 256
  %v1598 = vld [vmem:[%s1597] sm:$0xf]
  %v1599 = vld [vmem:[%s1597 + $0x4] sm:$0xf]
  %v1600 = vld [vmem:[%s1597 + $0x8] sm:$0xf]
  %v1601 = vld [vmem:[%s1597 + $0xc] sm:$0xf]
  %v1602 = vld [vmem:[%s1597 + $0x10] sm:$0xf]
  %v1603 = vld [vmem:[%s1597 + $0x14] sm:$0xf]
  %v1604 = vld [vmem:[%s1597 + $0x18] sm:$0xf]
  %v1605 = vld [vmem:[%s1597 + $0x1c] sm:$0xf]
  %v1606 = vld [vmem:[%s1597 + $0x20] sm:$0xf]
  %v1607 = vld [vmem:[%s1597 + $0x24] sm:$0xf]
  %v1608 = vld [vmem:[%s1597 + $0x28] sm:$0xf]
  %v1609 = vld [vmem:[%s1597 + $0x2c] sm:$0xf]
  %v1610 = vld [vmem:[%s1597 + $0x30] sm:$0xf]
  %v1611 = vld [vmem:[%s1597 + $0x34] sm:$0xf]
  %v1612 = vld [vmem:[%s1597 + $0x38] sm:$0xf]
  %v1613 = vld [vmem:[%s1597 + $0x3c] sm:$0xf]
  %v1630 = vunpack.c.l.b16 %v1598
  %v1631 = vunpack.c.l.b16 %v1599
  %v1632 = vunpack.c.l.b16 %v1600
  %v1633 = vunpack.c.l.b16 %v1601
  %v1634 = vunpack.c.l.b16 %v1602
  %v1635 = vunpack.c.l.b16 %v1603
  %v1636 = vunpack.c.l.b16 %v1604
  %v1637 = vunpack.c.l.b16 %v1605
  %v1638 = vunpack.c.l.b16 %v1606
  %v1639 = vunpack.c.l.b16 %v1607
  %v1640 = vunpack.c.l.b16 %v1608
  %v1641 = vunpack.c.l.b16 %v1609
  %v1642 = vunpack.c.l.b16 %v1610
  %v1643 = vunpack.c.l.b16 %v1611
  %v1644 = vunpack.c.l.b16 %v1612
  %v1645 = vunpack.c.l.b16 %v1613
  %v1646 = vpack.c.b16 %v1631, %v1630
  %v1647 = vpack.c.b16 %v1633, %v1632
  %v1648 = vpack.c.b16 %v1635, %v1634
  %v1649 = vpack.c.b16 %v1637, %v1636
  %v1650 = vpack.c.b16 %v1639, %v1638
  %v1651 = vpack.c.b16 %v1641, %v1640
  %v1652 = vpack.c.b16 %v1643, %v1642
  %v1653 = vpack.c.b16 %v1645, %v1644
  %1662 = vmatprep.subr.bf16.mxu0 0
  %1663 = vmatpush1.bf16.msra.mxu0 %v1646
  %1664 = vmatprep.subr.bf16.mxu0 0
  %1665 = vmatpush1.bf16.msra.mxu0 %v1647
  %1666 = vmatprep.subr.bf16.mxu0 0
  %1667 = vmatpush1.bf16.msra.mxu0 %v1648
  %1668 = vmatprep.subr.bf16.mxu0 0
  %1669 = vmatpush1.bf16.msra.mxu0 %v1649
  %1670 = vmatprep.subr.bf16.mxu0 0
  %1671 = vmatpush1.bf16.msra.mxu0 %v1650
  %1672 = vmatprep.subr.bf16.mxu0 0
  %1673 = vmatpush1.bf16.msra.mxu0 %v1651
  %1674 = vmatprep.subr.bf16.mxu0 0
  %1675 = vmatpush1.bf16.msra.mxu0 %v1652
  %1676 = vmatprep.subr.bf16.mxu0 0
  %1677 = vmatpush1.bf16.msra.mxu0 %v1653
  %1678 = vmatprep.subr.bf16.mxu0 0
  %1679 = vmatpush1.bf16.msra.mxu0 0
  %1680 = vmatprep.subr.bf16.mxu0 0
  %1681 = vmatpush1.bf16.msra.mxu0 0
  %1682 = vmatprep.subr.bf16.mxu0 0
  %1683 = vmatpush1.bf16.msra.mxu0 0
  %1684 = vmatprep.subr.bf16.mxu0 0
  %1685 = vmatpush1.bf16.msra.mxu0 0
  %1686 = vmatprep.subr.bf16.mxu0 0
  %1687 = vmatpush1.bf16.msra.mxu0 0
  %1688 = vmatprep.subr.bf16.mxu0 0
  %1689 = vmatpush1.bf16.msra.mxu0 0
  %1690 = vmatprep.subr.bf16.mxu0 0
  %1691 = vmatpush1.bf16.msra.mxu0 0
  %1692 = vmatprep.subr.bf16.mxu0 0
  %1693 = vmatpush1.bf16.msra.mxu0 0
  %1694 = vmatprep.mubr.bf16.mxu0 0
  %1695 = vmatmul.mubr.bf16.gmra.mrb[0].mxu0 %v1596
  %v1696 = vpop.f32.mrb[0].mxu0
  %v1697 = vadd.f32 0.0, %v1696
  %v1698 = vpop.f32.mrb[0].mxu0
  %v1699 = vpop.f32.mrb[0].mxu0
  %v1700 = vpop.f32.mrb[0].mxu0
  %1701 = vdwg.mxu0
  %v1702 = vadd.f32 %v1386, %v1697
  %s1703 = scalar_lea.vmem %s0, 40
  %v1704 = vld [vmem:[%s1703] sm:$0xff]
  %v1706 = vunpack.c.l.b16 %v1704
  %v1707 = vunpack.c.h.b16 %v1704
  %v1708 = vpack.c.b16 %v1706, %v1706
  %v1709 = vpack.c.b16 %v1707, %v1707
  %v1712 = vsel %vm130, %v1709, 0
  %1714 = vmatprep.subr.bf16.mxu0 0
  %1715 = vmatpush1.bf16.msra.mxu0 %v110
  %1716 = vmatprep.subr.bf16.mxu0 0
  %1717 = vmatpush1.bf16.msra.mxu0 %v111
  %1718 = vmatprep.subr.bf16.mxu0 0
  %1719 = vmatpush1.bf16.msra.mxu0 %v112
  %1720 = vmatprep.subr.bf16.mxu0 0
  %1721 = vmatpush1.bf16.msra.mxu0 %v113
  %1722 = vmatprep.subr.bf16.mxu0 0
  %1723 = vmatpush1.bf16.msra.mxu0 %v114
  %1724 = vmatprep.subr.bf16.mxu0 0
  %1725 = vmatpush1.bf16.msra.mxu0 %v115
  %1726 = vmatprep.subr.bf16.mxu0 0
  %1727 = vmatpush1.bf16.msra.mxu0 %v116
  %1728 = vmatprep.subr.bf16.mxu0 0
  %1729 = vmatpush1.bf16.msra.mxu0 %v117
  %1730 = vmatprep.subr.bf16.mxu0 0
  %1731 = vmatpush1.bf16.msra.mxu0 %v118
  %1732 = vmatprep.subr.bf16.mxu0 0
  %1733 = vmatpush1.bf16.msra.mxu0 %v119
  %1734 = vmatprep.subr.bf16.mxu0 0
  %1735 = vmatpush1.bf16.msra.mxu0 0
  %1736 = vmatprep.subr.bf16.mxu0 0
  %1737 = vmatpush1.bf16.msra.mxu0 0
  %1738 = vmatprep.subr.bf16.mxu0 0
  %1739 = vmatpush1.bf16.msra.mxu0 0
  %1740 = vmatprep.subr.bf16.mxu0 0
  %1741 = vmatpush1.bf16.msra.mxu0 0
  %1742 = vmatprep.subr.bf16.mxu0 0
  %1743 = vmatpush1.bf16.msra.mxu0 0
  %1744 = vmatprep.subr.bf16.mxu0 0
  %1745 = vmatpush1.bf16.msra.mxu0 0
  %1746 = vmatprep.mubr.bf16.mxu0 %v1712
  %1747 = vmatmul.mubr.bf16.gmra.mrb[0].mxu0 %v1708
  %v1748 = vpop.f32.mrb[0].mxu0
  %v1749 = vadd.f32 0.0, %v1748
  %v1750 = vpop.f32.mrb[0].mxu0
  %v1751 = vpop.f32.mrb[0].mxu0
  %v1752 = vpop.f32.mrb[0].mxu0
  %1753 = vdwg.mxu0
  %s1754 = scalar_lea.vmem %s1, 40
  %v1755 = vld [vmem:[%s1754] sm:$0xff]
  %v1757 = vunpack.c.l.b16 %v1755
  %v1758 = vunpack.c.h.b16 %v1755
  %v1759 = vpack.c.b16 %v1757, %v1757
  %v1760 = vpack.c.b16 %v1758, %v1758
  %v1763 = vsel %vm130, %v1760, 0
  %1765 = vmatprep.subr.bf16.mxu0 0
  %1766 = vmatpush1.bf16.msra.mxu0 %v110
  %1767 = vmatprep.subr.bf16.mxu0 0
  %1768 = vmatpush1.bf16.msra.mxu0 %v111
  %1769 = vmatprep.subr.bf16.mxu0 0
  %1770 = vmatpush1.bf16.msra.mxu0 %v112
  %1771 = vmatprep.subr.bf16.mxu0 0
  %1772 = vmatpush1.bf16.msra.mxu0 %v113
  %1773 = vmatprep.subr.bf16.mxu0 0
  %1774 = vmatpush1.bf16.msra.mxu0 %v114
  %1775 = vmatprep.subr.bf16.mxu0 0
  %1776 = vmatpush1.bf16.msra.mxu0 %v115
  %1777 = vmatprep.subr.bf16.mxu0 0
  %1778 = vmatpush1.bf16.msra.mxu0 %v116
  %1779 = vmatprep.subr.bf16.mxu0 0
  %1780 = vmatpush1.bf16.msra.mxu0 %v117
  %1781 = vmatprep.subr.bf16.mxu0 0
  %1782 = vmatpush1.bf16.msra.mxu0 %v118
  %1783 = vmatprep.subr.bf16.mxu0 0
  %1784 = vmatpush1.bf16.msra.mxu0 %v119
  %1785 = vmatprep.subr.bf16.mxu0 0
  %1786 = vmatpush1.bf16.msra.mxu0 0
  %1787 = vmatprep.subr.bf16.mxu0 0
  %1788 = vmatpush1.bf16.msra.mxu0 0
  %1789 = vmatprep.subr.bf16.mxu0 0
  %1790 = vmatpush1.bf16.msra.mxu0 0
  %1791 = vmatprep.subr.bf16.mxu0 0
  %1792 = vmatpush1.bf16.msra.mxu0 0
  %1793 = vmatprep.subr.bf16.mxu0 0
  %1794 = vmatpush1.bf16.msra.mxu0 0
  %1795 = vmatprep.subr.bf16.mxu0 0
  %1796 = vmatpush1.bf16.msra.mxu0 0
  %1797 = vmatprep.mubr.bf16.mxu0 %v1763
  %1798 = vmatmul.mubr.bf16.gmra.mrb[0].mxu0 %v1759
  %v1799 = vpop.f32.mrb[0].mxu0
  %v1800 = vadd.f32 0.0, %v1799
  %v1801 = vpop.f32.mrb[0].mxu0
  %v1802 = vpop.f32.mrb[0].mxu0
  %v1803 = vpop.f32.mrb[0].mxu0
  %1804 = vdwg.mxu0
  %v1805 = vmax.f32 %v1749, %v1800
  %s1806 = scalar_lea.vmem %s2, 40
  %v1807 = vld [vmem:[%s1806] sm:$0xff]
  %v1809 = vunpack.c.l.b16 %v1807
  %v1810 = vunpack.c.h.b16 %v1807
  %v1811 = vpack.c.b16 %v1809, %v1809
  %v1812 = vpack.c.b16 %v1810, %v1810
  %v1815 = vsel %vm130, %v1812, 0
  %1817 = vmatprep.subr.bf16.mxu0 0
  %1818 = vmatpush1.bf16.msra.mxu0 %v110
  %1819 = vmatprep.subr.bf16.mxu0 0
  %1820 = vmatpush1.bf16.msra.mxu0 %v111
  %1821 = vmatprep.subr.bf16.mxu0 0
  %1822 = vmatpush1.bf16.msra.mxu0 %v112
  %1823 = vmatprep.subr.bf16.mxu0 0
  %1824 = vmatpush1.bf16.msra.mxu0 %v113
  %1825 = vmatprep.subr.bf16.mxu0 0
  %1826 = vmatpush1.bf16.msra.mxu0 %v114
  %1827 = vmatprep.subr.bf16.mxu0 0
  %1828 = vmatpush1.bf16.msra.mxu0 %v115
  %1829 = vmatprep.subr.bf16.mxu0 0
  %1830 = vmatpush1.bf16.msra.mxu0 %v116
  %1831 = vmatprep.subr.bf16.mxu0 0
  %1832 = vmatpush1.bf16.msra.mxu0 %v117
  %1833 = vmatprep.subr.bf16.mxu0 0
  %1834 = vmatpush1.bf16.msra.mxu0 %v118
  %1835 = vmatprep.subr.bf16.mxu0 0
  %1836 = vmatpush1.bf16.msra.mxu0 %v119
  %1837 = vmatprep.subr.bf16.mxu0 0
  %1838 = vmatpush1.bf16.msra.mxu0 0
  %1839 = vmatprep.subr.bf16.mxu0 0
  %1840 = vmatpush1.bf16.msra.mxu0 0
  %1841 = vmatprep.subr.bf16.mxu0 0
  %1842 = vmatpush1.bf16.msra.mxu0 0
  %1843 = vmatprep.subr.bf16.mxu0 0
  %1844 = vmatpush1.bf16.msra.mxu0 0
  %1845 = vmatprep.subr.bf16.mxu0 0
  %1846 = vmatpush1.bf16.msra.mxu0 0
  %1847 = vmatprep.subr.bf16.mxu0 0
  %1848 = vmatpush1.bf16.msra.mxu0 0
  %1849 = vmatprep.mubr.bf16.mxu0 %v1815
  %1850 = vmatmul.mubr.bf16.gmra.mrb[0].mxu0 %v1811
  %v1851 = vpop.f32.mrb[0].mxu0
  %v1852 = vadd.f32 0.0, %v1851
  %v1853 = vpop.f32.mrb[0].mxu0
  %v1854 = vpop.f32.mrb[0].mxu0
  %v1855 = vpop.f32.mrb[0].mxu0
  %1856 = vdwg.mxu0
  %v1857 = vmax.f32 %v1805, %v1852
  %s1858 = scalar_lea.vmem %s3, 40
  %v1859 = vld [vmem:[%s1858] sm:$0xff]
  %v1861 = vunpack.c.l.b16 %v1859
  %v1862 = vunpack.c.h.b16 %v1859
  %v1863 = vpack.c.b16 %v1861, %v1861
  %v1864 = vpack.c.b16 %v1862, %v1862
  %v1867 = vsel %vm130, %v1864, 0
  %1869 = vmatprep.subr.bf16.mxu0 0
  %1870 = vmatpush1.bf16.msra.mxu0 %v110
  %1871 = vmatprep.subr.bf16.mxu0 0
  %1872 = vmatpush1.bf16.msra.mxu0 %v111
  %1873 = vmatprep.subr.bf16.mxu0 0
  %1874 = vmatpush1.bf16.msra.mxu0 %v112
  %1875 = vmatprep.subr.bf16.mxu0 0
  %1876 = vmatpush1.bf16.msra.mxu0 %v113
  %1877 = vmatprep.subr.bf16.mxu0 0
  %1878 = vmatpush1.bf16.msra.mxu0 %v114
  %1879 = vmatprep.subr.bf16.mxu0 0
  %1880 = vmatpush1.bf16.msra.mxu0 %v115
  %1881 = vmatprep.subr.bf16.mxu0 0
  %1882 = vmatpush1.bf16.msra.mxu0 %v116
  %1883 = vmatprep.subr.bf16.mxu0 0
  %1884 = vmatpush1.bf16.msra.mxu0 %v117
  %1885 = vmatprep.subr.bf16.mxu0 0
  %1886 = vmatpush1.bf16.msra.mxu0 %v118
  %1887 = vmatprep.subr.bf16.mxu0 0
  %1888 = vmatpush1.bf16.msra.mxu0 %v119
  %1889 = vmatprep.subr.bf16.mxu0 0
  %1890 = vmatpush1.bf16.msra.mxu0 0
  %1891 = vmatprep.subr.bf16.mxu0 0
  %1892 = vmatpush1.bf16.msra.mxu0 0
  %1893 = vmatprep.subr.bf16.mxu0 0
  %1894 = vmatpush1.bf16.msra.mxu0 0
  %1895 = vmatprep.subr.bf16.mxu0 0
  %1896 = vmatpush1.bf16.msra.mxu0 0
  %1897 = vmatprep.subr.bf16.mxu0 0
  %1898 = vmatpush1.bf16.msra.mxu0 0
  %1899 = vmatprep.subr.bf16.mxu0 0
  %1900 = vmatpush1.bf16.msra.mxu0 0
  %1901 = vmatprep.mubr.bf16.mxu0 %v1867
  %1902 = vmatmul.mubr.bf16.gmra.mrb[0].mxu0 %v1863
  %v1903 = vpop.f32.mrb[0].mxu0
  %v1904 = vadd.f32 0.0, %v1903
  %v1905 = vpop.f32.mrb[0].mxu0
  %v1906 = vpop.f32.mrb[0].mxu0
  %v1907 = vpop.f32.mrb[0].mxu0
  %1908 = vdwg.mxu0
  %v1909 = vmax.f32 %v1857, %v1904
  %v1910 = vadd.f32 %v1909, %v331
  %v1911 = vmax.f32 %v1910, 0.0
  %v1912 = vpack.c.bf16 %v1911, %v1911
  %s1913 = scalar_lea.vmem %s6, 320
  %v1914 = vld [vmem:[%s1913] sm:$0xf]
  %v1915 = vld [vmem:[%s1913 + $0x4] sm:$0xf]
  %v1916 = vld [vmem:[%s1913 + $0x8] sm:$0xf]
  %v1917 = vld [vmem:[%s1913 + $0xc] sm:$0xf]
  %v1918 = vld [vmem:[%s1913 + $0x10] sm:$0xf]
  %v1919 = vld [vmem:[%s1913 + $0x14] sm:$0xf]
  %v1920 = vld [vmem:[%s1913 + $0x18] sm:$0xf]
  %v1921 = vld [vmem:[%s1913 + $0x1c] sm:$0xf]
  %v1922 = vld [vmem:[%s1913 + $0x20] sm:$0xf]
  %v1923 = vld [vmem:[%s1913 + $0x24] sm:$0xf]
  %v1924 = vld [vmem:[%s1913 + $0x28] sm:$0xf]
  %v1925 = vld [vmem:[%s1913 + $0x2c] sm:$0xf]
  %v1926 = vld [vmem:[%s1913 + $0x30] sm:$0xf]
  %v1927 = vld [vmem:[%s1913 + $0x34] sm:$0xf]
  %v1928 = vld [vmem:[%s1913 + $0x38] sm:$0xf]
  %v1929 = vld [vmem:[%s1913 + $0x3c] sm:$0xf]
  %v1946 = vunpack.c.l.b16 %v1914
  %v1947 = vunpack.c.l.b16 %v1915
  %v1948 = vunpack.c.l.b16 %v1916
  %v1949 = vunpack.c.l.b16 %v1917
  %v1950 = vunpack.c.l.b16 %v1918
  %v1951 = vunpack.c.l.b16 %v1919
  %v1952 = vunpack.c.l.b16 %v1920
  %v1953 = vunpack.c.l.b16 %v1921
  %v1954 = vunpack.c.l.b16 %v1922
  %v1955 = vunpack.c.l.b16 %v1923
  %v1956 = vunpack.c.l.b16 %v1924
  %v1957 = vunpack.c.l.b16 %v1925
  %v1958 = vunpack.c.l.b16 %v1926
  %v1959 = vunpack.c.l.b16 %v1927
  %v1960 = vunpack.c.l.b16 %v1928
  %v1961 = vunpack.c.l.b16 %v1929
  %v1962 = vpack.c.b16 %v1947, %v1946
  %v1963 = vpack.c.b16 %v1949, %v1948
  %v1964 = vpack.c.b16 %v1951, %v1950
  %v1965 = vpack.c.b16 %v1953, %v1952
  %v1966 = vpack.c.b16 %v1955, %v1954
  %v1967 = vpack.c.b16 %v1957, %v1956
  %v1968 = vpack.c.b16 %v1959, %v1958
  %v1969 = vpack.c.b16 %v1961, %v1960
  %1978 = vmatprep.subr.bf16.mxu0 0
  %1979 = vmatpush1.bf16.msra.mxu0 %v1962
  %1980 = vmatprep.subr.bf16.mxu0 0
  %1981 = vmatpush1.bf16.msra.mxu0 %v1963
  %1982 = vmatprep.subr.bf16.mxu0 0
  %1983 = vmatpush1.bf16.msra.mxu0 %v1964
  %1984 = vmatprep.subr.bf16.mxu0 0
  %1985 = vmatpush1.bf16.msra.mxu0 %v1965
  %1986 = vmatprep.subr.bf16.mxu0 0
  %1987 = vmatpush1.bf16.msra.mxu0 %v1966
  %1988 = vmatprep.subr.bf16.mxu0 0
  %1989 = vmatpush1.bf16.msra.mxu0 %v1967
  %1990 = vmatprep.subr.bf16.mxu0 0
  %1991 = vmatpush1.bf16.msra.mxu0 %v1968
  %1992 = vmatprep.subr.bf16.mxu0 0
  %1993 = vmatpush1.bf16.msra.mxu0 %v1969
  %1994 = vmatprep.subr.bf16.mxu0 0
  %1995 = vmatpush1.bf16.msra.mxu0 0
  %1996 = vmatprep.subr.bf16.mxu0 0
  %1997 = vmatpush1.bf16.msra.mxu0 0
  %1998 = vmatprep.subr.bf16.mxu0 0
  %1999 = vmatpush1.bf16.msra.mxu0 0
  %2000 = vmatprep.subr.bf16.mxu0 0
  %2001 = vmatpush1.bf16.msra.mxu0 0
  %2002 = vmatprep.subr.bf16.mxu0 0
  %2003 = vmatpush1.bf16.msra.mxu0 0
  %2004 = vmatprep.subr.bf16.mxu0 0
  %2005 = vmatpush1.bf16.msra.mxu0 0
  %2006 = vmatprep.subr.bf16.mxu0 0
  %2007 = vmatpush1.bf16.msra.mxu0 0
  %2008 = vmatprep.subr.bf16.mxu0 0
  %2009 = vmatpush1.bf16.msra.mxu0 0
  %2010 = vmatprep.mubr.bf16.mxu0 0
  %2011 = vmatmul.mubr.bf16.gmra.mrb[0].mxu0 %v1912
  %v2012 = vpop.f32.mrb[0].mxu0
  %v2013 = vadd.f32 0.0, %v2012
  %v2014 = vpop.f32.mrb[0].mxu0
  %v2015 = vpop.f32.mrb[0].mxu0
  %v2016 = vpop.f32.mrb[0].mxu0
  %2017 = vdwg.mxu0
  %v2018 = vadd.f32 %v1702, %v2013
  %s2019 = scalar_lea.vmem %s0, 48
  %v2020 = vld [vmem:[%s2019] sm:$0xff]
  %v2022 = vunpack.c.l.b16 %v2020
  %v2023 = vunpack.c.h.b16 %v2020
  %v2024 = vpack.c.b16 %v2022, %v2022
  %v2025 = vpack.c.b16 %v2023, %v2023
  %v2028 = vsel %vm130, %v2025, 0
  %2030 = vmatprep.subr.bf16.mxu0 0
  %2031 = vmatpush1.bf16.msra.mxu0 %v110
  %2032 = vmatprep.subr.bf16.mxu0 0
  %2033 = vmatpush1.bf16.msra.mxu0 %v111
  %2034 = vmatprep.subr.bf16.mxu0 0
  %2035 = vmatpush1.bf16.msra.mxu0 %v112
  %2036 = vmatprep.subr.bf16.mxu0 0
  %2037 = vmatpush1.bf16.msra.mxu0 %v113
  %2038 = vmatprep.subr.bf16.mxu0 0
  %2039 = vmatpush1.bf16.msra.mxu0 %v114
  %2040 = vmatprep.subr.bf16.mxu0 0
  %2041 = vmatpush1.bf16.msra.mxu0 %v115
  %2042 = vmatprep.subr.bf16.mxu0 0
  %2043 = vmatpush1.bf16.msra.mxu0 %v116
  %2044 = vmatprep.subr.bf16.mxu0 0
  %2045 = vmatpush1.bf16.msra.mxu0 %v117
  %2046 = vmatprep.subr.bf16.mxu0 0
  %2047 = vmatpush1.bf16.msra.mxu0 %v118
  %2048 = vmatprep.subr.bf16.mxu0 0
  %2049 = vmatpush1.bf16.msra.mxu0 %v119
  %2050 = vmatprep.subr.bf16.mxu0 0
  %2051 = vmatpush1.bf16.msra.mxu0 0
  %2052 = vmatprep.subr.bf16.mxu0 0
  %2053 = vmatpush1.bf16.msra.mxu0 0
  %2054 = vmatprep.subr.bf16.mxu0 0
  %2055 = vmatpush1.bf16.msra.mxu0 0
  %2056 = vmatprep.subr.bf16.mxu0 0
  %2057 = vmatpush1.bf16.msra.mxu0 0
  %2058 = vmatprep.subr.bf16.mxu0 0
  %2059 = vmatpush1.bf16.msra.mxu0 0
  %2060 = vmatprep.subr.bf16.mxu0 0
  %2061 = vmatpush1.bf16.msra.mxu0 0
  %2062 = vmatprep.mubr.bf16.mxu0 %v2028
  %2063 = vmatmul.mubr.bf16.gmra.mrb[0].mxu0 %v2024
  %v2064 = vpop.f32.mrb[0].mxu0
  %v2065 = vadd.f32 0.0, %v2064
  %v2066 = vpop.f32.mrb[0].mxu0
  %v2067 = vpop.f32.mrb[0].mxu0
  %v2068 = vpop.f32.mrb[0].mxu0
  %2069 = vdwg.mxu0
  %s2070 = scalar_lea.vmem %s1, 48
  %v2071 = vld [vmem:[%s2070] sm:$0xff]
  %v2073 = vunpack.c.l.b16 %v2071
  %v2074 = vunpack.c.h.b16 %v2071
  %v2075 = vpack.c.b16 %v2073, %v2073
  %v2076 = vpack.c.b16 %v2074, %v2074
  %v2079 = vsel %vm130, %v2076, 0
  %2081 = vmatprep.subr.bf16.mxu0 0
  %2082 = vmatpush1.bf16.msra.mxu0 %v110
  %2083 = vmatprep.subr.bf16.mxu0 0
  %2084 = vmatpush1.bf16.msra.mxu0 %v111
  %2085 = vmatprep.subr.bf16.mxu0 0
  %2086 = vmatpush1.bf16.msra.mxu0 %v112
  %2087 = vmatprep.subr.bf16.mxu0 0
  %2088 = vmatpush1.bf16.msra.mxu0 %v113
  %2089 = vmatprep.subr.bf16.mxu0 0
  %2090 = vmatpush1.bf16.msra.mxu0 %v114
  %2091 = vmatprep.subr.bf16.mxu0 0
  %2092 = vmatpush1.bf16.msra.mxu0 %v115
  %2093 = vmatprep.subr.bf16.mxu0 0
  %2094 = vmatpush1.bf16.msra.mxu0 %v116
  %2095 = vmatprep.subr.bf16.mxu0 0
  %2096 = vmatpush1.bf16.msra.mxu0 %v117
  %2097 = vmatprep.subr.bf16.mxu0 0
  %2098 = vmatpush1.bf16.msra.mxu0 %v118
  %2099 = vmatprep.subr.bf16.mxu0 0
  %2100 = vmatpush1.bf16.msra.mxu0 %v119
  %2101 = vmatprep.subr.bf16.mxu0 0
  %2102 = vmatpush1.bf16.msra.mxu0 0
  %2103 = vmatprep.subr.bf16.mxu0 0
  %2104 = vmatpush1.bf16.msra.mxu0 0
  %2105 = vmatprep.subr.bf16.mxu0 0
  %2106 = vmatpush1.bf16.msra.mxu0 0
  %2107 = vmatprep.subr.bf16.mxu0 0
  %2108 = vmatpush1.bf16.msra.mxu0 0
  %2109 = vmatprep.subr.bf16.mxu0 0
  %2110 = vmatpush1.bf16.msra.mxu0 0
  %2111 = vmatprep.subr.bf16.mxu0 0
  %2112 = vmatpush1.bf16.msra.mxu0 0
  %2113 = vmatprep.mubr.bf16.mxu0 %v2079
  %2114 = vmatmul.mubr.bf16.gmra.mrb[0].mxu0 %v2075
  %v2115 = vpop.f32.mrb[0].mxu0
  %v2116 = vadd.f32 0.0, %v2115
  %v2117 = vpop.f32.mrb[0].mxu0
  %v2118 = vpop.f32.mrb[0].mxu0
  %v2119 = vpop.f32.mrb[0].mxu0
  %2120 = vdwg.mxu0
  %v2121 = vmax.f32 %v2065, %v2116
  %s2122 = scalar_lea.vmem %s2, 48
  %v2123 = vld [vmem:[%s2122] sm:$0xff]
  %v2125 = vunpack.c.l.b16 %v2123
  %v2126 = vunpack.c.h.b16 %v2123
  %v2127 = vpack.c.b16 %v2125, %v2125
  %v2128 = vpack.c.b16 %v2126, %v2126
  %v2131 = vsel %vm130, %v2128, 0
  %2133 = vmatprep.subr.bf16.mxu0 0
  %2134 = vmatpush1.bf16.msra.mxu0 %v110
  %2135 = vmatprep.subr.bf16.mxu0 0
  %2136 = vmatpush1.bf16.msra.mxu0 %v111
  %2137 = vmatprep.subr.bf16.mxu0 0
  %2138 = vmatpush1.bf16.msra.mxu0 %v112
  %2139 = vmatprep.subr.bf16.mxu0 0
  %2140 = vmatpush1.bf16.msra.mxu0 %v113
  %2141 = vmatprep.subr.bf16.mxu0 0
  %2142 = vmatpush1.bf16.msra.mxu0 %v114
  %2143 = vmatprep.subr.bf16.mxu0 0
  %2144 = vmatpush1.bf16.msra.mxu0 %v115
  %2145 = vmatprep.subr.bf16.mxu0 0
  %2146 = vmatpush1.bf16.msra.mxu0 %v116
  %2147 = vmatprep.subr.bf16.mxu0 0
  %2148 = vmatpush1.bf16.msra.mxu0 %v117
  %2149 = vmatprep.subr.bf16.mxu0 0
  %2150 = vmatpush1.bf16.msra.mxu0 %v118
  %2151 = vmatprep.subr.bf16.mxu0 0
  %2152 = vmatpush1.bf16.msra.mxu0 %v119
  %2153 = vmatprep.subr.bf16.mxu0 0
  %2154 = vmatpush1.bf16.msra.mxu0 0
  %2155 = vmatprep.subr.bf16.mxu0 0
  %2156 = vmatpush1.bf16.msra.mxu0 0
  %2157 = vmatprep.subr.bf16.mxu0 0
  %2158 = vmatpush1.bf16.msra.mxu0 0
  %2159 = vmatprep.subr.bf16.mxu0 0
  %2160 = vmatpush1.bf16.msra.mxu0 0
  %2161 = vmatprep.subr.bf16.mxu0 0
  %2162 = vmatpush1.bf16.msra.mxu0 0
  %2163 = vmatprep.subr.bf16.mxu0 0
  %2164 = vmatpush1.bf16.msra.mxu0 0
  %2165 = vmatprep.mubr.bf16.mxu0 %v2131
  %2166 = vmatmul.mubr.bf16.gmra.mrb[0].mxu0 %v2127
  %v2167 = vpop.f32.mrb[0].mxu0
  %v2168 = vadd.f32 0.0, %v2167
  %v2169 = vpop.f32.mrb[0].mxu0
  %v2170 = vpop.f32.mrb[0].mxu0
  %v2171 = vpop.f32.mrb[0].mxu0
  %2172 = vdwg.mxu0
  %v2173 = vmax.f32 %v2121, %v2168
  %s2174 = scalar_lea.vmem %s3, 48
  %v2175 = vld [vmem:[%s2174] sm:$0xff]
  %v2177 = vunpack.c.l.b16 %v2175
  %v2178 = vunpack.c.h.b16 %v2175
  %v2179 = vpack.c.b16 %v2177, %v2177
  %v2180 = vpack.c.b16 %v2178, %v2178
  %v2183 = vsel %vm130, %v2180, 0
  %2185 = vmatprep.subr.bf16.mxu0 0
  %2186 = vmatpush1.bf16.msra.mxu0 %v110
  %2187 = vmatprep.subr.bf16.mxu0 0
  %2188 = vmatpush1.bf16.msra.mxu0 %v111
  %2189 = vmatprep.subr.bf16.mxu0 0
  %2190 = vmatpush1.bf16.msra.mxu0 %v112
  %2191 = vmatprep.subr.bf16.mxu0 0
  %2192 = vmatpush1.bf16.msra.mxu0 %v113
  %2193 = vmatprep.subr.bf16.mxu0 0
  %2194 = vmatpush1.bf16.msra.mxu0 %v114
  %2195 = vmatprep.subr.bf16.mxu0 0
  %2196 = vmatpush1.bf16.msra.mxu0 %v115
  %2197 = vmatprep.subr.bf16.mxu0 0
  %2198 = vmatpush1.bf16.msra.mxu0 %v116
  %2199 = vmatprep.subr.bf16.mxu0 0
  %2200 = vmatpush1.bf16.msra.mxu0 %v117
  %2201 = vmatprep.subr.bf16.mxu0 0
  %2202 = vmatpush1.bf16.msra.mxu0 %v118
  %2203 = vmatprep.subr.bf16.mxu0 0
  %2204 = vmatpush1.bf16.msra.mxu0 %v119
  %2205 = vmatprep.subr.bf16.mxu0 0
  %2206 = vmatpush1.bf16.msra.mxu0 0
  %2207 = vmatprep.subr.bf16.mxu0 0
  %2208 = vmatpush1.bf16.msra.mxu0 0
  %2209 = vmatprep.subr.bf16.mxu0 0
  %2210 = vmatpush1.bf16.msra.mxu0 0
  %2211 = vmatprep.subr.bf16.mxu0 0
  %2212 = vmatpush1.bf16.msra.mxu0 0
  %2213 = vmatprep.subr.bf16.mxu0 0
  %2214 = vmatpush1.bf16.msra.mxu0 0
  %2215 = vmatprep.subr.bf16.mxu0 0
  %2216 = vmatpush1.bf16.msra.mxu0 0
  %2217 = vmatprep.mubr.bf16.mxu0 %v2183
  %2218 = vmatmul.mubr.bf16.gmra.mrb[0].mxu0 %v2179
  %v2219 = vpop.f32.mrb[0].mxu0
  %v2220 = vadd.f32 0.0, %v2219
  %v2221 = vpop.f32.mrb[0].mxu0
  %v2222 = vpop.f32.mrb[0].mxu0
  %v2223 = vpop.f32.mrb[0].mxu0
  %2224 = vdwg.mxu0
  %v2225 = vmax.f32 %v2173, %v2220
  %v2226 = vadd.f32 %v2225, %v331
  %v2227 = vmax.f32 %v2226, 0.0
  %v2228 = vpack.c.bf16 %v2227, %v2227
  %s2229 = scalar_lea.vmem %s6, 384
  %v2230 = vld [vmem:[%s2229] sm:$0xf]
  %v2231 = vld [vmem:[%s2229 + $0x4] sm:$0xf]
  %v2232 = vld [vmem:[%s2229 + $0x8] sm:$0xf]
  %v2233 = vld [vmem:[%s2229 + $0xc] sm:$0xf]
  %v2234 = vld [vmem:[%s2229 + $0x10] sm:$0xf]
  %v2235 = vld [vmem:[%s2229 + $0x14] sm:$0xf]
  %v2236 = vld [vmem:[%s2229 + $0x18] sm:$0xf]
  %v2237 = vld [vmem:[%s2229 + $0x1c] sm:$0xf]
  %v2238 = vld [vmem:[%s2229 + $0x20] sm:$0xf]
  %v2239 = vld [vmem:[%s2229 + $0x24] sm:$0xf]
  %v2240 = vld [vmem:[%s2229 + $0x28] sm:$0xf]
  %v2241 = vld [vmem:[%s2229 + $0x2c] sm:$0xf]
  %v2242 = vld [vmem:[%s2229 + $0x30] sm:$0xf]
  %v2243 = vld [vmem:[%s2229 + $0x34] sm:$0xf]
  %v2244 = vld [vmem:[%s2229 + $0x38] sm:$0xf]
  %v2245 = vld [vmem:[%s2229 + $0x3c] sm:$0xf]
  %v2262 = vunpack.c.l.b16 %v2230
  %v2263 = vunpack.c.l.b16 %v2231
  %v2264 = vunpack.c.l.b16 %v2232
  %v2265 = vunpack.c.l.b16 %v2233
  %v2266 = vunpack.c.l.b16 %v2234
  %v2267 = vunpack.c.l.b16 %v2235
  %v2268 = vunpack.c.l.b16 %v2236
  %v2269 = vunpack.c.l.b16 %v2237
  %v2270 = vunpack.c.l.b16 %v2238
  %v2271 = vunpack.c.l.b16 %v2239
  %v2272 = vunpack.c.l.b16 %v2240
  %v2273 = vunpack.c.l.b16 %v2241
  %v2274 = vunpack.c.l.b16 %v2242
  %v2275 = vunpack.c.l.b16 %v2243
  %v2276 = vunpack.c.l.b16 %v2244
  %v2277 = vunpack.c.l.b16 %v2245
  %v2278 = vpack.c.b16 %v2263, %v2262
  %v2279 = vpack.c.b16 %v2265, %v2264
  %v2280 = vpack.c.b16 %v2267, %v2266
  %v2281 = vpack.c.b16 %v2269, %v2268
  %v2282 = vpack.c.b16 %v2271, %v2270
  %v2283 = vpack.c.b16 %v2273, %v2272
  %v2284 = vpack.c.b16 %v2275, %v2274
  %v2285 = vpack.c.b16 %v2277, %v2276
  %2294 = vmatprep.subr.bf16.mxu0 0
  %2295 = vmatpush1.bf16.msra.mxu0 %v2278
  %2296 = vmatprep.subr.bf16.mxu0 0
  %2297 = vmatpush1.bf16.msra.mxu0 %v2279
  %2298 = vmatprep.subr.bf16.mxu0 0
  %2299 = vmatpush1.bf16.msra.mxu0 %v2280
  %2300 = vmatprep.subr.bf16.mxu0 0
  %2301 = vmatpush1.bf16.msra.mxu0 %v2281
  %2302 = vmatprep.subr.bf16.mxu0 0
  %2303 = vmatpush1.bf16.msra.mxu0 %v2282
  %2304 = vmatprep.subr.bf16.mxu0 0
  %2305 = vmatpush1.bf16.msra.mxu0 %v2283
  %2306 = vmatprep.subr.bf16.mxu0 0
  %2307 = vmatpush1.bf16.msra.mxu0 %v2284
  %2308 = vmatprep.subr.bf16.mxu0 0
  %2309 = vmatpush1.bf16.msra.mxu0 %v2285
  %2310 = vmatprep.subr.bf16.mxu0 0
  %2311 = vmatpush1.bf16.msra.mxu0 0
  %2312 = vmatprep.subr.bf16.mxu0 0
  %2313 = vmatpush1.bf16.msra.mxu0 0
  %2314 = vmatprep.subr.bf16.mxu0 0
  %2315 = vmatpush1.bf16.msra.mxu0 0
  %2316 = vmatprep.subr.bf16.mxu0 0
  %2317 = vmatpush1.bf16.msra.mxu0 0
  %2318 = vmatprep.subr.bf16.mxu0 0
  %2319 = vmatpush1.bf16.msra.mxu0 0
  %2320 = vmatprep.subr.bf16.mxu0 0
  %2321 = vmatpush1.bf16.msra.mxu0 0
  %2322 = vmatprep.subr.bf16.mxu0 0
  %2323 = vmatpush1.bf16.msra.mxu0 0
  %2324 = vmatprep.subr.bf16.mxu0 0
  %2325 = vmatpush1.bf16.msra.mxu0 0
  %2326 = vmatprep.mubr.bf16.mxu0 0
  %2327 = vmatmul.mubr.bf16.gmra.mrb[0].mxu0 %v2228
  %v2328 = vpop.f32.mrb[0].mxu0
  %v2329 = vadd.f32 0.0, %v2328
  %v2330 = vpop.f32.mrb[0].mxu0
  %v2331 = vpop.f32.mrb[0].mxu0
  %v2332 = vpop.f32.mrb[0].mxu0
  %2333 = vdwg.mxu0
  %v2334 = vadd.f32 %v2018, %v2329
  %s2335 = scalar_lea.vmem %s0, 56
  %v2336 = vld [vmem:[%s2335] sm:$0xff]
  %v2338 = vunpack.c.l.b16 %v2336
  %v2339 = vunpack.c.h.b16 %v2336
  %v2340 = vpack.c.b16 %v2338, %v2338
  %v2341 = vpack.c.b16 %v2339, %v2339
  %v2344 = vsel %vm130, %v2341, 0
  %2346 = vmatprep.subr.bf16.mxu0 0
  %2347 = vmatpush1.bf16.msra.mxu0 %v110
  %2348 = vmatprep.subr.bf16.mxu0 0
  %2349 = vmatpush1.bf16.msra.mxu0 %v111
  %2350 = vmatprep.subr.bf16.mxu0 0
  %2351 = vmatpush1.bf16.msra.mxu0 %v112
  %2352 = vmatprep.subr.bf16.mxu0 0
  %2353 = vmatpush1.bf16.msra.mxu0 %v113
  %2354 = vmatprep.subr.bf16.mxu0 0
  %2355 = vmatpush1.bf16.msra.mxu0 %v114
  %2356 = vmatprep.subr.bf16.mxu0 0
  %2357 = vmatpush1.bf16.msra.mxu0 %v115
  %2358 = vmatprep.subr.bf16.mxu0 0
  %2359 = vmatpush1.bf16.msra.mxu0 %v116
  %2360 = vmatprep.subr.bf16.mxu0 0
  %2361 = vmatpush1.bf16.msra.mxu0 %v117
  %2362 = vmatprep.subr.bf16.mxu0 0
  %2363 = vmatpush1.bf16.msra.mxu0 %v118
  %2364 = vmatprep.subr.bf16.mxu0 0
  %2365 = vmatpush1.bf16.msra.mxu0 %v119
  %2366 = vmatprep.subr.bf16.mxu0 0
  %2367 = vmatpush1.bf16.msra.mxu0 0
  %2368 = vmatprep.subr.bf16.mxu0 0
  %2369 = vmatpush1.bf16.msra.mxu0 0
  %2370 = vmatprep.subr.bf16.mxu0 0
  %2371 = vmatpush1.bf16.msra.mxu0 0
  %2372 = vmatprep.subr.bf16.mxu0 0
  %2373 = vmatpush1.bf16.msra.mxu0 0
  %2374 = vmatprep.subr.bf16.mxu0 0
  %2375 = vmatpush1.bf16.msra.mxu0 0
  %2376 = vmatprep.subr.bf16.mxu0 0
  %2377 = vmatpush1.bf16.msra.mxu0 0
  %2378 = vmatprep.mubr.bf16.mxu0 %v2344
  %2379 = vmatmul.mubr.bf16.gmra.mrb[0].mxu0 %v2340
  %v2380 = vpop.f32.mrb[0].mxu0
  %v2381 = vadd.f32 0.0, %v2380
  %v2382 = vpop.f32.mrb[0].mxu0
  %v2383 = vpop.f32.mrb[0].mxu0
  %v2384 = vpop.f32.mrb[0].mxu0
  %2385 = vdwg.mxu0
  %s2386 = scalar_lea.vmem %s1, 56
  %v2387 = vld [vmem:[%s2386] sm:$0xff]
  %v2389 = vunpack.c.l.b16 %v2387
  %v2390 = vunpack.c.h.b16 %v2387
  %v2391 = vpack.c.b16 %v2389, %v2389
  %v2392 = vpack.c.b16 %v2390, %v2390
  %v2395 = vsel %vm130, %v2392, 0
  %2397 = vmatprep.subr.bf16.mxu0 0
  %2398 = vmatpush1.bf16.msra.mxu0 %v110
  %2399 = vmatprep.subr.bf16.mxu0 0
  %2400 = vmatpush1.bf16.msra.mxu0 %v111
  %2401 = vmatprep.subr.bf16.mxu0 0
  %2402 = vmatpush1.bf16.msra.mxu0 %v112
  %2403 = vmatprep.subr.bf16.mxu0 0
  %2404 = vmatpush1.bf16.msra.mxu0 %v113
  %2405 = vmatprep.subr.bf16.mxu0 0
  %2406 = vmatpush1.bf16.msra.mxu0 %v114
  %2407 = vmatprep.subr.bf16.mxu0 0
  %2408 = vmatpush1.bf16.msra.mxu0 %v115
  %2409 = vmatprep.subr.bf16.mxu0 0
  %2410 = vmatpush1.bf16.msra.mxu0 %v116
  %2411 = vmatprep.subr.bf16.mxu0 0
  %2412 = vmatpush1.bf16.msra.mxu0 %v117
  %2413 = vmatprep.subr.bf16.mxu0 0
  %2414 = vmatpush1.bf16.msra.mxu0 %v118
  %2415 = vmatprep.subr.bf16.mxu0 0
  %2416 = vmatpush1.bf16.msra.mxu0 %v119
  %2417 = vmatprep.subr.bf16.mxu0 0
  %2418 = vmatpush1.bf16.msra.mxu0 0
  %2419 = vmatprep.subr.bf16.mxu0 0
  %2420 = vmatpush1.bf16.msra.mxu0 0
  %2421 = vmatprep.subr.bf16.mxu0 0
  %2422 = vmatpush1.bf16.msra.mxu0 0
  %2423 = vmatprep.subr.bf16.mxu0 0
  %2424 = vmatpush1.bf16.msra.mxu0 0
  %2425 = vmatprep.subr.bf16.mxu0 0
  %2426 = vmatpush1.bf16.msra.mxu0 0
  %2427 = vmatprep.subr.bf16.mxu0 0
  %2428 = vmatpush1.bf16.msra.mxu0 0
  %2429 = vmatprep.mubr.bf16.mxu0 %v2395
  %2430 = vmatmul.mubr.bf16.gmra.mrb[0].mxu0 %v2391
  %v2431 = vpop.f32.mrb[0].mxu0
  %v2432 = vadd.f32 0.0, %v2431
  %v2433 = vpop.f32.mrb[0].mxu0
  %v2434 = vpop.f32.mrb[0].mxu0
  %v2435 = vpop.f32.mrb[0].mxu0
  %2436 = vdwg.mxu0
  %v2437 = vmax.f32 %v2381, %v2432
  %s2438 = scalar_lea.vmem %s2, 56
  %v2439 = vld [vmem:[%s2438] sm:$0xff]
  %v2441 = vunpack.c.l.b16 %v2439
  %v2442 = vunpack.c.h.b16 %v2439
  %v2443 = vpack.c.b16 %v2441, %v2441
  %v2444 = vpack.c.b16 %v2442, %v2442
  %v2447 = vsel %vm130, %v2444, 0
  %2449 = vmatprep.subr.bf16.mxu0 0
  %2450 = vmatpush1.bf16.msra.mxu0 %v110
  %2451 = vmatprep.subr.bf16.mxu0 0
  %2452 = vmatpush1.bf16.msra.mxu0 %v111
  %2453 = vmatprep.subr.bf16.mxu0 0
  %2454 = vmatpush1.bf16.msra.mxu0 %v112
  %2455 = vmatprep.subr.bf16.mxu0 0
  %2456 = vmatpush1.bf16.msra.mxu0 %v113
  %2457 = vmatprep.subr.bf16.mxu0 0
  %2458 = vmatpush1.bf16.msra.mxu0 %v114
  %2459 = vmatprep.subr.bf16.mxu0 0
  %2460 = vmatpush1.bf16.msra.mxu0 %v115
  %2461 = vmatprep.subr.bf16.mxu0 0
  %2462 = vmatpush1.bf16.msra.mxu0 %v116
  %2463 = vmatprep.subr.bf16.mxu0 0
  %2464 = vmatpush1.bf16.msra.mxu0 %v117
  %2465 = vmatprep.subr.bf16.mxu0 0
  %2466 = vmatpush1.bf16.msra.mxu0 %v118
  %2467 = vmatprep.subr.bf16.mxu0 0
  %2468 = vmatpush1.bf16.msra.mxu0 %v119
  %2469 = vmatprep.subr.bf16.mxu0 0
  %2470 = vmatpush1.bf16.msra.mxu0 0
  %2471 = vmatprep.subr.bf16.mxu0 0
  %2472 = vmatpush1.bf16.msra.mxu0 0
  %2473 = vmatprep.subr.bf16.mxu0 0
  %2474 = vmatpush1.bf16.msra.mxu0 0
  %2475 = vmatprep.subr.bf16.mxu0 0
  %2476 = vmatpush1.bf16.msra.mxu0 0
  %2477 = vmatprep.subr.bf16.mxu0 0
  %2478 = vmatpush1.bf16.msra.mxu0 0
  %2479 = vmatprep.subr.bf16.mxu0 0
  %2480 = vmatpush1.bf16.msra.mxu0 0
  %2481 = vmatprep.mubr.bf16.mxu0 %v2447
  %2482 = vmatmul.mubr.bf16.gmra.mrb[0].mxu0 %v2443
  %v2483 = vpop.f32.mrb[0].mxu0
  %v2484 = vadd.f32 0.0, %v2483
  %v2485 = vpop.f32.mrb[0].mxu0
  %v2486 = vpop.f32.mrb[0].mxu0
  %v2487 = vpop.f32.mrb[0].mxu0
  %2488 = vdwg.mxu0
  %v2489 = vmax.f32 %v2437, %v2484
  %s2490 = scalar_lea.vmem %s3, 56
  %v2491 = vld [vmem:[%s2490] sm:$0xff]
  %v2493 = vunpack.c.l.b16 %v2491
  %v2494 = vunpack.c.h.b16 %v2491
  %v2495 = vpack.c.b16 %v2493, %v2493
  %v2496 = vpack.c.b16 %v2494, %v2494
  %v2499 = vsel %vm130, %v2496, 0
  %2501 = vmatprep.subr.bf16.mxu0 0
  %2502 = vmatpush1.bf16.msra.mxu0 %v110
  %2503 = vmatprep.subr.bf16.mxu0 0
  %2504 = vmatpush1.bf16.msra.mxu0 %v111
  %2505 = vmatprep.subr.bf16.mxu0 0
  %2506 = vmatpush1.bf16.msra.mxu0 %v112
  %2507 = vmatprep.subr.bf16.mxu0 0
  %2508 = vmatpush1.bf16.msra.mxu0 %v113
  %2509 = vmatprep.subr.bf16.mxu0 0
  %2510 = vmatpush1.bf16.msra.mxu0 %v114
  %2511 = vmatprep.subr.bf16.mxu0 0
  %2512 = vmatpush1.bf16.msra.mxu0 %v115
  %2513 = vmatprep.subr.bf16.mxu0 0
  %2514 = vmatpush1.bf16.msra.mxu0 %v116
  %2515 = vmatprep.subr.bf16.mxu0 0
  %2516 = vmatpush1.bf16.msra.mxu0 %v117
  %2517 = vmatprep.subr.bf16.mxu0 0
  %2518 = vmatpush1.bf16.msra.mxu0 %v118
  %2519 = vmatprep.subr.bf16.mxu0 0
  %2520 = vmatpush1.bf16.msra.mxu0 %v119
  %2521 = vmatprep.subr.bf16.mxu0 0
  %2522 = vmatpush1.bf16.msra.mxu0 0
  %2523 = vmatprep.subr.bf16.mxu0 0
  %2524 = vmatpush1.bf16.msra.mxu0 0
  %2525 = vmatprep.subr.bf16.mxu0 0
  %2526 = vmatpush1.bf16.msra.mxu0 0
  %2527 = vmatprep.subr.bf16.mxu0 0
  %2528 = vmatpush1.bf16.msra.mxu0 0
  %2529 = vmatprep.subr.bf16.mxu0 0
  %2530 = vmatpush1.bf16.msra.mxu0 0
  %2531 = vmatprep.subr.bf16.mxu0 0
  %2532 = vmatpush1.bf16.msra.mxu0 0
  %2533 = vmatprep.mubr.bf16.mxu0 %v2499
  %2534 = vmatmul.mubr.bf16.gmra.mrb[0].mxu0 %v2495
  %v2535 = vpop.f32.mrb[0].mxu0
  %v2536 = vadd.f32 0.0, %v2535
  %v2537 = vpop.f32.mrb[0].mxu0
  %v2538 = vpop.f32.mrb[0].mxu0
  %v2539 = vpop.f32.mrb[0].mxu0
  %2540 = vdwg.mxu0
  %v2541 = vmax.f32 %v2489, %v2536
  %v2542 = vadd.f32 %v2541, %v331
  %v2543 = vmax.f32 %v2542, 0.0
  %v2544 = vpack.c.bf16 %v2543, %v2543
  %s2545 = scalar_lea.vmem %s6, 448
  %v2546 = vld [vmem:[%s2545] sm:$0xf]
  %v2547 = vld [vmem:[%s2545 + $0x4] sm:$0xf]
  %v2548 = vld [vmem:[%s2545 + $0x8] sm:$0xf]
  %v2549 = vld [vmem:[%s2545 + $0xc] sm:$0xf]
  %v2550 = vld [vmem:[%s2545 + $0x10] sm:$0xf]
  %v2551 = vld [vmem:[%s2545 + $0x14] sm:$0xf]
  %v2552 = vld [vmem:[%s2545 + $0x18] sm:$0xf]
  %v2553 = vld [vmem:[%s2545 + $0x1c] sm:$0xf]
  %v2554 = vld [vmem:[%s2545 + $0x20] sm:$0xf]
  %v2555 = vld [vmem:[%s2545 + $0x24] sm:$0xf]
  %v2556 = vld [vmem:[%s2545 + $0x28] sm:$0xf]
  %v2557 = vld [vmem:[%s2545 + $0x2c] sm:$0xf]
  %v2558 = vld [vmem:[%s2545 + $0x30] sm:$0xf]
  %v2559 = vld [vmem:[%s2545 + $0x34] sm:$0xf]
  %v2560 = vld [vmem:[%s2545 + $0x38] sm:$0xf]
  %v2561 = vld [vmem:[%s2545 + $0x3c] sm:$0xf]
  %v2578 = vunpack.c.l.b16 %v2546
  %v2579 = vunpack.c.l.b16 %v2547
  %v2580 = vunpack.c.l.b16 %v2548
  %v2581 = vunpack.c.l.b16 %v2549
  %v2582 = vunpack.c.l.b16 %v2550
  %v2583 = vunpack.c.l.b16 %v2551
  %v2584 = vunpack.c.l.b16 %v2552
  %v2585 = vunpack.c.l.b16 %v2553
  %v2586 = vunpack.c.l.b16 %v2554
  %v2587 = vunpack.c.l.b16 %v2555
  %v2588 = vunpack.c.l.b16 %v2556
  %v2589 = vunpack.c.l.b16 %v2557
  %v2590 = vunpack.c.l.b16 %v2558
  %v2591 = vunpack.c.l.b16 %v2559
  %v2592 = vunpack.c.l.b16 %v2560
  %v2593 = vunpack.c.l.b16 %v2561
  %v2594 = vpack.c.b16 %v2579, %v2578
  %v2595 = vpack.c.b16 %v2581, %v2580
  %v2596 = vpack.c.b16 %v2583, %v2582
  %v2597 = vpack.c.b16 %v2585, %v2584
  %v2598 = vpack.c.b16 %v2587, %v2586
  %v2599 = vpack.c.b16 %v2589, %v2588
  %v2600 = vpack.c.b16 %v2591, %v2590
  %v2601 = vpack.c.b16 %v2593, %v2592
  %2610 = vmatprep.subr.bf16.mxu0 0
  %2611 = vmatpush1.bf16.msra.mxu0 %v2594
  %2612 = vmatprep.subr.bf16.mxu0 0
  %2613 = vmatpush1.bf16.msra.mxu0 %v2595
  %2614 = vmatprep.subr.bf16.mxu0 0
  %2615 = vmatpush1.bf16.msra.mxu0 %v2596
  %2616 = vmatprep.subr.bf16.mxu0 0
  %2617 = vmatpush1.bf16.msra.mxu0 %v2597
  %2618 = vmatprep.subr.bf16.mxu0 0
  %2619 = vmatpush1.bf16.msra.mxu0 %v2598
  %2620 = vmatprep.subr.bf16.mxu0 0
  %2621 = vmatpush1.bf16.msra.mxu0 %v2599
  %2622 = vmatprep.subr.bf16.mxu0 0
  %2623 = vmatpush1.bf16.msra.mxu0 %v2600
  %2624 = vmatprep.subr.bf16.mxu0 0
  %2625 = vmatpush1.bf16.msra.mxu0 %v2601
  %2626 = vmatprep.subr.bf16.mxu0 0
  %2627 = vmatpush1.bf16.msra.mxu0 0
  %2628 = vmatprep.subr.bf16.mxu0 0
  %2629 = vmatpush1.bf16.msra.mxu0 0
  %2630 = vmatprep.subr.bf16.mxu0 0
  %2631 = vmatpush1.bf16.msra.mxu0 0
  %2632 = vmatprep.subr.bf16.mxu0 0
  %2633 = vmatpush1.bf16.msra.mxu0 0
  %2634 = vmatprep.subr.bf16.mxu0 0
  %2635 = vmatpush1.bf16.msra.mxu0 0
  %2636 = vmatprep.subr.bf16.mxu0 0
  %2637 = vmatpush1.bf16.msra.mxu0 0
  %2638 = vmatprep.subr.bf16.mxu0 0
  %2639 = vmatpush1.bf16.msra.mxu0 0
  %2640 = vmatprep.subr.bf16.mxu0 0
  %2641 = vmatpush1.bf16.msra.mxu0 0
  %2642 = vmatprep.mubr.bf16.mxu0 0
  %2643 = vmatmul.mubr.bf16.gmra.mrb[0].mxu0 %v2544
  %v2644 = vpop.f32.mrb[0].mxu0
  %v2645 = vadd.f32 0.0, %v2644
  %v2646 = vpop.f32.mrb[0].mxu0
  %v2647 = vpop.f32.mrb[0].mxu0
  %v2648 = vpop.f32.mrb[0].mxu0
  %2649 = vdwg.mxu0
  %v2650 = vadd.f32 %v2334, %v2645
  %s2651 = scalar_lea.vmem %s0, 64
  %v2652 = vld [vmem:[%s2651] sm:$0xff]
  %v2654 = vunpack.c.l.b16 %v2652
  %v2655 = vunpack.c.h.b16 %v2652
  %v2656 = vpack.c.b16 %v2654, %v2654
  %v2657 = vpack.c.b16 %v2655, %v2655
  %v2660 = vsel %vm130, %v2657, 0
  %2662 = vmatprep.subr.bf16.mxu0 0
  %2663 = vmatpush1.bf16.msra.mxu0 %v110
  %2664 = vmatprep.subr.bf16.mxu0 0
  %2665 = vmatpush1.bf16.msra.mxu0 %v111
  %2666 = vmatprep.subr.bf16.mxu0 0
  %2667 = vmatpush1.bf16.msra.mxu0 %v112
  %2668 = vmatprep.subr.bf16.mxu0 0
  %2669 = vmatpush1.bf16.msra.mxu0 %v113
  %2670 = vmatprep.subr.bf16.mxu0 0
  %2671 = vmatpush1.bf16.msra.mxu0 %v114
  %2672 = vmatprep.subr.bf16.mxu0 0
  %2673 = vmatpush1.bf16.msra.mxu0 %v115
  %2674 = vmatprep.subr.bf16.mxu0 0
  %2675 = vmatpush1.bf16.msra.mxu0 %v116
  %2676 = vmatprep.subr.bf16.mxu0 0
  %2677 = vmatpush1.bf16.msra.mxu0 %v117
  %2678 = vmatprep.subr.bf16.mxu0 0
  %2679 = vmatpush1.bf16.msra.mxu0 %v118
  %2680 = vmatprep.subr.bf16.mxu0 0
  %2681 = vmatpush1.bf16.msra.mxu0 %v119
  %2682 = vmatprep.subr.bf16.mxu0 0
  %2683 = vmatpush1.bf16.msra.mxu0 0
  %2684 = vmatprep.subr.bf16.mxu0 0
  %2685 = vmatpush1.bf16.msra.mxu0 0
  %2686 = vmatprep.subr.bf16.mxu0 0
  %2687 = vmatpush1.bf16.msra.mxu0 0
  %2688 = vmatprep.subr.bf16.mxu0 0
  %2689 = vmatpush1.bf16.msra.mxu0 0
  %2690 = vmatprep.subr.bf16.mxu0 0
  %2691 = vmatpush1.bf16.msra.mxu0 0
  %2692 = vmatprep.subr.bf16.mxu0 0
  %2693 = vmatpush1.bf16.msra.mxu0 0
  %2694 = vmatprep.mubr.bf16.mxu0 %v2660
  %2695 = vmatmul.mubr.bf16.gmra.mrb[0].mxu0 %v2656
  %v2696 = vpop.f32.mrb[0].mxu0
  %v2697 = vadd.f32 0.0, %v2696
  %v2698 = vpop.f32.mrb[0].mxu0
  %v2699 = vpop.f32.mrb[0].mxu0
  %v2700 = vpop.f32.mrb[0].mxu0
  %2701 = vdwg.mxu0
  %s2702 = scalar_lea.vmem %s1, 64
  %v2703 = vld [vmem:[%s2702] sm:$0xff]
  %v2705 = vunpack.c.l.b16 %v2703
  %v2706 = vunpack.c.h.b16 %v2703
  %v2707 = vpack.c.b16 %v2705, %v2705
  %v2708 = vpack.c.b16 %v2706, %v2706
  %v2711 = vsel %vm130, %v2708, 0
  %2713 = vmatprep.subr.bf16.mxu0 0
  %2714 = vmatpush1.bf16.msra.mxu0 %v110
  %2715 = vmatprep.subr.bf16.mxu0 0
  %2716 = vmatpush1.bf16.msra.mxu0 %v111
  %2717 = vmatprep.subr.bf16.mxu0 0
  %2718 = vmatpush1.bf16.msra.mxu0 %v112
  %2719 = vmatprep.subr.bf16.mxu0 0
  %2720 = vmatpush1.bf16.msra.mxu0 %v113
  %2721 = vmatprep.subr.bf16.mxu0 0
  %2722 = vmatpush1.bf16.msra.mxu0 %v114
  %2723 = vmatprep.subr.bf16.mxu0 0
  %2724 = vmatpush1.bf16.msra.mxu0 %v115
  %2725 = vmatprep.subr.bf16.mxu0 0
  %2726 = vmatpush1.bf16.msra.mxu0 %v116
  %2727 = vmatprep.subr.bf16.mxu0 0
  %2728 = vmatpush1.bf16.msra.mxu0 %v117
  %2729 = vmatprep.subr.bf16.mxu0 0
  %2730 = vmatpush1.bf16.msra.mxu0 %v118
  %2731 = vmatprep.subr.bf16.mxu0 0
  %2732 = vmatpush1.bf16.msra.mxu0 %v119
  %2733 = vmatprep.subr.bf16.mxu0 0
  %2734 = vmatpush1.bf16.msra.mxu0 0
  %2735 = vmatprep.subr.bf16.mxu0 0
  %2736 = vmatpush1.bf16.msra.mxu0 0
  %2737 = vmatprep.subr.bf16.mxu0 0
  %2738 = vmatpush1.bf16.msra.mxu0 0
  %2739 = vmatprep.subr.bf16.mxu0 0
  %2740 = vmatpush1.bf16.msra.mxu0 0
  %2741 = vmatprep.subr.bf16.mxu0 0
  %2742 = vmatpush1.bf16.msra.mxu0 0
  %2743 = vmatprep.subr.bf16.mxu0 0
  %2744 = vmatpush1.bf16.msra.mxu0 0
  %2745 = vmatprep.mubr.bf16.mxu0 %v2711
  %2746 = vmatmul.mubr.bf16.gmra.mrb[0].mxu0 %v2707
  %v2747 = vpop.f32.mrb[0].mxu0
  %v2748 = vadd.f32 0.0, %v2747
  %v2749 = vpop.f32.mrb[0].mxu0
  %v2750 = vpop.f32.mrb[0].mxu0
  %v2751 = vpop.f32.mrb[0].mxu0
  %2752 = vdwg.mxu0
  %v2753 = vmax.f32 %v2697, %v2748
  %s2754 = scalar_lea.vmem %s2, 64
  %v2755 = vld [vmem:[%s2754] sm:$0xff]
  %v2757 = vunpack.c.l.b16 %v2755
  %v2758 = vunpack.c.h.b16 %v2755
  %v2759 = vpack.c.b16 %v2757, %v2757
  %v2760 = vpack.c.b16 %v2758, %v2758
  %v2763 = vsel %vm130, %v2760, 0
  %2765 = vmatprep.subr.bf16.mxu0 0
  %2766 = vmatpush1.bf16.msra.mxu0 %v110
  %2767 = vmatprep.subr.bf16.mxu0 0
  %2768 = vmatpush1.bf16.msra.mxu0 %v111
  %2769 = vmatprep.subr.bf16.mxu0 0
  %2770 = vmatpush1.bf16.msra.mxu0 %v112
  %2771 = vmatprep.subr.bf16.mxu0 0
  %2772 = vmatpush1.bf16.msra.mxu0 %v113
  %2773 = vmatprep.subr.bf16.mxu0 0
  %2774 = vmatpush1.bf16.msra.mxu0 %v114
  %2775 = vmatprep.subr.bf16.mxu0 0
  %2776 = vmatpush1.bf16.msra.mxu0 %v115
  %2777 = vmatprep.subr.bf16.mxu0 0
  %2778 = vmatpush1.bf16.msra.mxu0 %v116
  %2779 = vmatprep.subr.bf16.mxu0 0
  %2780 = vmatpush1.bf16.msra.mxu0 %v117
  %2781 = vmatprep.subr.bf16.mxu0 0
  %2782 = vmatpush1.bf16.msra.mxu0 %v118
  %2783 = vmatprep.subr.bf16.mxu0 0
  %2784 = vmatpush1.bf16.msra.mxu0 %v119
  %2785 = vmatprep.subr.bf16.mxu0 0
  %2786 = vmatpush1.bf16.msra.mxu0 0
  %2787 = vmatprep.subr.bf16.mxu0 0
  %2788 = vmatpush1.bf16.msra.mxu0 0
  %2789 = vmatprep.subr.bf16.mxu0 0
  %2790 = vmatpush1.bf16.msra.mxu0 0
  %2791 = vmatprep.subr.bf16.mxu0 0
  %2792 = vmatpush1.bf16.msra.mxu0 0
  %2793 = vmatprep.subr.bf16.mxu0 0
  %2794 = vmatpush1.bf16.msra.mxu0 0
  %2795 = vmatprep.subr.bf16.mxu0 0
  %2796 = vmatpush1.bf16.msra.mxu0 0
  %2797 = vmatprep.mubr.bf16.mxu0 %v2763
  %2798 = vmatmul.mubr.bf16.gmra.mrb[0].mxu0 %v2759
  %v2799 = vpop.f32.mrb[0].mxu0
  %v2800 = vadd.f32 0.0, %v2799
  %v2801 = vpop.f32.mrb[0].mxu0
  %v2802 = vpop.f32.mrb[0].mxu0
  %v2803 = vpop.f32.mrb[0].mxu0
  %2804 = vdwg.mxu0
  %v2805 = vmax.f32 %v2753, %v2800
  %s2806 = scalar_lea.vmem %s3, 64
  %v2807 = vld [vmem:[%s2806] sm:$0xff]
  %v2809 = vunpack.c.l.b16 %v2807
  %v2810 = vunpack.c.h.b16 %v2807
  %v2811 = vpack.c.b16 %v2809, %v2809
  %v2812 = vpack.c.b16 %v2810, %v2810
  %v2815 = vsel %vm130, %v2812, 0
  %2817 = vmatprep.subr.bf16.mxu0 0
  %2818 = vmatpush1.bf16.msra.mxu0 %v110
  %2819 = vmatprep.subr.bf16.mxu0 0
  %2820 = vmatpush1.bf16.msra.mxu0 %v111
  %2821 = vmatprep.subr.bf16.mxu0 0
  %2822 = vmatpush1.bf16.msra.mxu0 %v112
  %2823 = vmatprep.subr.bf16.mxu0 0
  %2824 = vmatpush1.bf16.msra.mxu0 %v113
  %2825 = vmatprep.subr.bf16.mxu0 0
  %2826 = vmatpush1.bf16.msra.mxu0 %v114
  %2827 = vmatprep.subr.bf16.mxu0 0
  %2828 = vmatpush1.bf16.msra.mxu0 %v115
  %2829 = vmatprep.subr.bf16.mxu0 0
  %2830 = vmatpush1.bf16.msra.mxu0 %v116
  %2831 = vmatprep.subr.bf16.mxu0 0
  %2832 = vmatpush1.bf16.msra.mxu0 %v117
  %2833 = vmatprep.subr.bf16.mxu0 0
  %2834 = vmatpush1.bf16.msra.mxu0 %v118
  %2835 = vmatprep.subr.bf16.mxu0 0
  %2836 = vmatpush1.bf16.msra.mxu0 %v119
  %2837 = vmatprep.subr.bf16.mxu0 0
  %2838 = vmatpush1.bf16.msra.mxu0 0
  %2839 = vmatprep.subr.bf16.mxu0 0
  %2840 = vmatpush1.bf16.msra.mxu0 0
  %2841 = vmatprep.subr.bf16.mxu0 0
  %2842 = vmatpush1.bf16.msra.mxu0 0
  %2843 = vmatprep.subr.bf16.mxu0 0
  %2844 = vmatpush1.bf16.msra.mxu0 0
  %2845 = vmatprep.subr.bf16.mxu0 0
  %2846 = vmatpush1.bf16.msra.mxu0 0
  %2847 = vmatprep.subr.bf16.mxu0 0
  %2848 = vmatpush1.bf16.msra.mxu0 0
  %2849 = vmatprep.mubr.bf16.mxu0 %v2815
  %2850 = vmatmul.mubr.bf16.gmra.mrb[0].mxu0 %v2811
  %v2851 = vpop.f32.mrb[0].mxu0
  %v2852 = vadd.f32 0.0, %v2851
  %v2853 = vpop.f32.mrb[0].mxu0
  %v2854 = vpop.f32.mrb[0].mxu0
  %v2855 = vpop.f32.mrb[0].mxu0
  %2856 = vdwg.mxu0
  %v2857 = vmax.f32 %v2805, %v2852
  %v2858 = vadd.f32 %v2857, %v331
  %v2859 = vmax.f32 %v2858, 0.0
  %v2860 = vpack.c.bf16 %v2859, %v2859
  %s2861 = scalar_lea.vmem %s6, 512
  %v2862 = vld [vmem:[%s2861] sm:$0xf]
  %v2863 = vld [vmem:[%s2861 + $0x4] sm:$0xf]
  %v2864 = vld [vmem:[%s2861 + $0x8] sm:$0xf]
  %v2865 = vld [vmem:[%s2861 + $0xc] sm:$0xf]
  %v2866 = vld [vmem:[%s2861 + $0x10] sm:$0xf]
  %v2867 = vld [vmem:[%s2861 + $0x14] sm:$0xf]
  %v2868 = vld [vmem:[%s2861 + $0x18] sm:$0xf]
  %v2869 = vld [vmem:[%s2861 + $0x1c] sm:$0xf]
  %v2870 = vld [vmem:[%s2861 + $0x20] sm:$0xf]
  %v2871 = vld [vmem:[%s2861 + $0x24] sm:$0xf]
  %v2872 = vld [vmem:[%s2861 + $0x28] sm:$0xf]
  %v2873 = vld [vmem:[%s2861 + $0x2c] sm:$0xf]
  %v2874 = vld [vmem:[%s2861 + $0x30] sm:$0xf]
  %v2875 = vld [vmem:[%s2861 + $0x34] sm:$0xf]
  %v2876 = vld [vmem:[%s2861 + $0x38] sm:$0xf]
  %v2877 = vld [vmem:[%s2861 + $0x3c] sm:$0xf]
  %v2894 = vunpack.c.l.b16 %v2862
  %v2895 = vunpack.c.l.b16 %v2863
  %v2896 = vunpack.c.l.b16 %v2864
  %v2897 = vunpack.c.l.b16 %v2865
  %v2898 = vunpack.c.l.b16 %v2866
  %v2899 = vunpack.c.l.b16 %v2867
  %v2900 = vunpack.c.l.b16 %v2868
  %v2901 = vunpack.c.l.b16 %v2869
  %v2902 = vunpack.c.l.b16 %v2870
  %v2903 = vunpack.c.l.b16 %v2871
  %v2904 = vunpack.c.l.b16 %v2872
  %v2905 = vunpack.c.l.b16 %v2873
  %v2906 = vunpack.c.l.b16 %v2874
  %v2907 = vunpack.c.l.b16 %v2875
  %v2908 = vunpack.c.l.b16 %v2876
  %v2909 = vunpack.c.l.b16 %v2877
  %v2910 = vpack.c.b16 %v2895, %v2894
  %v2911 = vpack.c.b16 %v2897, %v2896
  %v2912 = vpack.c.b16 %v2899, %v2898
  %v2913 = vpack.c.b16 %v2901, %v2900
  %v2914 = vpack.c.b16 %v2903, %v2902
  %v2915 = vpack.c.b16 %v2905, %v2904
  %v2916 = vpack.c.b16 %v2907, %v2906
  %v2917 = vpack.c.b16 %v2909, %v2908
  %2926 = vmatprep.subr.bf16.mxu0 0
  %2927 = vmatpush1.bf16.msra.mxu0 %v2910
  %2928 = vmatprep.subr.bf16.mxu0 0
  %2929 = vmatpush1.bf16.msra.mxu0 %v2911
  %2930 = vmatprep.subr.bf16.mxu0 0
  %2931 = vmatpush1.bf16.msra.mxu0 %v2912
  %2932 = vmatprep.subr.bf16.mxu0 0
  %2933 = vmatpush1.bf16.msra.mxu0 %v2913
  %2934 = vmatprep.subr.bf16.mxu0 0
  %2935 = vmatpush1.bf16.msra.mxu0 %v2914
  %2936 = vmatprep.subr.bf16.mxu0 0
  %2937 = vmatpush1.bf16.msra.mxu0 %v2915
  %2938 = vmatprep.subr.bf16.mxu0 0
  %2939 = vmatpush1.bf16.msra.mxu0 %v2916
  %2940 = vmatprep.subr.bf16.mxu0 0
  %2941 = vmatpush1.bf16.msra.mxu0 %v2917
  %2942 = vmatprep.subr.bf16.mxu0 0
  %2943 = vmatpush1.bf16.msra.mxu0 0
  %2944 = vmatprep.subr.bf16.mxu0 0
  %2945 = vmatpush1.bf16.msra.mxu0 0
  %2946 = vmatprep.subr.bf16.mxu0 0
  %2947 = vmatpush1.bf16.msra.mxu0 0
  %2948 = vmatprep.subr.bf16.mxu0 0
  %2949 = vmatpush1.bf16.msra.mxu0 0
  %2950 = vmatprep.subr.bf16.mxu0 0
  %2951 = vmatpush1.bf16.msra.mxu0 0
  %2952 = vmatprep.subr.bf16.mxu0 0
  %2953 = vmatpush1.bf16.msra.mxu0 0
  %2954 = vmatprep.subr.bf16.mxu0 0
  %2955 = vmatpush1.bf16.msra.mxu0 0
  %2956 = vmatprep.subr.bf16.mxu0 0
  %2957 = vmatpush1.bf16.msra.mxu0 0
  %2958 = vmatprep.mubr.bf16.mxu0 0
  %2959 = vmatmul.mubr.bf16.gmra.mrb[0].mxu0 %v2860
  %v2960 = vpop.f32.mrb[0].mxu0
  %v2961 = vadd.f32 0.0, %v2960
  %v2962 = vpop.f32.mrb[0].mxu0
  %v2963 = vpop.f32.mrb[0].mxu0
  %v2964 = vpop.f32.mrb[0].mxu0
  %2965 = vdwg.mxu0
  %v2966 = vadd.f32 %v2650, %v2961
  %s2967 = scalar_lea.vmem %s0, 72
  %v2968 = vld [vmem:[%s2967] sm:$0xff]
  %v2970 = vunpack.c.l.b16 %v2968
  %v2971 = vunpack.c.h.b16 %v2968
  %v2972 = vpack.c.b16 %v2970, %v2970
  %v2973 = vpack.c.b16 %v2971, %v2971
  %v2976 = vsel %vm130, %v2973, 0
  %2978 = vmatprep.subr.bf16.mxu0 0
  %2979 = vmatpush1.bf16.msra.mxu0 %v110
  %2980 = vmatprep.subr.bf16.mxu0 0
  %2981 = vmatpush1.bf16.msra.mxu0 %v111
  %2982 = vmatprep.subr.bf16.mxu0 0
  %2983 = vmatpush1.bf16.msra.mxu0 %v112
  %2984 = vmatprep.subr.bf16.mxu0 0
  %2985 = vmatpush1.bf16.msra.mxu0 %v113
  %2986 = vmatprep.subr.bf16.mxu0 0
  %2987 = vmatpush1.bf16.msra.mxu0 %v114
  %2988 = vmatprep.subr.bf16.mxu0 0
  %2989 = vmatpush1.bf16.msra.mxu0 %v115
  %2990 = vmatprep.subr.bf16.mxu0 0
  %2991 = vmatpush1.bf16.msra.mxu0 %v116
  %2992 = vmatprep.subr.bf16.mxu0 0
  %2993 = vmatpush1.bf16.msra.mxu0 %v117
  %2994 = vmatprep.subr.bf16.mxu0 0
  %2995 = vmatpush1.bf16.msra.mxu0 %v118
  %2996 = vmatprep.subr.bf16.mxu0 0
  %2997 = vmatpush1.bf16.msra.mxu0 %v119
  %2998 = vmatprep.subr.bf16.mxu0 0
  %2999 = vmatpush1.bf16.msra.mxu0 0
  %3000 = vmatprep.subr.bf16.mxu0 0
  %3001 = vmatpush1.bf16.msra.mxu0 0
  %3002 = vmatprep.subr.bf16.mxu0 0
  %3003 = vmatpush1.bf16.msra.mxu0 0
  %3004 = vmatprep.subr.bf16.mxu0 0
  %3005 = vmatpush1.bf16.msra.mxu0 0
  %3006 = vmatprep.subr.bf16.mxu0 0
  %3007 = vmatpush1.bf16.msra.mxu0 0
  %3008 = vmatprep.subr.bf16.mxu0 0
  %3009 = vmatpush1.bf16.msra.mxu0 0
  %3010 = vmatprep.mubr.bf16.mxu0 %v2976
  %3011 = vmatmul.mubr.bf16.gmra.mrb[0].mxu0 %v2972
  %v3012 = vpop.f32.mrb[0].mxu0
  %v3013 = vadd.f32 0.0, %v3012
  %v3014 = vpop.f32.mrb[0].mxu0
  %v3015 = vpop.f32.mrb[0].mxu0
  %v3016 = vpop.f32.mrb[0].mxu0
  %3017 = vdwg.mxu0
  %s3018 = scalar_lea.vmem %s1, 72
  %v3019 = vld [vmem:[%s3018] sm:$0xff]
  %v3021 = vunpack.c.l.b16 %v3019
  %v3022 = vunpack.c.h.b16 %v3019
  %v3023 = vpack.c.b16 %v3021, %v3021
  %v3024 = vpack.c.b16 %v3022, %v3022
  %v3027 = vsel %vm130, %v3024, 0
  %3029 = vmatprep.subr.bf16.mxu0 0
  %3030 = vmatpush1.bf16.msra.mxu0 %v110
  %3031 = vmatprep.subr.bf16.mxu0 0
  %3032 = vmatpush1.bf16.msra.mxu0 %v111
  %3033 = vmatprep.subr.bf16.mxu0 0
  %3034 = vmatpush1.bf16.msra.mxu0 %v112
  %3035 = vmatprep.subr.bf16.mxu0 0
  %3036 = vmatpush1.bf16.msra.mxu0 %v113
  %3037 = vmatprep.subr.bf16.mxu0 0
  %3038 = vmatpush1.bf16.msra.mxu0 %v114
  %3039 = vmatprep.subr.bf16.mxu0 0
  %3040 = vmatpush1.bf16.msra.mxu0 %v115
  %3041 = vmatprep.subr.bf16.mxu0 0
  %3042 = vmatpush1.bf16.msra.mxu0 %v116
  %3043 = vmatprep.subr.bf16.mxu0 0
  %3044 = vmatpush1.bf16.msra.mxu0 %v117
  %3045 = vmatprep.subr.bf16.mxu0 0
  %3046 = vmatpush1.bf16.msra.mxu0 %v118
  %3047 = vmatprep.subr.bf16.mxu0 0
  %3048 = vmatpush1.bf16.msra.mxu0 %v119
  %3049 = vmatprep.subr.bf16.mxu0 0
  %3050 = vmatpush1.bf16.msra.mxu0 0
  %3051 = vmatprep.subr.bf16.mxu0 0
  %3052 = vmatpush1.bf16.msra.mxu0 0
  %3053 = vmatprep.subr.bf16.mxu0 0
  %3054 = vmatpush1.bf16.msra.mxu0 0
  %3055 = vmatprep.subr.bf16.mxu0 0
  %3056 = vmatpush1.bf16.msra.mxu0 0
  %3057 = vmatprep.subr.bf16.mxu0 0
  %3058 = vmatpush1.bf16.msra.mxu0 0
  %3059 = vmatprep.subr.bf16.mxu0 0
  %3060 = vmatpush1.bf16.msra.mxu0 0
  %3061 = vmatprep.mubr.bf16.mxu0 %v3027
  %3062 = vmatmul.mubr.bf16.gmra.mrb[0].mxu0 %v3023
  %v3063 = vpop.f32.mrb[0].mxu0
  %v3064 = vadd.f32 0.0, %v3063
  %v3065 = vpop.f32.mrb[0].mxu0
  %v3066 = vpop.f32.mrb[0].mxu0
  %v3067 = vpop.f32.mrb[0].mxu0
  %3068 = vdwg.mxu0
  %v3069 = vmax.f32 %v3013, %v3064
  %s3070 = scalar_lea.vmem %s2, 72
  %v3071 = vld [vmem:[%s3070] sm:$0xff]
  %v3073 = vunpack.c.l.b16 %v3071
  %v3074 = vunpack.c.h.b16 %v3071
  %v3075 = vpack.c.b16 %v3073, %v3073
  %v3076 = vpack.c.b16 %v3074, %v3074
  %v3079 = vsel %vm130, %v3076, 0
  %3081 = vmatprep.subr.bf16.mxu0 0
  %3082 = vmatpush1.bf16.msra.mxu0 %v110
  %3083 = vmatprep.subr.bf16.mxu0 0
  %3084 = vmatpush1.bf16.msra.mxu0 %v111
  %3085 = vmatprep.subr.bf16.mxu0 0
  %3086 = vmatpush1.bf16.msra.mxu0 %v112
  %3087 = vmatprep.subr.bf16.mxu0 0
  %3088 = vmatpush1.bf16.msra.mxu0 %v113
  %3089 = vmatprep.subr.bf16.mxu0 0
  %3090 = vmatpush1.bf16.msra.mxu0 %v114
  %3091 = vmatprep.subr.bf16.mxu0 0
  %3092 = vmatpush1.bf16.msra.mxu0 %v115
  %3093 = vmatprep.subr.bf16.mxu0 0
  %3094 = vmatpush1.bf16.msra.mxu0 %v116
  %3095 = vmatprep.subr.bf16.mxu0 0
  %3096 = vmatpush1.bf16.msra.mxu0 %v117
  %3097 = vmatprep.subr.bf16.mxu0 0
  %3098 = vmatpush1.bf16.msra.mxu0 %v118
  %3099 = vmatprep.subr.bf16.mxu0 0
  %3100 = vmatpush1.bf16.msra.mxu0 %v119
  %3101 = vmatprep.subr.bf16.mxu0 0
  %3102 = vmatpush1.bf16.msra.mxu0 0
  %3103 = vmatprep.subr.bf16.mxu0 0
  %3104 = vmatpush1.bf16.msra.mxu0 0
  %3105 = vmatprep.subr.bf16.mxu0 0
  %3106 = vmatpush1.bf16.msra.mxu0 0
  %3107 = vmatprep.subr.bf16.mxu0 0
  %3108 = vmatpush1.bf16.msra.mxu0 0
  %3109 = vmatprep.subr.bf16.mxu0 0
  %3110 = vmatpush1.bf16.msra.mxu0 0
  %3111 = vmatprep.subr.bf16.mxu0 0
  %3112 = vmatpush1.bf16.msra.mxu0 0
  %3113 = vmatprep.mubr.bf16.mxu0 %v3079
  %3114 = vmatmul.mubr.bf16.gmra.mrb[0].mxu0 %v3075
  %v3115 = vpop.f32.mrb[0].mxu0
  %v3116 = vadd.f32 0.0, %v3115
  %v3117 = vpop.f32.mrb[0].mxu0
  %v3118 = vpop.f32.mrb[0].mxu0
  %v3119 = vpop.f32.mrb[0].mxu0
  %3120 = vdwg.mxu0
  %v3121 = vmax.f32 %v3069, %v3116
  %s3122 = scalar_lea.vmem %s3, 72
  %v3123 = vld [vmem:[%s3122] sm:$0xff]
  %v3125 = vunpack.c.l.b16 %v3123
  %v3126 = vunpack.c.h.b16 %v3123
  %v3127 = vpack.c.b16 %v3125, %v3125
  %v3128 = vpack.c.b16 %v3126, %v3126
  %v3131 = vsel %vm130, %v3128, 0
  %3133 = vmatprep.subr.bf16.mxu0 0
  %3134 = vmatpush1.bf16.msra.mxu0 %v110
  %3135 = vmatprep.subr.bf16.mxu0 0
  %3136 = vmatpush1.bf16.msra.mxu0 %v111
  %3137 = vmatprep.subr.bf16.mxu0 0
  %3138 = vmatpush1.bf16.msra.mxu0 %v112
  %3139 = vmatprep.subr.bf16.mxu0 0
  %3140 = vmatpush1.bf16.msra.mxu0 %v113
  %3141 = vmatprep.subr.bf16.mxu0 0
  %3142 = vmatpush1.bf16.msra.mxu0 %v114
  %3143 = vmatprep.subr.bf16.mxu0 0
  %3144 = vmatpush1.bf16.msra.mxu0 %v115
  %3145 = vmatprep.subr.bf16.mxu0 0
  %3146 = vmatpush1.bf16.msra.mxu0 %v116
  %3147 = vmatprep.subr.bf16.mxu0 0
  %3148 = vmatpush1.bf16.msra.mxu0 %v117
  %3149 = vmatprep.subr.bf16.mxu0 0
  %3150 = vmatpush1.bf16.msra.mxu0 %v118
  %3151 = vmatprep.subr.bf16.mxu0 0
  %3152 = vmatpush1.bf16.msra.mxu0 %v119
  %3153 = vmatprep.subr.bf16.mxu0 0
  %3154 = vmatpush1.bf16.msra.mxu0 0
  %3155 = vmatprep.subr.bf16.mxu0 0
  %3156 = vmatpush1.bf16.msra.mxu0 0
  %3157 = vmatprep.subr.bf16.mxu0 0
  %3158 = vmatpush1.bf16.msra.mxu0 0
  %3159 = vmatprep.subr.bf16.mxu0 0
  %3160 = vmatpush1.bf16.msra.mxu0 0
  %3161 = vmatprep.subr.bf16.mxu0 0
  %3162 = vmatpush1.bf16.msra.mxu0 0
  %3163 = vmatprep.subr.bf16.mxu0 0
  %3164 = vmatpush1.bf16.msra.mxu0 0
  %3165 = vmatprep.mubr.bf16.mxu0 %v3131
  %3166 = vmatmul.mubr.bf16.gmra.mrb[0].mxu0 %v3127
  %v3167 = vpop.f32.mrb[0].mxu0
  %v3168 = vadd.f32 0.0, %v3167
  %v3169 = vpop.f32.mrb[0].mxu0
  %v3170 = vpop.f32.mrb[0].mxu0
  %v3171 = vpop.f32.mrb[0].mxu0
  %3172 = vdwg.mxu0
  %v3173 = vmax.f32 %v3121, %v3168
  %v3174 = vadd.f32 %v3173, %v331
  %v3175 = vmax.f32 %v3174, 0.0
  %v3176 = vpack.c.bf16 %v3175, %v3175
  %s3177 = scalar_lea.vmem %s6, 576
  %v3178 = vld [vmem:[%s3177] sm:$0xf]
  %v3179 = vld [vmem:[%s3177 + $0x4] sm:$0xf]
  %v3180 = vld [vmem:[%s3177 + $0x8] sm:$0xf]
  %v3181 = vld [vmem:[%s3177 + $0xc] sm:$0xf]
  %v3182 = vld [vmem:[%s3177 + $0x10] sm:$0xf]
  %v3183 = vld [vmem:[%s3177 + $0x14] sm:$0xf]
  %v3184 = vld [vmem:[%s3177 + $0x18] sm:$0xf]
  %v3185 = vld [vmem:[%s3177 + $0x1c] sm:$0xf]
  %v3186 = vld [vmem:[%s3177 + $0x20] sm:$0xf]
  %v3187 = vld [vmem:[%s3177 + $0x24] sm:$0xf]
  %v3188 = vld [vmem:[%s3177 + $0x28] sm:$0xf]
  %v3189 = vld [vmem:[%s3177 + $0x2c] sm:$0xf]
  %v3190 = vld [vmem:[%s3177 + $0x30] sm:$0xf]
  %v3191 = vld [vmem:[%s3177 + $0x34] sm:$0xf]
  %v3192 = vld [vmem:[%s3177 + $0x38] sm:$0xf]
  %v3193 = vld [vmem:[%s3177 + $0x3c] sm:$0xf]
  %v3210 = vunpack.c.l.b16 %v3178
  %v3211 = vunpack.c.l.b16 %v3179
  %v3212 = vunpack.c.l.b16 %v3180
  %v3213 = vunpack.c.l.b16 %v3181
  %v3214 = vunpack.c.l.b16 %v3182
  %v3215 = vunpack.c.l.b16 %v3183
  %v3216 = vunpack.c.l.b16 %v3184
  %v3217 = vunpack.c.l.b16 %v3185
  %v3218 = vunpack.c.l.b16 %v3186
  %v3219 = vunpack.c.l.b16 %v3187
  %v3220 = vunpack.c.l.b16 %v3188
  %v3221 = vunpack.c.l.b16 %v3189
  %v3222 = vunpack.c.l.b16 %v3190
  %v3223 = vunpack.c.l.b16 %v3191
  %v3224 = vunpack.c.l.b16 %v3192
  %v3225 = vunpack.c.l.b16 %v3193
  %v3226 = vpack.c.b16 %v3211, %v3210
  %v3227 = vpack.c.b16 %v3213, %v3212
  %v3228 = vpack.c.b16 %v3215, %v3214
  %v3229 = vpack.c.b16 %v3217, %v3216
  %v3230 = vpack.c.b16 %v3219, %v3218
  %v3231 = vpack.c.b16 %v3221, %v3220
  %v3232 = vpack.c.b16 %v3223, %v3222
  %v3233 = vpack.c.b16 %v3225, %v3224
  %3242 = vmatprep.subr.bf16.mxu0 0
  %3243 = vmatpush1.bf16.msra.mxu0 %v3226
  %3244 = vmatprep.subr.bf16.mxu0 0
  %3245 = vmatpush1.bf16.msra.mxu0 %v3227
  %3246 = vmatprep.subr.bf16.mxu0 0
  %3247 = vmatpush1.bf16.msra.mxu0 %v3228
  %3248 = vmatprep.subr.bf16.mxu0 0
  %3249 = vmatpush1.bf16.msra.mxu0 %v3229
  %3250 = vmatprep.subr.bf16.mxu0 0
  %3251 = vmatpush1.bf16.msra.mxu0 %v3230
  %3252 = vmatprep.subr.bf16.mxu0 0
  %3253 = vmatpush1.bf16.msra.mxu0 %v3231
  %3254 = vmatprep.subr.bf16.mxu0 0
  %3255 = vmatpush1.bf16.msra.mxu0 %v3232
  %3256 = vmatprep.subr.bf16.mxu0 0
  %3257 = vmatpush1.bf16.msra.mxu0 %v3233
  %3258 = vmatprep.subr.bf16.mxu0 0
  %3259 = vmatpush1.bf16.msra.mxu0 0
  %3260 = vmatprep.subr.bf16.mxu0 0
  %3261 = vmatpush1.bf16.msra.mxu0 0
  %3262 = vmatprep.subr.bf16.mxu0 0
  %3263 = vmatpush1.bf16.msra.mxu0 0
  %3264 = vmatprep.subr.bf16.mxu0 0
  %3265 = vmatpush1.bf16.msra.mxu0 0
  %3266 = vmatprep.subr.bf16.mxu0 0
  %3267 = vmatpush1.bf16.msra.mxu0 0
  %3268 = vmatprep.subr.bf16.mxu0 0
  %3269 = vmatpush1.bf16.msra.mxu0 0
  %3270 = vmatprep.subr.bf16.mxu0 0
  %3271 = vmatpush1.bf16.msra.mxu0 0
  %3272 = vmatprep.subr.bf16.mxu0 0
  %3273 = vmatpush1.bf16.msra.mxu0 0
  %3274 = vmatprep.mubr.bf16.mxu0 0
  %3275 = vmatmul.mubr.bf16.gmra.mrb[0].mxu0 %v3176
  %v3276 = vpop.f32.mrb[0].mxu0
  %v3277 = vadd.f32 0.0, %v3276
  %v3278 = vpop.f32.mrb[0].mxu0
  %v3279 = vpop.f32.mrb[0].mxu0
  %v3280 = vpop.f32.mrb[0].mxu0
  %3281 = vdwg.mxu0
  %v3282 = vadd.f32 %v2966, %v3277
  %s3283 = scalar_lea.vmem %s0, 80
  %v3284 = vld [vmem:[%s3283] sm:$0xff]
  %v3286 = vunpack.c.l.b16 %v3284
  %v3287 = vunpack.c.h.b16 %v3284
  %v3288 = vpack.c.b16 %v3286, %v3286
  %v3289 = vpack.c.b16 %v3287, %v3287
  %v3292 = vsel %vm130, %v3289, 0
  %3294 = vmatprep.subr.bf16.mxu0 0
  %3295 = vmatpush1.bf16.msra.mxu0 %v110
  %3296 = vmatprep.subr.bf16.mxu0 0
  %3297 = vmatpush1.bf16.msra.mxu0 %v111
  %3298 = vmatprep.subr.bf16.mxu0 0
  %3299 = vmatpush1.bf16.msra.mxu0 %v112
  %3300 = vmatprep.subr.bf16.mxu0 0
  %3301 = vmatpush1.bf16.msra.mxu0 %v113
  %3302 = vmatprep.subr.bf16.mxu0 0
  %3303 = vmatpush1.bf16.msra.mxu0 %v114
  %3304 = vmatprep.subr.bf16.mxu0 0
  %3305 = vmatpush1.bf16.msra.mxu0 %v115
  %3306 = vmatprep.subr.bf16.mxu0 0
  %3307 = vmatpush1.bf16.msra.mxu0 %v116
  %3308 = vmatprep.subr.bf16.mxu0 0
  %3309 = vmatpush1.bf16.msra.mxu0 %v117
  %3310 = vmatprep.subr.bf16.mxu0 0
  %3311 = vmatpush1.bf16.msra.mxu0 %v118
  %3312 = vmatprep.subr.bf16.mxu0 0
  %3313 = vmatpush1.bf16.msra.mxu0 %v119
  %3314 = vmatprep.subr.bf16.mxu0 0
  %3315 = vmatpush1.bf16.msra.mxu0 0
  %3316 = vmatprep.subr.bf16.mxu0 0
  %3317 = vmatpush1.bf16.msra.mxu0 0
  %3318 = vmatprep.subr.bf16.mxu0 0
  %3319 = vmatpush1.bf16.msra.mxu0 0
  %3320 = vmatprep.subr.bf16.mxu0 0
  %3321 = vmatpush1.bf16.msra.mxu0 0
  %3322 = vmatprep.subr.bf16.mxu0 0
  %3323 = vmatpush1.bf16.msra.mxu0 0
  %3324 = vmatprep.subr.bf16.mxu0 0
  %3325 = vmatpush1.bf16.msra.mxu0 0
  %3326 = vmatprep.mubr.bf16.mxu0 %v3292
  %3327 = vmatmul.mubr.bf16.gmra.mrb[0].mxu0 %v3288
  %v3328 = vpop.f32.mrb[0].mxu0
  %v3329 = vadd.f32 0.0, %v3328
  %v3330 = vpop.f32.mrb[0].mxu0
  %v3331 = vpop.f32.mrb[0].mxu0
  %v3332 = vpop.f32.mrb[0].mxu0
  %3333 = vdwg.mxu0
  %s3334 = scalar_lea.vmem %s1, 80
  %v3335 = vld [vmem:[%s3334] sm:$0xff]
  %v3337 = vunpack.c.l.b16 %v3335
  %v3338 = vunpack.c.h.b16 %v3335
  %v3339 = vpack.c.b16 %v3337, %v3337
  %v3340 = vpack.c.b16 %v3338, %v3338
  %v3343 = vsel %vm130, %v3340, 0
  %3345 = vmatprep.subr.bf16.mxu0 0
  %3346 = vmatpush1.bf16.msra.mxu0 %v110
  %3347 = vmatprep.subr.bf16.mxu0 0
  %3348 = vmatpush1.bf16.msra.mxu0 %v111
  %3349 = vmatprep.subr.bf16.mxu0 0
  %3350 = vmatpush1.bf16.msra.mxu0 %v112
  %3351 = vmatprep.subr.bf16.mxu0 0
  %3352 = vmatpush1.bf16.msra.mxu0 %v113
  %3353 = vmatprep.subr.bf16.mxu0 0
  %3354 = vmatpush1.bf16.msra.mxu0 %v114
  %3355 = vmatprep.subr.bf16.mxu0 0
  %3356 = vmatpush1.bf16.msra.mxu0 %v115
  %3357 = vmatprep.subr.bf16.mxu0 0
  %3358 = vmatpush1.bf16.msra.mxu0 %v116
  %3359 = vmatprep.subr.bf16.mxu0 0
  %3360 = vmatpush1.bf16.msra.mxu0 %v117
  %3361 = vmatprep.subr.bf16.mxu0 0
  %3362 = vmatpush1.bf16.msra.mxu0 %v118
  %3363 = vmatprep.subr.bf16.mxu0 0
  %3364 = vmatpush1.bf16.msra.mxu0 %v119
  %3365 = vmatprep.subr.bf16.mxu0 0
  %3366 = vmatpush1.bf16.msra.mxu0 0
  %3367 = vmatprep.subr.bf16.mxu0 0
  %3368 = vmatpush1.bf16.msra.mxu0 0
  %3369 = vmatprep.subr.bf16.mxu0 0
  %3370 = vmatpush1.bf16.msra.mxu0 0
  %3371 = vmatprep.subr.bf16.mxu0 0
  %3372 = vmatpush1.bf16.msra.mxu0 0
  %3373 = vmatprep.subr.bf16.mxu0 0
  %3374 = vmatpush1.bf16.msra.mxu0 0
  %3375 = vmatprep.subr.bf16.mxu0 0
  %3376 = vmatpush1.bf16.msra.mxu0 0
  %3377 = vmatprep.mubr.bf16.mxu0 %v3343
  %3378 = vmatmul.mubr.bf16.gmra.mrb[0].mxu0 %v3339
  %v3379 = vpop.f32.mrb[0].mxu0
  %v3380 = vadd.f32 0.0, %v3379
  %v3381 = vpop.f32.mrb[0].mxu0
  %v3382 = vpop.f32.mrb[0].mxu0
  %v3383 = vpop.f32.mrb[0].mxu0
  %3384 = vdwg.mxu0
  %v3385 = vmax.f32 %v3329, %v3380
  %s3386 = scalar_lea.vmem %s2, 80
  %v3387 = vld [vmem:[%s3386] sm:$0xff]
  %v3389 = vunpack.c.l.b16 %v3387
  %v3390 = vunpack.c.h.b16 %v3387
  %v3391 = vpack.c.b16 %v3389, %v3389
  %v3392 = vpack.c.b16 %v3390, %v3390
  %v3395 = vsel %vm130, %v3392, 0
  %3397 = vmatprep.subr.bf16.mxu0 0
  %3398 = vmatpush1.bf16.msra.mxu0 %v110
  %3399 = vmatprep.subr.bf16.mxu0 0
  %3400 = vmatpush1.bf16.msra.mxu0 %v111
  %3401 = vmatprep.subr.bf16.mxu0 0
  %3402 = vmatpush1.bf16.msra.mxu0 %v112
  %3403 = vmatprep.subr.bf16.mxu0 0
  %3404 = vmatpush1.bf16.msra.mxu0 %v113
  %3405 = vmatprep.subr.bf16.mxu0 0
  %3406 = vmatpush1.bf16.msra.mxu0 %v114
  %3407 = vmatprep.subr.bf16.mxu0 0
  %3408 = vmatpush1.bf16.msra.mxu0 %v115
  %3409 = vmatprep.subr.bf16.mxu0 0
  %3410 = vmatpush1.bf16.msra.mxu0 %v116
  %3411 = vmatprep.subr.bf16.mxu0 0
  %3412 = vmatpush1.bf16.msra.mxu0 %v117
  %3413 = vmatprep.subr.bf16.mxu0 0
  %3414 = vmatpush1.bf16.msra.mxu0 %v118
  %3415 = vmatprep.subr.bf16.mxu0 0
  %3416 = vmatpush1.bf16.msra.mxu0 %v119
  %3417 = vmatprep.subr.bf16.mxu0 0
  %3418 = vmatpush1.bf16.msra.mxu0 0
  %3419 = vmatprep.subr.bf16.mxu0 0
  %3420 = vmatpush1.bf16.msra.mxu0 0
  %3421 = vmatprep.subr.bf16.mxu0 0
  %3422 = vmatpush1.bf16.msra.mxu0 0
  %3423 = vmatprep.subr.bf16.mxu0 0
  %3424 = vmatpush1.bf16.msra.mxu0 0
  %3425 = vmatprep.subr.bf16.mxu0 0
  %3426 = vmatpush1.bf16.msra.mxu0 0
  %3427 = vmatprep.subr.bf16.mxu0 0
  %3428 = vmatpush1.bf16.msra.mxu0 0
  %3429 = vmatprep.mubr.bf16.mxu0 %v3395
  %3430 = vmatmul.mubr.bf16.gmra.mrb[0].mxu0 %v3391
  %v3431 = vpop.f32.mrb[0].mxu0
  %v3432 = vadd.f32 0.0, %v3431
  %v3433 = vpop.f32.mrb[0].mxu0
  %v3434 = vpop.f32.mrb[0].mxu0
  %v3435 = vpop.f32.mrb[0].mxu0
  %3436 = vdwg.mxu0
  %v3437 = vmax.f32 %v3385, %v3432
  %s3438 = scalar_lea.vmem %s3, 80
  %v3439 = vld [vmem:[%s3438] sm:$0xff]
  %v3441 = vunpack.c.l.b16 %v3439
  %v3442 = vunpack.c.h.b16 %v3439
  %v3443 = vpack.c.b16 %v3441, %v3441
  %v3444 = vpack.c.b16 %v3442, %v3442
  %v3447 = vsel %vm130, %v3444, 0
  %3449 = vmatprep.subr.bf16.mxu0 0
  %3450 = vmatpush1.bf16.msra.mxu0 %v110
  %3451 = vmatprep.subr.bf16.mxu0 0
  %3452 = vmatpush1.bf16.msra.mxu0 %v111
  %3453 = vmatprep.subr.bf16.mxu0 0
  %3454 = vmatpush1.bf16.msra.mxu0 %v112
  %3455 = vmatprep.subr.bf16.mxu0 0
  %3456 = vmatpush1.bf16.msra.mxu0 %v113
  %3457 = vmatprep.subr.bf16.mxu0 0
  %3458 = vmatpush1.bf16.msra.mxu0 %v114
  %3459 = vmatprep.subr.bf16.mxu0 0
  %3460 = vmatpush1.bf16.msra.mxu0 %v115
  %3461 = vmatprep.subr.bf16.mxu0 0
  %3462 = vmatpush1.bf16.msra.mxu0 %v116
  %3463 = vmatprep.subr.bf16.mxu0 0
  %3464 = vmatpush1.bf16.msra.mxu0 %v117
  %3465 = vmatprep.subr.bf16.mxu0 0
  %3466 = vmatpush1.bf16.msra.mxu0 %v118
  %3467 = vmatprep.subr.bf16.mxu0 0
  %3468 = vmatpush1.bf16.msra.mxu0 %v119
  %3469 = vmatprep.subr.bf16.mxu0 0
  %3470 = vmatpush1.bf16.msra.mxu0 0
  %3471 = vmatprep.subr.bf16.mxu0 0
  %3472 = vmatpush1.bf16.msra.mxu0 0
  %3473 = vmatprep.subr.bf16.mxu0 0
  %3474 = vmatpush1.bf16.msra.mxu0 0
  %3475 = vmatprep.subr.bf16.mxu0 0
  %3476 = vmatpush1.bf16.msra.mxu0 0
  %3477 = vmatprep.subr.bf16.mxu0 0
  %3478 = vmatpush1.bf16.msra.mxu0 0
  %3479 = vmatprep.subr.bf16.mxu0 0
  %3480 = vmatpush1.bf16.msra.mxu0 0
  %3481 = vmatprep.mubr.bf16.mxu0 %v3447
  %3482 = vmatmul.mubr.bf16.gmra.mrb[0].mxu0 %v3443
  %v3483 = vpop.f32.mrb[0].mxu0
  %v3484 = vadd.f32 0.0, %v3483
  %v3485 = vpop.f32.mrb[0].mxu0
  %v3486 = vpop.f32.mrb[0].mxu0
  %v3487 = vpop.f32.mrb[0].mxu0
  %3488 = vdwg.mxu0
  %v3489 = vmax.f32 %v3437, %v3484
  %v3490 = vadd.f32 %v3489, %v331
  %v3491 = vmax.f32 %v3490, 0.0
  %v3492 = vpack.c.bf16 %v3491, %v3491
  %s3493 = scalar_lea.vmem %s6, 640
  %v3494 = vld [vmem:[%s3493] sm:$0xf]
  %v3495 = vld [vmem:[%s3493 + $0x4] sm:$0xf]
  %v3496 = vld [vmem:[%s3493 + $0x8] sm:$0xf]
  %v3497 = vld [vmem:[%s3493 + $0xc] sm:$0xf]
  %v3498 = vld [vmem:[%s3493 + $0x10] sm:$0xf]
  %v3499 = vld [vmem:[%s3493 + $0x14] sm:$0xf]
  %v3500 = vld [vmem:[%s3493 + $0x18] sm:$0xf]
  %v3501 = vld [vmem:[%s3493 + $0x1c] sm:$0xf]
  %v3502 = vld [vmem:[%s3493 + $0x20] sm:$0xf]
  %v3503 = vld [vmem:[%s3493 + $0x24] sm:$0xf]
  %v3504 = vld [vmem:[%s3493 + $0x28] sm:$0xf]
  %v3505 = vld [vmem:[%s3493 + $0x2c] sm:$0xf]
  %v3506 = vld [vmem:[%s3493 + $0x30] sm:$0xf]
  %v3507 = vld [vmem:[%s3493 + $0x34] sm:$0xf]
  %v3508 = vld [vmem:[%s3493 + $0x38] sm:$0xf]
  %v3509 = vld [vmem:[%s3493 + $0x3c] sm:$0xf]
  %v3526 = vunpack.c.l.b16 %v3494
  %v3527 = vunpack.c.l.b16 %v3495
  %v3528 = vunpack.c.l.b16 %v3496
  %v3529 = vunpack.c.l.b16 %v3497
  %v3530 = vunpack.c.l.b16 %v3498
  %v3531 = vunpack.c.l.b16 %v3499
  %v3532 = vunpack.c.l.b16 %v3500
  %v3533 = vunpack.c.l.b16 %v3501
  %v3534 = vunpack.c.l.b16 %v3502
  %v3535 = vunpack.c.l.b16 %v3503
  %v3536 = vunpack.c.l.b16 %v3504
  %v3537 = vunpack.c.l.b16 %v3505
  %v3538 = vunpack.c.l.b16 %v3506
  %v3539 = vunpack.c.l.b16 %v3507
  %v3540 = vunpack.c.l.b16 %v3508
  %v3541 = vunpack.c.l.b16 %v3509
  %v3542 = vpack.c.b16 %v3527, %v3526
  %v3543 = vpack.c.b16 %v3529, %v3528
  %v3544 = vpack.c.b16 %v3531, %v3530
  %v3545 = vpack.c.b16 %v3533, %v3532
  %v3546 = vpack.c.b16 %v3535, %v3534
  %v3547 = vpack.c.b16 %v3537, %v3536
  %v3548 = vpack.c.b16 %v3539, %v3538
  %v3549 = vpack.c.b16 %v3541, %v3540
  %3558 = vmatprep.subr.bf16.mxu0 0
  %3559 = vmatpush1.bf16.msra.mxu0 %v3542
  %3560 = vmatprep.subr.bf16.mxu0 0
  %3561 = vmatpush1.bf16.msra.mxu0 %v3543
  %3562 = vmatprep.subr.bf16.mxu0 0
  %3563 = vmatpush1.bf16.msra.mxu0 %v3544
  %3564 = vmatprep.subr.bf16.mxu0 0
  %3565 = vmatpush1.bf16.msra.mxu0 %v3545
  %3566 = vmatprep.subr.bf16.mxu0 0
  %3567 = vmatpush1.bf16.msra.mxu0 %v3546
  %3568 = vmatprep.subr.bf16.mxu0 0
  %3569 = vmatpush1.bf16.msra.mxu0 %v3547
  %3570 = vmatprep.subr.bf16.mxu0 0
  %3571 = vmatpush1.bf16.msra.mxu0 %v3548
  %3572 = vmatprep.subr.bf16.mxu0 0
  %3573 = vmatpush1.bf16.msra.mxu0 %v3549
  %3574 = vmatprep.subr.bf16.mxu0 0
  %3575 = vmatpush1.bf16.msra.mxu0 0
  %3576 = vmatprep.subr.bf16.mxu0 0
  %3577 = vmatpush1.bf16.msra.mxu0 0
  %3578 = vmatprep.subr.bf16.mxu0 0
  %3579 = vmatpush1.bf16.msra.mxu0 0
  %3580 = vmatprep.subr.bf16.mxu0 0
  %3581 = vmatpush1.bf16.msra.mxu0 0
  %3582 = vmatprep.subr.bf16.mxu0 0
  %3583 = vmatpush1.bf16.msra.mxu0 0
  %3584 = vmatprep.subr.bf16.mxu0 0
  %3585 = vmatpush1.bf16.msra.mxu0 0
  %3586 = vmatprep.subr.bf16.mxu0 0
  %3587 = vmatpush1.bf16.msra.mxu0 0
  %3588 = vmatprep.subr.bf16.mxu0 0
  %3589 = vmatpush1.bf16.msra.mxu0 0
  %3590 = vmatprep.mubr.bf16.mxu0 0
  %3591 = vmatmul.mubr.bf16.gmra.mrb[0].mxu0 %v3492
  %v3592 = vpop.f32.mrb[0].mxu0
  %v3593 = vadd.f32 0.0, %v3592
  %v3594 = vpop.f32.mrb[0].mxu0
  %v3595 = vpop.f32.mrb[0].mxu0
  %v3596 = vpop.f32.mrb[0].mxu0
  %3597 = vdwg.mxu0
  %v3598 = vadd.f32 %v3282, %v3593
  %s3599 = scalar_lea.vmem %s0, 88
  %v3600 = vld [vmem:[%s3599] sm:$0xff]
  %v3602 = vunpack.c.l.b16 %v3600
  %v3603 = vunpack.c.h.b16 %v3600
  %v3604 = vpack.c.b16 %v3602, %v3602
  %v3605 = vpack.c.b16 %v3603, %v3603
  %v3608 = vsel %vm130, %v3605, 0
  %3610 = vmatprep.subr.bf16.mxu0 0
  %3611 = vmatpush1.bf16.msra.mxu0 %v110
  %3612 = vmatprep.subr.bf16.mxu0 0
  %3613 = vmatpush1.bf16.msra.mxu0 %v111
  %3614 = vmatprep.subr.bf16.mxu0 0
  %3615 = vmatpush1.bf16.msra.mxu0 %v112
  %3616 = vmatprep.subr.bf16.mxu0 0
  %3617 = vmatpush1.bf16.msra.mxu0 %v113
  %3618 = vmatprep.subr.bf16.mxu0 0
  %3619 = vmatpush1.bf16.msra.mxu0 %v114
  %3620 = vmatprep.subr.bf16.mxu0 0
  %3621 = vmatpush1.bf16.msra.mxu0 %v115
  %3622 = vmatprep.subr.bf16.mxu0 0
  %3623 = vmatpush1.bf16.msra.mxu0 %v116
  %3624 = vmatprep.subr.bf16.mxu0 0
  %3625 = vmatpush1.bf16.msra.mxu0 %v117
  %3626 = vmatprep.subr.bf16.mxu0 0
  %3627 = vmatpush1.bf16.msra.mxu0 %v118
  %3628 = vmatprep.subr.bf16.mxu0 0
  %3629 = vmatpush1.bf16.msra.mxu0 %v119
  %3630 = vmatprep.subr.bf16.mxu0 0
  %3631 = vmatpush1.bf16.msra.mxu0 0
  %3632 = vmatprep.subr.bf16.mxu0 0
  %3633 = vmatpush1.bf16.msra.mxu0 0
  %3634 = vmatprep.subr.bf16.mxu0 0
  %3635 = vmatpush1.bf16.msra.mxu0 0
  %3636 = vmatprep.subr.bf16.mxu0 0
  %3637 = vmatpush1.bf16.msra.mxu0 0
  %3638 = vmatprep.subr.bf16.mxu0 0
  %3639 = vmatpush1.bf16.msra.mxu0 0
  %3640 = vmatprep.subr.bf16.mxu0 0
  %3641 = vmatpush1.bf16.msra.mxu0 0
  %3642 = vmatprep.mubr.bf16.mxu0 %v3608
  %3643 = vmatmul.mubr.bf16.gmra.mrb[0].mxu0 %v3604
  %v3644 = vpop.f32.mrb[0].mxu0
  %v3645 = vadd.f32 0.0, %v3644
  %v3646 = vpop.f32.mrb[0].mxu0
  %v3647 = vpop.f32.mrb[0].mxu0
  %v3648 = vpop.f32.mrb[0].mxu0
  %3649 = vdwg.mxu0
  %s3650 = scalar_lea.vmem %s1, 88
  %v3651 = vld [vmem:[%s3650] sm:$0xff]
  %v3653 = vunpack.c.l.b16 %v3651
  %v3654 = vunpack.c.h.b16 %v3651
  %v3655 = vpack.c.b16 %v3653, %v3653
  %v3656 = vpack.c.b16 %v3654, %v3654
  %v3659 = vsel %vm130, %v3656, 0
  %3661 = vmatprep.subr.bf16.mxu0 0
  %3662 = vmatpush1.bf16.msra.mxu0 %v110
  %3663 = vmatprep.subr.bf16.mxu0 0
  %3664 = vmatpush1.bf16.msra.mxu0 %v111
  %3665 = vmatprep.subr.bf16.mxu0 0
  %3666 = vmatpush1.bf16.msra.mxu0 %v112
  %3667 = vmatprep.subr.bf16.mxu0 0
  %3668 = vmatpush1.bf16.msra.mxu0 %v113
  %3669 = vmatprep.subr.bf16.mxu0 0
  %3670 = vmatpush1.bf16.msra.mxu0 %v114
  %3671 = vmatprep.subr.bf16.mxu0 0
  %3672 = vmatpush1.bf16.msra.mxu0 %v115
  %3673 = vmatprep.subr.bf16.mxu0 0
  %3674 = vmatpush1.bf16.msra.mxu0 %v116
  %3675 = vmatprep.subr.bf16.mxu0 0
  %3676 = vmatpush1.bf16.msra.mxu0 %v117
  %3677 = vmatprep.subr.bf16.mxu0 0
  %3678 = vmatpush1.bf16.msra.mxu0 %v118
  %3679 = vmatprep.subr.bf16.mxu0 0
  %3680 = vmatpush1.bf16.msra.mxu0 %v119
  %3681 = vmatprep.subr.bf16.mxu0 0
  %3682 = vmatpush1.bf16.msra.mxu0 0
  %3683 = vmatprep.subr.bf16.mxu0 0
  %3684 = vmatpush1.bf16.msra.mxu0 0
  %3685 = vmatprep.subr.bf16.mxu0 0
  %3686 = vmatpush1.bf16.msra.mxu0 0
  %3687 = vmatprep.subr.bf16.mxu0 0
  %3688 = vmatpush1.bf16.msra.mxu0 0
  %3689 = vmatprep.subr.bf16.mxu0 0
  %3690 = vmatpush1.bf16.msra.mxu0 0
  %3691 = vmatprep.subr.bf16.mxu0 0
  %3692 = vmatpush1.bf16.msra.mxu0 0
  %3693 = vmatprep.mubr.bf16.mxu0 %v3659
  %3694 = vmatmul.mubr.bf16.gmra.mrb[0].mxu0 %v3655
  %v3695 = vpop.f32.mrb[0].mxu0
  %v3696 = vadd.f32 0.0, %v3695
  %v3697 = vpop.f32.mrb[0].mxu0
  %v3698 = vpop.f32.mrb[0].mxu0
  %v3699 = vpop.f32.mrb[0].mxu0
  %3700 = vdwg.mxu0
  %v3701 = vmax.f32 %v3645, %v3696
  %s3702 = scalar_lea.vmem %s2, 88
  %v3703 = vld [vmem:[%s3702] sm:$0xff]
  %v3705 = vunpack.c.l.b16 %v3703
  %v3706 = vunpack.c.h.b16 %v3703
  %v3707 = vpack.c.b16 %v3705, %v3705
  %v3708 = vpack.c.b16 %v3706, %v3706
  %v3711 = vsel %vm130, %v3708, 0
  %3713 = vmatprep.subr.bf16.mxu0 0
  %3714 = vmatpush1.bf16.msra.mxu0 %v110
  %3715 = vmatprep.subr.bf16.mxu0 0
  %3716 = vmatpush1.bf16.msra.mxu0 %v111
  %3717 = vmatprep.subr.bf16.mxu0 0
  %3718 = vmatpush1.bf16.msra.mxu0 %v112
  %3719 = vmatprep.subr.bf16.mxu0 0
  %3720 = vmatpush1.bf16.msra.mxu0 %v113
  %3721 = vmatprep.subr.bf16.mxu0 0
  %3722 = vmatpush1.bf16.msra.mxu0 %v114
  %3723 = vmatprep.subr.bf16.mxu0 0
  %3724 = vmatpush1.bf16.msra.mxu0 %v115
  %3725 = vmatprep.subr.bf16.mxu0 0
  %3726 = vmatpush1.bf16.msra.mxu0 %v116
  %3727 = vmatprep.subr.bf16.mxu0 0
  %3728 = vmatpush1.bf16.msra.mxu0 %v117
  %3729 = vmatprep.subr.bf16.mxu0 0
  %3730 = vmatpush1.bf16.msra.mxu0 %v118
  %3731 = vmatprep.subr.bf16.mxu0 0
  %3732 = vmatpush1.bf16.msra.mxu0 %v119
  %3733 = vmatprep.subr.bf16.mxu0 0
  %3734 = vmatpush1.bf16.msra.mxu0 0
  %3735 = vmatprep.subr.bf16.mxu0 0
  %3736 = vmatpush1.bf16.msra.mxu0 0
  %3737 = vmatprep.subr.bf16.mxu0 0
  %3738 = vmatpush1.bf16.msra.mxu0 0
  %3739 = vmatprep.subr.bf16.mxu0 0
  %3740 = vmatpush1.bf16.msra.mxu0 0
  %3741 = vmatprep.subr.bf16.mxu0 0
  %3742 = vmatpush1.bf16.msra.mxu0 0
  %3743 = vmatprep.subr.bf16.mxu0 0
  %3744 = vmatpush1.bf16.msra.mxu0 0
  %3745 = vmatprep.mubr.bf16.mxu0 %v3711
  %3746 = vmatmul.mubr.bf16.gmra.mrb[0].mxu0 %v3707
  %v3747 = vpop.f32.mrb[0].mxu0
  %v3748 = vadd.f32 0.0, %v3747
  %v3749 = vpop.f32.mrb[0].mxu0
  %v3750 = vpop.f32.mrb[0].mxu0
  %v3751 = vpop.f32.mrb[0].mxu0
  %3752 = vdwg.mxu0
  %v3753 = vmax.f32 %v3701, %v3748
  %s3754 = scalar_lea.vmem %s3, 88
  %v3755 = vld [vmem:[%s3754] sm:$0xff]
  %v3757 = vunpack.c.l.b16 %v3755
  %v3758 = vunpack.c.h.b16 %v3755
  %v3759 = vpack.c.b16 %v3757, %v3757
  %v3760 = vpack.c.b16 %v3758, %v3758
  %v3763 = vsel %vm130, %v3760, 0
  %3765 = vmatprep.subr.bf16.mxu0 0
  %3766 = vmatpush1.bf16.msra.mxu0 %v110
  %3767 = vmatprep.subr.bf16.mxu0 0
  %3768 = vmatpush1.bf16.msra.mxu0 %v111
  %3769 = vmatprep.subr.bf16.mxu0 0
  %3770 = vmatpush1.bf16.msra.mxu0 %v112
  %3771 = vmatprep.subr.bf16.mxu0 0
  %3772 = vmatpush1.bf16.msra.mxu0 %v113
  %3773 = vmatprep.subr.bf16.mxu0 0
  %3774 = vmatpush1.bf16.msra.mxu0 %v114
  %3775 = vmatprep.subr.bf16.mxu0 0
  %3776 = vmatpush1.bf16.msra.mxu0 %v115
  %3777 = vmatprep.subr.bf16.mxu0 0
  %3778 = vmatpush1.bf16.msra.mxu0 %v116
  %3779 = vmatprep.subr.bf16.mxu0 0
  %3780 = vmatpush1.bf16.msra.mxu0 %v117
  %3781 = vmatprep.subr.bf16.mxu0 0
  %3782 = vmatpush1.bf16.msra.mxu0 %v118
  %3783 = vmatprep.subr.bf16.mxu0 0
  %3784 = vmatpush1.bf16.msra.mxu0 %v119
  %3785 = vmatprep.subr.bf16.mxu0 0
  %3786 = vmatpush1.bf16.msra.mxu0 0
  %3787 = vmatprep.subr.bf16.mxu0 0
  %3788 = vmatpush1.bf16.msra.mxu0 0
  %3789 = vmatprep.subr.bf16.mxu0 0
  %3790 = vmatpush1.bf16.msra.mxu0 0
  %3791 = vmatprep.subr.bf16.mxu0 0
  %3792 = vmatpush1.bf16.msra.mxu0 0
  %3793 = vmatprep.subr.bf16.mxu0 0
  %3794 = vmatpush1.bf16.msra.mxu0 0
  %3795 = vmatprep.subr.bf16.mxu0 0
  %3796 = vmatpush1.bf16.msra.mxu0 0
  %3797 = vmatprep.mubr.bf16.mxu0 %v3763
  %3798 = vmatmul.mubr.bf16.gmra.mrb[0].mxu0 %v3759
  %v3799 = vpop.f32.mrb[0].mxu0
  %v3800 = vadd.f32 0.0, %v3799
  %v3801 = vpop.f32.mrb[0].mxu0
  %v3802 = vpop.f32.mrb[0].mxu0
  %v3803 = vpop.f32.mrb[0].mxu0
  %3804 = vdwg.mxu0
  %v3805 = vmax.f32 %v3753, %v3800
  %v3806 = vadd.f32 %v3805, %v331
  %v3807 = vmax.f32 %v3806, 0.0
  %v3808 = vpack.c.bf16 %v3807, %v3807
  %s3809 = scalar_lea.vmem %s6, 704
  %v3810 = vld [vmem:[%s3809] sm:$0xf]
  %v3811 = vld [vmem:[%s3809 + $0x4] sm:$0xf]
  %v3812 = vld [vmem:[%s3809 + $0x8] sm:$0xf]
  %v3813 = vld [vmem:[%s3809 + $0xc] sm:$0xf]
  %v3814 = vld [vmem:[%s3809 + $0x10] sm:$0xf]
  %v3815 = vld [vmem:[%s3809 + $0x14] sm:$0xf]
  %v3816 = vld [vmem:[%s3809 + $0x18] sm:$0xf]
  %v3817 = vld [vmem:[%s3809 + $0x1c] sm:$0xf]
  %v3818 = vld [vmem:[%s3809 + $0x20] sm:$0xf]
  %v3819 = vld [vmem:[%s3809 + $0x24] sm:$0xf]
  %v3820 = vld [vmem:[%s3809 + $0x28] sm:$0xf]
  %v3821 = vld [vmem:[%s3809 + $0x2c] sm:$0xf]
  %v3822 = vld [vmem:[%s3809 + $0x30] sm:$0xf]
  %v3823 = vld [vmem:[%s3809 + $0x34] sm:$0xf]
  %v3824 = vld [vmem:[%s3809 + $0x38] sm:$0xf]
  %v3825 = vld [vmem:[%s3809 + $0x3c] sm:$0xf]
  %v3842 = vunpack.c.l.b16 %v3810
  %v3843 = vunpack.c.l.b16 %v3811
  %v3844 = vunpack.c.l.b16 %v3812
  %v3845 = vunpack.c.l.b16 %v3813
  %v3846 = vunpack.c.l.b16 %v3814
  %v3847 = vunpack.c.l.b16 %v3815
  %v3848 = vunpack.c.l.b16 %v3816
  %v3849 = vunpack.c.l.b16 %v3817
  %v3850 = vunpack.c.l.b16 %v3818
  %v3851 = vunpack.c.l.b16 %v3819
  %v3852 = vunpack.c.l.b16 %v3820
  %v3853 = vunpack.c.l.b16 %v3821
  %v3854 = vunpack.c.l.b16 %v3822
  %v3855 = vunpack.c.l.b16 %v3823
  %v3856 = vunpack.c.l.b16 %v3824
  %v3857 = vunpack.c.l.b16 %v3825
  %v3858 = vpack.c.b16 %v3843, %v3842
  %v3859 = vpack.c.b16 %v3845, %v3844
  %v3860 = vpack.c.b16 %v3847, %v3846
  %v3861 = vpack.c.b16 %v3849, %v3848
  %v3862 = vpack.c.b16 %v3851, %v3850
  %v3863 = vpack.c.b16 %v3853, %v3852
  %v3864 = vpack.c.b16 %v3855, %v3854
  %v3865 = vpack.c.b16 %v3857, %v3856
  %3874 = vmatprep.subr.bf16.mxu0 0
  %3875 = vmatpush1.bf16.msra.mxu0 %v3858
  %3876 = vmatprep.subr.bf16.mxu0 0
  %3877 = vmatpush1.bf16.msra.mxu0 %v3859
  %3878 = vmatprep.subr.bf16.mxu0 0
  %3879 = vmatpush1.bf16.msra.mxu0 %v3860
  %3880 = vmatprep.subr.bf16.mxu0 0
  %3881 = vmatpush1.bf16.msra.mxu0 %v3861
  %3882 = vmatprep.subr.bf16.mxu0 0
  %3883 = vmatpush1.bf16.msra.mxu0 %v3862
  %3884 = vmatprep.subr.bf16.mxu0 0
  %3885 = vmatpush1.bf16.msra.mxu0 %v3863
  %3886 = vmatprep.subr.bf16.mxu0 0
  %3887 = vmatpush1.bf16.msra.mxu0 %v3864
  %3888 = vmatprep.subr.bf16.mxu0 0
  %3889 = vmatpush1.bf16.msra.mxu0 %v3865
  %3890 = vmatprep.subr.bf16.mxu0 0
  %3891 = vmatpush1.bf16.msra.mxu0 0
  %3892 = vmatprep.subr.bf16.mxu0 0
  %3893 = vmatpush1.bf16.msra.mxu0 0
  %3894 = vmatprep.subr.bf16.mxu0 0
  %3895 = vmatpush1.bf16.msra.mxu0 0
  %3896 = vmatprep.subr.bf16.mxu0 0
  %3897 = vmatpush1.bf16.msra.mxu0 0
  %3898 = vmatprep.subr.bf16.mxu0 0
  %3899 = vmatpush1.bf16.msra.mxu0 0
  %3900 = vmatprep.subr.bf16.mxu0 0
  %3901 = vmatpush1.bf16.msra.mxu0 0
  %3902 = vmatprep.subr.bf16.mxu0 0
  %3903 = vmatpush1.bf16.msra.mxu0 0
  %3904 = vmatprep.subr.bf16.mxu0 0
  %3905 = vmatpush1.bf16.msra.mxu0 0
  %3906 = vmatprep.mubr.bf16.mxu0 0
  %3907 = vmatmul.mubr.bf16.gmra.mrb[0].mxu0 %v3808
  %v3908 = vpop.f32.mrb[0].mxu0
  %v3909 = vadd.f32 0.0, %v3908
  %v3910 = vpop.f32.mrb[0].mxu0
  %v3911 = vpop.f32.mrb[0].mxu0
  %v3912 = vpop.f32.mrb[0].mxu0
  %3913 = vdwg.mxu0
  %v3914 = vadd.f32 %v3598, %v3909
  %s3915 = scalar_lea.vmem %s0, 96
  %v3916 = vld [vmem:[%s3915] sm:$0xff]
  %v3918 = vunpack.c.l.b16 %v3916
  %v3919 = vunpack.c.h.b16 %v3916
  %v3920 = vpack.c.b16 %v3918, %v3918
  %v3921 = vpack.c.b16 %v3919, %v3919
  %v3924 = vsel %vm130, %v3921, 0
  %3926 = vmatprep.subr.bf16.mxu0 0
  %3927 = vmatpush1.bf16.msra.mxu0 %v110
  %3928 = vmatprep.subr.bf16.mxu0 0
  %3929 = vmatpush1.bf16.msra.mxu0 %v111
  %3930 = vmatprep.subr.bf16.mxu0 0
  %3931 = vmatpush1.bf16.msra.mxu0 %v112
  %3932 = vmatprep.subr.bf16.mxu0 0
  %3933 = vmatpush1.bf16.msra.mxu0 %v113
  %3934 = vmatprep.subr.bf16.mxu0 0
  %3935 = vmatpush1.bf16.msra.mxu0 %v114
  %3936 = vmatprep.subr.bf16.mxu0 0
  %3937 = vmatpush1.bf16.msra.mxu0 %v115
  %3938 = vmatprep.subr.bf16.mxu0 0
  %3939 = vmatpush1.bf16.msra.mxu0 %v116
  %3940 = vmatprep.subr.bf16.mxu0 0
  %3941 = vmatpush1.bf16.msra.mxu0 %v117
  %3942 = vmatprep.subr.bf16.mxu0 0
  %3943 = vmatpush1.bf16.msra.mxu0 %v118
  %3944 = vmatprep.subr.bf16.mxu0 0
  %3945 = vmatpush1.bf16.msra.mxu0 %v119
  %3946 = vmatprep.subr.bf16.mxu0 0
  %3947 = vmatpush1.bf16.msra.mxu0 0
  %3948 = vmatprep.subr.bf16.mxu0 0
  %3949 = vmatpush1.bf16.msra.mxu0 0
  %3950 = vmatprep.subr.bf16.mxu0 0
  %3951 = vmatpush1.bf16.msra.mxu0 0
  %3952 = vmatprep.subr.bf16.mxu0 0
  %3953 = vmatpush1.bf16.msra.mxu0 0
  %3954 = vmatprep.subr.bf16.mxu0 0
  %3955 = vmatpush1.bf16.msra.mxu0 0
  %3956 = vmatprep.subr.bf16.mxu0 0
  %3957 = vmatpush1.bf16.msra.mxu0 0
  %3958 = vmatprep.mubr.bf16.mxu0 %v3924
  %3959 = vmatmul.mubr.bf16.gmra.mrb[0].mxu0 %v3920
  %v3960 = vpop.f32.mrb[0].mxu0
  %v3961 = vadd.f32 0.0, %v3960
  %v3962 = vpop.f32.mrb[0].mxu0
  %v3963 = vpop.f32.mrb[0].mxu0
  %v3964 = vpop.f32.mrb[0].mxu0
  %3965 = vdwg.mxu0
  %s3966 = scalar_lea.vmem %s1, 96
  %v3967 = vld [vmem:[%s3966] sm:$0xff]
  %v3969 = vunpack.c.l.b16 %v3967
  %v3970 = vunpack.c.h.b16 %v3967
  %v3971 = vpack.c.b16 %v3969, %v3969
  %v3972 = vpack.c.b16 %v3970, %v3970
  %v3975 = vsel %vm130, %v3972, 0
  %3977 = vmatprep.subr.bf16.mxu0 0
  %3978 = vmatpush1.bf16.msra.mxu0 %v110
  %3979 = vmatprep.subr.bf16.mxu0 0
  %3980 = vmatpush1.bf16.msra.mxu0 %v111
  %3981 = vmatprep.subr.bf16.mxu0 0
  %3982 = vmatpush1.bf16.msra.mxu0 %v112
  %3983 = vmatprep.subr.bf16.mxu0 0
  %3984 = vmatpush1.bf16.msra.mxu0 %v113
  %3985 = vmatprep.subr.bf16.mxu0 0
  %3986 = vmatpush1.bf16.msra.mxu0 %v114
  %3987 = vmatprep.subr.bf16.mxu0 0
  %3988 = vmatpush1.bf16.msra.mxu0 %v115
  %3989 = vmatprep.subr.bf16.mxu0 0
  %3990 = vmatpush1.bf16.msra.mxu0 %v116
  %3991 = vmatprep.subr.bf16.mxu0 0
  %3992 = vmatpush1.bf16.msra.mxu0 %v117
  %3993 = vmatprep.subr.bf16.mxu0 0
  %3994 = vmatpush1.bf16.msra.mxu0 %v118
  %3995 = vmatprep.subr.bf16.mxu0 0
  %3996 = vmatpush1.bf16.msra.mxu0 %v119
  %3997 = vmatprep.subr.bf16.mxu0 0
  %3998 = vmatpush1.bf16.msra.mxu0 0
  %3999 = vmatprep.subr.bf16.mxu0 0
  %4000 = vmatpush1.bf16.msra.mxu0 0
  %4001 = vmatprep.subr.bf16.mxu0 0
  %4002 = vmatpush1.bf16.msra.mxu0 0
  %4003 = vmatprep.subr.bf16.mxu0 0
  %4004 = vmatpush1.bf16.msra.mxu0 0
  %4005 = vmatprep.subr.bf16.mxu0 0
  %4006 = vmatpush1.bf16.msra.mxu0 0
  %4007 = vmatprep.subr.bf16.mxu0 0
  %4008 = vmatpush1.bf16.msra.mxu0 0
  %4009 = vmatprep.mubr.bf16.mxu0 %v3975
  %4010 = vmatmul.mubr.bf16.gmra.mrb[0].mxu0 %v3971
  %v4011 = vpop.f32.mrb[0].mxu0
  %v4012 = vadd.f32 0.0, %v4011
  %v4013 = vpop.f32.mrb[0].mxu0
  %v4014 = vpop.f32.mrb[0].mxu0
  %v4015 = vpop.f32.mrb[0].mxu0
  %4016 = vdwg.mxu0
  %v4017 = vmax.f32 %v3961, %v4012
  %s4018 = scalar_lea.vmem %s2, 96
  %v4019 = vld [vmem:[%s4018] sm:$0xff]
  %v4021 = vunpack.c.l.b16 %v4019
  %v4022 = vunpack.c.h.b16 %v4019
  %v4023 = vpack.c.b16 %v4021, %v4021
  %v4024 = vpack.c.b16 %v4022, %v4022
  %v4027 = vsel %vm130, %v4024, 0
  %4029 = vmatprep.subr.bf16.mxu0 0
  %4030 = vmatpush1.bf16.msra.mxu0 %v110
  %4031 = vmatprep.subr.bf16.mxu0 0
  %4032 = vmatpush1.bf16.msra.mxu0 %v111
  %4033 = vmatprep.subr.bf16.mxu0 0
  %4034 = vmatpush1.bf16.msra.mxu0 %v112
  %4035 = vmatprep.subr.bf16.mxu0 0
  %4036 = vmatpush1.bf16.msra.mxu0 %v113
  %4037 = vmatprep.subr.bf16.mxu0 0
  %4038 = vmatpush1.bf16.msra.mxu0 %v114
  %4039 = vmatprep.subr.bf16.mxu0 0
  %4040 = vmatpush1.bf16.msra.mxu0 %v115
  %4041 = vmatprep.subr.bf16.mxu0 0
  %4042 = vmatpush1.bf16.msra.mxu0 %v116
  %4043 = vmatprep.subr.bf16.mxu0 0
  %4044 = vmatpush1.bf16.msra.mxu0 %v117
  %4045 = vmatprep.subr.bf16.mxu0 0
  %4046 = vmatpush1.bf16.msra.mxu0 %v118
  %4047 = vmatprep.subr.bf16.mxu0 0
  %4048 = vmatpush1.bf16.msra.mxu0 %v119
  %4049 = vmatprep.subr.bf16.mxu0 0
  %4050 = vmatpush1.bf16.msra.mxu0 0
  %4051 = vmatprep.subr.bf16.mxu0 0
  %4052 = vmatpush1.bf16.msra.mxu0 0
  %4053 = vmatprep.subr.bf16.mxu0 0
  %4054 = vmatpush1.bf16.msra.mxu0 0
  %4055 = vmatprep.subr.bf16.mxu0 0
  %4056 = vmatpush1.bf16.msra.mxu0 0
  %4057 = vmatprep.subr.bf16.mxu0 0
  %4058 = vmatpush1.bf16.msra.mxu0 0
  %4059 = vmatprep.subr.bf16.mxu0 0
  %4060 = vmatpush1.bf16.msra.mxu0 0
  %4061 = vmatprep.mubr.bf16.mxu0 %v4027
  %4062 = vmatmul.mubr.bf16.gmra.mrb[0].mxu0 %v4023
  %v4063 = vpop.f32.mrb[0].mxu0
  %v4064 = vadd.f32 0.0, %v4063
  %v4065 = vpop.f32.mrb[0].mxu0
  %v4066 = vpop.f32.mrb[0].mxu0
  %v4067 = vpop.f32.mrb[0].mxu0
  %4068 = vdwg.mxu0
  %v4069 = vmax.f32 %v4017, %v4064
  %s4070 = scalar_lea.vmem %s3, 96
  %v4071 = vld [vmem:[%s4070] sm:$0xff]
  %v4073 = vunpack.c.l.b16 %v4071
  %v4074 = vunpack.c.h.b16 %v4071
  %v4075 = vpack.c.b16 %v4073, %v4073
  %v4076 = vpack.c.b16 %v4074, %v4074
  %v4079 = vsel %vm130, %v4076, 0
  %4081 = vmatprep.subr.bf16.mxu0 0
  %4082 = vmatpush1.bf16.msra.mxu0 %v110
  %4083 = vmatprep.subr.bf16.mxu0 0
  %4084 = vmatpush1.bf16.msra.mxu0 %v111
  %4085 = vmatprep.subr.bf16.mxu0 0
  %4086 = vmatpush1.bf16.msra.mxu0 %v112
  %4087 = vmatprep.subr.bf16.mxu0 0
  %4088 = vmatpush1.bf16.msra.mxu0 %v113
  %4089 = vmatprep.subr.bf16.mxu0 0
  %4090 = vmatpush1.bf16.msra.mxu0 %v114
  %4091 = vmatprep.subr.bf16.mxu0 0
  %4092 = vmatpush1.bf16.msra.mxu0 %v115
  %4093 = vmatprep.subr.bf16.mxu0 0
  %4094 = vmatpush1.bf16.msra.mxu0 %v116
  %4095 = vmatprep.subr.bf16.mxu0 0
  %4096 = vmatpush1.bf16.msra.mxu0 %v117
  %4097 = vmatprep.subr.bf16.mxu0 0
  %4098 = vmatpush1.bf16.msra.mxu0 %v118
  %4099 = vmatprep.subr.bf16.mxu0 0
  %4100 = vmatpush1.bf16.msra.mxu0 %v119
  %4101 = vmatprep.subr.bf16.mxu0 0
  %4102 = vmatpush1.bf16.msra.mxu0 0
  %4103 = vmatprep.subr.bf16.mxu0 0
  %4104 = vmatpush1.bf16.msra.mxu0 0
  %4105 = vmatprep.subr.bf16.mxu0 0
  %4106 = vmatpush1.bf16.msra.mxu0 0
  %4107 = vmatprep.subr.bf16.mxu0 0
  %4108 = vmatpush1.bf16.msra.mxu0 0
  %4109 = vmatprep.subr.bf16.mxu0 0
  %4110 = vmatpush1.bf16.msra.mxu0 0
  %4111 = vmatprep.subr.bf16.mxu0 0
  %4112 = vmatpush1.bf16.msra.mxu0 0
  %4113 = vmatprep.mubr.bf16.mxu0 %v4079
  %4114 = vmatmul.mubr.bf16.gmra.mrb[0].mxu0 %v4075
  %v4115 = vpop.f32.mrb[0].mxu0
  %v4116 = vadd.f32 0.0, %v4115
  %v4117 = vpop.f32.mrb[0].mxu0
  %v4118 = vpop.f32.mrb[0].mxu0
  %v4119 = vpop.f32.mrb[0].mxu0
  %4120 = vdwg.mxu0
  %v4121 = vmax.f32 %v4069, %v4116
  %v4122 = vadd.f32 %v4121, %v331
  %v4123 = vmax.f32 %v4122, 0.0
  %v4124 = vpack.c.bf16 %v4123, %v4123
  %s4125 = scalar_lea.vmem %s6, 768
  %v4126 = vld [vmem:[%s4125] sm:$0xf]
  %v4127 = vld [vmem:[%s4125 + $0x4] sm:$0xf]
  %v4128 = vld [vmem:[%s4125 + $0x8] sm:$0xf]
  %v4129 = vld [vmem:[%s4125 + $0xc] sm:$0xf]
  %v4130 = vld [vmem:[%s4125 + $0x10] sm:$0xf]
  %v4131 = vld [vmem:[%s4125 + $0x14] sm:$0xf]
  %v4132 = vld [vmem:[%s4125 + $0x18] sm:$0xf]
  %v4133 = vld [vmem:[%s4125 + $0x1c] sm:$0xf]
  %v4134 = vld [vmem:[%s4125 + $0x20] sm:$0xf]
  %v4135 = vld [vmem:[%s4125 + $0x24] sm:$0xf]
  %v4136 = vld [vmem:[%s4125 + $0x28] sm:$0xf]
  %v4137 = vld [vmem:[%s4125 + $0x2c] sm:$0xf]
  %v4138 = vld [vmem:[%s4125 + $0x30] sm:$0xf]
  %v4139 = vld [vmem:[%s4125 + $0x34] sm:$0xf]
  %v4140 = vld [vmem:[%s4125 + $0x38] sm:$0xf]
  %v4141 = vld [vmem:[%s4125 + $0x3c] sm:$0xf]
  %v4158 = vunpack.c.l.b16 %v4126
  %v4159 = vunpack.c.l.b16 %v4127
  %v4160 = vunpack.c.l.b16 %v4128
  %v4161 = vunpack.c.l.b16 %v4129
  %v4162 = vunpack.c.l.b16 %v4130
  %v4163 = vunpack.c.l.b16 %v4131
  %v4164 = vunpack.c.l.b16 %v4132
  %v4165 = vunpack.c.l.b16 %v4133
  %v4166 = vunpack.c.l.b16 %v4134
  %v4167 = vunpack.c.l.b16 %v4135
  %v4168 = vunpack.c.l.b16 %v4136
  %v4169 = vunpack.c.l.b16 %v4137
  %v4170 = vunpack.c.l.b16 %v4138
  %v4171 = vunpack.c.l.b16 %v4139
  %v4172 = vunpack.c.l.b16 %v4140
  %v4173 = vunpack.c.l.b16 %v4141
  %v4174 = vpack.c.b16 %v4159, %v4158
  %v4175 = vpack.c.b16 %v4161, %v4160
  %v4176 = vpack.c.b16 %v4163, %v4162
  %v4177 = vpack.c.b16 %v4165, %v4164
  %v4178 = vpack.c.b16 %v4167, %v4166
  %v4179 = vpack.c.b16 %v4169, %v4168
  %v4180 = vpack.c.b16 %v4171, %v4170
  %v4181 = vpack.c.b16 %v4173, %v4172
  %4190 = vmatprep.subr.bf16.mxu0 0
  %4191 = vmatpush1.bf16.msra.mxu0 %v4174
  %4192 = vmatprep.subr.bf16.mxu0 0
  %4193 = vmatpush1.bf16.msra.mxu0 %v4175
  %4194 = vmatprep.subr.bf16.mxu0 0
  %4195 = vmatpush1.bf16.msra.mxu0 %v4176
  %4196 = vmatprep.subr.bf16.mxu0 0
  %4197 = vmatpush1.bf16.msra.mxu0 %v4177
  %4198 = vmatprep.subr.bf16.mxu0 0
  %4199 = vmatpush1.bf16.msra.mxu0 %v4178
  %4200 = vmatprep.subr.bf16.mxu0 0
  %4201 = vmatpush1.bf16.msra.mxu0 %v4179
  %4202 = vmatprep.subr.bf16.mxu0 0
  %4203 = vmatpush1.bf16.msra.mxu0 %v4180
  %4204 = vmatprep.subr.bf16.mxu0 0
  %4205 = vmatpush1.bf16.msra.mxu0 %v4181
  %4206 = vmatprep.subr.bf16.mxu0 0
  %4207 = vmatpush1.bf16.msra.mxu0 0
  %4208 = vmatprep.subr.bf16.mxu0 0
  %4209 = vmatpush1.bf16.msra.mxu0 0
  %4210 = vmatprep.subr.bf16.mxu0 0
  %4211 = vmatpush1.bf16.msra.mxu0 0
  %4212 = vmatprep.subr.bf16.mxu0 0
  %4213 = vmatpush1.bf16.msra.mxu0 0
  %4214 = vmatprep.subr.bf16.mxu0 0
  %4215 = vmatpush1.bf16.msra.mxu0 0
  %4216 = vmatprep.subr.bf16.mxu0 0
  %4217 = vmatpush1.bf16.msra.mxu0 0
  %4218 = vmatprep.subr.bf16.mxu0 0
  %4219 = vmatpush1.bf16.msra.mxu0 0
  %4220 = vmatprep.subr.bf16.mxu0 0
  %4221 = vmatpush1.bf16.msra.mxu0 0
  %4222 = vmatprep.mubr.bf16.mxu0 0
  %4223 = vmatmul.mubr.bf16.gmra.mrb[0].mxu0 %v4124
  %v4224 = vpop.f32.mrb[0].mxu0
  %v4225 = vadd.f32 0.0, %v4224
  %v4226 = vpop.f32.mrb[0].mxu0
  %v4227 = vpop.f32.mrb[0].mxu0
  %v4228 = vpop.f32.mrb[0].mxu0
  %4229 = vdwg.mxu0
  %v4230 = vadd.f32 %v3914, %v4225
  %s4231 = scalar_lea.vmem %s0, 104
  %v4232 = vld [vmem:[%s4231] sm:$0xff]
  %v4234 = vunpack.c.l.b16 %v4232
  %v4235 = vunpack.c.h.b16 %v4232
  %v4236 = vpack.c.b16 %v4234, %v4234
  %v4237 = vpack.c.b16 %v4235, %v4235
  %v4240 = vsel %vm130, %v4237, 0
  %4242 = vmatprep.subr.bf16.mxu0 0
  %4243 = vmatpush1.bf16.msra.mxu0 %v110
  %4244 = vmatprep.subr.bf16.mxu0 0
  %4245 = vmatpush1.bf16.msra.mxu0 %v111
  %4246 = vmatprep.subr.bf16.mxu0 0
  %4247 = vmatpush1.bf16.msra.mxu0 %v112
  %4248 = vmatprep.subr.bf16.mxu0 0
  %4249 = vmatpush1.bf16.msra.mxu0 %v113
  %4250 = vmatprep.subr.bf16.mxu0 0
  %4251 = vmatpush1.bf16.msra.mxu0 %v114
  %4252 = vmatprep.subr.bf16.mxu0 0
  %4253 = vmatpush1.bf16.msra.mxu0 %v115
  %4254 = vmatprep.subr.bf16.mxu0 0
  %4255 = vmatpush1.bf16.msra.mxu0 %v116
  %4256 = vmatprep.subr.bf16.mxu0 0
  %4257 = vmatpush1.bf16.msra.mxu0 %v117
  %4258 = vmatprep.subr.bf16.mxu0 0
  %4259 = vmatpush1.bf16.msra.mxu0 %v118
  %4260 = vmatprep.subr.bf16.mxu0 0
  %4261 = vmatpush1.bf16.msra.mxu0 %v119
  %4262 = vmatprep.subr.bf16.mxu0 0
  %4263 = vmatpush1.bf16.msra.mxu0 0
  %4264 = vmatprep.subr.bf16.mxu0 0
  %4265 = vmatpush1.bf16.msra.mxu0 0
  %4266 = vmatprep.subr.bf16.mxu0 0
  %4267 = vmatpush1.bf16.msra.mxu0 0
  %4268 = vmatprep.subr.bf16.mxu0 0
  %4269 = vmatpush1.bf16.msra.mxu0 0
  %4270 = vmatprep.subr.bf16.mxu0 0
  %4271 = vmatpush1.bf16.msra.mxu0 0
  %4272 = vmatprep.subr.bf16.mxu0 0
  %4273 = vmatpush1.bf16.msra.mxu0 0
  %4274 = vmatprep.mubr.bf16.mxu0 %v4240
  %4275 = vmatmul.mubr.bf16.gmra.mrb[0].mxu0 %v4236
  %v4276 = vpop.f32.mrb[0].mxu0
  %v4277 = vadd.f32 0.0, %v4276
  %v4278 = vpop.f32.mrb[0].mxu0
  %v4279 = vpop.f32.mrb[0].mxu0
  %v4280 = vpop.f32.mrb[0].mxu0
  %4281 = vdwg.mxu0
  %s4282 = scalar_lea.vmem %s1, 104
  %v4283 = vld [vmem:[%s4282] sm:$0xff]
  %v4285 = vunpack.c.l.b16 %v4283
  %v4286 = vunpack.c.h.b16 %v4283
  %v4287 = vpack.c.b16 %v4285, %v4285
  %v4288 = vpack.c.b16 %v4286, %v4286
  %v4291 = vsel %vm130, %v4288, 0
  %4293 = vmatprep.subr.bf16.mxu0 0
  %4294 = vmatpush1.bf16.msra.mxu0 %v110
  %4295 = vmatprep.subr.bf16.mxu0 0
  %4296 = vmatpush1.bf16.msra.mxu0 %v111
  %4297 = vmatprep.subr.bf16.mxu0 0
  %4298 = vmatpush1.bf16.msra.mxu0 %v112
  %4299 = vmatprep.subr.bf16.mxu0 0
  %4300 = vmatpush1.bf16.msra.mxu0 %v113
  %4301 = vmatprep.subr.bf16.mxu0 0
  %4302 = vmatpush1.bf16.msra.mxu0 %v114
  %4303 = vmatprep.subr.bf16.mxu0 0
  %4304 = vmatpush1.bf16.msra.mxu0 %v115
  %4305 = vmatprep.subr.bf16.mxu0 0
  %4306 = vmatpush1.bf16.msra.mxu0 %v116
  %4307 = vmatprep.subr.bf16.mxu0 0
  %4308 = vmatpush1.bf16.msra.mxu0 %v117
  %4309 = vmatprep.subr.bf16.mxu0 0
  %4310 = vmatpush1.bf16.msra.mxu0 %v118
  %4311 = vmatprep.subr.bf16.mxu0 0
  %4312 = vmatpush1.bf16.msra.mxu0 %v119
  %4313 = vmatprep.subr.bf16.mxu0 0
  %4314 = vmatpush1.bf16.msra.mxu0 0
  %4315 = vmatprep.subr.bf16.mxu0 0
  %4316 = vmatpush1.bf16.msra.mxu0 0
  %4317 = vmatprep.subr.bf16.mxu0 0
  %4318 = vmatpush1.bf16.msra.mxu0 0
  %4319 = vmatprep.subr.bf16.mxu0 0
  %4320 = vmatpush1.bf16.msra.mxu0 0
  %4321 = vmatprep.subr.bf16.mxu0 0
  %4322 = vmatpush1.bf16.msra.mxu0 0
  %4323 = vmatprep.subr.bf16.mxu0 0
  %4324 = vmatpush1.bf16.msra.mxu0 0
  %4325 = vmatprep.mubr.bf16.mxu0 %v4291
  %4326 = vmatmul.mubr.bf16.gmra.mrb[0].mxu0 %v4287
  %v4327 = vpop.f32.mrb[0].mxu0
  %v4328 = vadd.f32 0.0, %v4327
  %v4329 = vpop.f32.mrb[0].mxu0
  %v4330 = vpop.f32.mrb[0].mxu0
  %v4331 = vpop.f32.mrb[0].mxu0
  %4332 = vdwg.mxu0
  %v4333 = vmax.f32 %v4277, %v4328
  %s4334 = scalar_lea.vmem %s2, 104
  %v4335 = vld [vmem:[%s4334] sm:$0xff]
  %v4337 = vunpack.c.l.b16 %v4335
  %v4338 = vunpack.c.h.b16 %v4335
  %v4339 = vpack.c.b16 %v4337, %v4337
  %v4340 = vpack.c.b16 %v4338, %v4338
  %v4343 = vsel %vm130, %v4340, 0
  %4345 = vmatprep.subr.bf16.mxu0 0
  %4346 = vmatpush1.bf16.msra.mxu0 %v110
  %4347 = vmatprep.subr.bf16.mxu0 0
  %4348 = vmatpush1.bf16.msra.mxu0 %v111
  %4349 = vmatprep.subr.bf16.mxu0 0
  %4350 = vmatpush1.bf16.msra.mxu0 %v112
  %4351 = vmatprep.subr.bf16.mxu0 0
  %4352 = vmatpush1.bf16.msra.mxu0 %v113
  %4353 = vmatprep.subr.bf16.mxu0 0
  %4354 = vmatpush1.bf16.msra.mxu0 %v114
  %4355 = vmatprep.subr.bf16.mxu0 0
  %4356 = vmatpush1.bf16.msra.mxu0 %v115
  %4357 = vmatprep.subr.bf16.mxu0 0
  %4358 = vmatpush1.bf16.msra.mxu0 %v116
  %4359 = vmatprep.subr.bf16.mxu0 0
  %4360 = vmatpush1.bf16.msra.mxu0 %v117
  %4361 = vmatprep.subr.bf16.mxu0 0
  %4362 = vmatpush1.bf16.msra.mxu0 %v118
  %4363 = vmatprep.subr.bf16.mxu0 0
  %4364 = vmatpush1.bf16.msra.mxu0 %v119
  %4365 = vmatprep.subr.bf16.mxu0 0
  %4366 = vmatpush1.bf16.msra.mxu0 0
  %4367 = vmatprep.subr.bf16.mxu0 0
  %4368 = vmatpush1.bf16.msra.mxu0 0
  %4369 = vmatprep.subr.bf16.mxu0 0
  %4370 = vmatpush1.bf16.msra.mxu0 0
  %4371 = vmatprep.subr.bf16.mxu0 0
  %4372 = vmatpush1.bf16.msra.mxu0 0
  %4373 = vmatprep.subr.bf16.mxu0 0
  %4374 = vmatpush1.bf16.msra.mxu0 0
  %4375 = vmatprep.subr.bf16.mxu0 0
  %4376 = vmatpush1.bf16.msra.mxu0 0
  %4377 = vmatprep.mubr.bf16.mxu0 %v4343
  %4378 = vmatmul.mubr.bf16.gmra.mrb[0].mxu0 %v4339
  %v4379 = vpop.f32.mrb[0].mxu0
  %v4380 = vadd.f32 0.0, %v4379
  %v4381 = vpop.f32.mrb[0].mxu0
  %v4382 = vpop.f32.mrb[0].mxu0
  %v4383 = vpop.f32.mrb[0].mxu0
  %4384 = vdwg.mxu0
  %v4385 = vmax.f32 %v4333, %v4380
  %s4386 = scalar_lea.vmem %s3, 104
  %v4387 = vld [vmem:[%s4386] sm:$0xff]
  %v4389 = vunpack.c.l.b16 %v4387
  %v4390 = vunpack.c.h.b16 %v4387
  %v4391 = vpack.c.b16 %v4389, %v4389
  %v4392 = vpack.c.b16 %v4390, %v4390
  %v4395 = vsel %vm130, %v4392, 0
  %4397 = vmatprep.subr.bf16.mxu0 0
  %4398 = vmatpush1.bf16.msra.mxu0 %v110
  %4399 = vmatprep.subr.bf16.mxu0 0
  %4400 = vmatpush1.bf16.msra.mxu0 %v111
  %4401 = vmatprep.subr.bf16.mxu0 0
  %4402 = vmatpush1.bf16.msra.mxu0 %v112
  %4403 = vmatprep.subr.bf16.mxu0 0
  %4404 = vmatpush1.bf16.msra.mxu0 %v113
  %4405 = vmatprep.subr.bf16.mxu0 0
  %4406 = vmatpush1.bf16.msra.mxu0 %v114
  %4407 = vmatprep.subr.bf16.mxu0 0
  %4408 = vmatpush1.bf16.msra.mxu0 %v115
  %4409 = vmatprep.subr.bf16.mxu0 0
  %4410 = vmatpush1.bf16.msra.mxu0 %v116
  %4411 = vmatprep.subr.bf16.mxu0 0
  %4412 = vmatpush1.bf16.msra.mxu0 %v117
  %4413 = vmatprep.subr.bf16.mxu0 0
  %4414 = vmatpush1.bf16.msra.mxu0 %v118
  %4415 = vmatprep.subr.bf16.mxu0 0
  %4416 = vmatpush1.bf16.msra.mxu0 %v119
  %4417 = vmatprep.subr.bf16.mxu0 0
  %4418 = vmatpush1.bf16.msra.mxu0 0
  %4419 = vmatprep.subr.bf16.mxu0 0
  %4420 = vmatpush1.bf16.msra.mxu0 0
  %4421 = vmatprep.subr.bf16.mxu0 0
  %4422 = vmatpush1.bf16.msra.mxu0 0
  %4423 = vmatprep.subr.bf16.mxu0 0
  %4424 = vmatpush1.bf16.msra.mxu0 0
  %4425 = vmatprep.subr.bf16.mxu0 0
  %4426 = vmatpush1.bf16.msra.mxu0 0
  %4427 = vmatprep.subr.bf16.mxu0 0
  %4428 = vmatpush1.bf16.msra.mxu0 0
  %4429 = vmatprep.mubr.bf16.mxu0 %v4395
  %4430 = vmatmul.mubr.bf16.gmra.mrb[0].mxu0 %v4391
  %v4431 = vpop.f32.mrb[0].mxu0
  %v4432 = vadd.f32 0.0, %v4431
  %v4433 = vpop.f32.mrb[0].mxu0
  %v4434 = vpop.f32.mrb[0].mxu0
  %v4435 = vpop.f32.mrb[0].mxu0
  %4436 = vdwg.mxu0
  %v4437 = vmax.f32 %v4385, %v4432
  %v4438 = vadd.f32 %v4437, %v331
  %v4439 = vmax.f32 %v4438, 0.0
  %v4440 = vpack.c.bf16 %v4439, %v4439
  %s4441 = scalar_lea.vmem %s6, 832
  %v4442 = vld [vmem:[%s4441] sm:$0xf]
  %v4443 = vld [vmem:[%s4441 + $0x4] sm:$0xf]
  %v4444 = vld [vmem:[%s4441 + $0x8] sm:$0xf]
  %v4445 = vld [vmem:[%s4441 + $0xc] sm:$0xf]
  %v4446 = vld [vmem:[%s4441 + $0x10] sm:$0xf]
  %v4447 = vld [vmem:[%s4441 + $0x14] sm:$0xf]
  %v4448 = vld [vmem:[%s4441 + $0x18] sm:$0xf]
  %v4449 = vld [vmem:[%s4441 + $0x1c] sm:$0xf]
  %v4450 = vld [vmem:[%s4441 + $0x20] sm:$0xf]
  %v4451 = vld [vmem:[%s4441 + $0x24] sm:$0xf]
  %v4452 = vld [vmem:[%s4441 + $0x28] sm:$0xf]
  %v4453 = vld [vmem:[%s4441 + $0x2c] sm:$0xf]
  %v4454 = vld [vmem:[%s4441 + $0x30] sm:$0xf]
  %v4455 = vld [vmem:[%s4441 + $0x34] sm:$0xf]
  %v4456 = vld [vmem:[%s4441 + $0x38] sm:$0xf]
  %v4457 = vld [vmem:[%s4441 + $0x3c] sm:$0xf]
  %v4474 = vunpack.c.l.b16 %v4442
  %v4475 = vunpack.c.l.b16 %v4443
  %v4476 = vunpack.c.l.b16 %v4444
  %v4477 = vunpack.c.l.b16 %v4445
  %v4478 = vunpack.c.l.b16 %v4446
  %v4479 = vunpack.c.l.b16 %v4447
  %v4480 = vunpack.c.l.b16 %v4448
  %v4481 = vunpack.c.l.b16 %v4449
  %v4482 = vunpack.c.l.b16 %v4450
  %v4483 = vunpack.c.l.b16 %v4451
  %v4484 = vunpack.c.l.b16 %v4452
  %v4485 = vunpack.c.l.b16 %v4453
  %v4486 = vunpack.c.l.b16 %v4454
  %v4487 = vunpack.c.l.b16 %v4455
  %v4488 = vunpack.c.l.b16 %v4456
  %v4489 = vunpack.c.l.b16 %v4457
  %v4490 = vpack.c.b16 %v4475, %v4474
  %v4491 = vpack.c.b16 %v4477, %v4476
  %v4492 = vpack.c.b16 %v4479, %v4478
  %v4493 = vpack.c.b16 %v4481, %v4480
  %v4494 = vpack.c.b16 %v4483, %v4482
  %v4495 = vpack.c.b16 %v4485, %v4484
  %v4496 = vpack.c.b16 %v4487, %v4486
  %v4497 = vpack.c.b16 %v4489, %v4488
  %4506 = vmatprep.subr.bf16.mxu0 0
  %4507 = vmatpush1.bf16.msra.mxu0 %v4490
  %4508 = vmatprep.subr.bf16.mxu0 0
  %4509 = vmatpush1.bf16.msra.mxu0 %v4491
  %4510 = vmatprep.subr.bf16.mxu0 0
  %4511 = vmatpush1.bf16.msra.mxu0 %v4492
  %4512 = vmatprep.subr.bf16.mxu0 0
  %4513 = vmatpush1.bf16.msra.mxu0 %v4493
  %4514 = vmatprep.subr.bf16.mxu0 0
  %4515 = vmatpush1.bf16.msra.mxu0 %v4494
  %4516 = vmatprep.subr.bf16.mxu0 0
  %4517 = vmatpush1.bf16.msra.mxu0 %v4495
  %4518 = vmatprep.subr.bf16.mxu0 0
  %4519 = vmatpush1.bf16.msra.mxu0 %v4496
  %4520 = vmatprep.subr.bf16.mxu0 0
  %4521 = vmatpush1.bf16.msra.mxu0 %v4497
  %4522 = vmatprep.subr.bf16.mxu0 0
  %4523 = vmatpush1.bf16.msra.mxu0 0
  %4524 = vmatprep.subr.bf16.mxu0 0
  %4525 = vmatpush1.bf16.msra.mxu0 0
  %4526 = vmatprep.subr.bf16.mxu0 0
  %4527 = vmatpush1.bf16.msra.mxu0 0
  %4528 = vmatprep.subr.bf16.mxu0 0
  %4529 = vmatpush1.bf16.msra.mxu0 0
  %4530 = vmatprep.subr.bf16.mxu0 0
  %4531 = vmatpush1.bf16.msra.mxu0 0
  %4532 = vmatprep.subr.bf16.mxu0 0
  %4533 = vmatpush1.bf16.msra.mxu0 0
  %4534 = vmatprep.subr.bf16.mxu0 0
  %4535 = vmatpush1.bf16.msra.mxu0 0
  %4536 = vmatprep.subr.bf16.mxu0 0
  %4537 = vmatpush1.bf16.msra.mxu0 0
  %4538 = vmatprep.mubr.bf16.mxu0 0
  %4539 = vmatmul.mubr.bf16.gmra.mrb[0].mxu0 %v4440
  %v4540 = vpop.f32.mrb[0].mxu0
  %v4541 = vadd.f32 0.0, %v4540
  %v4542 = vpop.f32.mrb[0].mxu0
  %v4543 = vpop.f32.mrb[0].mxu0
  %v4544 = vpop.f32.mrb[0].mxu0
  %4545 = vdwg.mxu0
  %v4546 = vadd.f32 %v4230, %v4541
  %s4547 = scalar_lea.vmem %s0, 112
  %v4548 = vld [vmem:[%s4547] sm:$0xff]
  %v4550 = vunpack.c.l.b16 %v4548
  %v4551 = vunpack.c.h.b16 %v4548
  %v4552 = vpack.c.b16 %v4550, %v4550
  %v4553 = vpack.c.b16 %v4551, %v4551
  %v4556 = vsel %vm130, %v4553, 0
  %4558 = vmatprep.subr.bf16.mxu0 0
  %4559 = vmatpush1.bf16.msra.mxu0 %v110
  %4560 = vmatprep.subr.bf16.mxu0 0
  %4561 = vmatpush1.bf16.msra.mxu0 %v111
  %4562 = vmatprep.subr.bf16.mxu0 0
  %4563 = vmatpush1.bf16.msra.mxu0 %v112
  %4564 = vmatprep.subr.bf16.mxu0 0
  %4565 = vmatpush1.bf16.msra.mxu0 %v113
  %4566 = vmatprep.subr.bf16.mxu0 0
  %4567 = vmatpush1.bf16.msra.mxu0 %v114
  %4568 = vmatprep.subr.bf16.mxu0 0
  %4569 = vmatpush1.bf16.msra.mxu0 %v115
  %4570 = vmatprep.subr.bf16.mxu0 0
  %4571 = vmatpush1.bf16.msra.mxu0 %v116
  %4572 = vmatprep.subr.bf16.mxu0 0
  %4573 = vmatpush1.bf16.msra.mxu0 %v117
  %4574 = vmatprep.subr.bf16.mxu0 0
  %4575 = vmatpush1.bf16.msra.mxu0 %v118
  %4576 = vmatprep.subr.bf16.mxu0 0
  %4577 = vmatpush1.bf16.msra.mxu0 %v119
  %4578 = vmatprep.subr.bf16.mxu0 0
  %4579 = vmatpush1.bf16.msra.mxu0 0
  %4580 = vmatprep.subr.bf16.mxu0 0
  %4581 = vmatpush1.bf16.msra.mxu0 0
  %4582 = vmatprep.subr.bf16.mxu0 0
  %4583 = vmatpush1.bf16.msra.mxu0 0
  %4584 = vmatprep.subr.bf16.mxu0 0
  %4585 = vmatpush1.bf16.msra.mxu0 0
  %4586 = vmatprep.subr.bf16.mxu0 0
  %4587 = vmatpush1.bf16.msra.mxu0 0
  %4588 = vmatprep.subr.bf16.mxu0 0
  %4589 = vmatpush1.bf16.msra.mxu0 0
  %4590 = vmatprep.mubr.bf16.mxu0 %v4556
  %4591 = vmatmul.mubr.bf16.gmra.mrb[0].mxu0 %v4552
  %v4592 = vpop.f32.mrb[0].mxu0
  %v4593 = vadd.f32 0.0, %v4592
  %v4594 = vpop.f32.mrb[0].mxu0
  %v4595 = vpop.f32.mrb[0].mxu0
  %v4596 = vpop.f32.mrb[0].mxu0
  %4597 = vdwg.mxu0
  %s4598 = scalar_lea.vmem %s1, 112
  %v4599 = vld [vmem:[%s4598] sm:$0xff]
  %v4601 = vunpack.c.l.b16 %v4599
  %v4602 = vunpack.c.h.b16 %v4599
  %v4603 = vpack.c.b16 %v4601, %v4601
  %v4604 = vpack.c.b16 %v4602, %v4602
  %v4607 = vsel %vm130, %v4604, 0
  %4609 = vmatprep.subr.bf16.mxu0 0
  %4610 = vmatpush1.bf16.msra.mxu0 %v110
  %4611 = vmatprep.subr.bf16.mxu0 0
  %4612 = vmatpush1.bf16.msra.mxu0 %v111
  %4613 = vmatprep.subr.bf16.mxu0 0
  %4614 = vmatpush1.bf16.msra.mxu0 %v112
  %4615 = vmatprep.subr.bf16.mxu0 0
  %4616 = vmatpush1.bf16.msra.mxu0 %v113
  %4617 = vmatprep.subr.bf16.mxu0 0
  %4618 = vmatpush1.bf16.msra.mxu0 %v114
  %4619 = vmatprep.subr.bf16.mxu0 0
  %4620 = vmatpush1.bf16.msra.mxu0 %v115
  %4621 = vmatprep.subr.bf16.mxu0 0
  %4622 = vmatpush1.bf16.msra.mxu0 %v116
  %4623 = vmatprep.subr.bf16.mxu0 0
  %4624 = vmatpush1.bf16.msra.mxu0 %v117
  %4625 = vmatprep.subr.bf16.mxu0 0
  %4626 = vmatpush1.bf16.msra.mxu0 %v118
  %4627 = vmatprep.subr.bf16.mxu0 0
  %4628 = vmatpush1.bf16.msra.mxu0 %v119
  %4629 = vmatprep.subr.bf16.mxu0 0
  %4630 = vmatpush1.bf16.msra.mxu0 0
  %4631 = vmatprep.subr.bf16.mxu0 0
  %4632 = vmatpush1.bf16.msra.mxu0 0
  %4633 = vmatprep.subr.bf16.mxu0 0
  %4634 = vmatpush1.bf16.msra.mxu0 0
  %4635 = vmatprep.subr.bf16.mxu0 0
  %4636 = vmatpush1.bf16.msra.mxu0 0
  %4637 = vmatprep.subr.bf16.mxu0 0
  %4638 = vmatpush1.bf16.msra.mxu0 0
  %4639 = vmatprep.subr.bf16.mxu0 0
  %4640 = vmatpush1.bf16.msra.mxu0 0
  %4641 = vmatprep.mubr.bf16.mxu0 %v4607
  %4642 = vmatmul.mubr.bf16.gmra.mrb[0].mxu0 %v4603
  %v4643 = vpop.f32.mrb[0].mxu0
  %v4644 = vadd.f32 0.0, %v4643
  %v4645 = vpop.f32.mrb[0].mxu0
  %v4646 = vpop.f32.mrb[0].mxu0
  %v4647 = vpop.f32.mrb[0].mxu0
  %4648 = vdwg.mxu0
  %v4649 = vmax.f32 %v4593, %v4644
  %s4650 = scalar_lea.vmem %s2, 112
  %v4651 = vld [vmem:[%s4650] sm:$0xff]
  %v4653 = vunpack.c.l.b16 %v4651
  %v4654 = vunpack.c.h.b16 %v4651
  %v4655 = vpack.c.b16 %v4653, %v4653
  %v4656 = vpack.c.b16 %v4654, %v4654
  %v4659 = vsel %vm130, %v4656, 0
  %4661 = vmatprep.subr.bf16.mxu0 0
  %4662 = vmatpush1.bf16.msra.mxu0 %v110
  %4663 = vmatprep.subr.bf16.mxu0 0
  %4664 = vmatpush1.bf16.msra.mxu0 %v111
  %4665 = vmatprep.subr.bf16.mxu0 0
  %4666 = vmatpush1.bf16.msra.mxu0 %v112
  %4667 = vmatprep.subr.bf16.mxu0 0
  %4668 = vmatpush1.bf16.msra.mxu0 %v113
  %4669 = vmatprep.subr.bf16.mxu0 0
  %4670 = vmatpush1.bf16.msra.mxu0 %v114
  %4671 = vmatprep.subr.bf16.mxu0 0
  %4672 = vmatpush1.bf16.msra.mxu0 %v115
  %4673 = vmatprep.subr.bf16.mxu0 0
  %4674 = vmatpush1.bf16.msra.mxu0 %v116
  %4675 = vmatprep.subr.bf16.mxu0 0
  %4676 = vmatpush1.bf16.msra.mxu0 %v117
  %4677 = vmatprep.subr.bf16.mxu0 0
  %4678 = vmatpush1.bf16.msra.mxu0 %v118
  %4679 = vmatprep.subr.bf16.mxu0 0
  %4680 = vmatpush1.bf16.msra.mxu0 %v119
  %4681 = vmatprep.subr.bf16.mxu0 0
  %4682 = vmatpush1.bf16.msra.mxu0 0
  %4683 = vmatprep.subr.bf16.mxu0 0
  %4684 = vmatpush1.bf16.msra.mxu0 0
  %4685 = vmatprep.subr.bf16.mxu0 0
  %4686 = vmatpush1.bf16.msra.mxu0 0
  %4687 = vmatprep.subr.bf16.mxu0 0
  %4688 = vmatpush1.bf16.msra.mxu0 0
  %4689 = vmatprep.subr.bf16.mxu0 0
  %4690 = vmatpush1.bf16.msra.mxu0 0
  %4691 = vmatprep.subr.bf16.mxu0 0
  %4692 = vmatpush1.bf16.msra.mxu0 0
  %4693 = vmatprep.mubr.bf16.mxu0 %v4659
  %4694 = vmatmul.mubr.bf16.gmra.mrb[0].mxu0 %v4655
  %v4695 = vpop.f32.mrb[0].mxu0
  %v4696 = vadd.f32 0.0, %v4695
  %v4697 = vpop.f32.mrb[0].mxu0
  %v4698 = vpop.f32.mrb[0].mxu0
  %v4699 = vpop.f32.mrb[0].mxu0
  %4700 = vdwg.mxu0
  %v4701 = vmax.f32 %v4649, %v4696
  %s4702 = scalar_lea.vmem %s3, 112
  %v4703 = vld [vmem:[%s4702] sm:$0xff]
  %v4705 = vunpack.c.l.b16 %v4703
  %v4706 = vunpack.c.h.b16 %v4703
  %v4707 = vpack.c.b16 %v4705, %v4705
  %v4708 = vpack.c.b16 %v4706, %v4706
  %v4711 = vsel %vm130, %v4708, 0
  %4713 = vmatprep.subr.bf16.mxu0 0
  %4714 = vmatpush1.bf16.msra.mxu0 %v110
  %4715 = vmatprep.subr.bf16.mxu0 0
  %4716 = vmatpush1.bf16.msra.mxu0 %v111
  %4717 = vmatprep.subr.bf16.mxu0 0
  %4718 = vmatpush1.bf16.msra.mxu0 %v112
  %4719 = vmatprep.subr.bf16.mxu0 0
  %4720 = vmatpush1.bf16.msra.mxu0 %v113
  %4721 = vmatprep.subr.bf16.mxu0 0
  %4722 = vmatpush1.bf16.msra.mxu0 %v114
  %4723 = vmatprep.subr.bf16.mxu0 0
  %4724 = vmatpush1.bf16.msra.mxu0 %v115
  %4725 = vmatprep.subr.bf16.mxu0 0
  %4726 = vmatpush1.bf16.msra.mxu0 %v116
  %4727 = vmatprep.subr.bf16.mxu0 0
  %4728 = vmatpush1.bf16.msra.mxu0 %v117
  %4729 = vmatprep.subr.bf16.mxu0 0
  %4730 = vmatpush1.bf16.msra.mxu0 %v118
  %4731 = vmatprep.subr.bf16.mxu0 0
  %4732 = vmatpush1.bf16.msra.mxu0 %v119
  %4733 = vmatprep.subr.bf16.mxu0 0
  %4734 = vmatpush1.bf16.msra.mxu0 0
  %4735 = vmatprep.subr.bf16.mxu0 0
  %4736 = vmatpush1.bf16.msra.mxu0 0
  %4737 = vmatprep.subr.bf16.mxu0 0
  %4738 = vmatpush1.bf16.msra.mxu0 0
  %4739 = vmatprep.subr.bf16.mxu0 0
  %4740 = vmatpush1.bf16.msra.mxu0 0
  %4741 = vmatprep.subr.bf16.mxu0 0
  %4742 = vmatpush1.bf16.msra.mxu0 0
  %4743 = vmatprep.subr.bf16.mxu0 0
  %4744 = vmatpush1.bf16.msra.mxu0 0
  %4745 = vmatprep.mubr.bf16.mxu0 %v4711
  %4746 = vmatmul.mubr.bf16.gmra.mrb[0].mxu0 %v4707
  %v4747 = vpop.f32.mrb[0].mxu0
  %v4748 = vadd.f32 0.0, %v4747
  %v4749 = vpop.f32.mrb[0].mxu0
  %v4750 = vpop.f32.mrb[0].mxu0
  %v4751 = vpop.f32.mrb[0].mxu0
  %4752 = vdwg.mxu0
  %v4753 = vmax.f32 %v4701, %v4748
  %v4754 = vadd.f32 %v4753, %v331
  %v4755 = vmax.f32 %v4754, 0.0
  %v4756 = vpack.c.bf16 %v4755, %v4755
  %s4757 = scalar_lea.vmem %s6, 896
  %v4758 = vld [vmem:[%s4757] sm:$0xf]
  %v4759 = vld [vmem:[%s4757 + $0x4] sm:$0xf]
  %v4760 = vld [vmem:[%s4757 + $0x8] sm:$0xf]
  %v4761 = vld [vmem:[%s4757 + $0xc] sm:$0xf]
  %v4762 = vld [vmem:[%s4757 + $0x10] sm:$0xf]
  %v4763 = vld [vmem:[%s4757 + $0x14] sm:$0xf]
  %v4764 = vld [vmem:[%s4757 + $0x18] sm:$0xf]
  %v4765 = vld [vmem:[%s4757 + $0x1c] sm:$0xf]
  %v4766 = vld [vmem:[%s4757 + $0x20] sm:$0xf]
  %v4767 = vld [vmem:[%s4757 + $0x24] sm:$0xf]
  %v4768 = vld [vmem:[%s4757 + $0x28] sm:$0xf]
  %v4769 = vld [vmem:[%s4757 + $0x2c] sm:$0xf]
  %v4770 = vld [vmem:[%s4757 + $0x30] sm:$0xf]
  %v4771 = vld [vmem:[%s4757 + $0x34] sm:$0xf]
  %v4772 = vld [vmem:[%s4757 + $0x38] sm:$0xf]
  %v4773 = vld [vmem:[%s4757 + $0x3c] sm:$0xf]
  %v4790 = vunpack.c.l.b16 %v4758
  %v4791 = vunpack.c.l.b16 %v4759
  %v4792 = vunpack.c.l.b16 %v4760
  %v4793 = vunpack.c.l.b16 %v4761
  %v4794 = vunpack.c.l.b16 %v4762
  %v4795 = vunpack.c.l.b16 %v4763
  %v4796 = vunpack.c.l.b16 %v4764
  %v4797 = vunpack.c.l.b16 %v4765
  %v4798 = vunpack.c.l.b16 %v4766
  %v4799 = vunpack.c.l.b16 %v4767
  %v4800 = vunpack.c.l.b16 %v4768
  %v4801 = vunpack.c.l.b16 %v4769
  %v4802 = vunpack.c.l.b16 %v4770
  %v4803 = vunpack.c.l.b16 %v4771
  %v4804 = vunpack.c.l.b16 %v4772
  %v4805 = vunpack.c.l.b16 %v4773
  %v4806 = vpack.c.b16 %v4791, %v4790
  %v4807 = vpack.c.b16 %v4793, %v4792
  %v4808 = vpack.c.b16 %v4795, %v4794
  %v4809 = vpack.c.b16 %v4797, %v4796
  %v4810 = vpack.c.b16 %v4799, %v4798
  %v4811 = vpack.c.b16 %v4801, %v4800
  %v4812 = vpack.c.b16 %v4803, %v4802
  %v4813 = vpack.c.b16 %v4805, %v4804
  %4822 = vmatprep.subr.bf16.mxu0 0
  %4823 = vmatpush1.bf16.msra.mxu0 %v4806
  %4824 = vmatprep.subr.bf16.mxu0 0
  %4825 = vmatpush1.bf16.msra.mxu0 %v4807
  %4826 = vmatprep.subr.bf16.mxu0 0
  %4827 = vmatpush1.bf16.msra.mxu0 %v4808
  %4828 = vmatprep.subr.bf16.mxu0 0
  %4829 = vmatpush1.bf16.msra.mxu0 %v4809
  %4830 = vmatprep.subr.bf16.mxu0 0
  %4831 = vmatpush1.bf16.msra.mxu0 %v4810
  %4832 = vmatprep.subr.bf16.mxu0 0
  %4833 = vmatpush1.bf16.msra.mxu0 %v4811
  %4834 = vmatprep.subr.bf16.mxu0 0
  %4835 = vmatpush1.bf16.msra.mxu0 %v4812
  %4836 = vmatprep.subr.bf16.mxu0 0
  %4837 = vmatpush1.bf16.msra.mxu0 %v4813
  %4838 = vmatprep.subr.bf16.mxu0 0
  %4839 = vmatpush1.bf16.msra.mxu0 0
  %4840 = vmatprep.subr.bf16.mxu0 0
  %4841 = vmatpush1.bf16.msra.mxu0 0
  %4842 = vmatprep.subr.bf16.mxu0 0
  %4843 = vmatpush1.bf16.msra.mxu0 0
  %4844 = vmatprep.subr.bf16.mxu0 0
  %4845 = vmatpush1.bf16.msra.mxu0 0
  %4846 = vmatprep.subr.bf16.mxu0 0
  %4847 = vmatpush1.bf16.msra.mxu0 0
  %4848 = vmatprep.subr.bf16.mxu0 0
  %4849 = vmatpush1.bf16.msra.mxu0 0
  %4850 = vmatprep.subr.bf16.mxu0 0
  %4851 = vmatpush1.bf16.msra.mxu0 0
  %4852 = vmatprep.subr.bf16.mxu0 0
  %4853 = vmatpush1.bf16.msra.mxu0 0
  %4854 = vmatprep.mubr.bf16.mxu0 0
  %4855 = vmatmul.mubr.bf16.gmra.mrb[0].mxu0 %v4756
  %v4856 = vpop.f32.mrb[0].mxu0
  %v4857 = vadd.f32 0.0, %v4856
  %v4858 = vpop.f32.mrb[0].mxu0
  %v4859 = vpop.f32.mrb[0].mxu0
  %v4860 = vpop.f32.mrb[0].mxu0
  %4861 = vdwg.mxu0
  %v4862 = vadd.f32 %v4546, %v4857
  %s4863 = scalar_lea.vmem %s0, 120
  %v4864 = vld [vmem:[%s4863] sm:$0xff]
  %v4866 = vunpack.c.l.b16 %v4864
  %v4867 = vunpack.c.h.b16 %v4864
  %v4868 = vpack.c.b16 %v4866, %v4866
  %v4869 = vpack.c.b16 %v4867, %v4867
  %v4872 = vsel %vm130, %v4869, 0
  %4874 = vmatprep.subr.bf16.mxu0 0
  %4875 = vmatpush1.bf16.msra.mxu0 %v110
  %4876 = vmatprep.subr.bf16.mxu0 0
  %4877 = vmatpush1.bf16.msra.mxu0 %v111
  %4878 = vmatprep.subr.bf16.mxu0 0
  %4879 = vmatpush1.bf16.msra.mxu0 %v112
  %4880 = vmatprep.subr.bf16.mxu0 0
  %4881 = vmatpush1.bf16.msra.mxu0 %v113
  %4882 = vmatprep.subr.bf16.mxu0 0
  %4883 = vmatpush1.bf16.msra.mxu0 %v114
  %4884 = vmatprep.subr.bf16.mxu0 0
  %4885 = vmatpush1.bf16.msra.mxu0 %v115
  %4886 = vmatprep.subr.bf16.mxu0 0
  %4887 = vmatpush1.bf16.msra.mxu0 %v116
  %4888 = vmatprep.subr.bf16.mxu0 0
  %4889 = vmatpush1.bf16.msra.mxu0 %v117
  %4890 = vmatprep.subr.bf16.mxu0 0
  %4891 = vmatpush1.bf16.msra.mxu0 %v118
  %4892 = vmatprep.subr.bf16.mxu0 0
  %4893 = vmatpush1.bf16.msra.mxu0 %v119
  %4894 = vmatprep.subr.bf16.mxu0 0
  %4895 = vmatpush1.bf16.msra.mxu0 0
  %4896 = vmatprep.subr.bf16.mxu0 0
  %4897 = vmatpush1.bf16.msra.mxu0 0
  %4898 = vmatprep.subr.bf16.mxu0 0
  %4899 = vmatpush1.bf16.msra.mxu0 0
  %4900 = vmatprep.subr.bf16.mxu0 0
  %4901 = vmatpush1.bf16.msra.mxu0 0
  %4902 = vmatprep.subr.bf16.mxu0 0
  %4903 = vmatpush1.bf16.msra.mxu0 0
  %4904 = vmatprep.subr.bf16.mxu0 0
  %4905 = vmatpush1.bf16.msra.mxu0 0
  %4906 = vmatprep.mubr.bf16.mxu0 %v4872
  %4907 = vmatmul.mubr.bf16.gmra.mrb[0].mxu0 %v4868
  %v4908 = vpop.f32.mrb[0].mxu0
  %v4909 = vadd.f32 0.0, %v4908
  %v4910 = vpop.f32.mrb[0].mxu0
  %v4911 = vpop.f32.mrb[0].mxu0
  %v4912 = vpop.f32.mrb[0].mxu0
  %4913 = vdwg.mxu0
  %s4914 = scalar_lea.vmem %s1, 120
  %v4915 = vld [vmem:[%s4914] sm:$0xff]
  %v4917 = vunpack.c.l.b16 %v4915
  %v4918 = vunpack.c.h.b16 %v4915
  %v4919 = vpack.c.b16 %v4917, %v4917
  %v4920 = vpack.c.b16 %v4918, %v4918
  %v4923 = vsel %vm130, %v4920, 0
  %4925 = vmatprep.subr.bf16.mxu0 0
  %4926 = vmatpush1.bf16.msra.mxu0 %v110
  %4927 = vmatprep.subr.bf16.mxu0 0
  %4928 = vmatpush1.bf16.msra.mxu0 %v111
  %4929 = vmatprep.subr.bf16.mxu0 0
  %4930 = vmatpush1.bf16.msra.mxu0 %v112
  %4931 = vmatprep.subr.bf16.mxu0 0
  %4932 = vmatpush1.bf16.msra.mxu0 %v113
  %4933 = vmatprep.subr.bf16.mxu0 0
  %4934 = vmatpush1.bf16.msra.mxu0 %v114
  %4935 = vmatprep.subr.bf16.mxu0 0
  %4936 = vmatpush1.bf16.msra.mxu0 %v115
  %4937 = vmatprep.subr.bf16.mxu0 0
  %4938 = vmatpush1.bf16.msra.mxu0 %v116
  %4939 = vmatprep.subr.bf16.mxu0 0
  %4940 = vmatpush1.bf16.msra.mxu0 %v117
  %4941 = vmatprep.subr.bf16.mxu0 0
  %4942 = vmatpush1.bf16.msra.mxu0 %v118
  %4943 = vmatprep.subr.bf16.mxu0 0
  %4944 = vmatpush1.bf16.msra.mxu0 %v119
  %4945 = vmatprep.subr.bf16.mxu0 0
  %4946 = vmatpush1.bf16.msra.mxu0 0
  %4947 = vmatprep.subr.bf16.mxu0 0
  %4948 = vmatpush1.bf16.msra.mxu0 0
  %4949 = vmatprep.subr.bf16.mxu0 0
  %4950 = vmatpush1.bf16.msra.mxu0 0
  %4951 = vmatprep.subr.bf16.mxu0 0
  %4952 = vmatpush1.bf16.msra.mxu0 0
  %4953 = vmatprep.subr.bf16.mxu0 0
  %4954 = vmatpush1.bf16.msra.mxu0 0
  %4955 = vmatprep.subr.bf16.mxu0 0
  %4956 = vmatpush1.bf16.msra.mxu0 0
  %4957 = vmatprep.mubr.bf16.mxu0 %v4923
  %4958 = vmatmul.mubr.bf16.gmra.mrb[0].mxu0 %v4919
  %v4959 = vpop.f32.mrb[0].mxu0
  %v4960 = vadd.f32 0.0, %v4959
  %v4961 = vpop.f32.mrb[0].mxu0
  %v4962 = vpop.f32.mrb[0].mxu0
  %v4963 = vpop.f32.mrb[0].mxu0
  %4964 = vdwg.mxu0
  %v4965 = vmax.f32 %v4909, %v4960
  %s4966 = scalar_lea.vmem %s2, 120
  %v4967 = vld [vmem:[%s4966] sm:$0xff]
  %v4969 = vunpack.c.l.b16 %v4967
  %v4970 = vunpack.c.h.b16 %v4967
  %v4971 = vpack.c.b16 %v4969, %v4969
  %v4972 = vpack.c.b16 %v4970, %v4970
  %v4975 = vsel %vm130, %v4972, 0
  %4977 = vmatprep.subr.bf16.mxu0 0
  %4978 = vmatpush1.bf16.msra.mxu0 %v110
  %4979 = vmatprep.subr.bf16.mxu0 0
  %4980 = vmatpush1.bf16.msra.mxu0 %v111
  %4981 = vmatprep.subr.bf16.mxu0 0
  %4982 = vmatpush1.bf16.msra.mxu0 %v112
  %4983 = vmatprep.subr.bf16.mxu0 0
  %4984 = vmatpush1.bf16.msra.mxu0 %v113
  %4985 = vmatprep.subr.bf16.mxu0 0
  %4986 = vmatpush1.bf16.msra.mxu0 %v114
  %4987 = vmatprep.subr.bf16.mxu0 0
  %4988 = vmatpush1.bf16.msra.mxu0 %v115
  %4989 = vmatprep.subr.bf16.mxu0 0
  %4990 = vmatpush1.bf16.msra.mxu0 %v116
  %4991 = vmatprep.subr.bf16.mxu0 0
  %4992 = vmatpush1.bf16.msra.mxu0 %v117
  %4993 = vmatprep.subr.bf16.mxu0 0
  %4994 = vmatpush1.bf16.msra.mxu0 %v118
  %4995 = vmatprep.subr.bf16.mxu0 0
  %4996 = vmatpush1.bf16.msra.mxu0 %v119
  %4997 = vmatprep.subr.bf16.mxu0 0
  %4998 = vmatpush1.bf16.msra.mxu0 0
  %4999 = vmatprep.subr.bf16.mxu0 0
  %5000 = vmatpush1.bf16.msra.mxu0 0
  %5001 = vmatprep.subr.bf16.mxu0 0
  %5002 = vmatpush1.bf16.msra.mxu0 0
  %5003 = vmatprep.subr.bf16.mxu0 0
  %5004 = vmatpush1.bf16.msra.mxu0 0
  %5005 = vmatprep.subr.bf16.mxu0 0
  %5006 = vmatpush1.bf16.msra.mxu0 0
  %5007 = vmatprep.subr.bf16.mxu0 0
  %5008 = vmatpush1.bf16.msra.mxu0 0
  %5009 = vmatprep.mubr.bf16.mxu0 %v4975
  %5010 = vmatmul.mubr.bf16.gmra.mrb[0].mxu0 %v4971
  %v5011 = vpop.f32.mrb[0].mxu0
  %v5012 = vadd.f32 0.0, %v5011
  %v5013 = vpop.f32.mrb[0].mxu0
  %v5014 = vpop.f32.mrb[0].mxu0
  %v5015 = vpop.f32.mrb[0].mxu0
  %5016 = vdwg.mxu0
  %v5017 = vmax.f32 %v4965, %v5012
  %s5018 = scalar_lea.vmem %s3, 120
  %v5019 = vld [vmem:[%s5018] sm:$0xff]
  %v5021 = vunpack.c.l.b16 %v5019
  %v5022 = vunpack.c.h.b16 %v5019
  %v5023 = vpack.c.b16 %v5021, %v5021
  %v5024 = vpack.c.b16 %v5022, %v5022
  %v5027 = vsel %vm130, %v5024, 0
  %5029 = vmatprep.subr.bf16.mxu0 0
  %5030 = vmatpush1.bf16.msra.mxu0 %v110
  %5031 = vmatprep.subr.bf16.mxu0 0
  %5032 = vmatpush1.bf16.msra.mxu0 %v111
  %5033 = vmatprep.subr.bf16.mxu0 0
  %5034 = vmatpush1.bf16.msra.mxu0 %v112
  %5035 = vmatprep.subr.bf16.mxu0 0
  %5036 = vmatpush1.bf16.msra.mxu0 %v113
  %5037 = vmatprep.subr.bf16.mxu0 0
  %5038 = vmatpush1.bf16.msra.mxu0 %v114
  %5039 = vmatprep.subr.bf16.mxu0 0
  %5040 = vmatpush1.bf16.msra.mxu0 %v115
  %5041 = vmatprep.subr.bf16.mxu0 0
  %5042 = vmatpush1.bf16.msra.mxu0 %v116
  %5043 = vmatprep.subr.bf16.mxu0 0
  %5044 = vmatpush1.bf16.msra.mxu0 %v117
  %5045 = vmatprep.subr.bf16.mxu0 0
  %5046 = vmatpush1.bf16.msra.mxu0 %v118
  %5047 = vmatprep.subr.bf16.mxu0 0
  %5048 = vmatpush1.bf16.msra.mxu0 %v119
  %5049 = vmatprep.subr.bf16.mxu0 0
  %5050 = vmatpush1.bf16.msra.mxu0 0
  %5051 = vmatprep.subr.bf16.mxu0 0
  %5052 = vmatpush1.bf16.msra.mxu0 0
  %5053 = vmatprep.subr.bf16.mxu0 0
  %5054 = vmatpush1.bf16.msra.mxu0 0
  %5055 = vmatprep.subr.bf16.mxu0 0
  %5056 = vmatpush1.bf16.msra.mxu0 0
  %5057 = vmatprep.subr.bf16.mxu0 0
  %5058 = vmatpush1.bf16.msra.mxu0 0
  %5059 = vmatprep.subr.bf16.mxu0 0
  %5060 = vmatpush1.bf16.msra.mxu0 0
  %5061 = vmatprep.mubr.bf16.mxu0 %v5027
  %5062 = vmatmul.mubr.bf16.gmra.mrb[0].mxu0 %v5023
  %v5063 = vpop.f32.mrb[0].mxu0
  %v5064 = vadd.f32 0.0, %v5063
  %v5065 = vpop.f32.mrb[0].mxu0
  %v5066 = vpop.f32.mrb[0].mxu0
  %v5067 = vpop.f32.mrb[0].mxu0
  %5068 = vdwg.mxu0
  %v5069 = vmax.f32 %v5017, %v5064
  %v5070 = vadd.f32 %v5069, %v331
  %v5071 = vmax.f32 %v5070, 0.0
  %v5072 = vpack.c.bf16 %v5071, %v5071
  %s5073 = scalar_lea.vmem %s6, 960
  %v5074 = vld [vmem:[%s5073] sm:$0xf]
  %v5075 = vld [vmem:[%s5073 + $0x4] sm:$0xf]
  %v5076 = vld [vmem:[%s5073 + $0x8] sm:$0xf]
  %v5077 = vld [vmem:[%s5073 + $0xc] sm:$0xf]
  %v5078 = vld [vmem:[%s5073 + $0x10] sm:$0xf]
  %v5079 = vld [vmem:[%s5073 + $0x14] sm:$0xf]
  %v5080 = vld [vmem:[%s5073 + $0x18] sm:$0xf]
  %v5081 = vld [vmem:[%s5073 + $0x1c] sm:$0xf]
  %v5082 = vld [vmem:[%s5073 + $0x20] sm:$0xf]
  %v5083 = vld [vmem:[%s5073 + $0x24] sm:$0xf]
  %v5084 = vld [vmem:[%s5073 + $0x28] sm:$0xf]
  %v5085 = vld [vmem:[%s5073 + $0x2c] sm:$0xf]
  %v5086 = vld [vmem:[%s5073 + $0x30] sm:$0xf]
  %v5087 = vld [vmem:[%s5073 + $0x34] sm:$0xf]
  %v5088 = vld [vmem:[%s5073 + $0x38] sm:$0xf]
  %v5089 = vld [vmem:[%s5073 + $0x3c] sm:$0xf]
  %v5106 = vunpack.c.l.b16 %v5074
  %v5107 = vunpack.c.l.b16 %v5075
  %v5108 = vunpack.c.l.b16 %v5076
  %v5109 = vunpack.c.l.b16 %v5077
  %v5110 = vunpack.c.l.b16 %v5078
  %v5111 = vunpack.c.l.b16 %v5079
  %v5112 = vunpack.c.l.b16 %v5080
  %v5113 = vunpack.c.l.b16 %v5081
  %v5114 = vunpack.c.l.b16 %v5082
  %v5115 = vunpack.c.l.b16 %v5083
  %v5116 = vunpack.c.l.b16 %v5084
  %v5117 = vunpack.c.l.b16 %v5085
  %v5118 = vunpack.c.l.b16 %v5086
  %v5119 = vunpack.c.l.b16 %v5087
  %v5120 = vunpack.c.l.b16 %v5088
  %v5121 = vunpack.c.l.b16 %v5089
  %v5122 = vpack.c.b16 %v5107, %v5106
  %v5123 = vpack.c.b16 %v5109, %v5108
  %v5124 = vpack.c.b16 %v5111, %v5110
  %v5125 = vpack.c.b16 %v5113, %v5112
  %v5126 = vpack.c.b16 %v5115, %v5114
  %v5127 = vpack.c.b16 %v5117, %v5116
  %v5128 = vpack.c.b16 %v5119, %v5118
  %v5129 = vpack.c.b16 %v5121, %v5120
  %5138 = vmatprep.subr.bf16.mxu0 0
  %5139 = vmatpush1.bf16.msra.mxu0 %v5122
  %5140 = vmatprep.subr.bf16.mxu0 0
  %5141 = vmatpush1.bf16.msra.mxu0 %v5123
  %5142 = vmatprep.subr.bf16.mxu0 0
  %5143 = vmatpush1.bf16.msra.mxu0 %v5124
  %5144 = vmatprep.subr.bf16.mxu0 0
  %5145 = vmatpush1.bf16.msra.mxu0 %v5125
  %5146 = vmatprep.subr.bf16.mxu0 0
  %5147 = vmatpush1.bf16.msra.mxu0 %v5126
  %5148 = vmatprep.subr.bf16.mxu0 0
  %5149 = vmatpush1.bf16.msra.mxu0 %v5127
  %5150 = vmatprep.subr.bf16.mxu0 0
  %5151 = vmatpush1.bf16.msra.mxu0 %v5128
  %5152 = vmatprep.subr.bf16.mxu0 0
  %5153 = vmatpush1.bf16.msra.mxu0 %v5129
  %5154 = vmatprep.subr.bf16.mxu0 0
  %5155 = vmatpush1.bf16.msra.mxu0 0
  %5156 = vmatprep.subr.bf16.mxu0 0
  %5157 = vmatpush1.bf16.msra.mxu0 0
  %5158 = vmatprep.subr.bf16.mxu0 0
  %5159 = vmatpush1.bf16.msra.mxu0 0
  %5160 = vmatprep.subr.bf16.mxu0 0
  %5161 = vmatpush1.bf16.msra.mxu0 0
  %5162 = vmatprep.subr.bf16.mxu0 0
  %5163 = vmatpush1.bf16.msra.mxu0 0
  %5164 = vmatprep.subr.bf16.mxu0 0
  %5165 = vmatpush1.bf16.msra.mxu0 0
  %5166 = vmatprep.subr.bf16.mxu0 0
  %5167 = vmatpush1.bf16.msra.mxu0 0
  %5168 = vmatprep.subr.bf16.mxu0 0
  %5169 = vmatpush1.bf16.msra.mxu0 0
  %5170 = vmatprep.mubr.bf16.mxu0 0
  %5171 = vmatmul.mubr.bf16.gmra.mrb[0].mxu0 %v5072
  %v5172 = vpop.f32.mrb[0].mxu0
  %v5173 = vadd.f32 0.0, %v5172
  %v5174 = vpop.f32.mrb[0].mxu0
  %v5175 = vpop.f32.mrb[0].mxu0
  %v5176 = vpop.f32.mrb[0].mxu0
  %5177 = vdwg.mxu0
  %v5178 = vadd.f32 %v4862, %v5173
  %s5179 = scalar_lea.vmem %s0, 128
  %v5180 = vld [vmem:[%s5179] sm:$0xff]
  %v5182 = vunpack.c.l.b16 %v5180
  %v5183 = vunpack.c.h.b16 %v5180
  %v5184 = vpack.c.b16 %v5182, %v5182
  %v5185 = vpack.c.b16 %v5183, %v5183
  %v5188 = vsel %vm130, %v5185, 0
  %5190 = vmatprep.subr.bf16.mxu0 0
  %5191 = vmatpush1.bf16.msra.mxu0 %v110
  %5192 = vmatprep.subr.bf16.mxu0 0
  %5193 = vmatpush1.bf16.msra.mxu0 %v111
  %5194 = vmatprep.subr.bf16.mxu0 0
  %5195 = vmatpush1.bf16.msra.mxu0 %v112
  %5196 = vmatprep.subr.bf16.mxu0 0
  %5197 = vmatpush1.bf16.msra.mxu0 %v113
  %5198 = vmatprep.subr.bf16.mxu0 0
  %5199 = vmatpush1.bf16.msra.mxu0 %v114
  %5200 = vmatprep.subr.bf16.mxu0 0
  %5201 = vmatpush1.bf16.msra.mxu0 %v115
  %5202 = vmatprep.subr.bf16.mxu0 0
  %5203 = vmatpush1.bf16.msra.mxu0 %v116
  %5204 = vmatprep.subr.bf16.mxu0 0
  %5205 = vmatpush1.bf16.msra.mxu0 %v117
  %5206 = vmatprep.subr.bf16.mxu0 0
  %5207 = vmatpush1.bf16.msra.mxu0 %v118
  %5208 = vmatprep.subr.bf16.mxu0 0
  %5209 = vmatpush1.bf16.msra.mxu0 %v119
  %5210 = vmatprep.subr.bf16.mxu0 0
  %5211 = vmatpush1.bf16.msra.mxu0 0
  %5212 = vmatprep.subr.bf16.mxu0 0
  %5213 = vmatpush1.bf16.msra.mxu0 0
  %5214 = vmatprep.subr.bf16.mxu0 0
  %5215 = vmatpush1.bf16.msra.mxu0 0
  %5216 = vmatprep.subr.bf16.mxu0 0
  %5217 = vmatpush1.bf16.msra.mxu0 0
  %5218 = vmatprep.subr.bf16.mxu0 0
  %5219 = vmatpush1.bf16.msra.mxu0 0
  %5220 = vmatprep.subr.bf16.mxu0 0
  %5221 = vmatpush1.bf16.msra.mxu0 0
  %5222 = vmatprep.mubr.bf16.mxu0 %v5188
  %5223 = vmatmul.mubr.bf16.gmra.mrb[0].mxu0 %v5184
  %v5224 = vpop.f32.mrb[0].mxu0
  %v5225 = vadd.f32 0.0, %v5224
  %v5226 = vpop.f32.mrb[0].mxu0
  %v5227 = vpop.f32.mrb[0].mxu0
  %v5228 = vpop.f32.mrb[0].mxu0
  %5229 = vdwg.mxu0
  %s5230 = scalar_lea.vmem %s1, 128
  %v5231 = vld [vmem:[%s5230] sm:$0xff]
  %v5233 = vunpack.c.l.b16 %v5231
  %v5234 = vunpack.c.h.b16 %v5231
  %v5235 = vpack.c.b16 %v5233, %v5233
  %v5236 = vpack.c.b16 %v5234, %v5234
  %v5239 = vsel %vm130, %v5236, 0
  %5241 = vmatprep.subr.bf16.mxu0 0
  %5242 = vmatpush1.bf16.msra.mxu0 %v110
  %5243 = vmatprep.subr.bf16.mxu0 0
  %5244 = vmatpush1.bf16.msra.mxu0 %v111
  %5245 = vmatprep.subr.bf16.mxu0 0
  %5246 = vmatpush1.bf16.msra.mxu0 %v112
  %5247 = vmatprep.subr.bf16.mxu0 0
  %5248 = vmatpush1.bf16.msra.mxu0 %v113
  %5249 = vmatprep.subr.bf16.mxu0 0
  %5250 = vmatpush1.bf16.msra.mxu0 %v114
  %5251 = vmatprep.subr.bf16.mxu0 0
  %5252 = vmatpush1.bf16.msra.mxu0 %v115
  %5253 = vmatprep.subr.bf16.mxu0 0
  %5254 = vmatpush1.bf16.msra.mxu0 %v116
  %5255 = vmatprep.subr.bf16.mxu0 0
  %5256 = vmatpush1.bf16.msra.mxu0 %v117
  %5257 = vmatprep.subr.bf16.mxu0 0
  %5258 = vmatpush1.bf16.msra.mxu0 %v118
  %5259 = vmatprep.subr.bf16.mxu0 0
  %5260 = vmatpush1.bf16.msra.mxu0 %v119
  %5261 = vmatprep.subr.bf16.mxu0 0
  %5262 = vmatpush1.bf16.msra.mxu0 0
  %5263 = vmatprep.subr.bf16.mxu0 0
  %5264 = vmatpush1.bf16.msra.mxu0 0
  %5265 = vmatprep.subr.bf16.mxu0 0
  %5266 = vmatpush1.bf16.msra.mxu0 0
  %5267 = vmatprep.subr.bf16.mxu0 0
  %5268 = vmatpush1.bf16.msra.mxu0 0
  %5269 = vmatprep.subr.bf16.mxu0 0
  %5270 = vmatpush1.bf16.msra.mxu0 0
  %5271 = vmatprep.subr.bf16.mxu0 0
  %5272 = vmatpush1.bf16.msra.mxu0 0
  %5273 = vmatprep.mubr.bf16.mxu0 %v5239
  %5274 = vmatmul.mubr.bf16.gmra.mrb[0].mxu0 %v5235
  %v5275 = vpop.f32.mrb[0].mxu0
  %v5276 = vadd.f32 0.0, %v5275
  %v5277 = vpop.f32.mrb[0].mxu0
  %v5278 = vpop.f32.mrb[0].mxu0
  %v5279 = vpop.f32.mrb[0].mxu0
  %5280 = vdwg.mxu0
  %v5281 = vmax.f32 %v5225, %v5276
  %s5282 = scalar_lea.vmem %s2, 128
  %v5283 = vld [vmem:[%s5282] sm:$0xff]
  %v5285 = vunpack.c.l.b16 %v5283
  %v5286 = vunpack.c.h.b16 %v5283
  %v5287 = vpack.c.b16 %v5285, %v5285
  %v5288 = vpack.c.b16 %v5286, %v5286
  %v5291 = vsel %vm130, %v5288, 0
  %5293 = vmatprep.subr.bf16.mxu0 0
  %5294 = vmatpush1.bf16.msra.mxu0 %v110
  %5295 = vmatprep.subr.bf16.mxu0 0
  %5296 = vmatpush1.bf16.msra.mxu0 %v111
  %5297 = vmatprep.subr.bf16.mxu0 0
  %5298 = vmatpush1.bf16.msra.mxu0 %v112
  %5299 = vmatprep.subr.bf16.mxu0 0
  %5300 = vmatpush1.bf16.msra.mxu0 %v113
  %5301 = vmatprep.subr.bf16.mxu0 0
  %5302 = vmatpush1.bf16.msra.mxu0 %v114
  %5303 = vmatprep.subr.bf16.mxu0 0
  %5304 = vmatpush1.bf16.msra.mxu0 %v115
  %5305 = vmatprep.subr.bf16.mxu0 0
  %5306 = vmatpush1.bf16.msra.mxu0 %v116
  %5307 = vmatprep.subr.bf16.mxu0 0
  %5308 = vmatpush1.bf16.msra.mxu0 %v117
  %5309 = vmatprep.subr.bf16.mxu0 0
  %5310 = vmatpush1.bf16.msra.mxu0 %v118
  %5311 = vmatprep.subr.bf16.mxu0 0
  %5312 = vmatpush1.bf16.msra.mxu0 %v119
  %5313 = vmatprep.subr.bf16.mxu0 0
  %5314 = vmatpush1.bf16.msra.mxu0 0
  %5315 = vmatprep.subr.bf16.mxu0 0
  %5316 = vmatpush1.bf16.msra.mxu0 0
  %5317 = vmatprep.subr.bf16.mxu0 0
  %5318 = vmatpush1.bf16.msra.mxu0 0
  %5319 = vmatprep.subr.bf16.mxu0 0
  %5320 = vmatpush1.bf16.msra.mxu0 0
  %5321 = vmatprep.subr.bf16.mxu0 0
  %5322 = vmatpush1.bf16.msra.mxu0 0
  %5323 = vmatprep.subr.bf16.mxu0 0
  %5324 = vmatpush1.bf16.msra.mxu0 0
  %5325 = vmatprep.mubr.bf16.mxu0 %v5291
  %5326 = vmatmul.mubr.bf16.gmra.mrb[0].mxu0 %v5287
  %v5327 = vpop.f32.mrb[0].mxu0
  %v5328 = vadd.f32 0.0, %v5327
  %v5329 = vpop.f32.mrb[0].mxu0
  %v5330 = vpop.f32.mrb[0].mxu0
  %v5331 = vpop.f32.mrb[0].mxu0
  %5332 = vdwg.mxu0
  %v5333 = vmax.f32 %v5281, %v5328
  %s5334 = scalar_lea.vmem %s3, 128
  %v5335 = vld [vmem:[%s5334] sm:$0xff]
  %v5337 = vunpack.c.l.b16 %v5335
  %v5338 = vunpack.c.h.b16 %v5335
  %v5339 = vpack.c.b16 %v5337, %v5337
  %v5340 = vpack.c.b16 %v5338, %v5338
  %v5343 = vsel %vm130, %v5340, 0
  %5345 = vmatprep.subr.bf16.mxu0 0
  %5346 = vmatpush1.bf16.msra.mxu0 %v110
  %5347 = vmatprep.subr.bf16.mxu0 0
  %5348 = vmatpush1.bf16.msra.mxu0 %v111
  %5349 = vmatprep.subr.bf16.mxu0 0
  %5350 = vmatpush1.bf16.msra.mxu0 %v112
  %5351 = vmatprep.subr.bf16.mxu0 0
  %5352 = vmatpush1.bf16.msra.mxu0 %v113
  %5353 = vmatprep.subr.bf16.mxu0 0
  %5354 = vmatpush1.bf16.msra.mxu0 %v114
  %5355 = vmatprep.subr.bf16.mxu0 0
  %5356 = vmatpush1.bf16.msra.mxu0 %v115
  %5357 = vmatprep.subr.bf16.mxu0 0
  %5358 = vmatpush1.bf16.msra.mxu0 %v116
  %5359 = vmatprep.subr.bf16.mxu0 0
  %5360 = vmatpush1.bf16.msra.mxu0 %v117
  %5361 = vmatprep.subr.bf16.mxu0 0
  %5362 = vmatpush1.bf16.msra.mxu0 %v118
  %5363 = vmatprep.subr.bf16.mxu0 0
  %5364 = vmatpush1.bf16.msra.mxu0 %v119
  %5365 = vmatprep.subr.bf16.mxu0 0
  %5366 = vmatpush1.bf16.msra.mxu0 0
  %5367 = vmatprep.subr.bf16.mxu0 0
  %5368 = vmatpush1.bf16.msra.mxu0 0
  %5369 = vmatprep.subr.bf16.mxu0 0
  %5370 = vmatpush1.bf16.msra.mxu0 0
  %5371 = vmatprep.subr.bf16.mxu0 0
  %5372 = vmatpush1.bf16.msra.mxu0 0
  %5373 = vmatprep.subr.bf16.mxu0 0
  %5374 = vmatpush1.bf16.msra.mxu0 0
  %5375 = vmatprep.subr.bf16.mxu0 0
  %5376 = vmatpush1.bf16.msra.mxu0 0
  %5377 = vmatprep.mubr.bf16.mxu0 %v5343
  %5378 = vmatmul.mubr.bf16.gmra.mrb[0].mxu0 %v5339
  %v5379 = vpop.f32.mrb[0].mxu0
  %v5380 = vadd.f32 0.0, %v5379
  %v5381 = vpop.f32.mrb[0].mxu0
  %v5382 = vpop.f32.mrb[0].mxu0
  %v5383 = vpop.f32.mrb[0].mxu0
  %5384 = vdwg.mxu0
  %v5385 = vmax.f32 %v5333, %v5380
  %v5386 = vadd.f32 %v5385, %v331
  %v5387 = vmax.f32 %v5386, 0.0
  %v5388 = vpack.c.bf16 %v5387, %v5387
  %s5389 = scalar_lea.vmem %s6, 1024
  %v5390 = vld [vmem:[%s5389] sm:$0xf]
  %v5391 = vld [vmem:[%s5389 + $0x4] sm:$0xf]
  %v5392 = vld [vmem:[%s5389 + $0x8] sm:$0xf]
  %v5393 = vld [vmem:[%s5389 + $0xc] sm:$0xf]
  %v5394 = vld [vmem:[%s5389 + $0x10] sm:$0xf]
  %v5395 = vld [vmem:[%s5389 + $0x14] sm:$0xf]
  %v5396 = vld [vmem:[%s5389 + $0x18] sm:$0xf]
  %v5397 = vld [vmem:[%s5389 + $0x1c] sm:$0xf]
  %v5398 = vld [vmem:[%s5389 + $0x20] sm:$0xf]
  %v5399 = vld [vmem:[%s5389 + $0x24] sm:$0xf]
  %v5400 = vld [vmem:[%s5389 + $0x28] sm:$0xf]
  %v5401 = vld [vmem:[%s5389 + $0x2c] sm:$0xf]
  %v5402 = vld [vmem:[%s5389 + $0x30] sm:$0xf]
  %v5403 = vld [vmem:[%s5389 + $0x34] sm:$0xf]
  %v5404 = vld [vmem:[%s5389 + $0x38] sm:$0xf]
  %v5405 = vld [vmem:[%s5389 + $0x3c] sm:$0xf]
  %v5422 = vunpack.c.l.b16 %v5390
  %v5423 = vunpack.c.l.b16 %v5391
  %v5424 = vunpack.c.l.b16 %v5392
  %v5425 = vunpack.c.l.b16 %v5393
  %v5426 = vunpack.c.l.b16 %v5394
  %v5427 = vunpack.c.l.b16 %v5395
  %v5428 = vunpack.c.l.b16 %v5396
  %v5429 = vunpack.c.l.b16 %v5397
  %v5430 = vunpack.c.l.b16 %v5398
  %v5431 = vunpack.c.l.b16 %v5399
  %v5432 = vunpack.c.l.b16 %v5400
  %v5433 = vunpack.c.l.b16 %v5401
  %v5434 = vunpack.c.l.b16 %v5402
  %v5435 = vunpack.c.l.b16 %v5403
  %v5436 = vunpack.c.l.b16 %v5404
  %v5437 = vunpack.c.l.b16 %v5405
  %v5438 = vpack.c.b16 %v5423, %v5422
  %v5439 = vpack.c.b16 %v5425, %v5424
  %v5440 = vpack.c.b16 %v5427, %v5426
  %v5441 = vpack.c.b16 %v5429, %v5428
  %v5442 = vpack.c.b16 %v5431, %v5430
  %v5443 = vpack.c.b16 %v5433, %v5432
  %v5444 = vpack.c.b16 %v5435, %v5434
  %v5445 = vpack.c.b16 %v5437, %v5436
  %5454 = vmatprep.subr.bf16.mxu0 0
  %5455 = vmatpush1.bf16.msra.mxu0 %v5438
  %5456 = vmatprep.subr.bf16.mxu0 0
  %5457 = vmatpush1.bf16.msra.mxu0 %v5439
  %5458 = vmatprep.subr.bf16.mxu0 0
  %5459 = vmatpush1.bf16.msra.mxu0 %v5440
  %5460 = vmatprep.subr.bf16.mxu0 0
  %5461 = vmatpush1.bf16.msra.mxu0 %v5441
  %5462 = vmatprep.subr.bf16.mxu0 0
  %5463 = vmatpush1.bf16.msra.mxu0 %v5442
  %5464 = vmatprep.subr.bf16.mxu0 0
  %5465 = vmatpush1.bf16.msra.mxu0 %v5443
  %5466 = vmatprep.subr.bf16.mxu0 0
  %5467 = vmatpush1.bf16.msra.mxu0 %v5444
  %5468 = vmatprep.subr.bf16.mxu0 0
  %5469 = vmatpush1.bf16.msra.mxu0 %v5445
  %5470 = vmatprep.subr.bf16.mxu0 0
  %5471 = vmatpush1.bf16.msra.mxu0 0
  %5472 = vmatprep.subr.bf16.mxu0 0
  %5473 = vmatpush1.bf16.msra.mxu0 0
  %5474 = vmatprep.subr.bf16.mxu0 0
  %5475 = vmatpush1.bf16.msra.mxu0 0
  %5476 = vmatprep.subr.bf16.mxu0 0
  %5477 = vmatpush1.bf16.msra.mxu0 0
  %5478 = vmatprep.subr.bf16.mxu0 0
  %5479 = vmatpush1.bf16.msra.mxu0 0
  %5480 = vmatprep.subr.bf16.mxu0 0
  %5481 = vmatpush1.bf16.msra.mxu0 0
  %5482 = vmatprep.subr.bf16.mxu0 0
  %5483 = vmatpush1.bf16.msra.mxu0 0
  %5484 = vmatprep.subr.bf16.mxu0 0
  %5485 = vmatpush1.bf16.msra.mxu0 0
  %5486 = vmatprep.mubr.bf16.mxu0 0
  %5487 = vmatmul.mubr.bf16.gmra.mrb[0].mxu0 %v5388
  %v5488 = vpop.f32.mrb[0].mxu0
  %v5489 = vadd.f32 0.0, %v5488
  %v5490 = vpop.f32.mrb[0].mxu0
  %v5491 = vpop.f32.mrb[0].mxu0
  %v5492 = vpop.f32.mrb[0].mxu0
  %5493 = vdwg.mxu0
  %v5494 = vadd.f32 %v5178, %v5489
  %s5495 = scalar_lea.vmem %s0, 136
  %v5496 = vld [vmem:[%s5495] sm:$0xff]
  %v5498 = vunpack.c.l.b16 %v5496
  %v5499 = vunpack.c.h.b16 %v5496
  %v5500 = vpack.c.b16 %v5498, %v5498
  %v5501 = vpack.c.b16 %v5499, %v5499
  %v5504 = vsel %vm130, %v5501, 0
  %5506 = vmatprep.subr.bf16.mxu0 0
  %5507 = vmatpush1.bf16.msra.mxu0 %v110
  %5508 = vmatprep.subr.bf16.mxu0 0
  %5509 = vmatpush1.bf16.msra.mxu0 %v111
  %5510 = vmatprep.subr.bf16.mxu0 0
  %5511 = vmatpush1.bf16.msra.mxu0 %v112
  %5512 = vmatprep.subr.bf16.mxu0 0
  %5513 = vmatpush1.bf16.msra.mxu0 %v113
  %5514 = vmatprep.subr.bf16.mxu0 0
  %5515 = vmatpush1.bf16.msra.mxu0 %v114
  %5516 = vmatprep.subr.bf16.mxu0 0
  %5517 = vmatpush1.bf16.msra.mxu0 %v115
  %5518 = vmatprep.subr.bf16.mxu0 0
  %5519 = vmatpush1.bf16.msra.mxu0 %v116
  %5520 = vmatprep.subr.bf16.mxu0 0
  %5521 = vmatpush1.bf16.msra.mxu0 %v117
  %5522 = vmatprep.subr.bf16.mxu0 0
  %5523 = vmatpush1.bf16.msra.mxu0 %v118
  %5524 = vmatprep.subr.bf16.mxu0 0
  %5525 = vmatpush1.bf16.msra.mxu0 %v119
  %5526 = vmatprep.subr.bf16.mxu0 0
  %5527 = vmatpush1.bf16.msra.mxu0 0
  %5528 = vmatprep.subr.bf16.mxu0 0
  %5529 = vmatpush1.bf16.msra.mxu0 0
  %5530 = vmatprep.subr.bf16.mxu0 0
  %5531 = vmatpush1.bf16.msra.mxu0 0
  %5532 = vmatprep.subr.bf16.mxu0 0
  %5533 = vmatpush1.bf16.msra.mxu0 0
  %5534 = vmatprep.subr.bf16.mxu0 0
  %5535 = vmatpush1.bf16.msra.mxu0 0
  %5536 = vmatprep.subr.bf16.mxu0 0
  %5537 = vmatpush1.bf16.msra.mxu0 0
  %5538 = vmatprep.mubr.bf16.mxu0 %v5504
  %5539 = vmatmul.mubr.bf16.gmra.mrb[0].mxu0 %v5500
  %v5540 = vpop.f32.mrb[0].mxu0
  %v5541 = vadd.f32 0.0, %v5540
  %v5542 = vpop.f32.mrb[0].mxu0
  %v5543 = vpop.f32.mrb[0].mxu0
  %v5544 = vpop.f32.mrb[0].mxu0
  %5545 = vdwg.mxu0
  %s5546 = scalar_lea.vmem %s1, 136
  %v5547 = vld [vmem:[%s5546] sm:$0xff]
  %v5549 = vunpack.c.l.b16 %v5547
  %v5550 = vunpack.c.h.b16 %v5547
  %v5551 = vpack.c.b16 %v5549, %v5549
  %v5552 = vpack.c.b16 %v5550, %v5550
  %v5555 = vsel %vm130, %v5552, 0
  %5557 = vmatprep.subr.bf16.mxu0 0
  %5558 = vmatpush1.bf16.msra.mxu0 %v110
  %5559 = vmatprep.subr.bf16.mxu0 0
  %5560 = vmatpush1.bf16.msra.mxu0 %v111
  %5561 = vmatprep.subr.bf16.mxu0 0
  %5562 = vmatpush1.bf16.msra.mxu0 %v112
  %5563 = vmatprep.subr.bf16.mxu0 0
  %5564 = vmatpush1.bf16.msra.mxu0 %v113
  %5565 = vmatprep.subr.bf16.mxu0 0
  %5566 = vmatpush1.bf16.msra.mxu0 %v114
  %5567 = vmatprep.subr.bf16.mxu0 0
  %5568 = vmatpush1.bf16.msra.mxu0 %v115
  %5569 = vmatprep.subr.bf16.mxu0 0
  %5570 = vmatpush1.bf16.msra.mxu0 %v116
  %5571 = vmatprep.subr.bf16.mxu0 0
  %5572 = vmatpush1.bf16.msra.mxu0 %v117
  %5573 = vmatprep.subr.bf16.mxu0 0
  %5574 = vmatpush1.bf16.msra.mxu0 %v118
  %5575 = vmatprep.subr.bf16.mxu0 0
  %5576 = vmatpush1.bf16.msra.mxu0 %v119
  %5577 = vmatprep.subr.bf16.mxu0 0
  %5578 = vmatpush1.bf16.msra.mxu0 0
  %5579 = vmatprep.subr.bf16.mxu0 0
  %5580 = vmatpush1.bf16.msra.mxu0 0
  %5581 = vmatprep.subr.bf16.mxu0 0
  %5582 = vmatpush1.bf16.msra.mxu0 0
  %5583 = vmatprep.subr.bf16.mxu0 0
  %5584 = vmatpush1.bf16.msra.mxu0 0
  %5585 = vmatprep.subr.bf16.mxu0 0
  %5586 = vmatpush1.bf16.msra.mxu0 0
  %5587 = vmatprep.subr.bf16.mxu0 0
  %5588 = vmatpush1.bf16.msra.mxu0 0
  %5589 = vmatprep.mubr.bf16.mxu0 %v5555
  %5590 = vmatmul.mubr.bf16.gmra.mrb[0].mxu0 %v5551
  %v5591 = vpop.f32.mrb[0].mxu0
  %v5592 = vadd.f32 0.0, %v5591
  %v5593 = vpop.f32.mrb[0].mxu0
  %v5594 = vpop.f32.mrb[0].mxu0
  %v5595 = vpop.f32.mrb[0].mxu0
  %5596 = vdwg.mxu0
  %v5597 = vmax.f32 %v5541, %v5592
  %s5598 = scalar_lea.vmem %s2, 136
  %v5599 = vld [vmem:[%s5598] sm:$0xff]
  %v5601 = vunpack.c.l.b16 %v5599
  %v5602 = vunpack.c.h.b16 %v5599
  %v5603 = vpack.c.b16 %v5601, %v5601
  %v5604 = vpack.c.b16 %v5602, %v5602
  %v5607 = vsel %vm130, %v5604, 0
  %5609 = vmatprep.subr.bf16.mxu0 0
  %5610 = vmatpush1.bf16.msra.mxu0 %v110
  %5611 = vmatprep.subr.bf16.mxu0 0
  %5612 = vmatpush1.bf16.msra.mxu0 %v111
  %5613 = vmatprep.subr.bf16.mxu0 0
  %5614 = vmatpush1.bf16.msra.mxu0 %v112
  %5615 = vmatprep.subr.bf16.mxu0 0
  %5616 = vmatpush1.bf16.msra.mxu0 %v113
  %5617 = vmatprep.subr.bf16.mxu0 0
  %5618 = vmatpush1.bf16.msra.mxu0 %v114
  %5619 = vmatprep.subr.bf16.mxu0 0
  %5620 = vmatpush1.bf16.msra.mxu0 %v115
  %5621 = vmatprep.subr.bf16.mxu0 0
  %5622 = vmatpush1.bf16.msra.mxu0 %v116
  %5623 = vmatprep.subr.bf16.mxu0 0
  %5624 = vmatpush1.bf16.msra.mxu0 %v117
  %5625 = vmatprep.subr.bf16.mxu0 0
  %5626 = vmatpush1.bf16.msra.mxu0 %v118
  %5627 = vmatprep.subr.bf16.mxu0 0
  %5628 = vmatpush1.bf16.msra.mxu0 %v119
  %5629 = vmatprep.subr.bf16.mxu0 0
  %5630 = vmatpush1.bf16.msra.mxu0 0
  %5631 = vmatprep.subr.bf16.mxu0 0
  %5632 = vmatpush1.bf16.msra.mxu0 0
  %5633 = vmatprep.subr.bf16.mxu0 0
  %5634 = vmatpush1.bf16.msra.mxu0 0
  %5635 = vmatprep.subr.bf16.mxu0 0
  %5636 = vmatpush1.bf16.msra.mxu0 0
  %5637 = vmatprep.subr.bf16.mxu0 0
  %5638 = vmatpush1.bf16.msra.mxu0 0
  %5639 = vmatprep.subr.bf16.mxu0 0
  %5640 = vmatpush1.bf16.msra.mxu0 0
  %5641 = vmatprep.mubr.bf16.mxu0 %v5607
  %5642 = vmatmul.mubr.bf16.gmra.mrb[0].mxu0 %v5603
  %v5643 = vpop.f32.mrb[0].mxu0
  %v5644 = vadd.f32 0.0, %v5643
  %v5645 = vpop.f32.mrb[0].mxu0
  %v5646 = vpop.f32.mrb[0].mxu0
  %v5647 = vpop.f32.mrb[0].mxu0
  %5648 = vdwg.mxu0
  %v5649 = vmax.f32 %v5597, %v5644
  %s5650 = scalar_lea.vmem %s3, 136
  %v5651 = vld [vmem:[%s5650] sm:$0xff]
  %v5653 = vunpack.c.l.b16 %v5651
  %v5654 = vunpack.c.h.b16 %v5651
  %v5655 = vpack.c.b16 %v5653, %v5653
  %v5656 = vpack.c.b16 %v5654, %v5654
  %v5659 = vsel %vm130, %v5656, 0
  %5661 = vmatprep.subr.bf16.mxu0 0
  %5662 = vmatpush1.bf16.msra.mxu0 %v110
  %5663 = vmatprep.subr.bf16.mxu0 0
  %5664 = vmatpush1.bf16.msra.mxu0 %v111
  %5665 = vmatprep.subr.bf16.mxu0 0
  %5666 = vmatpush1.bf16.msra.mxu0 %v112
  %5667 = vmatprep.subr.bf16.mxu0 0
  %5668 = vmatpush1.bf16.msra.mxu0 %v113
  %5669 = vmatprep.subr.bf16.mxu0 0
  %5670 = vmatpush1.bf16.msra.mxu0 %v114
  %5671 = vmatprep.subr.bf16.mxu0 0
  %5672 = vmatpush1.bf16.msra.mxu0 %v115
  %5673 = vmatprep.subr.bf16.mxu0 0
  %5674 = vmatpush1.bf16.msra.mxu0 %v116
  %5675 = vmatprep.subr.bf16.mxu0 0
  %5676 = vmatpush1.bf16.msra.mxu0 %v117
  %5677 = vmatprep.subr.bf16.mxu0 0
  %5678 = vmatpush1.bf16.msra.mxu0 %v118
  %5679 = vmatprep.subr.bf16.mxu0 0
  %5680 = vmatpush1.bf16.msra.mxu0 %v119
  %5681 = vmatprep.subr.bf16.mxu0 0
  %5682 = vmatpush1.bf16.msra.mxu0 0
  %5683 = vmatprep.subr.bf16.mxu0 0
  %5684 = vmatpush1.bf16.msra.mxu0 0
  %5685 = vmatprep.subr.bf16.mxu0 0
  %5686 = vmatpush1.bf16.msra.mxu0 0
  %5687 = vmatprep.subr.bf16.mxu0 0
  %5688 = vmatpush1.bf16.msra.mxu0 0
  %5689 = vmatprep.subr.bf16.mxu0 0
  %5690 = vmatpush1.bf16.msra.mxu0 0
  %5691 = vmatprep.subr.bf16.mxu0 0
  %5692 = vmatpush1.bf16.msra.mxu0 0
  %5693 = vmatprep.mubr.bf16.mxu0 %v5659
  %5694 = vmatmul.mubr.bf16.gmra.mrb[0].mxu0 %v5655
  %v5695 = vpop.f32.mrb[0].mxu0
  %v5696 = vadd.f32 0.0, %v5695
  %v5697 = vpop.f32.mrb[0].mxu0
  %v5698 = vpop.f32.mrb[0].mxu0
  %v5699 = vpop.f32.mrb[0].mxu0
  %5700 = vdwg.mxu0
  %v5701 = vmax.f32 %v5649, %v5696
  %v5702 = vadd.f32 %v5701, %v331
  %v5703 = vmax.f32 %v5702, 0.0
  %v5704 = vpack.c.bf16 %v5703, %v5703
  %s5705 = scalar_lea.vmem %s6, 1088
  %v5706 = vld [vmem:[%s5705] sm:$0xf]
  %v5707 = vld [vmem:[%s5705 + $0x4] sm:$0xf]
  %v5708 = vld [vmem:[%s5705 + $0x8] sm:$0xf]
  %v5709 = vld [vmem:[%s5705 + $0xc] sm:$0xf]
  %v5710 = vld [vmem:[%s5705 + $0x10] sm:$0xf]
  %v5711 = vld [vmem:[%s5705 + $0x14] sm:$0xf]
  %v5712 = vld [vmem:[%s5705 + $0x18] sm:$0xf]
  %v5713 = vld [vmem:[%s5705 + $0x1c] sm:$0xf]
  %v5714 = vld [vmem:[%s5705 + $0x20] sm:$0xf]
  %v5715 = vld [vmem:[%s5705 + $0x24] sm:$0xf]
  %v5716 = vld [vmem:[%s5705 + $0x28] sm:$0xf]
  %v5717 = vld [vmem:[%s5705 + $0x2c] sm:$0xf]
  %v5718 = vld [vmem:[%s5705 + $0x30] sm:$0xf]
  %v5719 = vld [vmem:[%s5705 + $0x34] sm:$0xf]
  %v5720 = vld [vmem:[%s5705 + $0x38] sm:$0xf]
  %v5721 = vld [vmem:[%s5705 + $0x3c] sm:$0xf]
  %v5738 = vunpack.c.l.b16 %v5706
  %v5739 = vunpack.c.l.b16 %v5707
  %v5740 = vunpack.c.l.b16 %v5708
  %v5741 = vunpack.c.l.b16 %v5709
  %v5742 = vunpack.c.l.b16 %v5710
  %v5743 = vunpack.c.l.b16 %v5711
  %v5744 = vunpack.c.l.b16 %v5712
  %v5745 = vunpack.c.l.b16 %v5713
  %v5746 = vunpack.c.l.b16 %v5714
  %v5747 = vunpack.c.l.b16 %v5715
  %v5748 = vunpack.c.l.b16 %v5716
  %v5749 = vunpack.c.l.b16 %v5717
  %v5750 = vunpack.c.l.b16 %v5718
  %v5751 = vunpack.c.l.b16 %v5719
  %v5752 = vunpack.c.l.b16 %v5720
  %v5753 = vunpack.c.l.b16 %v5721
  %v5754 = vpack.c.b16 %v5739, %v5738
  %v5755 = vpack.c.b16 %v5741, %v5740
  %v5756 = vpack.c.b16 %v5743, %v5742
  %v5757 = vpack.c.b16 %v5745, %v5744
  %v5758 = vpack.c.b16 %v5747, %v5746
  %v5759 = vpack.c.b16 %v5749, %v5748
  %v5760 = vpack.c.b16 %v5751, %v5750
  %v5761 = vpack.c.b16 %v5753, %v5752
  %5770 = vmatprep.subr.bf16.mxu0 0
  %5771 = vmatpush1.bf16.msra.mxu0 %v5754
  %5772 = vmatprep.subr.bf16.mxu0 0
  %5773 = vmatpush1.bf16.msra.mxu0 %v5755
  %5774 = vmatprep.subr.bf16.mxu0 0
  %5775 = vmatpush1.bf16.msra.mxu0 %v5756
  %5776 = vmatprep.subr.bf16.mxu0 0
  %5777 = vmatpush1.bf16.msra.mxu0 %v5757
  %5778 = vmatprep.subr.bf16.mxu0 0
  %5779 = vmatpush1.bf16.msra.mxu0 %v5758
  %5780 = vmatprep.subr.bf16.mxu0 0
  %5781 = vmatpush1.bf16.msra.mxu0 %v5759
  %5782 = vmatprep.subr.bf16.mxu0 0
  %5783 = vmatpush1.bf16.msra.mxu0 %v5760
  %5784 = vmatprep.subr.bf16.mxu0 0
  %5785 = vmatpush1.bf16.msra.mxu0 %v5761
  %5786 = vmatprep.subr.bf16.mxu0 0
  %5787 = vmatpush1.bf16.msra.mxu0 0
  %5788 = vmatprep.subr.bf16.mxu0 0
  %5789 = vmatpush1.bf16.msra.mxu0 0
  %5790 = vmatprep.subr.bf16.mxu0 0
  %5791 = vmatpush1.bf16.msra.mxu0 0
  %5792 = vmatprep.subr.bf16.mxu0 0
  %5793 = vmatpush1.bf16.msra.mxu0 0
  %5794 = vmatprep.subr.bf16.mxu0 0
  %5795 = vmatpush1.bf16.msra.mxu0 0
  %5796 = vmatprep.subr.bf16.mxu0 0
  %5797 = vmatpush1.bf16.msra.mxu0 0
  %5798 = vmatprep.subr.bf16.mxu0 0
  %5799 = vmatpush1.bf16.msra.mxu0 0
  %5800 = vmatprep.subr.bf16.mxu0 0
  %5801 = vmatpush1.bf16.msra.mxu0 0
  %5802 = vmatprep.mubr.bf16.mxu0 0
  %5803 = vmatmul.mubr.bf16.gmra.mrb[0].mxu0 %v5704
  %v5804 = vpop.f32.mrb[0].mxu0
  %v5805 = vadd.f32 0.0, %v5804
  %v5806 = vpop.f32.mrb[0].mxu0
  %v5807 = vpop.f32.mrb[0].mxu0
  %v5808 = vpop.f32.mrb[0].mxu0
  %5809 = vdwg.mxu0
  %v5810 = vadd.f32 %v5494, %v5805
  %s5811 = scalar_lea.vmem %s0, 144
  %v5812 = vld [vmem:[%s5811] sm:$0xff]
  %v5814 = vunpack.c.l.b16 %v5812
  %v5815 = vunpack.c.h.b16 %v5812
  %v5816 = vpack.c.b16 %v5814, %v5814
  %v5817 = vpack.c.b16 %v5815, %v5815
  %v5820 = vsel %vm130, %v5817, 0
  %5822 = vmatprep.subr.bf16.mxu0 0
  %5823 = vmatpush1.bf16.msra.mxu0 %v110
  %5824 = vmatprep.subr.bf16.mxu0 0
  %5825 = vmatpush1.bf16.msra.mxu0 %v111
  %5826 = vmatprep.subr.bf16.mxu0 0
  %5827 = vmatpush1.bf16.msra.mxu0 %v112
  %5828 = vmatprep.subr.bf16.mxu0 0
  %5829 = vmatpush1.bf16.msra.mxu0 %v113
  %5830 = vmatprep.subr.bf16.mxu0 0
  %5831 = vmatpush1.bf16.msra.mxu0 %v114
  %5832 = vmatprep.subr.bf16.mxu0 0
  %5833 = vmatpush1.bf16.msra.mxu0 %v115
  %5834 = vmatprep.subr.bf16.mxu0 0
  %5835 = vmatpush1.bf16.msra.mxu0 %v116
  %5836 = vmatprep.subr.bf16.mxu0 0
  %5837 = vmatpush1.bf16.msra.mxu0 %v117
  %5838 = vmatprep.subr.bf16.mxu0 0
  %5839 = vmatpush1.bf16.msra.mxu0 %v118
  %5840 = vmatprep.subr.bf16.mxu0 0
  %5841 = vmatpush1.bf16.msra.mxu0 %v119
  %5842 = vmatprep.subr.bf16.mxu0 0
  %5843 = vmatpush1.bf16.msra.mxu0 0
  %5844 = vmatprep.subr.bf16.mxu0 0
  %5845 = vmatpush1.bf16.msra.mxu0 0
  %5846 = vmatprep.subr.bf16.mxu0 0
  %5847 = vmatpush1.bf16.msra.mxu0 0
  %5848 = vmatprep.subr.bf16.mxu0 0
  %5849 = vmatpush1.bf16.msra.mxu0 0
  %5850 = vmatprep.subr.bf16.mxu0 0
  %5851 = vmatpush1.bf16.msra.mxu0 0
  %5852 = vmatprep.subr.bf16.mxu0 0
  %5853 = vmatpush1.bf16.msra.mxu0 0
  %5854 = vmatprep.mubr.bf16.mxu0 %v5820
  %5855 = vmatmul.mubr.bf16.gmra.mrb[0].mxu0 %v5816
  %v5856 = vpop.f32.mrb[0].mxu0
  %v5857 = vadd.f32 0.0, %v5856
  %v5858 = vpop.f32.mrb[0].mxu0
  %v5859 = vpop.f32.mrb[0].mxu0
  %v5860 = vpop.f32.mrb[0].mxu0
  %5861 = vdwg.mxu0
  %s5862 = scalar_lea.vmem %s1, 144
  %v5863 = vld [vmem:[%s5862] sm:$0xff]
  %v5865 = vunpack.c.l.b16 %v5863
  %v5866 = vunpack.c.h.b16 %v5863
  %v5867 = vpack.c.b16 %v5865, %v5865
  %v5868 = vpack.c.b16 %v5866, %v5866
  %v5871 = vsel %vm130, %v5868, 0
  %5873 = vmatprep.subr.bf16.mxu0 0
  %5874 = vmatpush1.bf16.msra.mxu0 %v110
  %5875 = vmatprep.subr.bf16.mxu0 0
  %5876 = vmatpush1.bf16.msra.mxu0 %v111
  %5877 = vmatprep.subr.bf16.mxu0 0
  %5878 = vmatpush1.bf16.msra.mxu0 %v112
  %5879 = vmatprep.subr.bf16.mxu0 0
  %5880 = vmatpush1.bf16.msra.mxu0 %v113
  %5881 = vmatprep.subr.bf16.mxu0 0
  %5882 = vmatpush1.bf16.msra.mxu0 %v114
  %5883 = vmatprep.subr.bf16.mxu0 0
  %5884 = vmatpush1.bf16.msra.mxu0 %v115
  %5885 = vmatprep.subr.bf16.mxu0 0
  %5886 = vmatpush1.bf16.msra.mxu0 %v116
  %5887 = vmatprep.subr.bf16.mxu0 0
  %5888 = vmatpush1.bf16.msra.mxu0 %v117
  %5889 = vmatprep.subr.bf16.mxu0 0
  %5890 = vmatpush1.bf16.msra.mxu0 %v118
  %5891 = vmatprep.subr.bf16.mxu0 0
  %5892 = vmatpush1.bf16.msra.mxu0 %v119
  %5893 = vmatprep.subr.bf16.mxu0 0
  %5894 = vmatpush1.bf16.msra.mxu0 0
  %5895 = vmatprep.subr.bf16.mxu0 0
  %5896 = vmatpush1.bf16.msra.mxu0 0
  %5897 = vmatprep.subr.bf16.mxu0 0
  %5898 = vmatpush1.bf16.msra.mxu0 0
  %5899 = vmatprep.subr.bf16.mxu0 0
  %5900 = vmatpush1.bf16.msra.mxu0 0
  %5901 = vmatprep.subr.bf16.mxu0 0
  %5902 = vmatpush1.bf16.msra.mxu0 0
  %5903 = vmatprep.subr.bf16.mxu0 0
  %5904 = vmatpush1.bf16.msra.mxu0 0
  %5905 = vmatprep.mubr.bf16.mxu0 %v5871
  %5906 = vmatmul.mubr.bf16.gmra.mrb[0].mxu0 %v5867
  %v5907 = vpop.f32.mrb[0].mxu0
  %v5908 = vadd.f32 0.0, %v5907
  %v5909 = vpop.f32.mrb[0].mxu0
  %v5910 = vpop.f32.mrb[0].mxu0
  %v5911 = vpop.f32.mrb[0].mxu0
  %5912 = vdwg.mxu0
  %v5913 = vmax.f32 %v5857, %v5908
  %s5914 = scalar_lea.vmem %s2, 144
  %v5915 = vld [vmem:[%s5914] sm:$0xff]
  %v5917 = vunpack.c.l.b16 %v5915
  %v5918 = vunpack.c.h.b16 %v5915
  %v5919 = vpack.c.b16 %v5917, %v5917
  %v5920 = vpack.c.b16 %v5918, %v5918
  %v5923 = vsel %vm130, %v5920, 0
  %5925 = vmatprep.subr.bf16.mxu0 0
  %5926 = vmatpush1.bf16.msra.mxu0 %v110
  %5927 = vmatprep.subr.bf16.mxu0 0
  %5928 = vmatpush1.bf16.msra.mxu0 %v111
  %5929 = vmatprep.subr.bf16.mxu0 0
  %5930 = vmatpush1.bf16.msra.mxu0 %v112
  %5931 = vmatprep.subr.bf16.mxu0 0
  %5932 = vmatpush1.bf16.msra.mxu0 %v113
  %5933 = vmatprep.subr.bf16.mxu0 0
  %5934 = vmatpush1.bf16.msra.mxu0 %v114
  %5935 = vmatprep.subr.bf16.mxu0 0
  %5936 = vmatpush1.bf16.msra.mxu0 %v115
  %5937 = vmatprep.subr.bf16.mxu0 0
  %5938 = vmatpush1.bf16.msra.mxu0 %v116
  %5939 = vmatprep.subr.bf16.mxu0 0
  %5940 = vmatpush1.bf16.msra.mxu0 %v117
  %5941 = vmatprep.subr.bf16.mxu0 0
  %5942 = vmatpush1.bf16.msra.mxu0 %v118
  %5943 = vmatprep.subr.bf16.mxu0 0
  %5944 = vmatpush1.bf16.msra.mxu0 %v119
  %5945 = vmatprep.subr.bf16.mxu0 0
  %5946 = vmatpush1.bf16.msra.mxu0 0
  %5947 = vmatprep.subr.bf16.mxu0 0
  %5948 = vmatpush1.bf16.msra.mxu0 0
  %5949 = vmatprep.subr.bf16.mxu0 0
  %5950 = vmatpush1.bf16.msra.mxu0 0
  %5951 = vmatprep.subr.bf16.mxu0 0
  %5952 = vmatpush1.bf16.msra.mxu0 0
  %5953 = vmatprep.subr.bf16.mxu0 0
  %5954 = vmatpush1.bf16.msra.mxu0 0
  %5955 = vmatprep.subr.bf16.mxu0 0
  %5956 = vmatpush1.bf16.msra.mxu0 0
  %5957 = vmatprep.mubr.bf16.mxu0 %v5923
  %5958 = vmatmul.mubr.bf16.gmra.mrb[0].mxu0 %v5919
  %v5959 = vpop.f32.mrb[0].mxu0
  %v5960 = vadd.f32 0.0, %v5959
  %v5961 = vpop.f32.mrb[0].mxu0
  %v5962 = vpop.f32.mrb[0].mxu0
  %v5963 = vpop.f32.mrb[0].mxu0
  %5964 = vdwg.mxu0
  %v5965 = vmax.f32 %v5913, %v5960
  %s5966 = scalar_lea.vmem %s3, 144
  %v5967 = vld [vmem:[%s5966] sm:$0xff]
  %v5969 = vunpack.c.l.b16 %v5967
  %v5970 = vunpack.c.h.b16 %v5967
  %v5971 = vpack.c.b16 %v5969, %v5969
  %v5972 = vpack.c.b16 %v5970, %v5970
  %v5975 = vsel %vm130, %v5972, 0
  %5977 = vmatprep.subr.bf16.mxu0 0
  %5978 = vmatpush1.bf16.msra.mxu0 %v110
  %5979 = vmatprep.subr.bf16.mxu0 0
  %5980 = vmatpush1.bf16.msra.mxu0 %v111
  %5981 = vmatprep.subr.bf16.mxu0 0
  %5982 = vmatpush1.bf16.msra.mxu0 %v112
  %5983 = vmatprep.subr.bf16.mxu0 0
  %5984 = vmatpush1.bf16.msra.mxu0 %v113
  %5985 = vmatprep.subr.bf16.mxu0 0
  %5986 = vmatpush1.bf16.msra.mxu0 %v114
  %5987 = vmatprep.subr.bf16.mxu0 0
  %5988 = vmatpush1.bf16.msra.mxu0 %v115
  %5989 = vmatprep.subr.bf16.mxu0 0
  %5990 = vmatpush1.bf16.msra.mxu0 %v116
  %5991 = vmatprep.subr.bf16.mxu0 0
  %5992 = vmatpush1.bf16.msra.mxu0 %v117
  %5993 = vmatprep.subr.bf16.mxu0 0
  %5994 = vmatpush1.bf16.msra.mxu0 %v118
  %5995 = vmatprep.subr.bf16.mxu0 0
  %5996 = vmatpush1.bf16.msra.mxu0 %v119
  %5997 = vmatprep.subr.bf16.mxu0 0
  %5998 = vmatpush1.bf16.msra.mxu0 0
  %5999 = vmatprep.subr.bf16.mxu0 0
  %6000 = vmatpush1.bf16.msra.mxu0 0
  %6001 = vmatprep.subr.bf16.mxu0 0
  %6002 = vmatpush1.bf16.msra.mxu0 0
  %6003 = vmatprep.subr.bf16.mxu0 0
  %6004 = vmatpush1.bf16.msra.mxu0 0
  %6005 = vmatprep.subr.bf16.mxu0 0
  %6006 = vmatpush1.bf16.msra.mxu0 0
  %6007 = vmatprep.subr.bf16.mxu0 0
  %6008 = vmatpush1.bf16.msra.mxu0 0
  %6009 = vmatprep.mubr.bf16.mxu0 %v5975
  %6010 = vmatmul.mubr.bf16.gmra.mrb[0].mxu0 %v5971
  %v6011 = vpop.f32.mrb[0].mxu0
  %v6012 = vadd.f32 0.0, %v6011
  %v6013 = vpop.f32.mrb[0].mxu0
  %v6014 = vpop.f32.mrb[0].mxu0
  %v6015 = vpop.f32.mrb[0].mxu0
  %6016 = vdwg.mxu0
  %v6017 = vmax.f32 %v5965, %v6012
  %v6018 = vadd.f32 %v6017, %v331
  %v6019 = vmax.f32 %v6018, 0.0
  %v6020 = vpack.c.bf16 %v6019, %v6019
  %s6021 = scalar_lea.vmem %s6, 1152
  %v6022 = vld [vmem:[%s6021] sm:$0xf]
  %v6023 = vld [vmem:[%s6021 + $0x4] sm:$0xf]
  %v6024 = vld [vmem:[%s6021 + $0x8] sm:$0xf]
  %v6025 = vld [vmem:[%s6021 + $0xc] sm:$0xf]
  %v6026 = vld [vmem:[%s6021 + $0x10] sm:$0xf]
  %v6027 = vld [vmem:[%s6021 + $0x14] sm:$0xf]
  %v6028 = vld [vmem:[%s6021 + $0x18] sm:$0xf]
  %v6029 = vld [vmem:[%s6021 + $0x1c] sm:$0xf]
  %v6030 = vld [vmem:[%s6021 + $0x20] sm:$0xf]
  %v6031 = vld [vmem:[%s6021 + $0x24] sm:$0xf]
  %v6032 = vld [vmem:[%s6021 + $0x28] sm:$0xf]
  %v6033 = vld [vmem:[%s6021 + $0x2c] sm:$0xf]
  %v6034 = vld [vmem:[%s6021 + $0x30] sm:$0xf]
  %v6035 = vld [vmem:[%s6021 + $0x34] sm:$0xf]
  %v6036 = vld [vmem:[%s6021 + $0x38] sm:$0xf]
  %v6037 = vld [vmem:[%s6021 + $0x3c] sm:$0xf]
  %v6054 = vunpack.c.l.b16 %v6022
  %v6055 = vunpack.c.l.b16 %v6023
  %v6056 = vunpack.c.l.b16 %v6024
  %v6057 = vunpack.c.l.b16 %v6025
  %v6058 = vunpack.c.l.b16 %v6026
  %v6059 = vunpack.c.l.b16 %v6027
  %v6060 = vunpack.c.l.b16 %v6028
  %v6061 = vunpack.c.l.b16 %v6029
  %v6062 = vunpack.c.l.b16 %v6030
  %v6063 = vunpack.c.l.b16 %v6031
  %v6064 = vunpack.c.l.b16 %v6032
  %v6065 = vunpack.c.l.b16 %v6033
  %v6066 = vunpack.c.l.b16 %v6034
  %v6067 = vunpack.c.l.b16 %v6035
  %v6068 = vunpack.c.l.b16 %v6036
  %v6069 = vunpack.c.l.b16 %v6037
  %v6070 = vpack.c.b16 %v6055, %v6054
  %v6071 = vpack.c.b16 %v6057, %v6056
  %v6072 = vpack.c.b16 %v6059, %v6058
  %v6073 = vpack.c.b16 %v6061, %v6060
  %v6074 = vpack.c.b16 %v6063, %v6062
  %v6075 = vpack.c.b16 %v6065, %v6064
  %v6076 = vpack.c.b16 %v6067, %v6066
  %v6077 = vpack.c.b16 %v6069, %v6068
  %6086 = vmatprep.subr.bf16.mxu0 0
  %6087 = vmatpush1.bf16.msra.mxu0 %v6070
  %6088 = vmatprep.subr.bf16.mxu0 0
  %6089 = vmatpush1.bf16.msra.mxu0 %v6071
  %6090 = vmatprep.subr.bf16.mxu0 0
  %6091 = vmatpush1.bf16.msra.mxu0 %v6072
  %6092 = vmatprep.subr.bf16.mxu0 0
  %6093 = vmatpush1.bf16.msra.mxu0 %v6073
  %6094 = vmatprep.subr.bf16.mxu0 0
  %6095 = vmatpush1.bf16.msra.mxu0 %v6074
  %6096 = vmatprep.subr.bf16.mxu0 0
  %6097 = vmatpush1.bf16.msra.mxu0 %v6075
  %6098 = vmatprep.subr.bf16.mxu0 0
  %6099 = vmatpush1.bf16.msra.mxu0 %v6076
  %6100 = vmatprep.subr.bf16.mxu0 0
  %6101 = vmatpush1.bf16.msra.mxu0 %v6077
  %6102 = vmatprep.subr.bf16.mxu0 0
  %6103 = vmatpush1.bf16.msra.mxu0 0
  %6104 = vmatprep.subr.bf16.mxu0 0
  %6105 = vmatpush1.bf16.msra.mxu0 0
  %6106 = vmatprep.subr.bf16.mxu0 0
  %6107 = vmatpush1.bf16.msra.mxu0 0
  %6108 = vmatprep.subr.bf16.mxu0 0
  %6109 = vmatpush1.bf16.msra.mxu0 0
  %6110 = vmatprep.subr.bf16.mxu0 0
  %6111 = vmatpush1.bf16.msra.mxu0 0
  %6112 = vmatprep.subr.bf16.mxu0 0
  %6113 = vmatpush1.bf16.msra.mxu0 0
  %6114 = vmatprep.subr.bf16.mxu0 0
  %6115 = vmatpush1.bf16.msra.mxu0 0
  %6116 = vmatprep.subr.bf16.mxu0 0
  %6117 = vmatpush1.bf16.msra.mxu0 0
  %6118 = vmatprep.mubr.bf16.mxu0 0
  %6119 = vmatmul.mubr.bf16.gmra.mrb[0].mxu0 %v6020
  %v6120 = vpop.f32.mrb[0].mxu0
  %v6121 = vadd.f32 0.0, %v6120
  %v6122 = vpop.f32.mrb[0].mxu0
  %v6123 = vpop.f32.mrb[0].mxu0
  %v6124 = vpop.f32.mrb[0].mxu0
  %6125 = vdwg.mxu0
  %v6126 = vadd.f32 %v5810, %v6121
  %s6127 = scalar_lea.vmem %s0, 152
  %v6128 = vld [vmem:[%s6127] sm:$0xff]
  %v6130 = vunpack.c.l.b16 %v6128
  %v6131 = vunpack.c.h.b16 %v6128
  %v6132 = vpack.c.b16 %v6130, %v6130
  %v6133 = vpack.c.b16 %v6131, %v6131
  %v6136 = vsel %vm130, %v6133, 0
  %6138 = vmatprep.subr.bf16.mxu0 0
  %6139 = vmatpush1.bf16.msra.mxu0 %v110
  %6140 = vmatprep.subr.bf16.mxu0 0
  %6141 = vmatpush1.bf16.msra.mxu0 %v111
  %6142 = vmatprep.subr.bf16.mxu0 0
  %6143 = vmatpush1.bf16.msra.mxu0 %v112
  %6144 = vmatprep.subr.bf16.mxu0 0
  %6145 = vmatpush1.bf16.msra.mxu0 %v113
  %6146 = vmatprep.subr.bf16.mxu0 0
  %6147 = vmatpush1.bf16.msra.mxu0 %v114
  %6148 = vmatprep.subr.bf16.mxu0 0
  %6149 = vmatpush1.bf16.msra.mxu0 %v115
  %6150 = vmatprep.subr.bf16.mxu0 0
  %6151 = vmatpush1.bf16.msra.mxu0 %v116
  %6152 = vmatprep.subr.bf16.mxu0 0
  %6153 = vmatpush1.bf16.msra.mxu0 %v117
  %6154 = vmatprep.subr.bf16.mxu0 0
  %6155 = vmatpush1.bf16.msra.mxu0 %v118
  %6156 = vmatprep.subr.bf16.mxu0 0
  %6157 = vmatpush1.bf16.msra.mxu0 %v119
  %6158 = vmatprep.subr.bf16.mxu0 0
  %6159 = vmatpush1.bf16.msra.mxu0 0
  %6160 = vmatprep.subr.bf16.mxu0 0
  %6161 = vmatpush1.bf16.msra.mxu0 0
  %6162 = vmatprep.subr.bf16.mxu0 0
  %6163 = vmatpush1.bf16.msra.mxu0 0
  %6164 = vmatprep.subr.bf16.mxu0 0
  %6165 = vmatpush1.bf16.msra.mxu0 0
  %6166 = vmatprep.subr.bf16.mxu0 0
  %6167 = vmatpush1.bf16.msra.mxu0 0
  %6168 = vmatprep.subr.bf16.mxu0 0
  %6169 = vmatpush1.bf16.msra.mxu0 0
  %6170 = vmatprep.mubr.bf16.mxu0 %v6136
  %6171 = vmatmul.mubr.bf16.gmra.mrb[0].mxu0 %v6132
  %v6172 = vpop.f32.mrb[0].mxu0
  %v6173 = vadd.f32 0.0, %v6172
  %v6174 = vpop.f32.mrb[0].mxu0
  %v6175 = vpop.f32.mrb[0].mxu0
  %v6176 = vpop.f32.mrb[0].mxu0
  %6177 = vdwg.mxu0
  %s6178 = scalar_lea.vmem %s1, 152
  %v6179 = vld [vmem:[%s6178] sm:$0xff]
  %v6181 = vunpack.c.l.b16 %v6179
  %v6182 = vunpack.c.h.b16 %v6179
  %v6183 = vpack.c.b16 %v6181, %v6181
  %v6184 = vpack.c.b16 %v6182, %v6182
  %v6187 = vsel %vm130, %v6184, 0
  %6189 = vmatprep.subr.bf16.mxu0 0
  %6190 = vmatpush1.bf16.msra.mxu0 %v110
  %6191 = vmatprep.subr.bf16.mxu0 0
  %6192 = vmatpush1.bf16.msra.mxu0 %v111
  %6193 = vmatprep.subr.bf16.mxu0 0
  %6194 = vmatpush1.bf16.msra.mxu0 %v112
  %6195 = vmatprep.subr.bf16.mxu0 0
  %6196 = vmatpush1.bf16.msra.mxu0 %v113
  %6197 = vmatprep.subr.bf16.mxu0 0
  %6198 = vmatpush1.bf16.msra.mxu0 %v114
  %6199 = vmatprep.subr.bf16.mxu0 0
  %6200 = vmatpush1.bf16.msra.mxu0 %v115
  %6201 = vmatprep.subr.bf16.mxu0 0
  %6202 = vmatpush1.bf16.msra.mxu0 %v116
  %6203 = vmatprep.subr.bf16.mxu0 0
  %6204 = vmatpush1.bf16.msra.mxu0 %v117
  %6205 = vmatprep.subr.bf16.mxu0 0
  %6206 = vmatpush1.bf16.msra.mxu0 %v118
  %6207 = vmatprep.subr.bf16.mxu0 0
  %6208 = vmatpush1.bf16.msra.mxu0 %v119
  %6209 = vmatprep.subr.bf16.mxu0 0
  %6210 = vmatpush1.bf16.msra.mxu0 0
  %6211 = vmatprep.subr.bf16.mxu0 0
  %6212 = vmatpush1.bf16.msra.mxu0 0
  %6213 = vmatprep.subr.bf16.mxu0 0
  %6214 = vmatpush1.bf16.msra.mxu0 0
  %6215 = vmatprep.subr.bf16.mxu0 0
  %6216 = vmatpush1.bf16.msra.mxu0 0
  %6217 = vmatprep.subr.bf16.mxu0 0
  %6218 = vmatpush1.bf16.msra.mxu0 0
  %6219 = vmatprep.subr.bf16.mxu0 0
  %6220 = vmatpush1.bf16.msra.mxu0 0
  %6221 = vmatprep.mubr.bf16.mxu0 %v6187
  %6222 = vmatmul.mubr.bf16.gmra.mrb[0].mxu0 %v6183
  %v6223 = vpop.f32.mrb[0].mxu0
  %v6224 = vadd.f32 0.0, %v6223
  %v6225 = vpop.f32.mrb[0].mxu0
  %v6226 = vpop.f32.mrb[0].mxu0
  %v6227 = vpop.f32.mrb[0].mxu0
  %6228 = vdwg.mxu0
  %v6229 = vmax.f32 %v6173, %v6224
  %s6230 = scalar_lea.vmem %s2, 152
  %v6231 = vld [vmem:[%s6230] sm:$0xff]
  %v6233 = vunpack.c.l.b16 %v6231
  %v6234 = vunpack.c.h.b16 %v6231
  %v6235 = vpack.c.b16 %v6233, %v6233
  %v6236 = vpack.c.b16 %v6234, %v6234
  %v6239 = vsel %vm130, %v6236, 0
  %6241 = vmatprep.subr.bf16.mxu0 0
  %6242 = vmatpush1.bf16.msra.mxu0 %v110
  %6243 = vmatprep.subr.bf16.mxu0 0
  %6244 = vmatpush1.bf16.msra.mxu0 %v111
  %6245 = vmatprep.subr.bf16.mxu0 0
  %6246 = vmatpush1.bf16.msra.mxu0 %v112
  %6247 = vmatprep.subr.bf16.mxu0 0
  %6248 = vmatpush1.bf16.msra.mxu0 %v113
  %6249 = vmatprep.subr.bf16.mxu0 0
  %6250 = vmatpush1.bf16.msra.mxu0 %v114
  %6251 = vmatprep.subr.bf16.mxu0 0
  %6252 = vmatpush1.bf16.msra.mxu0 %v115
  %6253 = vmatprep.subr.bf16.mxu0 0
  %6254 = vmatpush1.bf16.msra.mxu0 %v116
  %6255 = vmatprep.subr.bf16.mxu0 0
  %6256 = vmatpush1.bf16.msra.mxu0 %v117
  %6257 = vmatprep.subr.bf16.mxu0 0
  %6258 = vmatpush1.bf16.msra.mxu0 %v118
  %6259 = vmatprep.subr.bf16.mxu0 0
  %6260 = vmatpush1.bf16.msra.mxu0 %v119
  %6261 = vmatprep.subr.bf16.mxu0 0
  %6262 = vmatpush1.bf16.msra.mxu0 0
  %6263 = vmatprep.subr.bf16.mxu0 0
  %6264 = vmatpush1.bf16.msra.mxu0 0
  %6265 = vmatprep.subr.bf16.mxu0 0
  %6266 = vmatpush1.bf16.msra.mxu0 0
  %6267 = vmatprep.subr.bf16.mxu0 0
  %6268 = vmatpush1.bf16.msra.mxu0 0
  %6269 = vmatprep.subr.bf16.mxu0 0
  %6270 = vmatpush1.bf16.msra.mxu0 0
  %6271 = vmatprep.subr.bf16.mxu0 0
  %6272 = vmatpush1.bf16.msra.mxu0 0
  %6273 = vmatprep.mubr.bf16.mxu0 %v6239
  %6274 = vmatmul.mubr.bf16.gmra.mrb[0].mxu0 %v6235
  %v6275 = vpop.f32.mrb[0].mxu0
  %v6276 = vadd.f32 0.0, %v6275
  %v6277 = vpop.f32.mrb[0].mxu0
  %v6278 = vpop.f32.mrb[0].mxu0
  %v6279 = vpop.f32.mrb[0].mxu0
  %6280 = vdwg.mxu0
  %v6281 = vmax.f32 %v6229, %v6276
  %s6282 = scalar_lea.vmem %s3, 152
  %v6283 = vld [vmem:[%s6282] sm:$0xff]
  %v6285 = vunpack.c.l.b16 %v6283
  %v6286 = vunpack.c.h.b16 %v6283
  %v6287 = vpack.c.b16 %v6285, %v6285
  %v6288 = vpack.c.b16 %v6286, %v6286
  %v6291 = vsel %vm130, %v6288, 0
  %6293 = vmatprep.subr.bf16.mxu0 0
  %6294 = vmatpush1.bf16.msra.mxu0 %v110
  %6295 = vmatprep.subr.bf16.mxu0 0
  %6296 = vmatpush1.bf16.msra.mxu0 %v111
  %6297 = vmatprep.subr.bf16.mxu0 0
  %6298 = vmatpush1.bf16.msra.mxu0 %v112
  %6299 = vmatprep.subr.bf16.mxu0 0
  %6300 = vmatpush1.bf16.msra.mxu0 %v113
  %6301 = vmatprep.subr.bf16.mxu0 0
  %6302 = vmatpush1.bf16.msra.mxu0 %v114
  %6303 = vmatprep.subr.bf16.mxu0 0
  %6304 = vmatpush1.bf16.msra.mxu0 %v115
  %6305 = vmatprep.subr.bf16.mxu0 0
  %6306 = vmatpush1.bf16.msra.mxu0 %v116
  %6307 = vmatprep.subr.bf16.mxu0 0
  %6308 = vmatpush1.bf16.msra.mxu0 %v117
  %6309 = vmatprep.subr.bf16.mxu0 0
  %6310 = vmatpush1.bf16.msra.mxu0 %v118
  %6311 = vmatprep.subr.bf16.mxu0 0
  %6312 = vmatpush1.bf16.msra.mxu0 %v119
  %6313 = vmatprep.subr.bf16.mxu0 0
  %6314 = vmatpush1.bf16.msra.mxu0 0
  %6315 = vmatprep.subr.bf16.mxu0 0
  %6316 = vmatpush1.bf16.msra.mxu0 0
  %6317 = vmatprep.subr.bf16.mxu0 0
  %6318 = vmatpush1.bf16.msra.mxu0 0
  %6319 = vmatprep.subr.bf16.mxu0 0
  %6320 = vmatpush1.bf16.msra.mxu0 0
  %6321 = vmatprep.subr.bf16.mxu0 0
  %6322 = vmatpush1.bf16.msra.mxu0 0
  %6323 = vmatprep.subr.bf16.mxu0 0
  %6324 = vmatpush1.bf16.msra.mxu0 0
  %6325 = vmatprep.mubr.bf16.mxu0 %v6291
  %6326 = vmatmul.mubr.bf16.gmra.mrb[0].mxu0 %v6287
  %v6327 = vpop.f32.mrb[0].mxu0
  %v6328 = vadd.f32 0.0, %v6327
  %v6329 = vpop.f32.mrb[0].mxu0
  %v6330 = vpop.f32.mrb[0].mxu0
  %v6331 = vpop.f32.mrb[0].mxu0
  %6332 = vdwg.mxu0
  %v6333 = vmax.f32 %v6281, %v6328
  %v6334 = vadd.f32 %v6333, %v331
  %v6335 = vmax.f32 %v6334, 0.0
  %v6336 = vpack.c.bf16 %v6335, %v6335
  %s6337 = scalar_lea.vmem %s6, 1216
  %v6338 = vld [vmem:[%s6337] sm:$0xf]
  %v6339 = vld [vmem:[%s6337 + $0x4] sm:$0xf]
  %v6340 = vld [vmem:[%s6337 + $0x8] sm:$0xf]
  %v6341 = vld [vmem:[%s6337 + $0xc] sm:$0xf]
  %v6342 = vld [vmem:[%s6337 + $0x10] sm:$0xf]
  %v6343 = vld [vmem:[%s6337 + $0x14] sm:$0xf]
  %v6344 = vld [vmem:[%s6337 + $0x18] sm:$0xf]
  %v6345 = vld [vmem:[%s6337 + $0x1c] sm:$0xf]
  %v6346 = vld [vmem:[%s6337 + $0x20] sm:$0xf]
  %v6347 = vld [vmem:[%s6337 + $0x24] sm:$0xf]
  %v6348 = vld [vmem:[%s6337 + $0x28] sm:$0xf]
  %v6349 = vld [vmem:[%s6337 + $0x2c] sm:$0xf]
  %v6350 = vld [vmem:[%s6337 + $0x30] sm:$0xf]
  %v6351 = vld [vmem:[%s6337 + $0x34] sm:$0xf]
  %v6352 = vld [vmem:[%s6337 + $0x38] sm:$0xf]
  %v6353 = vld [vmem:[%s6337 + $0x3c] sm:$0xf]
  %v6370 = vunpack.c.l.b16 %v6338
  %v6371 = vunpack.c.l.b16 %v6339
  %v6372 = vunpack.c.l.b16 %v6340
  %v6373 = vunpack.c.l.b16 %v6341
  %v6374 = vunpack.c.l.b16 %v6342
  %v6375 = vunpack.c.l.b16 %v6343
  %v6376 = vunpack.c.l.b16 %v6344
  %v6377 = vunpack.c.l.b16 %v6345
  %v6378 = vunpack.c.l.b16 %v6346
  %v6379 = vunpack.c.l.b16 %v6347
  %v6380 = vunpack.c.l.b16 %v6348
  %v6381 = vunpack.c.l.b16 %v6349
  %v6382 = vunpack.c.l.b16 %v6350
  %v6383 = vunpack.c.l.b16 %v6351
  %v6384 = vunpack.c.l.b16 %v6352
  %v6385 = vunpack.c.l.b16 %v6353
  %v6386 = vpack.c.b16 %v6371, %v6370
  %v6387 = vpack.c.b16 %v6373, %v6372
  %v6388 = vpack.c.b16 %v6375, %v6374
  %v6389 = vpack.c.b16 %v6377, %v6376
  %v6390 = vpack.c.b16 %v6379, %v6378
  %v6391 = vpack.c.b16 %v6381, %v6380
  %v6392 = vpack.c.b16 %v6383, %v6382
  %v6393 = vpack.c.b16 %v6385, %v6384
  %6402 = vmatprep.subr.bf16.mxu0 0
  %6403 = vmatpush1.bf16.msra.mxu0 %v6386
  %6404 = vmatprep.subr.bf16.mxu0 0
  %6405 = vmatpush1.bf16.msra.mxu0 %v6387
  %6406 = vmatprep.subr.bf16.mxu0 0
  %6407 = vmatpush1.bf16.msra.mxu0 %v6388
  %6408 = vmatprep.subr.bf16.mxu0 0
  %6409 = vmatpush1.bf16.msra.mxu0 %v6389
  %6410 = vmatprep.subr.bf16.mxu0 0
  %6411 = vmatpush1.bf16.msra.mxu0 %v6390
  %6412 = vmatprep.subr.bf16.mxu0 0
  %6413 = vmatpush1.bf16.msra.mxu0 %v6391
  %6414 = vmatprep.subr.bf16.mxu0 0
  %6415 = vmatpush1.bf16.msra.mxu0 %v6392
  %6416 = vmatprep.subr.bf16.mxu0 0
  %6417 = vmatpush1.bf16.msra.mxu0 %v6393
  %6418 = vmatprep.subr.bf16.mxu0 0
  %6419 = vmatpush1.bf16.msra.mxu0 0
  %6420 = vmatprep.subr.bf16.mxu0 0
  %6421 = vmatpush1.bf16.msra.mxu0 0
  %6422 = vmatprep.subr.bf16.mxu0 0
  %6423 = vmatpush1.bf16.msra.mxu0 0
  %6424 = vmatprep.subr.bf16.mxu0 0
  %6425 = vmatpush1.bf16.msra.mxu0 0
  %6426 = vmatprep.subr.bf16.mxu0 0
  %6427 = vmatpush1.bf16.msra.mxu0 0
  %6428 = vmatprep.subr.bf16.mxu0 0
  %6429 = vmatpush1.bf16.msra.mxu0 0
  %6430 = vmatprep.subr.bf16.mxu0 0
  %6431 = vmatpush1.bf16.msra.mxu0 0
  %6432 = vmatprep.subr.bf16.mxu0 0
  %6433 = vmatpush1.bf16.msra.mxu0 0
  %6434 = vmatprep.mubr.bf16.mxu0 0
  %6435 = vmatmul.mubr.bf16.gmra.mrb[0].mxu0 %v6336
  %v6436 = vpop.f32.mrb[0].mxu0
  %v6437 = vadd.f32 0.0, %v6436
  %v6438 = vpop.f32.mrb[0].mxu0
  %v6439 = vpop.f32.mrb[0].mxu0
  %v6440 = vpop.f32.mrb[0].mxu0
  %6441 = vdwg.mxu0
  %v6442 = vadd.f32 %v6126, %v6437
  %s6443 = scalar_lea.vmem %s0, 160
  %v6444 = vld [vmem:[%s6443] sm:$0xff]
  %v6446 = vunpack.c.l.b16 %v6444
  %v6447 = vunpack.c.h.b16 %v6444
  %v6448 = vpack.c.b16 %v6446, %v6446
  %v6449 = vpack.c.b16 %v6447, %v6447
  %v6452 = vsel %vm130, %v6449, 0
  %6454 = vmatprep.subr.bf16.mxu0 0
  %6455 = vmatpush1.bf16.msra.mxu0 %v110
  %6456 = vmatprep.subr.bf16.mxu0 0
  %6457 = vmatpush1.bf16.msra.mxu0 %v111
  %6458 = vmatprep.subr.bf16.mxu0 0
  %6459 = vmatpush1.bf16.msra.mxu0 %v112
  %6460 = vmatprep.subr.bf16.mxu0 0
  %6461 = vmatpush1.bf16.msra.mxu0 %v113
  %6462 = vmatprep.subr.bf16.mxu0 0
  %6463 = vmatpush1.bf16.msra.mxu0 %v114
  %6464 = vmatprep.subr.bf16.mxu0 0
  %6465 = vmatpush1.bf16.msra.mxu0 %v115
  %6466 = vmatprep.subr.bf16.mxu0 0
  %6467 = vmatpush1.bf16.msra.mxu0 %v116
  %6468 = vmatprep.subr.bf16.mxu0 0
  %6469 = vmatpush1.bf16.msra.mxu0 %v117
  %6470 = vmatprep.subr.bf16.mxu0 0
  %6471 = vmatpush1.bf16.msra.mxu0 %v118
  %6472 = vmatprep.subr.bf16.mxu0 0
  %6473 = vmatpush1.bf16.msra.mxu0 %v119
  %6474 = vmatprep.subr.bf16.mxu0 0
  %6475 = vmatpush1.bf16.msra.mxu0 0
  %6476 = vmatprep.subr.bf16.mxu0 0
  %6477 = vmatpush1.bf16.msra.mxu0 0
  %6478 = vmatprep.subr.bf16.mxu0 0
  %6479 = vmatpush1.bf16.msra.mxu0 0
  %6480 = vmatprep.subr.bf16.mxu0 0
  %6481 = vmatpush1.bf16.msra.mxu0 0
  %6482 = vmatprep.subr.bf16.mxu0 0
  %6483 = vmatpush1.bf16.msra.mxu0 0
  %6484 = vmatprep.subr.bf16.mxu0 0
  %6485 = vmatpush1.bf16.msra.mxu0 0
  %6486 = vmatprep.mubr.bf16.mxu0 %v6452
  %6487 = vmatmul.mubr.bf16.gmra.mrb[0].mxu0 %v6448
  %v6488 = vpop.f32.mrb[0].mxu0
  %v6489 = vadd.f32 0.0, %v6488
  %v6490 = vpop.f32.mrb[0].mxu0
  %v6491 = vpop.f32.mrb[0].mxu0
  %v6492 = vpop.f32.mrb[0].mxu0
  %6493 = vdwg.mxu0
  %s6494 = scalar_lea.vmem %s1, 160
  %v6495 = vld [vmem:[%s6494] sm:$0xff]
  %v6497 = vunpack.c.l.b16 %v6495
  %v6498 = vunpack.c.h.b16 %v6495
  %v6499 = vpack.c.b16 %v6497, %v6497
  %v6500 = vpack.c.b16 %v6498, %v6498
  %v6503 = vsel %vm130, %v6500, 0
  %6505 = vmatprep.subr.bf16.mxu0 0
  %6506 = vmatpush1.bf16.msra.mxu0 %v110
  %6507 = vmatprep.subr.bf16.mxu0 0
  %6508 = vmatpush1.bf16.msra.mxu0 %v111
  %6509 = vmatprep.subr.bf16.mxu0 0
  %6510 = vmatpush1.bf16.msra.mxu0 %v112
  %6511 = vmatprep.subr.bf16.mxu0 0
  %6512 = vmatpush1.bf16.msra.mxu0 %v113
  %6513 = vmatprep.subr.bf16.mxu0 0
  %6514 = vmatpush1.bf16.msra.mxu0 %v114
  %6515 = vmatprep.subr.bf16.mxu0 0
  %6516 = vmatpush1.bf16.msra.mxu0 %v115
  %6517 = vmatprep.subr.bf16.mxu0 0
  %6518 = vmatpush1.bf16.msra.mxu0 %v116
  %6519 = vmatprep.subr.bf16.mxu0 0
  %6520 = vmatpush1.bf16.msra.mxu0 %v117
  %6521 = vmatprep.subr.bf16.mxu0 0
  %6522 = vmatpush1.bf16.msra.mxu0 %v118
  %6523 = vmatprep.subr.bf16.mxu0 0
  %6524 = vmatpush1.bf16.msra.mxu0 %v119
  %6525 = vmatprep.subr.bf16.mxu0 0
  %6526 = vmatpush1.bf16.msra.mxu0 0
  %6527 = vmatprep.subr.bf16.mxu0 0
  %6528 = vmatpush1.bf16.msra.mxu0 0
  %6529 = vmatprep.subr.bf16.mxu0 0
  %6530 = vmatpush1.bf16.msra.mxu0 0
  %6531 = vmatprep.subr.bf16.mxu0 0
  %6532 = vmatpush1.bf16.msra.mxu0 0
  %6533 = vmatprep.subr.bf16.mxu0 0
  %6534 = vmatpush1.bf16.msra.mxu0 0
  %6535 = vmatprep.subr.bf16.mxu0 0
  %6536 = vmatpush1.bf16.msra.mxu0 0
  %6537 = vmatprep.mubr.bf16.mxu0 %v6503
  %6538 = vmatmul.mubr.bf16.gmra.mrb[0].mxu0 %v6499
  %v6539 = vpop.f32.mrb[0].mxu0
  %v6540 = vadd.f32 0.0, %v6539
  %v6541 = vpop.f32.mrb[0].mxu0
  %v6542 = vpop.f32.mrb[0].mxu0
  %v6543 = vpop.f32.mrb[0].mxu0
  %6544 = vdwg.mxu0
  %v6545 = vmax.f32 %v6489, %v6540
  %s6546 = scalar_lea.vmem %s2, 160
  %v6547 = vld [vmem:[%s6546] sm:$0xff]
  %v6549 = vunpack.c.l.b16 %v6547
  %v6550 = vunpack.c.h.b16 %v6547
  %v6551 = vpack.c.b16 %v6549, %v6549
  %v6552 = vpack.c.b16 %v6550, %v6550
  %v6555 = vsel %vm130, %v6552, 0
  %6557 = vmatprep.subr.bf16.mxu0 0
  %6558 = vmatpush1.bf16.msra.mxu0 %v110
  %6559 = vmatprep.subr.bf16.mxu0 0
  %6560 = vmatpush1.bf16.msra.mxu0 %v111
  %6561 = vmatprep.subr.bf16.mxu0 0
  %6562 = vmatpush1.bf16.msra.mxu0 %v112
  %6563 = vmatprep.subr.bf16.mxu0 0
  %6564 = vmatpush1.bf16.msra.mxu0 %v113
  %6565 = vmatprep.subr.bf16.mxu0 0
  %6566 = vmatpush1.bf16.msra.mxu0 %v114
  %6567 = vmatprep.subr.bf16.mxu0 0
  %6568 = vmatpush1.bf16.msra.mxu0 %v115
  %6569 = vmatprep.subr.bf16.mxu0 0
  %6570 = vmatpush1.bf16.msra.mxu0 %v116
  %6571 = vmatprep.subr.bf16.mxu0 0
  %6572 = vmatpush1.bf16.msra.mxu0 %v117
  %6573 = vmatprep.subr.bf16.mxu0 0
  %6574 = vmatpush1.bf16.msra.mxu0 %v118
  %6575 = vmatprep.subr.bf16.mxu0 0
  %6576 = vmatpush1.bf16.msra.mxu0 %v119
  %6577 = vmatprep.subr.bf16.mxu0 0
  %6578 = vmatpush1.bf16.msra.mxu0 0
  %6579 = vmatprep.subr.bf16.mxu0 0
  %6580 = vmatpush1.bf16.msra.mxu0 0
  %6581 = vmatprep.subr.bf16.mxu0 0
  %6582 = vmatpush1.bf16.msra.mxu0 0
  %6583 = vmatprep.subr.bf16.mxu0 0
  %6584 = vmatpush1.bf16.msra.mxu0 0
  %6585 = vmatprep.subr.bf16.mxu0 0
  %6586 = vmatpush1.bf16.msra.mxu0 0
  %6587 = vmatprep.subr.bf16.mxu0 0
  %6588 = vmatpush1.bf16.msra.mxu0 0
  %6589 = vmatprep.mubr.bf16.mxu0 %v6555
  %6590 = vmatmul.mubr.bf16.gmra.mrb[0].mxu0 %v6551
  %v6591 = vpop.f32.mrb[0].mxu0
  %v6592 = vadd.f32 0.0, %v6591
  %v6593 = vpop.f32.mrb[0].mxu0
  %v6594 = vpop.f32.mrb[0].mxu0
  %v6595 = vpop.f32.mrb[0].mxu0
  %6596 = vdwg.mxu0
  %v6597 = vmax.f32 %v6545, %v6592
  %s6598 = scalar_lea.vmem %s3, 160
  %v6599 = vld [vmem:[%s6598] sm:$0xff]
  %v6601 = vunpack.c.l.b16 %v6599
  %v6602 = vunpack.c.h.b16 %v6599
  %v6603 = vpack.c.b16 %v6601, %v6601
  %v6604 = vpack.c.b16 %v6602, %v6602
  %v6607 = vsel %vm130, %v6604, 0
  %6609 = vmatprep.subr.bf16.mxu0 0
  %6610 = vmatpush1.bf16.msra.mxu0 %v110
  %6611 = vmatprep.subr.bf16.mxu0 0
  %6612 = vmatpush1.bf16.msra.mxu0 %v111
  %6613 = vmatprep.subr.bf16.mxu0 0
  %6614 = vmatpush1.bf16.msra.mxu0 %v112
  %6615 = vmatprep.subr.bf16.mxu0 0
  %6616 = vmatpush1.bf16.msra.mxu0 %v113
  %6617 = vmatprep.subr.bf16.mxu0 0
  %6618 = vmatpush1.bf16.msra.mxu0 %v114
  %6619 = vmatprep.subr.bf16.mxu0 0
  %6620 = vmatpush1.bf16.msra.mxu0 %v115
  %6621 = vmatprep.subr.bf16.mxu0 0
  %6622 = vmatpush1.bf16.msra.mxu0 %v116
  %6623 = vmatprep.subr.bf16.mxu0 0
  %6624 = vmatpush1.bf16.msra.mxu0 %v117
  %6625 = vmatprep.subr.bf16.mxu0 0
  %6626 = vmatpush1.bf16.msra.mxu0 %v118
  %6627 = vmatprep.subr.bf16.mxu0 0
  %6628 = vmatpush1.bf16.msra.mxu0 %v119
  %6629 = vmatprep.subr.bf16.mxu0 0
  %6630 = vmatpush1.bf16.msra.mxu0 0
  %6631 = vmatprep.subr.bf16.mxu0 0
  %6632 = vmatpush1.bf16.msra.mxu0 0
  %6633 = vmatprep.subr.bf16.mxu0 0
  %6634 = vmatpush1.bf16.msra.mxu0 0
  %6635 = vmatprep.subr.bf16.mxu0 0
  %6636 = vmatpush1.bf16.msra.mxu0 0
  %6637 = vmatprep.subr.bf16.mxu0 0
  %6638 = vmatpush1.bf16.msra.mxu0 0
  %6639 = vmatprep.subr.bf16.mxu0 0
  %6640 = vmatpush1.bf16.msra.mxu0 0
  %6641 = vmatprep.mubr.bf16.mxu0 %v6607
  %6642 = vmatmul.mubr.bf16.gmra.mrb[0].mxu0 %v6603
  %v6643 = vpop.f32.mrb[0].mxu0
  %v6644 = vadd.f32 0.0, %v6643
  %v6645 = vpop.f32.mrb[0].mxu0
  %v6646 = vpop.f32.mrb[0].mxu0
  %v6647 = vpop.f32.mrb[0].mxu0
  %6648 = vdwg.mxu0
  %v6649 = vmax.f32 %v6597, %v6644
  %v6650 = vadd.f32 %v6649, %v331
  %v6651 = vmax.f32 %v6650, 0.0
  %v6652 = vpack.c.bf16 %v6651, %v6651
  %s6653 = scalar_lea.vmem %s6, 1280
  %v6654 = vld [vmem:[%s6653] sm:$0xf]
  %v6655 = vld [vmem:[%s6653 + $0x4] sm:$0xf]
  %v6656 = vld [vmem:[%s6653 + $0x8] sm:$0xf]
  %v6657 = vld [vmem:[%s6653 + $0xc] sm:$0xf]
  %v6658 = vld [vmem:[%s6653 + $0x10] sm:$0xf]
  %v6659 = vld [vmem:[%s6653 + $0x14] sm:$0xf]
  %v6660 = vld [vmem:[%s6653 + $0x18] sm:$0xf]
  %v6661 = vld [vmem:[%s6653 + $0x1c] sm:$0xf]
  %v6662 = vld [vmem:[%s6653 + $0x20] sm:$0xf]
  %v6663 = vld [vmem:[%s6653 + $0x24] sm:$0xf]
  %v6664 = vld [vmem:[%s6653 + $0x28] sm:$0xf]
  %v6665 = vld [vmem:[%s6653 + $0x2c] sm:$0xf]
  %v6666 = vld [vmem:[%s6653 + $0x30] sm:$0xf]
  %v6667 = vld [vmem:[%s6653 + $0x34] sm:$0xf]
  %v6668 = vld [vmem:[%s6653 + $0x38] sm:$0xf]
  %v6669 = vld [vmem:[%s6653 + $0x3c] sm:$0xf]
  %v6686 = vunpack.c.l.b16 %v6654
  %v6687 = vunpack.c.l.b16 %v6655
  %v6688 = vunpack.c.l.b16 %v6656
  %v6689 = vunpack.c.l.b16 %v6657
  %v6690 = vunpack.c.l.b16 %v6658
  %v6691 = vunpack.c.l.b16 %v6659
  %v6692 = vunpack.c.l.b16 %v6660
  %v6693 = vunpack.c.l.b16 %v6661
  %v6694 = vunpack.c.l.b16 %v6662
  %v6695 = vunpack.c.l.b16 %v6663
  %v6696 = vunpack.c.l.b16 %v6664
  %v6697 = vunpack.c.l.b16 %v6665
  %v6698 = vunpack.c.l.b16 %v6666
  %v6699 = vunpack.c.l.b16 %v6667
  %v6700 = vunpack.c.l.b16 %v6668
  %v6701 = vunpack.c.l.b16 %v6669
  %v6702 = vpack.c.b16 %v6687, %v6686
  %v6703 = vpack.c.b16 %v6689, %v6688
  %v6704 = vpack.c.b16 %v6691, %v6690
  %v6705 = vpack.c.b16 %v6693, %v6692
  %v6706 = vpack.c.b16 %v6695, %v6694
  %v6707 = vpack.c.b16 %v6697, %v6696
  %v6708 = vpack.c.b16 %v6699, %v6698
  %v6709 = vpack.c.b16 %v6701, %v6700
  %6718 = vmatprep.subr.bf16.mxu0 0
  %6719 = vmatpush1.bf16.msra.mxu0 %v6702
  %6720 = vmatprep.subr.bf16.mxu0 0
  %6721 = vmatpush1.bf16.msra.mxu0 %v6703
  %6722 = vmatprep.subr.bf16.mxu0 0
  %6723 = vmatpush1.bf16.msra.mxu0 %v6704
  %6724 = vmatprep.subr.bf16.mxu0 0
  %6725 = vmatpush1.bf16.msra.mxu0 %v6705
  %6726 = vmatprep.subr.bf16.mxu0 0
  %6727 = vmatpush1.bf16.msra.mxu0 %v6706
  %6728 = vmatprep.subr.bf16.mxu0 0
  %6729 = vmatpush1.bf16.msra.mxu0 %v6707
  %6730 = vmatprep.subr.bf16.mxu0 0
  %6731 = vmatpush1.bf16.msra.mxu0 %v6708
  %6732 = vmatprep.subr.bf16.mxu0 0
  %6733 = vmatpush1.bf16.msra.mxu0 %v6709
  %6734 = vmatprep.subr.bf16.mxu0 0
  %6735 = vmatpush1.bf16.msra.mxu0 0
  %6736 = vmatprep.subr.bf16.mxu0 0
  %6737 = vmatpush1.bf16.msra.mxu0 0
  %6738 = vmatprep.subr.bf16.mxu0 0
  %6739 = vmatpush1.bf16.msra.mxu0 0
  %6740 = vmatprep.subr.bf16.mxu0 0
  %6741 = vmatpush1.bf16.msra.mxu0 0
  %6742 = vmatprep.subr.bf16.mxu0 0
  %6743 = vmatpush1.bf16.msra.mxu0 0
  %6744 = vmatprep.subr.bf16.mxu0 0
  %6745 = vmatpush1.bf16.msra.mxu0 0
  %6746 = vmatprep.subr.bf16.mxu0 0
  %6747 = vmatpush1.bf16.msra.mxu0 0
  %6748 = vmatprep.subr.bf16.mxu0 0
  %6749 = vmatpush1.bf16.msra.mxu0 0
  %6750 = vmatprep.mubr.bf16.mxu0 0
  %6751 = vmatmul.mubr.bf16.gmra.mrb[0].mxu0 %v6652
  %v6752 = vpop.f32.mrb[0].mxu0
  %v6753 = vadd.f32 0.0, %v6752
  %v6754 = vpop.f32.mrb[0].mxu0
  %v6755 = vpop.f32.mrb[0].mxu0
  %v6756 = vpop.f32.mrb[0].mxu0
  %6757 = vdwg.mxu0
  %v6758 = vadd.f32 %v6442, %v6753
  %s6759 = scalar_lea.vmem %s0, 168
  %v6760 = vld [vmem:[%s6759] sm:$0xff]
  %v6762 = vunpack.c.l.b16 %v6760
  %v6763 = vunpack.c.h.b16 %v6760
  %v6764 = vpack.c.b16 %v6762, %v6762
  %v6765 = vpack.c.b16 %v6763, %v6763
  %v6768 = vsel %vm130, %v6765, 0
  %6770 = vmatprep.subr.bf16.mxu0 0
  %6771 = vmatpush1.bf16.msra.mxu0 %v110
  %6772 = vmatprep.subr.bf16.mxu0 0
  %6773 = vmatpush1.bf16.msra.mxu0 %v111
  %6774 = vmatprep.subr.bf16.mxu0 0
  %6775 = vmatpush1.bf16.msra.mxu0 %v112
  %6776 = vmatprep.subr.bf16.mxu0 0
  %6777 = vmatpush1.bf16.msra.mxu0 %v113
  %6778 = vmatprep.subr.bf16.mxu0 0
  %6779 = vmatpush1.bf16.msra.mxu0 %v114
  %6780 = vmatprep.subr.bf16.mxu0 0
  %6781 = vmatpush1.bf16.msra.mxu0 %v115
  %6782 = vmatprep.subr.bf16.mxu0 0
  %6783 = vmatpush1.bf16.msra.mxu0 %v116
  %6784 = vmatprep.subr.bf16.mxu0 0
  %6785 = vmatpush1.bf16.msra.mxu0 %v117
  %6786 = vmatprep.subr.bf16.mxu0 0
  %6787 = vmatpush1.bf16.msra.mxu0 %v118
  %6788 = vmatprep.subr.bf16.mxu0 0
  %6789 = vmatpush1.bf16.msra.mxu0 %v119
  %6790 = vmatprep.subr.bf16.mxu0 0
  %6791 = vmatpush1.bf16.msra.mxu0 0
  %6792 = vmatprep.subr.bf16.mxu0 0
  %6793 = vmatpush1.bf16.msra.mxu0 0
  %6794 = vmatprep.subr.bf16.mxu0 0
  %6795 = vmatpush1.bf16.msra.mxu0 0
  %6796 = vmatprep.subr.bf16.mxu0 0
  %6797 = vmatpush1.bf16.msra.mxu0 0
  %6798 = vmatprep.subr.bf16.mxu0 0
  %6799 = vmatpush1.bf16.msra.mxu0 0
  %6800 = vmatprep.subr.bf16.mxu0 0
  %6801 = vmatpush1.bf16.msra.mxu0 0
  %6802 = vmatprep.mubr.bf16.mxu0 %v6768
  %6803 = vmatmul.mubr.bf16.gmra.mrb[0].mxu0 %v6764
  %v6804 = vpop.f32.mrb[0].mxu0
  %v6805 = vadd.f32 0.0, %v6804
  %v6806 = vpop.f32.mrb[0].mxu0
  %v6807 = vpop.f32.mrb[0].mxu0
  %v6808 = vpop.f32.mrb[0].mxu0
  %6809 = vdwg.mxu0
  %s6810 = scalar_lea.vmem %s1, 168
  %v6811 = vld [vmem:[%s6810] sm:$0xff]
  %v6813 = vunpack.c.l.b16 %v6811
  %v6814 = vunpack.c.h.b16 %v6811
  %v6815 = vpack.c.b16 %v6813, %v6813
  %v6816 = vpack.c.b16 %v6814, %v6814
  %v6819 = vsel %vm130, %v6816, 0
  %6821 = vmatprep.subr.bf16.mxu0 0
  %6822 = vmatpush1.bf16.msra.mxu0 %v110
  %6823 = vmatprep.subr.bf16.mxu0 0
  %6824 = vmatpush1.bf16.msra.mxu0 %v111
  %6825 = vmatprep.subr.bf16.mxu0 0
  %6826 = vmatpush1.bf16.msra.mxu0 %v112
  %6827 = vmatprep.subr.bf16.mxu0 0
  %6828 = vmatpush1.bf16.msra.mxu0 %v113
  %6829 = vmatprep.subr.bf16.mxu0 0
  %6830 = vmatpush1.bf16.msra.mxu0 %v114
  %6831 = vmatprep.subr.bf16.mxu0 0
  %6832 = vmatpush1.bf16.msra.mxu0 %v115
  %6833 = vmatprep.subr.bf16.mxu0 0
  %6834 = vmatpush1.bf16.msra.mxu0 %v116
  %6835 = vmatprep.subr.bf16.mxu0 0
  %6836 = vmatpush1.bf16.msra.mxu0 %v117
  %6837 = vmatprep.subr.bf16.mxu0 0
  %6838 = vmatpush1.bf16.msra.mxu0 %v118
  %6839 = vmatprep.subr.bf16.mxu0 0
  %6840 = vmatpush1.bf16.msra.mxu0 %v119
  %6841 = vmatprep.subr.bf16.mxu0 0
  %6842 = vmatpush1.bf16.msra.mxu0 0
  %6843 = vmatprep.subr.bf16.mxu0 0
  %6844 = vmatpush1.bf16.msra.mxu0 0
  %6845 = vmatprep.subr.bf16.mxu0 0
  %6846 = vmatpush1.bf16.msra.mxu0 0
  %6847 = vmatprep.subr.bf16.mxu0 0
  %6848 = vmatpush1.bf16.msra.mxu0 0
  %6849 = vmatprep.subr.bf16.mxu0 0
  %6850 = vmatpush1.bf16.msra.mxu0 0
  %6851 = vmatprep.subr.bf16.mxu0 0
  %6852 = vmatpush1.bf16.msra.mxu0 0
  %6853 = vmatprep.mubr.bf16.mxu0 %v6819
  %6854 = vmatmul.mubr.bf16.gmra.mrb[0].mxu0 %v6815
  %v6855 = vpop.f32.mrb[0].mxu0
  %v6856 = vadd.f32 0.0, %v6855
  %v6857 = vpop.f32.mrb[0].mxu0
  %v6858 = vpop.f32.mrb[0].mxu0
  %v6859 = vpop.f32.mrb[0].mxu0
  %6860 = vdwg.mxu0
  %v6861 = vmax.f32 %v6805, %v6856
  %s6862 = scalar_lea.vmem %s2, 168
  %v6863 = vld [vmem:[%s6862] sm:$0xff]
  %v6865 = vunpack.c.l.b16 %v6863
  %v6866 = vunpack.c.h.b16 %v6863
  %v6867 = vpack.c.b16 %v6865, %v6865
  %v6868 = vpack.c.b16 %v6866, %v6866
  %v6871 = vsel %vm130, %v6868, 0
  %6873 = vmatprep.subr.bf16.mxu0 0
  %6874 = vmatpush1.bf16.msra.mxu0 %v110
  %6875 = vmatprep.subr.bf16.mxu0 0
  %6876 = vmatpush1.bf16.msra.mxu0 %v111
  %6877 = vmatprep.subr.bf16.mxu0 0
  %6878 = vmatpush1.bf16.msra.mxu0 %v112
  %6879 = vmatprep.subr.bf16.mxu0 0
  %6880 = vmatpush1.bf16.msra.mxu0 %v113
  %6881 = vmatprep.subr.bf16.mxu0 0
  %6882 = vmatpush1.bf16.msra.mxu0 %v114
  %6883 = vmatprep.subr.bf16.mxu0 0
  %6884 = vmatpush1.bf16.msra.mxu0 %v115
  %6885 = vmatprep.subr.bf16.mxu0 0
  %6886 = vmatpush1.bf16.msra.mxu0 %v116
  %6887 = vmatprep.subr.bf16.mxu0 0
  %6888 = vmatpush1.bf16.msra.mxu0 %v117
  %6889 = vmatprep.subr.bf16.mxu0 0
  %6890 = vmatpush1.bf16.msra.mxu0 %v118
  %6891 = vmatprep.subr.bf16.mxu0 0
  %6892 = vmatpush1.bf16.msra.mxu0 %v119
  %6893 = vmatprep.subr.bf16.mxu0 0
  %6894 = vmatpush1.bf16.msra.mxu0 0
  %6895 = vmatprep.subr.bf16.mxu0 0
  %6896 = vmatpush1.bf16.msra.mxu0 0
  %6897 = vmatprep.subr.bf16.mxu0 0
  %6898 = vmatpush1.bf16.msra.mxu0 0
  %6899 = vmatprep.subr.bf16.mxu0 0
  %6900 = vmatpush1.bf16.msra.mxu0 0
  %6901 = vmatprep.subr.bf16.mxu0 0
  %6902 = vmatpush1.bf16.msra.mxu0 0
  %6903 = vmatprep.subr.bf16.mxu0 0
  %6904 = vmatpush1.bf16.msra.mxu0 0
  %6905 = vmatprep.mubr.bf16.mxu0 %v6871
  %6906 = vmatmul.mubr.bf16.gmra.mrb[0].mxu0 %v6867
  %v6907 = vpop.f32.mrb[0].mxu0
  %v6908 = vadd.f32 0.0, %v6907
  %v6909 = vpop.f32.mrb[0].mxu0
  %v6910 = vpop.f32.mrb[0].mxu0
  %v6911 = vpop.f32.mrb[0].mxu0
  %6912 = vdwg.mxu0
  %v6913 = vmax.f32 %v6861, %v6908
  %s6914 = scalar_lea.vmem %s3, 168
  %v6915 = vld [vmem:[%s6914] sm:$0xff]
  %v6917 = vunpack.c.l.b16 %v6915
  %v6918 = vunpack.c.h.b16 %v6915
  %v6919 = vpack.c.b16 %v6917, %v6917
  %v6920 = vpack.c.b16 %v6918, %v6918
  %v6923 = vsel %vm130, %v6920, 0
  %6925 = vmatprep.subr.bf16.mxu0 0
  %6926 = vmatpush1.bf16.msra.mxu0 %v110
  %6927 = vmatprep.subr.bf16.mxu0 0
  %6928 = vmatpush1.bf16.msra.mxu0 %v111
  %6929 = vmatprep.subr.bf16.mxu0 0
  %6930 = vmatpush1.bf16.msra.mxu0 %v112
  %6931 = vmatprep.subr.bf16.mxu0 0
  %6932 = vmatpush1.bf16.msra.mxu0 %v113
  %6933 = vmatprep.subr.bf16.mxu0 0
  %6934 = vmatpush1.bf16.msra.mxu0 %v114
  %6935 = vmatprep.subr.bf16.mxu0 0
  %6936 = vmatpush1.bf16.msra.mxu0 %v115
  %6937 = vmatprep.subr.bf16.mxu0 0
  %6938 = vmatpush1.bf16.msra.mxu0 %v116
  %6939 = vmatprep.subr.bf16.mxu0 0
  %6940 = vmatpush1.bf16.msra.mxu0 %v117
  %6941 = vmatprep.subr.bf16.mxu0 0
  %6942 = vmatpush1.bf16.msra.mxu0 %v118
  %6943 = vmatprep.subr.bf16.mxu0 0
  %6944 = vmatpush1.bf16.msra.mxu0 %v119
  %6945 = vmatprep.subr.bf16.mxu0 0
  %6946 = vmatpush1.bf16.msra.mxu0 0
  %6947 = vmatprep.subr.bf16.mxu0 0
  %6948 = vmatpush1.bf16.msra.mxu0 0
  %6949 = vmatprep.subr.bf16.mxu0 0
  %6950 = vmatpush1.bf16.msra.mxu0 0
  %6951 = vmatprep.subr.bf16.mxu0 0
  %6952 = vmatpush1.bf16.msra.mxu0 0
  %6953 = vmatprep.subr.bf16.mxu0 0
  %6954 = vmatpush1.bf16.msra.mxu0 0
  %6955 = vmatprep.subr.bf16.mxu0 0
  %6956 = vmatpush1.bf16.msra.mxu0 0
  %6957 = vmatprep.mubr.bf16.mxu0 %v6923
  %6958 = vmatmul.mubr.bf16.gmra.mrb[0].mxu0 %v6919
  %v6959 = vpop.f32.mrb[0].mxu0
  %v6960 = vadd.f32 0.0, %v6959
  %v6961 = vpop.f32.mrb[0].mxu0
  %v6962 = vpop.f32.mrb[0].mxu0
  %v6963 = vpop.f32.mrb[0].mxu0
  %6964 = vdwg.mxu0
  %v6965 = vmax.f32 %v6913, %v6960
  %v6966 = vadd.f32 %v6965, %v331
  %v6967 = vmax.f32 %v6966, 0.0
  %v6968 = vpack.c.bf16 %v6967, %v6967
  %s6969 = scalar_lea.vmem %s6, 1344
  %v6970 = vld [vmem:[%s6969] sm:$0xf]
  %v6971 = vld [vmem:[%s6969 + $0x4] sm:$0xf]
  %v6972 = vld [vmem:[%s6969 + $0x8] sm:$0xf]
  %v6973 = vld [vmem:[%s6969 + $0xc] sm:$0xf]
  %v6974 = vld [vmem:[%s6969 + $0x10] sm:$0xf]
  %v6975 = vld [vmem:[%s6969 + $0x14] sm:$0xf]
  %v6976 = vld [vmem:[%s6969 + $0x18] sm:$0xf]
  %v6977 = vld [vmem:[%s6969 + $0x1c] sm:$0xf]
  %v6978 = vld [vmem:[%s6969 + $0x20] sm:$0xf]
  %v6979 = vld [vmem:[%s6969 + $0x24] sm:$0xf]
  %v6980 = vld [vmem:[%s6969 + $0x28] sm:$0xf]
  %v6981 = vld [vmem:[%s6969 + $0x2c] sm:$0xf]
  %v6982 = vld [vmem:[%s6969 + $0x30] sm:$0xf]
  %v6983 = vld [vmem:[%s6969 + $0x34] sm:$0xf]
  %v6984 = vld [vmem:[%s6969 + $0x38] sm:$0xf]
  %v6985 = vld [vmem:[%s6969 + $0x3c] sm:$0xf]
  %v7002 = vunpack.c.l.b16 %v6970
  %v7003 = vunpack.c.l.b16 %v6971
  %v7004 = vunpack.c.l.b16 %v6972
  %v7005 = vunpack.c.l.b16 %v6973
  %v7006 = vunpack.c.l.b16 %v6974
  %v7007 = vunpack.c.l.b16 %v6975
  %v7008 = vunpack.c.l.b16 %v6976
  %v7009 = vunpack.c.l.b16 %v6977
  %v7010 = vunpack.c.l.b16 %v6978
  %v7011 = vunpack.c.l.b16 %v6979
  %v7012 = vunpack.c.l.b16 %v6980
  %v7013 = vunpack.c.l.b16 %v6981
  %v7014 = vunpack.c.l.b16 %v6982
  %v7015 = vunpack.c.l.b16 %v6983
  %v7016 = vunpack.c.l.b16 %v6984
  %v7017 = vunpack.c.l.b16 %v6985
  %v7018 = vpack.c.b16 %v7003, %v7002
  %v7019 = vpack.c.b16 %v7005, %v7004
  %v7020 = vpack.c.b16 %v7007, %v7006
  %v7021 = vpack.c.b16 %v7009, %v7008
  %v7022 = vpack.c.b16 %v7011, %v7010
  %v7023 = vpack.c.b16 %v7013, %v7012
  %v7024 = vpack.c.b16 %v7015, %v7014
  %v7025 = vpack.c.b16 %v7017, %v7016
  %7034 = vmatprep.subr.bf16.mxu0 0
  %7035 = vmatpush1.bf16.msra.mxu0 %v7018
  %7036 = vmatprep.subr.bf16.mxu0 0
  %7037 = vmatpush1.bf16.msra.mxu0 %v7019
  %7038 = vmatprep.subr.bf16.mxu0 0
  %7039 = vmatpush1.bf16.msra.mxu0 %v7020
  %7040 = vmatprep.subr.bf16.mxu0 0
  %7041 = vmatpush1.bf16.msra.mxu0 %v7021
  %7042 = vmatprep.subr.bf16.mxu0 0
  %7043 = vmatpush1.bf16.msra.mxu0 %v7022
  %7044 = vmatprep.subr.bf16.mxu0 0
  %7045 = vmatpush1.bf16.msra.mxu0 %v7023
  %7046 = vmatprep.subr.bf16.mxu0 0
  %7047 = vmatpush1.bf16.msra.mxu0 %v7024
  %7048 = vmatprep.subr.bf16.mxu0 0
  %7049 = vmatpush1.bf16.msra.mxu0 %v7025
  %7050 = vmatprep.subr.bf16.mxu0 0
  %7051 = vmatpush1.bf16.msra.mxu0 0
  %7052 = vmatprep.subr.bf16.mxu0 0
  %7053 = vmatpush1.bf16.msra.mxu0 0
  %7054 = vmatprep.subr.bf16.mxu0 0
  %7055 = vmatpush1.bf16.msra.mxu0 0
  %7056 = vmatprep.subr.bf16.mxu0 0
  %7057 = vmatpush1.bf16.msra.mxu0 0
  %7058 = vmatprep.subr.bf16.mxu0 0
  %7059 = vmatpush1.bf16.msra.mxu0 0
  %7060 = vmatprep.subr.bf16.mxu0 0
  %7061 = vmatpush1.bf16.msra.mxu0 0
  %7062 = vmatprep.subr.bf16.mxu0 0
  %7063 = vmatpush1.bf16.msra.mxu0 0
  %7064 = vmatprep.subr.bf16.mxu0 0
  %7065 = vmatpush1.bf16.msra.mxu0 0
  %7066 = vmatprep.mubr.bf16.mxu0 0
  %7067 = vmatmul.mubr.bf16.gmra.mrb[0].mxu0 %v6968
  %v7068 = vpop.f32.mrb[0].mxu0
  %v7069 = vadd.f32 0.0, %v7068
  %v7070 = vpop.f32.mrb[0].mxu0
  %v7071 = vpop.f32.mrb[0].mxu0
  %v7072 = vpop.f32.mrb[0].mxu0
  %7073 = vdwg.mxu0
  %v7074 = vadd.f32 %v6758, %v7069
  %s7075 = scalar_lea.vmem %s0, 176
  %v7076 = vld [vmem:[%s7075] sm:$0xff]
  %v7078 = vunpack.c.l.b16 %v7076
  %v7079 = vunpack.c.h.b16 %v7076
  %v7080 = vpack.c.b16 %v7078, %v7078
  %v7081 = vpack.c.b16 %v7079, %v7079
  %v7084 = vsel %vm130, %v7081, 0
  %7086 = vmatprep.subr.bf16.mxu0 0
  %7087 = vmatpush1.bf16.msra.mxu0 %v110
  %7088 = vmatprep.subr.bf16.mxu0 0
  %7089 = vmatpush1.bf16.msra.mxu0 %v111
  %7090 = vmatprep.subr.bf16.mxu0 0
  %7091 = vmatpush1.bf16.msra.mxu0 %v112
  %7092 = vmatprep.subr.bf16.mxu0 0
  %7093 = vmatpush1.bf16.msra.mxu0 %v113
  %7094 = vmatprep.subr.bf16.mxu0 0
  %7095 = vmatpush1.bf16.msra.mxu0 %v114
  %7096 = vmatprep.subr.bf16.mxu0 0
  %7097 = vmatpush1.bf16.msra.mxu0 %v115
  %7098 = vmatprep.subr.bf16.mxu0 0
  %7099 = vmatpush1.bf16.msra.mxu0 %v116
  %7100 = vmatprep.subr.bf16.mxu0 0
  %7101 = vmatpush1.bf16.msra.mxu0 %v117
  %7102 = vmatprep.subr.bf16.mxu0 0
  %7103 = vmatpush1.bf16.msra.mxu0 %v118
  %7104 = vmatprep.subr.bf16.mxu0 0
  %7105 = vmatpush1.bf16.msra.mxu0 %v119
  %7106 = vmatprep.subr.bf16.mxu0 0
  %7107 = vmatpush1.bf16.msra.mxu0 0
  %7108 = vmatprep.subr.bf16.mxu0 0
  %7109 = vmatpush1.bf16.msra.mxu0 0
  %7110 = vmatprep.subr.bf16.mxu0 0
  %7111 = vmatpush1.bf16.msra.mxu0 0
  %7112 = vmatprep.subr.bf16.mxu0 0
  %7113 = vmatpush1.bf16.msra.mxu0 0
  %7114 = vmatprep.subr.bf16.mxu0 0
  %7115 = vmatpush1.bf16.msra.mxu0 0
  %7116 = vmatprep.subr.bf16.mxu0 0
  %7117 = vmatpush1.bf16.msra.mxu0 0
  %7118 = vmatprep.mubr.bf16.mxu0 %v7084
  %7119 = vmatmul.mubr.bf16.gmra.mrb[0].mxu0 %v7080
  %v7120 = vpop.f32.mrb[0].mxu0
  %v7121 = vadd.f32 0.0, %v7120
  %v7122 = vpop.f32.mrb[0].mxu0
  %v7123 = vpop.f32.mrb[0].mxu0
  %v7124 = vpop.f32.mrb[0].mxu0
  %7125 = vdwg.mxu0
  %s7126 = scalar_lea.vmem %s1, 176
  %v7127 = vld [vmem:[%s7126] sm:$0xff]
  %v7129 = vunpack.c.l.b16 %v7127
  %v7130 = vunpack.c.h.b16 %v7127
  %v7131 = vpack.c.b16 %v7129, %v7129
  %v7132 = vpack.c.b16 %v7130, %v7130
  %v7135 = vsel %vm130, %v7132, 0
  %7137 = vmatprep.subr.bf16.mxu0 0
  %7138 = vmatpush1.bf16.msra.mxu0 %v110
  %7139 = vmatprep.subr.bf16.mxu0 0
  %7140 = vmatpush1.bf16.msra.mxu0 %v111
  %7141 = vmatprep.subr.bf16.mxu0 0
  %7142 = vmatpush1.bf16.msra.mxu0 %v112
  %7143 = vmatprep.subr.bf16.mxu0 0
  %7144 = vmatpush1.bf16.msra.mxu0 %v113
  %7145 = vmatprep.subr.bf16.mxu0 0
  %7146 = vmatpush1.bf16.msra.mxu0 %v114
  %7147 = vmatprep.subr.bf16.mxu0 0
  %7148 = vmatpush1.bf16.msra.mxu0 %v115
  %7149 = vmatprep.subr.bf16.mxu0 0
  %7150 = vmatpush1.bf16.msra.mxu0 %v116
  %7151 = vmatprep.subr.bf16.mxu0 0
  %7152 = vmatpush1.bf16.msra.mxu0 %v117
  %7153 = vmatprep.subr.bf16.mxu0 0
  %7154 = vmatpush1.bf16.msra.mxu0 %v118
  %7155 = vmatprep.subr.bf16.mxu0 0
  %7156 = vmatpush1.bf16.msra.mxu0 %v119
  %7157 = vmatprep.subr.bf16.mxu0 0
  %7158 = vmatpush1.bf16.msra.mxu0 0
  %7159 = vmatprep.subr.bf16.mxu0 0
  %7160 = vmatpush1.bf16.msra.mxu0 0
  %7161 = vmatprep.subr.bf16.mxu0 0
  %7162 = vmatpush1.bf16.msra.mxu0 0
  %7163 = vmatprep.subr.bf16.mxu0 0
  %7164 = vmatpush1.bf16.msra.mxu0 0
  %7165 = vmatprep.subr.bf16.mxu0 0
  %7166 = vmatpush1.bf16.msra.mxu0 0
  %7167 = vmatprep.subr.bf16.mxu0 0
  %7168 = vmatpush1.bf16.msra.mxu0 0
  %7169 = vmatprep.mubr.bf16.mxu0 %v7135
  %7170 = vmatmul.mubr.bf16.gmra.mrb[0].mxu0 %v7131
  %v7171 = vpop.f32.mrb[0].mxu0
  %v7172 = vadd.f32 0.0, %v7171
  %v7173 = vpop.f32.mrb[0].mxu0
  %v7174 = vpop.f32.mrb[0].mxu0
  %v7175 = vpop.f32.mrb[0].mxu0
  %7176 = vdwg.mxu0
  %v7177 = vmax.f32 %v7121, %v7172
  %s7178 = scalar_lea.vmem %s2, 176
  %v7179 = vld [vmem:[%s7178] sm:$0xff]
  %v7181 = vunpack.c.l.b16 %v7179
  %v7182 = vunpack.c.h.b16 %v7179
  %v7183 = vpack.c.b16 %v7181, %v7181
  %v7184 = vpack.c.b16 %v7182, %v7182
  %v7187 = vsel %vm130, %v7184, 0
  %7189 = vmatprep.subr.bf16.mxu0 0
  %7190 = vmatpush1.bf16.msra.mxu0 %v110
  %7191 = vmatprep.subr.bf16.mxu0 0
  %7192 = vmatpush1.bf16.msra.mxu0 %v111
  %7193 = vmatprep.subr.bf16.mxu0 0
  %7194 = vmatpush1.bf16.msra.mxu0 %v112
  %7195 = vmatprep.subr.bf16.mxu0 0
  %7196 = vmatpush1.bf16.msra.mxu0 %v113
  %7197 = vmatprep.subr.bf16.mxu0 0
  %7198 = vmatpush1.bf16.msra.mxu0 %v114
  %7199 = vmatprep.subr.bf16.mxu0 0
  %7200 = vmatpush1.bf16.msra.mxu0 %v115
  %7201 = vmatprep.subr.bf16.mxu0 0
  %7202 = vmatpush1.bf16.msra.mxu0 %v116
  %7203 = vmatprep.subr.bf16.mxu0 0
  %7204 = vmatpush1.bf16.msra.mxu0 %v117
  %7205 = vmatprep.subr.bf16.mxu0 0
  %7206 = vmatpush1.bf16.msra.mxu0 %v118
  %7207 = vmatprep.subr.bf16.mxu0 0
  %7208 = vmatpush1.bf16.msra.mxu0 %v119
  %7209 = vmatprep.subr.bf16.mxu0 0
  %7210 = vmatpush1.bf16.msra.mxu0 0
  %7211 = vmatprep.subr.bf16.mxu0 0
  %7212 = vmatpush1.bf16.msra.mxu0 0
  %7213 = vmatprep.subr.bf16.mxu0 0
  %7214 = vmatpush1.bf16.msra.mxu0 0
  %7215 = vmatprep.subr.bf16.mxu0 0
  %7216 = vmatpush1.bf16.msra.mxu0 0
  %7217 = vmatprep.subr.bf16.mxu0 0
  %7218 = vmatpush1.bf16.msra.mxu0 0
  %7219 = vmatprep.subr.bf16.mxu0 0
  %7220 = vmatpush1.bf16.msra.mxu0 0
  %7221 = vmatprep.mubr.bf16.mxu0 %v7187
  %7222 = vmatmul.mubr.bf16.gmra.mrb[0].mxu0 %v7183
  %v7223 = vpop.f32.mrb[0].mxu0
  %v7224 = vadd.f32 0.0, %v7223
  %v7225 = vpop.f32.mrb[0].mxu0
  %v7226 = vpop.f32.mrb[0].mxu0
  %v7227 = vpop.f32.mrb[0].mxu0
  %7228 = vdwg.mxu0
  %v7229 = vmax.f32 %v7177, %v7224
  %s7230 = scalar_lea.vmem %s3, 176
  %v7231 = vld [vmem:[%s7230] sm:$0xff]
  %v7233 = vunpack.c.l.b16 %v7231
  %v7234 = vunpack.c.h.b16 %v7231
  %v7235 = vpack.c.b16 %v7233, %v7233
  %v7236 = vpack.c.b16 %v7234, %v7234
  %v7239 = vsel %vm130, %v7236, 0
  %7241 = vmatprep.subr.bf16.mxu0 0
  %7242 = vmatpush1.bf16.msra.mxu0 %v110
  %7243 = vmatprep.subr.bf16.mxu0 0
  %7244 = vmatpush1.bf16.msra.mxu0 %v111
  %7245 = vmatprep.subr.bf16.mxu0 0
  %7246 = vmatpush1.bf16.msra.mxu0 %v112
  %7247 = vmatprep.subr.bf16.mxu0 0
  %7248 = vmatpush1.bf16.msra.mxu0 %v113
  %7249 = vmatprep.subr.bf16.mxu0 0
  %7250 = vmatpush1.bf16.msra.mxu0 %v114
  %7251 = vmatprep.subr.bf16.mxu0 0
  %7252 = vmatpush1.bf16.msra.mxu0 %v115
  %7253 = vmatprep.subr.bf16.mxu0 0
  %7254 = vmatpush1.bf16.msra.mxu0 %v116
  %7255 = vmatprep.subr.bf16.mxu0 0
  %7256 = vmatpush1.bf16.msra.mxu0 %v117
  %7257 = vmatprep.subr.bf16.mxu0 0
  %7258 = vmatpush1.bf16.msra.mxu0 %v118
  %7259 = vmatprep.subr.bf16.mxu0 0
  %7260 = vmatpush1.bf16.msra.mxu0 %v119
  %7261 = vmatprep.subr.bf16.mxu0 0
  %7262 = vmatpush1.bf16.msra.mxu0 0
  %7263 = vmatprep.subr.bf16.mxu0 0
  %7264 = vmatpush1.bf16.msra.mxu0 0
  %7265 = vmatprep.subr.bf16.mxu0 0
  %7266 = vmatpush1.bf16.msra.mxu0 0
  %7267 = vmatprep.subr.bf16.mxu0 0
  %7268 = vmatpush1.bf16.msra.mxu0 0
  %7269 = vmatprep.subr.bf16.mxu0 0
  %7270 = vmatpush1.bf16.msra.mxu0 0
  %7271 = vmatprep.subr.bf16.mxu0 0
  %7272 = vmatpush1.bf16.msra.mxu0 0
  %7273 = vmatprep.mubr.bf16.mxu0 %v7239
  %7274 = vmatmul.mubr.bf16.gmra.mrb[0].mxu0 %v7235
  %v7275 = vpop.f32.mrb[0].mxu0
  %v7276 = vadd.f32 0.0, %v7275
  %v7277 = vpop.f32.mrb[0].mxu0
  %v7278 = vpop.f32.mrb[0].mxu0
  %v7279 = vpop.f32.mrb[0].mxu0
  %7280 = vdwg.mxu0
  %v7281 = vmax.f32 %v7229, %v7276
  %v7282 = vadd.f32 %v7281, %v331
  %v7283 = vmax.f32 %v7282, 0.0
  %v7284 = vpack.c.bf16 %v7283, %v7283
  %s7285 = scalar_lea.vmem %s6, 1408
  %v7286 = vld [vmem:[%s7285] sm:$0xf]
  %v7287 = vld [vmem:[%s7285 + $0x4] sm:$0xf]
  %v7288 = vld [vmem:[%s7285 + $0x8] sm:$0xf]
  %v7289 = vld [vmem:[%s7285 + $0xc] sm:$0xf]
  %v7290 = vld [vmem:[%s7285 + $0x10] sm:$0xf]
  %v7291 = vld [vmem:[%s7285 + $0x14] sm:$0xf]
  %v7292 = vld [vmem:[%s7285 + $0x18] sm:$0xf]
  %v7293 = vld [vmem:[%s7285 + $0x1c] sm:$0xf]
  %v7294 = vld [vmem:[%s7285 + $0x20] sm:$0xf]
  %v7295 = vld [vmem:[%s7285 + $0x24] sm:$0xf]
  %v7296 = vld [vmem:[%s7285 + $0x28] sm:$0xf]
  %v7297 = vld [vmem:[%s7285 + $0x2c] sm:$0xf]
  %v7298 = vld [vmem:[%s7285 + $0x30] sm:$0xf]
  %v7299 = vld [vmem:[%s7285 + $0x34] sm:$0xf]
  %v7300 = vld [vmem:[%s7285 + $0x38] sm:$0xf]
  %v7301 = vld [vmem:[%s7285 + $0x3c] sm:$0xf]
  %v7318 = vunpack.c.l.b16 %v7286
  %v7319 = vunpack.c.l.b16 %v7287
  %v7320 = vunpack.c.l.b16 %v7288
  %v7321 = vunpack.c.l.b16 %v7289
  %v7322 = vunpack.c.l.b16 %v7290
  %v7323 = vunpack.c.l.b16 %v7291
  %v7324 = vunpack.c.l.b16 %v7292
  %v7325 = vunpack.c.l.b16 %v7293
  %v7326 = vunpack.c.l.b16 %v7294
  %v7327 = vunpack.c.l.b16 %v7295
  %v7328 = vunpack.c.l.b16 %v7296
  %v7329 = vunpack.c.l.b16 %v7297
  %v7330 = vunpack.c.l.b16 %v7298
  %v7331 = vunpack.c.l.b16 %v7299
  %v7332 = vunpack.c.l.b16 %v7300
  %v7333 = vunpack.c.l.b16 %v7301
  %v7334 = vpack.c.b16 %v7319, %v7318
  %v7335 = vpack.c.b16 %v7321, %v7320
  %v7336 = vpack.c.b16 %v7323, %v7322
  %v7337 = vpack.c.b16 %v7325, %v7324
  %v7338 = vpack.c.b16 %v7327, %v7326
  %v7339 = vpack.c.b16 %v7329, %v7328
  %v7340 = vpack.c.b16 %v7331, %v7330
  %v7341 = vpack.c.b16 %v7333, %v7332
  %7350 = vmatprep.subr.bf16.mxu0 0
  %7351 = vmatpush1.bf16.msra.mxu0 %v7334
  %7352 = vmatprep.subr.bf16.mxu0 0
  %7353 = vmatpush1.bf16.msra.mxu0 %v7335
  %7354 = vmatprep.subr.bf16.mxu0 0
  %7355 = vmatpush1.bf16.msra.mxu0 %v7336
  %7356 = vmatprep.subr.bf16.mxu0 0
  %7357 = vmatpush1.bf16.msra.mxu0 %v7337
  %7358 = vmatprep.subr.bf16.mxu0 0
  %7359 = vmatpush1.bf16.msra.mxu0 %v7338
  %7360 = vmatprep.subr.bf16.mxu0 0
  %7361 = vmatpush1.bf16.msra.mxu0 %v7339
  %7362 = vmatprep.subr.bf16.mxu0 0
  %7363 = vmatpush1.bf16.msra.mxu0 %v7340
  %7364 = vmatprep.subr.bf16.mxu0 0
  %7365 = vmatpush1.bf16.msra.mxu0 %v7341
  %7366 = vmatprep.subr.bf16.mxu0 0
  %7367 = vmatpush1.bf16.msra.mxu0 0
  %7368 = vmatprep.subr.bf16.mxu0 0
  %7369 = vmatpush1.bf16.msra.mxu0 0
  %7370 = vmatprep.subr.bf16.mxu0 0
  %7371 = vmatpush1.bf16.msra.mxu0 0
  %7372 = vmatprep.subr.bf16.mxu0 0
  %7373 = vmatpush1.bf16.msra.mxu0 0
  %7374 = vmatprep.subr.bf16.mxu0 0
  %7375 = vmatpush1.bf16.msra.mxu0 0
  %7376 = vmatprep.subr.bf16.mxu0 0
  %7377 = vmatpush1.bf16.msra.mxu0 0
  %7378 = vmatprep.subr.bf16.mxu0 0
  %7379 = vmatpush1.bf16.msra.mxu0 0
  %7380 = vmatprep.subr.bf16.mxu0 0
  %7381 = vmatpush1.bf16.msra.mxu0 0
  %7382 = vmatprep.mubr.bf16.mxu0 0
  %7383 = vmatmul.mubr.bf16.gmra.mrb[0].mxu0 %v7284
  %v7384 = vpop.f32.mrb[0].mxu0
  %v7385 = vadd.f32 0.0, %v7384
  %v7386 = vpop.f32.mrb[0].mxu0
  %v7387 = vpop.f32.mrb[0].mxu0
  %v7388 = vpop.f32.mrb[0].mxu0
  %7389 = vdwg.mxu0
  %v7390 = vadd.f32 %v7074, %v7385
  %s7391 = scalar_lea.vmem %s0, 184
  %v7392 = vld [vmem:[%s7391] sm:$0xff]
  %v7394 = vunpack.c.l.b16 %v7392
  %v7395 = vunpack.c.h.b16 %v7392
  %v7396 = vpack.c.b16 %v7394, %v7394
  %v7397 = vpack.c.b16 %v7395, %v7395
  %v7400 = vsel %vm130, %v7397, 0
  %7402 = vmatprep.subr.bf16.mxu0 0
  %7403 = vmatpush1.bf16.msra.mxu0 %v110
  %7404 = vmatprep.subr.bf16.mxu0 0
  %7405 = vmatpush1.bf16.msra.mxu0 %v111
  %7406 = vmatprep.subr.bf16.mxu0 0
  %7407 = vmatpush1.bf16.msra.mxu0 %v112
  %7408 = vmatprep.subr.bf16.mxu0 0
  %7409 = vmatpush1.bf16.msra.mxu0 %v113
  %7410 = vmatprep.subr.bf16.mxu0 0
  %7411 = vmatpush1.bf16.msra.mxu0 %v114
  %7412 = vmatprep.subr.bf16.mxu0 0
  %7413 = vmatpush1.bf16.msra.mxu0 %v115
  %7414 = vmatprep.subr.bf16.mxu0 0
  %7415 = vmatpush1.bf16.msra.mxu0 %v116
  %7416 = vmatprep.subr.bf16.mxu0 0
  %7417 = vmatpush1.bf16.msra.mxu0 %v117
  %7418 = vmatprep.subr.bf16.mxu0 0
  %7419 = vmatpush1.bf16.msra.mxu0 %v118
  %7420 = vmatprep.subr.bf16.mxu0 0
  %7421 = vmatpush1.bf16.msra.mxu0 %v119
  %7422 = vmatprep.subr.bf16.mxu0 0
  %7423 = vmatpush1.bf16.msra.mxu0 0
  %7424 = vmatprep.subr.bf16.mxu0 0
  %7425 = vmatpush1.bf16.msra.mxu0 0
  %7426 = vmatprep.subr.bf16.mxu0 0
  %7427 = vmatpush1.bf16.msra.mxu0 0
  %7428 = vmatprep.subr.bf16.mxu0 0
  %7429 = vmatpush1.bf16.msra.mxu0 0
  %7430 = vmatprep.subr.bf16.mxu0 0
  %7431 = vmatpush1.bf16.msra.mxu0 0
  %7432 = vmatprep.subr.bf16.mxu0 0
  %7433 = vmatpush1.bf16.msra.mxu0 0
  %7434 = vmatprep.mubr.bf16.mxu0 %v7400
  %7435 = vmatmul.mubr.bf16.gmra.mrb[0].mxu0 %v7396
  %v7436 = vpop.f32.mrb[0].mxu0
  %v7437 = vadd.f32 0.0, %v7436
  %v7438 = vpop.f32.mrb[0].mxu0
  %v7439 = vpop.f32.mrb[0].mxu0
  %v7440 = vpop.f32.mrb[0].mxu0
  %7441 = vdwg.mxu0
  %s7442 = scalar_lea.vmem %s1, 184
  %v7443 = vld [vmem:[%s7442] sm:$0xff]
  %v7445 = vunpack.c.l.b16 %v7443
  %v7446 = vunpack.c.h.b16 %v7443
  %v7447 = vpack.c.b16 %v7445, %v7445
  %v7448 = vpack.c.b16 %v7446, %v7446
  %v7451 = vsel %vm130, %v7448, 0
  %7453 = vmatprep.subr.bf16.mxu0 0
  %7454 = vmatpush1.bf16.msra.mxu0 %v110
  %7455 = vmatprep.subr.bf16.mxu0 0
  %7456 = vmatpush1.bf16.msra.mxu0 %v111
  %7457 = vmatprep.subr.bf16.mxu0 0
  %7458 = vmatpush1.bf16.msra.mxu0 %v112
  %7459 = vmatprep.subr.bf16.mxu0 0
  %7460 = vmatpush1.bf16.msra.mxu0 %v113
  %7461 = vmatprep.subr.bf16.mxu0 0
  %7462 = vmatpush1.bf16.msra.mxu0 %v114
  %7463 = vmatprep.subr.bf16.mxu0 0
  %7464 = vmatpush1.bf16.msra.mxu0 %v115
  %7465 = vmatprep.subr.bf16.mxu0 0
  %7466 = vmatpush1.bf16.msra.mxu0 %v116
  %7467 = vmatprep.subr.bf16.mxu0 0
  %7468 = vmatpush1.bf16.msra.mxu0 %v117
  %7469 = vmatprep.subr.bf16.mxu0 0
  %7470 = vmatpush1.bf16.msra.mxu0 %v118
  %7471 = vmatprep.subr.bf16.mxu0 0
  %7472 = vmatpush1.bf16.msra.mxu0 %v119
  %7473 = vmatprep.subr.bf16.mxu0 0
  %7474 = vmatpush1.bf16.msra.mxu0 0
  %7475 = vmatprep.subr.bf16.mxu0 0
  %7476 = vmatpush1.bf16.msra.mxu0 0
  %7477 = vmatprep.subr.bf16.mxu0 0
  %7478 = vmatpush1.bf16.msra.mxu0 0
  %7479 = vmatprep.subr.bf16.mxu0 0
  %7480 = vmatpush1.bf16.msra.mxu0 0
  %7481 = vmatprep.subr.bf16.mxu0 0
  %7482 = vmatpush1.bf16.msra.mxu0 0
  %7483 = vmatprep.subr.bf16.mxu0 0
  %7484 = vmatpush1.bf16.msra.mxu0 0
  %7485 = vmatprep.mubr.bf16.mxu0 %v7451
  %7486 = vmatmul.mubr.bf16.gmra.mrb[0].mxu0 %v7447
  %v7487 = vpop.f32.mrb[0].mxu0
  %v7488 = vadd.f32 0.0, %v7487
  %v7489 = vpop.f32.mrb[0].mxu0
  %v7490 = vpop.f32.mrb[0].mxu0
  %v7491 = vpop.f32.mrb[0].mxu0
  %7492 = vdwg.mxu0
  %v7493 = vmax.f32 %v7437, %v7488
  %s7494 = scalar_lea.vmem %s2, 184
  %v7495 = vld [vmem:[%s7494] sm:$0xff]
  %v7497 = vunpack.c.l.b16 %v7495
  %v7498 = vunpack.c.h.b16 %v7495
  %v7499 = vpack.c.b16 %v7497, %v7497
  %v7500 = vpack.c.b16 %v7498, %v7498
  %v7503 = vsel %vm130, %v7500, 0
  %7505 = vmatprep.subr.bf16.mxu0 0
  %7506 = vmatpush1.bf16.msra.mxu0 %v110
  %7507 = vmatprep.subr.bf16.mxu0 0
  %7508 = vmatpush1.bf16.msra.mxu0 %v111
  %7509 = vmatprep.subr.bf16.mxu0 0
  %7510 = vmatpush1.bf16.msra.mxu0 %v112
  %7511 = vmatprep.subr.bf16.mxu0 0
  %7512 = vmatpush1.bf16.msra.mxu0 %v113
  %7513 = vmatprep.subr.bf16.mxu0 0
  %7514 = vmatpush1.bf16.msra.mxu0 %v114
  %7515 = vmatprep.subr.bf16.mxu0 0
  %7516 = vmatpush1.bf16.msra.mxu0 %v115
  %7517 = vmatprep.subr.bf16.mxu0 0
  %7518 = vmatpush1.bf16.msra.mxu0 %v116
  %7519 = vmatprep.subr.bf16.mxu0 0
  %7520 = vmatpush1.bf16.msra.mxu0 %v117
  %7521 = vmatprep.subr.bf16.mxu0 0
  %7522 = vmatpush1.bf16.msra.mxu0 %v118
  %7523 = vmatprep.subr.bf16.mxu0 0
  %7524 = vmatpush1.bf16.msra.mxu0 %v119
  %7525 = vmatprep.subr.bf16.mxu0 0
  %7526 = vmatpush1.bf16.msra.mxu0 0
  %7527 = vmatprep.subr.bf16.mxu0 0
  %7528 = vmatpush1.bf16.msra.mxu0 0
  %7529 = vmatprep.subr.bf16.mxu0 0
  %7530 = vmatpush1.bf16.msra.mxu0 0
  %7531 = vmatprep.subr.bf16.mxu0 0
  %7532 = vmatpush1.bf16.msra.mxu0 0
  %7533 = vmatprep.subr.bf16.mxu0 0
  %7534 = vmatpush1.bf16.msra.mxu0 0
  %7535 = vmatprep.subr.bf16.mxu0 0
  %7536 = vmatpush1.bf16.msra.mxu0 0
  %7537 = vmatprep.mubr.bf16.mxu0 %v7503
  %7538 = vmatmul.mubr.bf16.gmra.mrb[0].mxu0 %v7499
  %v7539 = vpop.f32.mrb[0].mxu0
  %v7540 = vadd.f32 0.0, %v7539
  %v7541 = vpop.f32.mrb[0].mxu0
  %v7542 = vpop.f32.mrb[0].mxu0
  %v7543 = vpop.f32.mrb[0].mxu0
  %7544 = vdwg.mxu0
  %v7545 = vmax.f32 %v7493, %v7540
  %s7546 = scalar_lea.vmem %s3, 184
  %v7547 = vld [vmem:[%s7546] sm:$0xff]
  %v7549 = vunpack.c.l.b16 %v7547
  %v7550 = vunpack.c.h.b16 %v7547
  %v7551 = vpack.c.b16 %v7549, %v7549
  %v7552 = vpack.c.b16 %v7550, %v7550
  %v7555 = vsel %vm130, %v7552, 0
  %7557 = vmatprep.subr.bf16.mxu0 0
  %7558 = vmatpush1.bf16.msra.mxu0 %v110
  %7559 = vmatprep.subr.bf16.mxu0 0
  %7560 = vmatpush1.bf16.msra.mxu0 %v111
  %7561 = vmatprep.subr.bf16.mxu0 0
  %7562 = vmatpush1.bf16.msra.mxu0 %v112
  %7563 = vmatprep.subr.bf16.mxu0 0
  %7564 = vmatpush1.bf16.msra.mxu0 %v113
  %7565 = vmatprep.subr.bf16.mxu0 0
  %7566 = vmatpush1.bf16.msra.mxu0 %v114
  %7567 = vmatprep.subr.bf16.mxu0 0
  %7568 = vmatpush1.bf16.msra.mxu0 %v115
  %7569 = vmatprep.subr.bf16.mxu0 0
  %7570 = vmatpush1.bf16.msra.mxu0 %v116
  %7571 = vmatprep.subr.bf16.mxu0 0
  %7572 = vmatpush1.bf16.msra.mxu0 %v117
  %7573 = vmatprep.subr.bf16.mxu0 0
  %7574 = vmatpush1.bf16.msra.mxu0 %v118
  %7575 = vmatprep.subr.bf16.mxu0 0
  %7576 = vmatpush1.bf16.msra.mxu0 %v119
  %7577 = vmatprep.subr.bf16.mxu0 0
  %7578 = vmatpush1.bf16.msra.mxu0 0
  %7579 = vmatprep.subr.bf16.mxu0 0
  %7580 = vmatpush1.bf16.msra.mxu0 0
  %7581 = vmatprep.subr.bf16.mxu0 0
  %7582 = vmatpush1.bf16.msra.mxu0 0
  %7583 = vmatprep.subr.bf16.mxu0 0
  %7584 = vmatpush1.bf16.msra.mxu0 0
  %7585 = vmatprep.subr.bf16.mxu0 0
  %7586 = vmatpush1.bf16.msra.mxu0 0
  %7587 = vmatprep.subr.bf16.mxu0 0
  %7588 = vmatpush1.bf16.msra.mxu0 0
  %7589 = vmatprep.mubr.bf16.mxu0 %v7555
  %7590 = vmatmul.mubr.bf16.gmra.mrb[0].mxu0 %v7551
  %v7591 = vpop.f32.mrb[0].mxu0
  %v7592 = vadd.f32 0.0, %v7591
  %v7593 = vpop.f32.mrb[0].mxu0
  %v7594 = vpop.f32.mrb[0].mxu0
  %v7595 = vpop.f32.mrb[0].mxu0
  %7596 = vdwg.mxu0
  %v7597 = vmax.f32 %v7545, %v7592
  %v7598 = vadd.f32 %v7597, %v331
  %v7599 = vmax.f32 %v7598, 0.0
  %v7600 = vpack.c.bf16 %v7599, %v7599
  %s7601 = scalar_lea.vmem %s6, 1472
  %v7602 = vld [vmem:[%s7601] sm:$0xf]
  %v7603 = vld [vmem:[%s7601 + $0x4] sm:$0xf]
  %v7604 = vld [vmem:[%s7601 + $0x8] sm:$0xf]
  %v7605 = vld [vmem:[%s7601 + $0xc] sm:$0xf]
  %v7606 = vld [vmem:[%s7601 + $0x10] sm:$0xf]
  %v7607 = vld [vmem:[%s7601 + $0x14] sm:$0xf]
  %v7608 = vld [vmem:[%s7601 + $0x18] sm:$0xf]
  %v7609 = vld [vmem:[%s7601 + $0x1c] sm:$0xf]
  %v7610 = vld [vmem:[%s7601 + $0x20] sm:$0xf]
  %v7611 = vld [vmem:[%s7601 + $0x24] sm:$0xf]
  %v7612 = vld [vmem:[%s7601 + $0x28] sm:$0xf]
  %v7613 = vld [vmem:[%s7601 + $0x2c] sm:$0xf]
  %v7614 = vld [vmem:[%s7601 + $0x30] sm:$0xf]
  %v7615 = vld [vmem:[%s7601 + $0x34] sm:$0xf]
  %v7616 = vld [vmem:[%s7601 + $0x38] sm:$0xf]
  %v7617 = vld [vmem:[%s7601 + $0x3c] sm:$0xf]
  %v7634 = vunpack.c.l.b16 %v7602
  %v7635 = vunpack.c.l.b16 %v7603
  %v7636 = vunpack.c.l.b16 %v7604
  %v7637 = vunpack.c.l.b16 %v7605
  %v7638 = vunpack.c.l.b16 %v7606
  %v7639 = vunpack.c.l.b16 %v7607
  %v7640 = vunpack.c.l.b16 %v7608
  %v7641 = vunpack.c.l.b16 %v7609
  %v7642 = vunpack.c.l.b16 %v7610
  %v7643 = vunpack.c.l.b16 %v7611
  %v7644 = vunpack.c.l.b16 %v7612
  %v7645 = vunpack.c.l.b16 %v7613
  %v7646 = vunpack.c.l.b16 %v7614
  %v7647 = vunpack.c.l.b16 %v7615
  %v7648 = vunpack.c.l.b16 %v7616
  %v7649 = vunpack.c.l.b16 %v7617
  %v7650 = vpack.c.b16 %v7635, %v7634
  %v7651 = vpack.c.b16 %v7637, %v7636
  %v7652 = vpack.c.b16 %v7639, %v7638
  %v7653 = vpack.c.b16 %v7641, %v7640
  %v7654 = vpack.c.b16 %v7643, %v7642
  %v7655 = vpack.c.b16 %v7645, %v7644
  %v7656 = vpack.c.b16 %v7647, %v7646
  %v7657 = vpack.c.b16 %v7649, %v7648
  %7666 = vmatprep.subr.bf16.mxu0 0
  %7667 = vmatpush1.bf16.msra.mxu0 %v7650
  %7668 = vmatprep.subr.bf16.mxu0 0
  %7669 = vmatpush1.bf16.msra.mxu0 %v7651
  %7670 = vmatprep.subr.bf16.mxu0 0
  %7671 = vmatpush1.bf16.msra.mxu0 %v7652
  %7672 = vmatprep.subr.bf16.mxu0 0
  %7673 = vmatpush1.bf16.msra.mxu0 %v7653
  %7674 = vmatprep.subr.bf16.mxu0 0
  %7675 = vmatpush1.bf16.msra.mxu0 %v7654
  %7676 = vmatprep.subr.bf16.mxu0 0
  %7677 = vmatpush1.bf16.msra.mxu0 %v7655
  %7678 = vmatprep.subr.bf16.mxu0 0
  %7679 = vmatpush1.bf16.msra.mxu0 %v7656
  %7680 = vmatprep.subr.bf16.mxu0 0
  %7681 = vmatpush1.bf16.msra.mxu0 %v7657
  %7682 = vmatprep.subr.bf16.mxu0 0
  %7683 = vmatpush1.bf16.msra.mxu0 0
  %7684 = vmatprep.subr.bf16.mxu0 0
  %7685 = vmatpush1.bf16.msra.mxu0 0
  %7686 = vmatprep.subr.bf16.mxu0 0
  %7687 = vmatpush1.bf16.msra.mxu0 0
  %7688 = vmatprep.subr.bf16.mxu0 0
  %7689 = vmatpush1.bf16.msra.mxu0 0
  %7690 = vmatprep.subr.bf16.mxu0 0
  %7691 = vmatpush1.bf16.msra.mxu0 0
  %7692 = vmatprep.subr.bf16.mxu0 0
  %7693 = vmatpush1.bf16.msra.mxu0 0
  %7694 = vmatprep.subr.bf16.mxu0 0
  %7695 = vmatpush1.bf16.msra.mxu0 0
  %7696 = vmatprep.subr.bf16.mxu0 0
  %7697 = vmatpush1.bf16.msra.mxu0 0
  %7698 = vmatprep.mubr.bf16.mxu0 0
  %7699 = vmatmul.mubr.bf16.gmra.mrb[0].mxu0 %v7600
  %v7700 = vpop.f32.mrb[0].mxu0
  %v7701 = vadd.f32 0.0, %v7700
  %v7702 = vpop.f32.mrb[0].mxu0
  %v7703 = vpop.f32.mrb[0].mxu0
  %v7704 = vpop.f32.mrb[0].mxu0
  %7705 = vdwg.mxu0
  %v7706 = vadd.f32 %v7390, %v7701
  %s7707 = scalar_lea.vmem %s0, 192
  %v7708 = vld [vmem:[%s7707] sm:$0xff]
  %v7710 = vunpack.c.l.b16 %v7708
  %v7711 = vunpack.c.h.b16 %v7708
  %v7712 = vpack.c.b16 %v7710, %v7710
  %v7713 = vpack.c.b16 %v7711, %v7711
  %v7716 = vsel %vm130, %v7713, 0
  %7718 = vmatprep.subr.bf16.mxu0 0
  %7719 = vmatpush1.bf16.msra.mxu0 %v110
  %7720 = vmatprep.subr.bf16.mxu0 0
  %7721 = vmatpush1.bf16.msra.mxu0 %v111
  %7722 = vmatprep.subr.bf16.mxu0 0
  %7723 = vmatpush1.bf16.msra.mxu0 %v112
  %7724 = vmatprep.subr.bf16.mxu0 0
  %7725 = vmatpush1.bf16.msra.mxu0 %v113
  %7726 = vmatprep.subr.bf16.mxu0 0
  %7727 = vmatpush1.bf16.msra.mxu0 %v114
  %7728 = vmatprep.subr.bf16.mxu0 0
  %7729 = vmatpush1.bf16.msra.mxu0 %v115
  %7730 = vmatprep.subr.bf16.mxu0 0
  %7731 = vmatpush1.bf16.msra.mxu0 %v116
  %7732 = vmatprep.subr.bf16.mxu0 0
  %7733 = vmatpush1.bf16.msra.mxu0 %v117
  %7734 = vmatprep.subr.bf16.mxu0 0
  %7735 = vmatpush1.bf16.msra.mxu0 %v118
  %7736 = vmatprep.subr.bf16.mxu0 0
  %7737 = vmatpush1.bf16.msra.mxu0 %v119
  %7738 = vmatprep.subr.bf16.mxu0 0
  %7739 = vmatpush1.bf16.msra.mxu0 0
  %7740 = vmatprep.subr.bf16.mxu0 0
  %7741 = vmatpush1.bf16.msra.mxu0 0
  %7742 = vmatprep.subr.bf16.mxu0 0
  %7743 = vmatpush1.bf16.msra.mxu0 0
  %7744 = vmatprep.subr.bf16.mxu0 0
  %7745 = vmatpush1.bf16.msra.mxu0 0
  %7746 = vmatprep.subr.bf16.mxu0 0
  %7747 = vmatpush1.bf16.msra.mxu0 0
  %7748 = vmatprep.subr.bf16.mxu0 0
  %7749 = vmatpush1.bf16.msra.mxu0 0
  %7750 = vmatprep.mubr.bf16.mxu0 %v7716
  %7751 = vmatmul.mubr.bf16.gmra.mrb[0].mxu0 %v7712
  %v7752 = vpop.f32.mrb[0].mxu0
  %v7753 = vadd.f32 0.0, %v7752
  %v7754 = vpop.f32.mrb[0].mxu0
  %v7755 = vpop.f32.mrb[0].mxu0
  %v7756 = vpop.f32.mrb[0].mxu0
  %7757 = vdwg.mxu0
  %s7758 = scalar_lea.vmem %s1, 192
  %v7759 = vld [vmem:[%s7758] sm:$0xff]
  %v7761 = vunpack.c.l.b16 %v7759
  %v7762 = vunpack.c.h.b16 %v7759
  %v7763 = vpack.c.b16 %v7761, %v7761
  %v7764 = vpack.c.b16 %v7762, %v7762
  %v7767 = vsel %vm130, %v7764, 0
  %7769 = vmatprep.subr.bf16.mxu0 0
  %7770 = vmatpush1.bf16.msra.mxu0 %v110
  %7771 = vmatprep.subr.bf16.mxu0 0
  %7772 = vmatpush1.bf16.msra.mxu0 %v111
  %7773 = vmatprep.subr.bf16.mxu0 0
  %7774 = vmatpush1.bf16.msra.mxu0 %v112
  %7775 = vmatprep.subr.bf16.mxu0 0
  %7776 = vmatpush1.bf16.msra.mxu0 %v113
  %7777 = vmatprep.subr.bf16.mxu0 0
  %7778 = vmatpush1.bf16.msra.mxu0 %v114
  %7779 = vmatprep.subr.bf16.mxu0 0
  %7780 = vmatpush1.bf16.msra.mxu0 %v115
  %7781 = vmatprep.subr.bf16.mxu0 0
  %7782 = vmatpush1.bf16.msra.mxu0 %v116
  %7783 = vmatprep.subr.bf16.mxu0 0
  %7784 = vmatpush1.bf16.msra.mxu0 %v117
  %7785 = vmatprep.subr.bf16.mxu0 0
  %7786 = vmatpush1.bf16.msra.mxu0 %v118
  %7787 = vmatprep.subr.bf16.mxu0 0
  %7788 = vmatpush1.bf16.msra.mxu0 %v119
  %7789 = vmatprep.subr.bf16.mxu0 0
  %7790 = vmatpush1.bf16.msra.mxu0 0
  %7791 = vmatprep.subr.bf16.mxu0 0
  %7792 = vmatpush1.bf16.msra.mxu0 0
  %7793 = vmatprep.subr.bf16.mxu0 0
  %7794 = vmatpush1.bf16.msra.mxu0 0
  %7795 = vmatprep.subr.bf16.mxu0 0
  %7796 = vmatpush1.bf16.msra.mxu0 0
  %7797 = vmatprep.subr.bf16.mxu0 0
  %7798 = vmatpush1.bf16.msra.mxu0 0
  %7799 = vmatprep.subr.bf16.mxu0 0
  %7800 = vmatpush1.bf16.msra.mxu0 0
  %7801 = vmatprep.mubr.bf16.mxu0 %v7767
  %7802 = vmatmul.mubr.bf16.gmra.mrb[0].mxu0 %v7763
  %v7803 = vpop.f32.mrb[0].mxu0
  %v7804 = vadd.f32 0.0, %v7803
  %v7805 = vpop.f32.mrb[0].mxu0
  %v7806 = vpop.f32.mrb[0].mxu0
  %v7807 = vpop.f32.mrb[0].mxu0
  %7808 = vdwg.mxu0
  %v7809 = vmax.f32 %v7753, %v7804
  %s7810 = scalar_lea.vmem %s2, 192
  %v7811 = vld [vmem:[%s7810] sm:$0xff]
  %v7813 = vunpack.c.l.b16 %v7811
  %v7814 = vunpack.c.h.b16 %v7811
  %v7815 = vpack.c.b16 %v7813, %v7813
  %v7816 = vpack.c.b16 %v7814, %v7814
  %v7819 = vsel %vm130, %v7816, 0
  %7821 = vmatprep.subr.bf16.mxu0 0
  %7822 = vmatpush1.bf16.msra.mxu0 %v110
  %7823 = vmatprep.subr.bf16.mxu0 0
  %7824 = vmatpush1.bf16.msra.mxu0 %v111
  %7825 = vmatprep.subr.bf16.mxu0 0
  %7826 = vmatpush1.bf16.msra.mxu0 %v112
  %7827 = vmatprep.subr.bf16.mxu0 0
  %7828 = vmatpush1.bf16.msra.mxu0 %v113
  %7829 = vmatprep.subr.bf16.mxu0 0
  %7830 = vmatpush1.bf16.msra.mxu0 %v114
  %7831 = vmatprep.subr.bf16.mxu0 0
  %7832 = vmatpush1.bf16.msra.mxu0 %v115
  %7833 = vmatprep.subr.bf16.mxu0 0
  %7834 = vmatpush1.bf16.msra.mxu0 %v116
  %7835 = vmatprep.subr.bf16.mxu0 0
  %7836 = vmatpush1.bf16.msra.mxu0 %v117
  %7837 = vmatprep.subr.bf16.mxu0 0
  %7838 = vmatpush1.bf16.msra.mxu0 %v118
  %7839 = vmatprep.subr.bf16.mxu0 0
  %7840 = vmatpush1.bf16.msra.mxu0 %v119
  %7841 = vmatprep.subr.bf16.mxu0 0
  %7842 = vmatpush1.bf16.msra.mxu0 0
  %7843 = vmatprep.subr.bf16.mxu0 0
  %7844 = vmatpush1.bf16.msra.mxu0 0
  %7845 = vmatprep.subr.bf16.mxu0 0
  %7846 = vmatpush1.bf16.msra.mxu0 0
  %7847 = vmatprep.subr.bf16.mxu0 0
  %7848 = vmatpush1.bf16.msra.mxu0 0
  %7849 = vmatprep.subr.bf16.mxu0 0
  %7850 = vmatpush1.bf16.msra.mxu0 0
  %7851 = vmatprep.subr.bf16.mxu0 0
  %7852 = vmatpush1.bf16.msra.mxu0 0
  %7853 = vmatprep.mubr.bf16.mxu0 %v7819
  %7854 = vmatmul.mubr.bf16.gmra.mrb[0].mxu0 %v7815
  %v7855 = vpop.f32.mrb[0].mxu0
  %v7856 = vadd.f32 0.0, %v7855
  %v7857 = vpop.f32.mrb[0].mxu0
  %v7858 = vpop.f32.mrb[0].mxu0
  %v7859 = vpop.f32.mrb[0].mxu0
  %7860 = vdwg.mxu0
  %v7861 = vmax.f32 %v7809, %v7856
  %s7862 = scalar_lea.vmem %s3, 192
  %v7863 = vld [vmem:[%s7862] sm:$0xff]
  %v7865 = vunpack.c.l.b16 %v7863
  %v7866 = vunpack.c.h.b16 %v7863
  %v7867 = vpack.c.b16 %v7865, %v7865
  %v7868 = vpack.c.b16 %v7866, %v7866
  %v7871 = vsel %vm130, %v7868, 0
  %7873 = vmatprep.subr.bf16.mxu0 0
  %7874 = vmatpush1.bf16.msra.mxu0 %v110
  %7875 = vmatprep.subr.bf16.mxu0 0
  %7876 = vmatpush1.bf16.msra.mxu0 %v111
  %7877 = vmatprep.subr.bf16.mxu0 0
  %7878 = vmatpush1.bf16.msra.mxu0 %v112
  %7879 = vmatprep.subr.bf16.mxu0 0
  %7880 = vmatpush1.bf16.msra.mxu0 %v113
  %7881 = vmatprep.subr.bf16.mxu0 0
  %7882 = vmatpush1.bf16.msra.mxu0 %v114
  %7883 = vmatprep.subr.bf16.mxu0 0
  %7884 = vmatpush1.bf16.msra.mxu0 %v115
  %7885 = vmatprep.subr.bf16.mxu0 0
  %7886 = vmatpush1.bf16.msra.mxu0 %v116
  %7887 = vmatprep.subr.bf16.mxu0 0
  %7888 = vmatpush1.bf16.msra.mxu0 %v117
  %7889 = vmatprep.subr.bf16.mxu0 0
  %7890 = vmatpush1.bf16.msra.mxu0 %v118
  %7891 = vmatprep.subr.bf16.mxu0 0
  %7892 = vmatpush1.bf16.msra.mxu0 %v119
  %7893 = vmatprep.subr.bf16.mxu0 0
  %7894 = vmatpush1.bf16.msra.mxu0 0
  %7895 = vmatprep.subr.bf16.mxu0 0
  %7896 = vmatpush1.bf16.msra.mxu0 0
  %7897 = vmatprep.subr.bf16.mxu0 0
  %7898 = vmatpush1.bf16.msra.mxu0 0
  %7899 = vmatprep.subr.bf16.mxu0 0
  %7900 = vmatpush1.bf16.msra.mxu0 0
  %7901 = vmatprep.subr.bf16.mxu0 0
  %7902 = vmatpush1.bf16.msra.mxu0 0
  %7903 = vmatprep.subr.bf16.mxu0 0
  %7904 = vmatpush1.bf16.msra.mxu0 0
  %7905 = vmatprep.mubr.bf16.mxu0 %v7871
  %7906 = vmatmul.mubr.bf16.gmra.mrb[0].mxu0 %v7867
  %v7907 = vpop.f32.mrb[0].mxu0
  %v7908 = vadd.f32 0.0, %v7907
  %v7909 = vpop.f32.mrb[0].mxu0
  %v7910 = vpop.f32.mrb[0].mxu0
  %v7911 = vpop.f32.mrb[0].mxu0
  %7912 = vdwg.mxu0
  %v7913 = vmax.f32 %v7861, %v7908
  %v7914 = vadd.f32 %v7913, %v331
  %v7915 = vmax.f32 %v7914, 0.0
  %v7916 = vpack.c.bf16 %v7915, %v7915
  %s7917 = scalar_lea.vmem %s6, 1536
  %v7918 = vld [vmem:[%s7917] sm:$0xf]
  %v7919 = vld [vmem:[%s7917 + $0x4] sm:$0xf]
  %v7920 = vld [vmem:[%s7917 + $0x8] sm:$0xf]
  %v7921 = vld [vmem:[%s7917 + $0xc] sm:$0xf]
  %v7922 = vld [vmem:[%s7917 + $0x10] sm:$0xf]
  %v7923 = vld [vmem:[%s7917 + $0x14] sm:$0xf]
  %v7924 = vld [vmem:[%s7917 + $0x18] sm:$0xf]
  %v7925 = vld [vmem:[%s7917 + $0x1c] sm:$0xf]
  %v7926 = vld [vmem:[%s7917 + $0x20] sm:$0xf]
  %v7927 = vld [vmem:[%s7917 + $0x24] sm:$0xf]
  %v7928 = vld [vmem:[%s7917 + $0x28] sm:$0xf]
  %v7929 = vld [vmem:[%s7917 + $0x2c] sm:$0xf]
  %v7930 = vld [vmem:[%s7917 + $0x30] sm:$0xf]
  %v7931 = vld [vmem:[%s7917 + $0x34] sm:$0xf]
  %v7932 = vld [vmem:[%s7917 + $0x38] sm:$0xf]
  %v7933 = vld [vmem:[%s7917 + $0x3c] sm:$0xf]
  %v7950 = vunpack.c.l.b16 %v7918
  %v7951 = vunpack.c.l.b16 %v7919
  %v7952 = vunpack.c.l.b16 %v7920
  %v7953 = vunpack.c.l.b16 %v7921
  %v7954 = vunpack.c.l.b16 %v7922
  %v7955 = vunpack.c.l.b16 %v7923
  %v7956 = vunpack.c.l.b16 %v7924
  %v7957 = vunpack.c.l.b16 %v7925
  %v7958 = vunpack.c.l.b16 %v7926
  %v7959 = vunpack.c.l.b16 %v7927
  %v7960 = vunpack.c.l.b16 %v7928
  %v7961 = vunpack.c.l.b16 %v7929
  %v7962 = vunpack.c.l.b16 %v7930
  %v7963 = vunpack.c.l.b16 %v7931
  %v7964 = vunpack.c.l.b16 %v7932
  %v7965 = vunpack.c.l.b16 %v7933
  %v7966 = vpack.c.b16 %v7951, %v7950
  %v7967 = vpack.c.b16 %v7953, %v7952
  %v7968 = vpack.c.b16 %v7955, %v7954
  %v7969 = vpack.c.b16 %v7957, %v7956
  %v7970 = vpack.c.b16 %v7959, %v7958
  %v7971 = vpack.c.b16 %v7961, %v7960
  %v7972 = vpack.c.b16 %v7963, %v7962
  %v7973 = vpack.c.b16 %v7965, %v7964
  %7982 = vmatprep.subr.bf16.mxu0 0
  %7983 = vmatpush1.bf16.msra.mxu0 %v7966
  %7984 = vmatprep.subr.bf16.mxu0 0
  %7985 = vmatpush1.bf16.msra.mxu0 %v7967
  %7986 = vmatprep.subr.bf16.mxu0 0
  %7987 = vmatpush1.bf16.msra.mxu0 %v7968
  %7988 = vmatprep.subr.bf16.mxu0 0
  %7989 = vmatpush1.bf16.msra.mxu0 %v7969
  %7990 = vmatprep.subr.bf16.mxu0 0
  %7991 = vmatpush1.bf16.msra.mxu0 %v7970
  %7992 = vmatprep.subr.bf16.mxu0 0
  %7993 = vmatpush1.bf16.msra.mxu0 %v7971
  %7994 = vmatprep.subr.bf16.mxu0 0
  %7995 = vmatpush1.bf16.msra.mxu0 %v7972
  %7996 = vmatprep.subr.bf16.mxu0 0
  %7997 = vmatpush1.bf16.msra.mxu0 %v7973
  %7998 = vmatprep.subr.bf16.mxu0 0
  %7999 = vmatpush1.bf16.msra.mxu0 0
  %8000 = vmatprep.subr.bf16.mxu0 0
  %8001 = vmatpush1.bf16.msra.mxu0 0
  %8002 = vmatprep.subr.bf16.mxu0 0
  %8003 = vmatpush1.bf16.msra.mxu0 0
  %8004 = vmatprep.subr.bf16.mxu0 0
  %8005 = vmatpush1.bf16.msra.mxu0 0
  %8006 = vmatprep.subr.bf16.mxu0 0
  %8007 = vmatpush1.bf16.msra.mxu0 0
  %8008 = vmatprep.subr.bf16.mxu0 0
  %8009 = vmatpush1.bf16.msra.mxu0 0
  %8010 = vmatprep.subr.bf16.mxu0 0
  %8011 = vmatpush1.bf16.msra.mxu0 0
  %8012 = vmatprep.subr.bf16.mxu0 0
  %8013 = vmatpush1.bf16.msra.mxu0 0
  %8014 = vmatprep.mubr.bf16.mxu0 0
  %8015 = vmatmul.mubr.bf16.gmra.mrb[0].mxu0 %v7916
  %v8016 = vpop.f32.mrb[0].mxu0
  %v8017 = vadd.f32 0.0, %v8016
  %v8018 = vpop.f32.mrb[0].mxu0
  %v8019 = vpop.f32.mrb[0].mxu0
  %v8020 = vpop.f32.mrb[0].mxu0
  %8021 = vdwg.mxu0
  %v8022 = vadd.f32 %v7706, %v8017
  %v8023 = vld [vmem:[%s7] sm:$0x1]
  %v8025 = vlaneseq
  %v8026 = vshrl.u32 %v8025, 7
  %v8027 = vsub.s32 0, %v8026
  %v8028 = vrot.slane %v8023, %v8027
  %v8030 = vadd.f32 %v8022, %v8028
  %v8031 = vmax.f32 %v8030, 0.0
  %v8032 = vpack.c.bf16 %v8031, %v8031
  %v8033 = vld [vmem:[%s8] sm:$0xf]
  %v8034 = vld [vmem:[%s8 + $0x4] sm:$0xf]
  %v8035 = vld [vmem:[%s8 + $0x8] sm:$0xf]
  %v8036 = vld [vmem:[%s8 + $0xc] sm:$0xf]
  %v8037 = vld [vmem:[%s8 + $0x10] sm:$0xf]
  %v8038 = vld [vmem:[%s8 + $0x14] sm:$0xf]
  %v8039 = vld [vmem:[%s8 + $0x18] sm:$0xf]
  %v8040 = vld [vmem:[%s8 + $0x1c] sm:$0xf]
  %v8041 = vld [vmem:[%s8 + $0x20] sm:$0xf]
  %v8042 = vld [vmem:[%s8 + $0x24] sm:$0xf]
  %v8043 = vld [vmem:[%s8 + $0x28] sm:$0xf]
  %v8044 = vld [vmem:[%s8 + $0x2c] sm:$0xf]
  %v8045 = vld [vmem:[%s8 + $0x30] sm:$0xf]
  %v8046 = vld [vmem:[%s8 + $0x34] sm:$0xf]
  %v8047 = vld [vmem:[%s8 + $0x38] sm:$0xf]
  %v8048 = vld [vmem:[%s8 + $0x3c] sm:$0xf]
  %v8049 = vld [vmem:[%s9] sm:$0x1]
  %v8051 = vlaneseq
  %v8052 = vshrl.u32 %v8051, 7
  %v8053 = vsub.s32 0, %v8052
  %v8054 = vrot.slane %v8049, %v8053
  %v8072 = vunpack.c.l.b16 %v8033
  %v8073 = vunpack.c.l.b16 %v8034
  %v8074 = vunpack.c.l.b16 %v8035
  %v8075 = vunpack.c.l.b16 %v8036
  %v8076 = vunpack.c.l.b16 %v8037
  %v8077 = vunpack.c.l.b16 %v8038
  %v8078 = vunpack.c.l.b16 %v8039
  %v8079 = vunpack.c.l.b16 %v8040
  %v8080 = vunpack.c.l.b16 %v8041
  %v8081 = vunpack.c.l.b16 %v8042
  %v8082 = vunpack.c.l.b16 %v8043
  %v8083 = vunpack.c.l.b16 %v8044
  %v8084 = vunpack.c.l.b16 %v8045
  %v8085 = vunpack.c.l.b16 %v8046
  %v8086 = vunpack.c.l.b16 %v8047
  %v8087 = vunpack.c.l.b16 %v8048
  %v8088 = vpack.c.b16 %v8073, %v8072
  %v8089 = vpack.c.b16 %v8075, %v8074
  %v8090 = vpack.c.b16 %v8077, %v8076
  %v8091 = vpack.c.b16 %v8079, %v8078
  %v8092 = vpack.c.b16 %v8081, %v8080
  %v8093 = vpack.c.b16 %v8083, %v8082
  %v8094 = vpack.c.b16 %v8085, %v8084
  %v8095 = vpack.c.b16 %v8087, %v8086
  %8104 = vmatprep.subr.bf16.mxu0 0
  %8105 = vmatpush1.bf16.msra.mxu0 %v8088
  %8106 = vmatprep.subr.bf16.mxu0 0
  %8107 = vmatpush1.bf16.msra.mxu0 %v8089
  %8108 = vmatprep.subr.bf16.mxu0 0
  %8109 = vmatpush1.bf16.msra.mxu0 %v8090
  %8110 = vmatprep.subr.bf16.mxu0 0
  %8111 = vmatpush1.bf16.msra.mxu0 %v8091
  %8112 = vmatprep.subr.bf16.mxu0 0
  %8113 = vmatpush1.bf16.msra.mxu0 %v8092
  %8114 = vmatprep.subr.bf16.mxu0 0
  %8115 = vmatpush1.bf16.msra.mxu0 %v8093
  %8116 = vmatprep.subr.bf16.mxu0 0
  %8117 = vmatpush1.bf16.msra.mxu0 %v8094
  %8118 = vmatprep.subr.bf16.mxu0 0
  %8119 = vmatpush1.bf16.msra.mxu0 %v8095
  %8120 = vmatprep.subr.bf16.mxu0 0
  %8121 = vmatpush1.bf16.msra.mxu0 0
  %8122 = vmatprep.subr.bf16.mxu0 0
  %8123 = vmatpush1.bf16.msra.mxu0 0
  %8124 = vmatprep.subr.bf16.mxu0 0
  %8125 = vmatpush1.bf16.msra.mxu0 0
  %8126 = vmatprep.subr.bf16.mxu0 0
  %8127 = vmatpush1.bf16.msra.mxu0 0
  %8128 = vmatprep.subr.bf16.mxu0 0
  %8129 = vmatpush1.bf16.msra.mxu0 0
  %8130 = vmatprep.subr.bf16.mxu0 0
  %8131 = vmatpush1.bf16.msra.mxu0 0
  %8132 = vmatprep.subr.bf16.mxu0 0
  %8133 = vmatpush1.bf16.msra.mxu0 0
  %8134 = vmatprep.subr.bf16.mxu0 0
  %8135 = vmatpush1.bf16.msra.mxu0 0
  %8136 = vmatprep.mubr.bf16.mxu0 0
  %8137 = vmatmul.mubr.bf16.gmra.mrb[0].mxu0 %v8032
  %v8138 = vpop.f32.mrb[0].mxu0
  %v8139 = vadd.f32 %v8054, %v8138
  %v8140 = vpop.f32.mrb[0].mxu0
  %v8141 = vpop.f32.mrb[0].mxu0
  %v8142 = vpop.f32.mrb[0].mxu0
  %8143 = vdwg.mxu0
  %v8144 = vmax.f32 %v8139, 0.0
  %v8145 = vpack.c.bf16 %v8144, %v8144
  %v8146 = vld [vmem:[%s10] sm:$0xf]
  %v8147 = vld [vmem:[%s10 + $0x4] sm:$0xf]
  %v8148 = vld [vmem:[%s10 + $0x8] sm:$0xf]
  %v8149 = vld [vmem:[%s10 + $0xc] sm:$0xf]
  %v8150 = vld [vmem:[%s10 + $0x10] sm:$0xf]
  %v8151 = vld [vmem:[%s10 + $0x14] sm:$0xf]
  %v8152 = vld [vmem:[%s10 + $0x18] sm:$0xf]
  %v8153 = vld [vmem:[%s10 + $0x1c] sm:$0xf]
  %v8154 = vld [vmem:[%s10 + $0x20] sm:$0xf]
  %v8155 = vld [vmem:[%s10 + $0x24] sm:$0xf]
  %v8156 = vld [vmem:[%s10 + $0x28] sm:$0xf]
  %v8157 = vld [vmem:[%s10 + $0x2c] sm:$0xf]
  %v8158 = vld [vmem:[%s10 + $0x30] sm:$0xf]
  %v8159 = vld [vmem:[%s10 + $0x34] sm:$0xf]
  %v8160 = vld [vmem:[%s10 + $0x38] sm:$0xf]
  %v8161 = vld [vmem:[%s10 + $0x3c] sm:$0xf]
  %v8162 = vld [vmem:[%s11] sm:$0x1]
  %v8164 = vlaneseq
  %v8165 = vshrl.u32 %v8164, 7
  %v8166 = vsub.s32 0, %v8165
  %v8167 = vrot.slane %v8162, %v8166
  %v8185 = vunpack.c.l.b16 %v8146
  %v8186 = vunpack.c.l.b16 %v8147
  %v8187 = vunpack.c.l.b16 %v8148
  %v8188 = vunpack.c.l.b16 %v8149
  %v8189 = vunpack.c.l.b16 %v8150
  %v8190 = vunpack.c.l.b16 %v8151
  %v8191 = vunpack.c.l.b16 %v8152
  %v8192 = vunpack.c.l.b16 %v8153
  %v8193 = vunpack.c.l.b16 %v8154
  %v8194 = vunpack.c.l.b16 %v8155
  %v8195 = vunpack.c.l.b16 %v8156
  %v8196 = vunpack.c.l.b16 %v8157
  %v8197 = vunpack.c.l.b16 %v8158
  %v8198 = vunpack.c.l.b16 %v8159
  %v8199 = vunpack.c.l.b16 %v8160
  %v8200 = vunpack.c.l.b16 %v8161
  %v8201 = vpack.c.b16 %v8186, %v8185
  %v8202 = vpack.c.b16 %v8188, %v8187
  %v8203 = vpack.c.b16 %v8190, %v8189
  %v8204 = vpack.c.b16 %v8192, %v8191
  %v8205 = vpack.c.b16 %v8194, %v8193
  %v8206 = vpack.c.b16 %v8196, %v8195
  %v8207 = vpack.c.b16 %v8198, %v8197
  %v8208 = vpack.c.b16 %v8200, %v8199
  %8217 = vmatprep.subr.bf16.mxu0 0
  %8218 = vmatpush1.bf16.msra.mxu0 %v8201
  %8219 = vmatprep.subr.bf16.mxu0 0
  %8220 = vmatpush1.bf16.msra.mxu0 %v8202
  %8221 = vmatprep.subr.bf16.mxu0 0
  %8222 = vmatpush1.bf16.msra.mxu0 %v8203
  %8223 = vmatprep.subr.bf16.mxu0 0
  %8224 = vmatpush1.bf16.msra.mxu0 %v8204
  %8225 = vmatprep.subr.bf16.mxu0 0
  %8226 = vmatpush1.bf16.msra.mxu0 %v8205
  %8227 = vmatprep.subr.bf16.mxu0 0
  %8228 = vmatpush1.bf16.msra.mxu0 %v8206
  %8229 = vmatprep.subr.bf16.mxu0 0
  %8230 = vmatpush1.bf16.msra.mxu0 %v8207
  %8231 = vmatprep.subr.bf16.mxu0 0
  %8232 = vmatpush1.bf16.msra.mxu0 %v8208
  %8233 = vmatprep.subr.bf16.mxu0 0
  %8234 = vmatpush1.bf16.msra.mxu0 0
  %8235 = vmatprep.subr.bf16.mxu0 0
  %8236 = vmatpush1.bf16.msra.mxu0 0
  %8237 = vmatprep.subr.bf16.mxu0 0
  %8238 = vmatpush1.bf16.msra.mxu0 0
  %8239 = vmatprep.subr.bf16.mxu0 0
  %8240 = vmatpush1.bf16.msra.mxu0 0
  %8241 = vmatprep.subr.bf16.mxu0 0
  %8242 = vmatpush1.bf16.msra.mxu0 0
  %8243 = vmatprep.subr.bf16.mxu0 0
  %8244 = vmatpush1.bf16.msra.mxu0 0
  %8245 = vmatprep.subr.bf16.mxu0 0
  %8246 = vmatpush1.bf16.msra.mxu0 0
  %8247 = vmatprep.subr.bf16.mxu0 0
  %8248 = vmatpush1.bf16.msra.mxu0 0
  %8249 = vmatprep.mubr.bf16.mxu0 0
  %8250 = vmatmul.mubr.bf16.gmra.mrb[0].mxu0 %v8145
  %v8251 = vpop.f32.mrb[0].mxu0
  %v8252 = vadd.f32 %v8167, %v8251
  %v8253 = vpop.f32.mrb[0].mxu0
  %v8254 = vpop.f32.mrb[0].mxu0
  %v8255 = vpop.f32.mrb[0].mxu0
  %8256 = vdwg.mxu0
  %8257 = vst [vmem:[%s12] sm:$0xff] %v8252
  // Predicated region
  $region50: #{tennet_forward.3} parent=0 // pred_check
    _
  $region51: #{tennet_forward.3} parent=0 // pred_check_branch
    %8259 = sbr.rel (0) target = $region53
  $region52: #{tennet_forward.3} parent=0 // pred_region
    _
  $region53: #{tennet_forward.3} parent=0 // pred_fallthru
    _
  // Predicated region
  $region54: #{tennet_forward.3} parent=0 // pred_check
    _
  $region55: #{tennet_forward.3} parent=0 // pred_check_branch
    %8261 = sbr.rel (0) target = $region57
  $region56: #{tennet_forward.3} parent=0 // pred_region
    _
  $region57: #{tennet_forward.3} parent=0 // pred_fallthru
    _

</llo_original>
